<compile_context>
chip_gen: v7x
topology: tpu7x:2x2x1
jax: 0.10.0
libtpu: 0.0.40
codegen_flags: <defaults>
</compile_context>

<pallas_src>
import functools

import jax
import jax.numpy as jnp
from jax.experimental import pallas as pl
from jax.experimental.pallas import tpu as pltpu


def _fused_kernel(xr_ref, xd_ref, gbr_ref, gbd_ref,
                  w1r, b1r, w2r, b2r, w3r, w4r, b4r,
                  w1d, b1d, w2d, b2d, w3d, w4d, b4d,
                  o_ref, *, hw):
    """One grid step processes `imgs` whole images (tile_n = imgs*hw pixels)."""
    tile_n = xr_ref.shape[0]
    imgs = tile_n // hw

    def branch(x_ref, gb_ref, w1, b1, w2, b2, w3a, w4, b4):
        # resnet compressor: conv1 + ReLU ; conv2 + ReLU   (1x1 convs == matmuls)
        x = x_ref[...].astype(jnp.bfloat16)                               # (tile_n, C_in)
        h = jnp.dot(x, w1[...], preferred_element_type=jnp.float32) + b1[...]
        h = jnp.maximum(h, 0.0)
        h = jnp.dot(h.astype(jnp.bfloat16), w2[...],
                    preferred_element_type=jnp.float32) + b2[...]
        h = jnp.maximum(h, 0.0)                                           # (tile_n, 32)
        # combiner conv1 on cat([compressed, goal]) is split as
        #   h @ W3[:32]  +  (emb @ W3[32:] + b3)
        # where the second term is constant per image -> precomputed `gb`.
        h = jnp.dot(h.astype(jnp.bfloat16), w3a[...],
                    preferred_element_type=jnp.float32)                   # (tile_n, 128)
        c0 = h.shape[-1]
        h = h.reshape(imgs, hw, c0) + gb_ref[...]                         # + (imgs, 1, 128)
        h = jnp.maximum(h, 0.0).reshape(tile_n, c0)
        # combiner conv2 (no ReLU, matches the nn.Sequential)
        return jnp.dot(h.astype(jnp.bfloat16), w4[...],
                       preferred_element_type=jnp.float32) + b4[...]      # (tile_n, 32)

    out_r = branch(xr_ref, gbr_ref, w1r, b1r, w2r, b2r, w3r, w4r, b4r)
    out_d = branch(xd_ref, gbd_ref, w1d, b1d, w2d, b2d, w3d, w4d, b4d)
    c1 = out_r.shape[-1]
    o_ref[:, :c1] = out_r.astype(o_ref.dtype)       # fused 64-lane output block
    o_ref[:, c1:] = out_d.astype(o_ref.dtype)


def _prep_branch_weights(branch_params):
    """Split combiner conv1 weight; cast matmul weights to bf16 once (tiny)."""
    w1, b1, w2, b2, w3, b3, w4, b4 = branch_params
    h1d = w2.shape[1]
    w3a, w3b = w3[:h1d], w3[h1d:]
    bf = jnp.bfloat16
    kernel_args = (w1.astype(bf), b1.reshape(1, -1),
                   w2.astype(bf), b2.reshape(1, -1),
                   w3a.astype(bf),
                   w4.astype(bf), b4.reshape(1, -1))
    return kernel_args, w3b, b3


def fused_dual_branch(xr, xd, gbr, gbd, args_r, args_d, *, hw, imgs_per_tile):
    """xr/xd: (Bp*hw, C) pixel-major; gbr/gbd: (Bp, 1, 128) per-image goal
    contribution (combiner bias folded in).  Returns (Bp*hw, 2*c_out) f32."""
    n, c_in = xr.shape
    tile_n = imgs_per_tile * hw
    c0 = gbr.shape[-1]
    c1 = args_r[-2].shape[-1]   # combiner conv2 out channels (32)

    row_spec = lambda width: pl.BlockSpec((tile_n, width), lambda i: (i, 0))
    gb_spec = pl.BlockSpec((imgs_per_tile, 1, c0), lambda i: (i, 0, 0))
    const_spec = lambda a: pl.BlockSpec(a.shape, lambda i: (0,) * a.ndim)

    in_specs = ([row_spec(c_in), row_spec(c_in), gb_spec, gb_spec]
                + [const_spec(a) for a in args_r]
                + [const_spec(a) for a in args_d])

    return pl.pallas_call(
        functools.partial(_fused_kernel, hw=hw),
        out_shape=jax.ShapeDtypeStruct((n, 2 * c1), jnp.float32),
        grid=(n // tile_n,),
        in_specs=in_specs,
        out_specs=row_spec(2 * c1),
        compiler_params=pltpu.CompilerParams(
            dimension_semantics=("parallel",)),
    )(xr, xd, gbr, gbd, *args_r, *args_d)


def resnet_dual_tensor_goal_encoder(rgb, depth, goal, params, *,
                                    target_tile_rows=1024):
    """rgb/depth: (nstep, nsampler, C, H, W) NCHW; goal: (nstep, nsampler) int."""
    nstep, nsampler = rgb.shape[:2]
    c_in, h, w = rgb.shape[-3:]
    b = nstep * nsampler
    hw = h * w
    # TODO(synk): pad H*W up to a multiple of 8 for the free in-kernel
    # per-image reshape when the resnet tensor is e.g. 7x7.
    assert hw % 8 == 0, "H*W must be a multiple of 8 for this kernel"

    # goal embedding lookup (nn.Embedding for Discrete goal space) -- glue.
    emb = jnp.take(params["goal_embedding"],
                   goal.reshape(b).astype(jnp.int32), axis=0)             # (B, GE)

    # per-branch weight prep + per-image goal contribution of combiner conv1.
    args_r, w3b_r, b3_r = _prep_branch_weights(params["rgb"])
    args_d, w3b_d, b3_d = _prep_branch_weights(params["depth"])
    gbr = (emb @ w3b_r + b3_r)[:, None, :]                                # (B, 1, 128)
    gbd = (emb @ w3b_d + b3_d)[:, None, :]

    # NCHW -> pixel-major (B, HW, C): the only large XLA transposes left.
    # TODO(synk): fold this transpose into the kernel (channels-major compute)
    # to save one HBM round trip per input stream.
    def to_pixels(x):
        return jnp.transpose(x.reshape(b, c_in, hw), (0, 2, 1))           # (B, HW, C)

    xr = to_pixels(rgb)
    xd = to_pixels(depth)

    # image-aligned tiling; pad the batch so tiles never straddle it and the
    # grid never drops a partial tile.
    imgs_per_tile = max(1, min(b, target_tile_rows // hw))
    n_tiles = pl.cdiv(b, imgs_per_tile)
    bp = n_tiles * imgs_per_tile
    if bp != b:
        pad = ((0, bp - b), (0, 0), (0, 0))
        xr, xd, gbr, gbd = (jnp.pad(a, pad) for a in (xr, xd, gbr, gbd))

    out = fused_dual_branch(xr.reshape(bp * hw, c_in),
                            xd.reshape(bp * hw, c_in),
                            gbr, gbd, args_r, args_d,
                            hw=hw, imgs_per_tile=imgs_per_tile)           # (Bp*HW, 64)

    c_out2 = out.shape[-1]
    out = out.reshape(bp, hw, c_out2)[:b]                                 # (B, HW, 64)
    # pixel-major -> torch NCHW flatten order: per image
    # [rgb ch0..31 over (H,W), depth ch0..31 over (H,W)].
    out = jnp.transpose(out, (0, 2, 1)).reshape(b, c_out2 * hw)
    # adapt_output (use_agent=False): (nstep, nsampler*nagent, -1)
    return out.reshape(nstep, nsampler, -1)


def _init_params(key, c_in, goal_n, goal_embed_dims=32,
                 resnet_hid=(128, 32), comb_hid=(128, 32)):
    keys = jax.random.split(key, 32)
    k = iter(keys)

    def wgt(shape, kk):
        return jax.random.normal(kk, shape, jnp.float32) * 0.02

    def branch():
        return (
            wgt((c_in, resnet_hid[0]), next(k)),                  # compressor conv1 W
            wgt((resnet_hid[0],), next(k)),                       # compressor conv1 b
            wgt((resnet_hid[0], resnet_hid[1]), next(k)),         # compressor conv2 W
            wgt((resnet_hid[1],), next(k)),                       # compressor conv2 b
            wgt((resnet_hid[1] + goal_embed_dims, comb_hid[0]), next(k)),  # combiner conv1 W
            wgt((comb_hid[0],), next(k)),                         # combiner conv1 b
            wgt((comb_hid[0], comb_hid[1]), next(k)),             # combiner conv2 W
            wgt((comb_hid[1],), next(k)),                         # combiner conv2 b
        )

    return {
        "goal_embedding": wgt((goal_n, goal_embed_dims), next(k)),
        "rgb": branch(),
        "depth": branch(),
    }


def _branch_ref(x_nc, goal_nc, branch_params):
    w1, b1, w2, b2, w3, b3, w4, b4 = branch_params
    hh = jnp.maximum(x_nc @ w1 + b1, 0.0)
    hh = jnp.maximum(hh @ w2 + b2, 0.0)
    hh = jnp.maximum(jnp.concatenate([hh, goal_nc], axis=-1) @ w3 + b3, 0.0)
    return hh @ w4 + b4


if __name__ == "__main__":
    key = jax.random.PRNGKey(0)
    k_rgb, k_depth, k_goal, k_param = jax.random.split(key, 4)

    # small but representative shapes: B = nstep*nsampler = 32 images,
    # resnet tensor (64, 8, 8) -> N = 2048 pixel rows, tile = 1024, grid = 2.
    nstep, nsampler = 4, 8
    c_in, h, w = 64, 8, 8
    n_goal_classes = 10

    rgb = jax.random.normal(k_rgb, (nstep, nsampler, c_in, h, w), jnp.float32)
    depth = jax.random.normal(k_depth, (nstep, nsampler, c_in, h, w), jnp.float32)
    goal = jax.random.randint(k_goal, (nstep, nsampler), 0, n_goal_classes, jnp.int32)

    params = _init_params(k_param, c_in, n_goal_classes)

    fwd = jax.jit(resnet_dual_tensor_goal_encoder)
    out = jax.block_until_ready(fwd(rgb, depth, goal, params))

    # pure-JAX f32 reference (exact module math) for a sanity check.
    b = nstep * nsampler
    n = b * h * w
    ge = params["goal_embedding"].shape[-1]
    emb = jnp.take(params["goal_embedding"], goal.reshape(b), axis=0)
    goal_nc = jnp.broadcast_to(emb[:, None, None, :], (b, h, w, ge)).reshape(n, ge)
    to_pix = lambda x: jnp.transpose(x.reshape(b, c_in, h * w), (0, 2, 1)).reshape(n, c_in)
    to_flat = lambda o: jnp.transpose(o.reshape(b, h * w, -1), (0, 2, 1)).reshape(b, -1)
    ref = jnp.concatenate(
        [to_flat(_branch_ref(to_pix(rgb), goal_nc, params["rgb"])),
         to_flat(_branch_ref(to_pix(depth), goal_nc, params["depth"]))],
        axis=1).reshape(nstep, nsampler, -1)

    assert out.shape == (nstep, nsampler, 2 * 32 * h * w), out.shape
    err = float(jnp.max(jnp.abs(out - ref)))
    assert jnp.allclose(out, ref, atol=2e-3, rtol=2e-2), err
    print("KERNEL_OK")
</pallas_src>

<mosaic_0001>
module attributes {stable_mosaic.version = 11 : i64} {
  func.func @_fused_kernel(%arg0: i32, %arg1: memref<1024x64xf32, #tpu.memory_space<vmem>>, %arg2: memref<1024x64xf32, #tpu.memory_space<vmem>>, %arg3: memref<16x1x128xf32, #tpu.memory_space<vmem>>, %arg4: memref<16x1x128xf32, #tpu.memory_space<vmem>>, %arg5: memref<64x128xbf16, #tpu.memory_space<vmem>>, %arg6: memref<1x128xf32, #tpu.memory_space<vmem>>, %arg7: memref<128x32xbf16, #tpu.memory_space<vmem>>, %arg8: memref<1x32xf32, #tpu.memory_space<vmem>>, %arg9: memref<32x128xbf16, #tpu.memory_space<vmem>>, %arg10: memref<128x32xbf16, #tpu.memory_space<vmem>>, %arg11: memref<1x32xf32, #tpu.memory_space<vmem>>, %arg12: memref<64x128xbf16, #tpu.memory_space<vmem>>, %arg13: memref<1x128xf32, #tpu.memory_space<vmem>>, %arg14: memref<128x32xbf16, #tpu.memory_space<vmem>>, %arg15: memref<1x32xf32, #tpu.memory_space<vmem>>, %arg16: memref<32x128xbf16, #tpu.memory_space<vmem>>, %arg17: memref<128x32xbf16, #tpu.memory_space<vmem>>, %arg18: memref<1x32xf32, #tpu.memory_space<vmem>>, %arg19: memref<1024x64xf32, #tpu.memory_space<vmem>>) attributes {dimension_semantics = [#tpu.dimension_semantics<parallel>], iteration_bounds = array<i64: 2>, scalar_prefetch = 0 : i64, scratch_operands = 0 : i64, tpu.core_type = #tpu.core_type<tc>, window_params = [{transform_indices = @transform_0, window_bounds = array<i64: 1024, 64>}, {transform_indices = @transform_1, window_bounds = array<i64: 1024, 64>}, {transform_indices = @transform_2, window_bounds = array<i64: 16, 1, 128>}, {transform_indices = @transform_3, window_bounds = array<i64: 16, 1, 128>}, {pipeline_mode = #tpu.pipeline_mode<synchronous>, transform_indices = @transform_4, window_bounds = array<i64: 64, 128>}, {pipeline_mode = #tpu.pipeline_mode<synchronous>, transform_indices = @transform_5, window_bounds = array<i64: 1, 128>}, {pipeline_mode = #tpu.pipeline_mode<synchronous>, transform_indices = @transform_6, window_bounds = array<i64: 128, 32>}, {pipeline_mode = #tpu.pipeline_mode<synchronous>, transform_indices = @transform_7, window_bounds = array<i64: 1, 32>}, {pipeline_mode = #tpu.pipeline_mode<synchronous>, transform_indices = @transform_8, window_bounds = array<i64: 32, 128>}, {pipeline_mode = #tpu.pipeline_mode<synchronous>, transform_indices = @transform_9, window_bounds = array<i64: 128, 32>}, {pipeline_mode = #tpu.pipeline_mode<synchronous>, transform_indices = @transform_10, window_bounds = array<i64: 1, 32>}, {pipeline_mode = #tpu.pipeline_mode<synchronous>, transform_indices = @transform_11, window_bounds = array<i64: 64, 128>}, {pipeline_mode = #tpu.pipeline_mode<synchronous>, transform_indices = @transform_12, window_bounds = array<i64: 1, 128>}, {pipeline_mode = #tpu.pipeline_mode<synchronous>, transform_indices = @transform_13, window_bounds = array<i64: 128, 32>}, {pipeline_mode = #tpu.pipeline_mode<synchronous>, transform_indices = @transform_14, window_bounds = array<i64: 1, 32>}, {pipeline_mode = #tpu.pipeline_mode<synchronous>, transform_indices = @transform_15, window_bounds = array<i64: 32, 128>}, {pipeline_mode = #tpu.pipeline_mode<synchronous>, transform_indices = @transform_16, window_bounds = array<i64: 128, 32>}, {pipeline_mode = #tpu.pipeline_mode<synchronous>, transform_indices = @transform_17, window_bounds = array<i64: 1, 32>}, {transform_indices = @transform_18, window_bounds = array<i64: 1024, 64>}]} {
    %c0 = arith.constant 0 : index
    %c0_0 = arith.constant 0 : index
    %0 = vector.load %arg1[%c0, %c0_0] : memref<1024x64xf32, #tpu.memory_space<vmem>>, vector<1024x64xf32>
    %1 = arith.truncf %0 : vector<1024x64xf32> to vector<1024x64xbf16>
    %c0_1 = arith.constant 0 : index
    %c0_2 = arith.constant 0 : index
    %2 = vector.load %arg5[%c0_1, %c0_2] : memref<64x128xbf16, #tpu.memory_space<vmem>>, vector<64x128xbf16>
    %cst = arith.constant dense<0.000000e+00> : vector<1024x128xf32>
    %3 = tpu.matmul %1, %2, %cst {dimension_numbers = #tpu.dot_dimension_numbers<[1], [0], [0], [1], [0, 0, 1, 1], [], []>} : vector<1024x64xbf16>, vector<64x128xbf16>, vector<1024x128xf32> -> vector<1024x128xf32>
    %c0_3 = arith.constant 0 : index
    %c0_4 = arith.constant 0 : index
    %4 = vector.load %arg6[%c0_3, %c0_4] : memref<1x128xf32, #tpu.memory_space<vmem>>, vector<1x128xf32>
    %5 = vector.broadcast %4 : vector<1x128xf32> to vector<1024x128xf32>
    %6 = arith.addf %3, %5 : vector<1024x128xf32>
    %cst_5 = arith.constant 0.000000e+00 : f32
    %7 = vector.broadcast %cst_5 : f32 to vector<1024x128xf32>
    %8 = arith.maximumf %6, %7 : vector<1024x128xf32>
    %9 = arith.truncf %8 : vector<1024x128xf32> to vector<1024x128xbf16>
    %c0_6 = arith.constant 0 : index
    %c0_7 = arith.constant 0 : index
    %10 = vector.load %arg7[%c0_6, %c0_7] : memref<128x32xbf16, #tpu.memory_space<vmem>>, vector<128x32xbf16>
    %cst_8 = arith.constant dense<0.000000e+00> : vector<1024x32xf32>
    %11 = tpu.matmul %9, %10, %cst_8 {dimension_numbers = #tpu.dot_dimension_numbers<[1], [0], [0], [1], [0, 0, 1, 1], [], []>} : vector<1024x128xbf16>, vector<128x32xbf16>, vector<1024x32xf32> -> vector<1024x32xf32>
    %c0_9 = arith.constant 0 : index
    %c0_10 = arith.constant 0 : index
    %12 = vector.load %arg8[%c0_9, %c0_10] : memref<1x32xf32, #tpu.memory_space<vmem>>, vector<1x32xf32>
    %13 = vector.broadcast %12 : vector<1x32xf32> to vector<1024x32xf32>
    %14 = arith.addf %11, %13 : vector<1024x32xf32>
    %cst_11 = arith.constant 0.000000e+00 : f32
    %15 = vector.broadcast %cst_11 : f32 to vector<1024x32xf32>
    %16 = arith.maximumf %14, %15 : vector<1024x32xf32>
    %17 = arith.truncf %16 : vector<1024x32xf32> to vector<1024x32xbf16>
    %c0_12 = arith.constant 0 : index
    %c0_13 = arith.constant 0 : index
    %18 = vector.load %arg9[%c0_12, %c0_13] : memref<32x128xbf16, #tpu.memory_space<vmem>>, vector<32x128xbf16>
    %cst_14 = arith.constant dense<0.000000e+00> : vector<1024x128xf32>
    %19 = tpu.matmul %17, %18, %cst_14 {dimension_numbers = #tpu.dot_dimension_numbers<[1], [0], [0], [1], [0, 0, 1, 1], [], []>} : vector<1024x32xbf16>, vector<32x128xbf16>, vector<1024x128xf32> -> vector<1024x128xf32>
    %20 = vector.shape_cast %19 : vector<1024x128xf32> to vector<16x64x128xf32>
    %c0_15 = arith.constant 0 : index
    %c0_16 = arith.constant 0 : index
    %c0_17 = arith.constant 0 : index
    %21 = vector.load %arg3[%c0_15, %c0_16, %c0_17] : memref<16x1x128xf32, #tpu.memory_space<vmem>>, vector<16x1x128xf32>
    %22 = vector.broadcast %21 : vector<16x1x128xf32> to vector<16x64x128xf32>
    %23 = arith.addf %20, %22 : vector<16x64x128xf32>
    %cst_18 = arith.constant 0.000000e+00 : f32
    %24 = vector.broadcast %cst_18 : f32 to vector<16x64x128xf32>
    %25 = arith.maximumf %23, %24 : vector<16x64x128xf32>
    %26 = vector.shape_cast %25 : vector<16x64x128xf32> to vector<1024x128xf32>
    %27 = arith.truncf %26 : vector<1024x128xf32> to vector<1024x128xbf16>
    %c0_19 = arith.constant 0 : index
    %c0_20 = arith.constant 0 : index
    %28 = vector.load %arg10[%c0_19, %c0_20] : memref<128x32xbf16, #tpu.memory_space<vmem>>, vector<128x32xbf16>
    %cst_21 = arith.constant dense<0.000000e+00> : vector<1024x32xf32>
    %29 = tpu.matmul %27, %28, %cst_21 {dimension_numbers = #tpu.dot_dimension_numbers<[1], [0], [0], [1], [0, 0, 1, 1], [], []>} : vector<1024x128xbf16>, vector<128x32xbf16>, vector<1024x32xf32> -> vector<1024x32xf32>
    %c0_22 = arith.constant 0 : index
    %c0_23 = arith.constant 0 : index
    %30 = vector.load %arg11[%c0_22, %c0_23] : memref<1x32xf32, #tpu.memory_space<vmem>>, vector<1x32xf32>
    %31 = vector.broadcast %30 : vector<1x32xf32> to vector<1024x32xf32>
    %32 = arith.addf %29, %31 : vector<1024x32xf32>
    %c0_24 = arith.constant 0 : index
    %c0_25 = arith.constant 0 : index
    %33 = vector.load %arg2[%c0_24, %c0_25] : memref<1024x64xf32, #tpu.memory_space<vmem>>, vector<1024x64xf32>
    %34 = arith.truncf %33 : vector<1024x64xf32> to vector<1024x64xbf16>
    %c0_26 = arith.constant 0 : index
    %c0_27 = arith.constant 0 : index
    %35 = vector.load %arg12[%c0_26, %c0_27] : memref<64x128xbf16, #tpu.memory_space<vmem>>, vector<64x128xbf16>
    %cst_28 = arith.constant dense<0.000000e+00> : vector<1024x128xf32>
    %36 = tpu.matmul %34, %35, %cst_28 {dimension_numbers = #tpu.dot_dimension_numbers<[1], [0], [0], [1], [0, 0, 1, 1], [], []>} : vector<1024x64xbf16>, vector<64x128xbf16>, vector<1024x128xf32> -> vector<1024x128xf32>
    %c0_29 = arith.constant 0 : index
    %c0_30 = arith.constant 0 : index
    %37 = vector.load %arg13[%c0_29, %c0_30] : memref<1x128xf32, #tpu.memory_space<vmem>>, vector<1x128xf32>
    %38 = vector.broadcast %37 : vector<1x128xf32> to vector<1024x128xf32>
    %39 = arith.addf %36, %38 : vector<1024x128xf32>
    %cst_31 = arith.constant 0.000000e+00 : f32
    %40 = vector.broadcast %cst_31 : f32 to vector<1024x128xf32>
    %41 = arith.maximumf %39, %40 : vector<1024x128xf32>
    %42 = arith.truncf %41 : vector<1024x128xf32> to vector<1024x128xbf16>
    %c0_32 = arith.constant 0 : index
    %c0_33 = arith.constant 0 : index
    %43 = vector.load %arg14[%c0_32, %c0_33] : memref<128x32xbf16, #tpu.memory_space<vmem>>, vector<128x32xbf16>
    %cst_34 = arith.constant dense<0.000000e+00> : vector<1024x32xf32>
    %44 = tpu.matmul %42, %43, %cst_34 {dimension_numbers = #tpu.dot_dimension_numbers<[1], [0], [0], [1], [0, 0, 1, 1], [], []>} : vector<1024x128xbf16>, vector<128x32xbf16>, vector<1024x32xf32> -> vector<1024x32xf32>
    %c0_35 = arith.constant 0 : index
    %c0_36 = arith.constant 0 : index
    %45 = vector.load %arg15[%c0_35, %c0_36] : memref<1x32xf32, #tpu.memory_space<vmem>>, vector<1x32xf32>
    %46 = vector.broadcast %45 : vector<1x32xf32> to vector<1024x32xf32>
    %47 = arith.addf %44, %46 : vector<1024x32xf32>
    %cst_37 = arith.constant 0.000000e+00 : f32
    %48 = vector.broadcast %cst_37 : f32 to vector<1024x32xf32>
    %49 = arith.maximumf %47, %48 : vector<1024x32xf32>
    %50 = arith.truncf %49 : vector<1024x32xf32> to vector<1024x32xbf16>
    %c0_38 = arith.constant 0 : index
    %c0_39 = arith.constant 0 : index
    %51 = vector.load %arg16[%c0_38, %c0_39] : memref<32x128xbf16, #tpu.memory_space<vmem>>, vector<32x128xbf16>
    %cst_40 = arith.constant dense<0.000000e+00> : vector<1024x128xf32>
    %52 = tpu.matmul %50, %51, %cst_40 {dimension_numbers = #tpu.dot_dimension_numbers<[1], [0], [0], [1], [0, 0, 1, 1], [], []>} : vector<1024x32xbf16>, vector<32x128xbf16>, vector<1024x128xf32> -> vector<1024x128xf32>
    %53 = vector.shape_cast %52 : vector<1024x128xf32> to vector<16x64x128xf32>
    %c0_41 = arith.constant 0 : index
    %c0_42 = arith.constant 0 : index
    %c0_43 = arith.constant 0 : index
    %54 = vector.load %arg4[%c0_41, %c0_42, %c0_43] : memref<16x1x128xf32, #tpu.memory_space<vmem>>, vector<16x1x128xf32>
    %55 = vector.broadcast %54 : vector<16x1x128xf32> to vector<16x64x128xf32>
    %56 = arith.addf %53, %55 : vector<16x64x128xf32>
    %cst_44 = arith.constant 0.000000e+00 : f32
    %57 = vector.broadcast %cst_44 : f32 to vector<16x64x128xf32>
    %58 = arith.maximumf %56, %57 : vector<16x64x128xf32>
    %59 = vector.shape_cast %58 : vector<16x64x128xf32> to vector<1024x128xf32>
    %60 = arith.truncf %59 : vector<1024x128xf32> to vector<1024x128xbf16>
    %c0_45 = arith.constant 0 : index
    %c0_46 = arith.constant 0 : index
    %61 = vector.load %arg17[%c0_45, %c0_46] : memref<128x32xbf16, #tpu.memory_space<vmem>>, vector<128x32xbf16>
    %cst_47 = arith.constant dense<0.000000e+00> : vector<1024x32xf32>
    %62 = tpu.matmul %60, %61, %cst_47 {dimension_numbers = #tpu.dot_dimension_numbers<[1], [0], [0], [1], [0, 0, 1, 1], [], []>} : vector<1024x128xbf16>, vector<128x32xbf16>, vector<1024x32xf32> -> vector<1024x32xf32>
    %c0_48 = arith.constant 0 : index
    %c0_49 = arith.constant 0 : index
    %63 = vector.load %arg18[%c0_48, %c0_49] : memref<1x32xf32, #tpu.memory_space<vmem>>, vector<1x32xf32>
    %64 = vector.broadcast %63 : vector<1x32xf32> to vector<1024x32xf32>
    %65 = arith.addf %62, %64 : vector<1024x32xf32>
    %c0_50 = arith.constant 0 : index
    %c0_51 = arith.constant 0 : index
    %66 = vector.load %arg19[%c0_50, %c0_51] : memref<1024x64xf32, #tpu.memory_space<vmem>>, vector<1024x32xf32>
    tpu.vector_store %arg19[%c0_50, %c0_51], %32 {strides = array<i32>} : memref<1024x64xf32, #tpu.memory_space<vmem>>, vector<1024x32xf32>,
    %c0_52 = arith.constant 0 : index
    %c32 = arith.constant 32 : index
    %67 = vector.load %arg19[%c0_52, %c32] : memref<1024x64xf32, #tpu.memory_space<vmem>>, vector<1024x32xf32>
    tpu.vector_store %arg19[%c0_52, %c32], %65 {strides = array<i32>} : memref<1024x64xf32, #tpu.memory_space<vmem>>, vector<1024x32xf32>,
    return
  }
  func.func @transform_0(%arg0: i32) -> (i32, i32) {
    %c0_i32 = arith.constant 0 : i32
    %c0_i32_0 = arith.constant 0 : i32
    return %arg0, %c0_i32 : i32, i32
  }
  func.func @transform_1(%arg0: i32) -> (i32, i32) {
    %c0_i32 = arith.constant 0 : i32
    %c0_i32_0 = arith.constant 0 : i32
    return %arg0, %c0_i32 : i32, i32
  }
  func.func @transform_2(%arg0: i32) -> (i32, i32, i32) {
    %c0_i32 = arith.constant 0 : i32
    %c0_i32_0 = arith.constant 0 : i32
    %c0_i32_1 = arith.constant 0 : i32
    return %arg0, %c0_i32, %c0_i32_0 : i32, i32, i32
  }
  func.func @transform_3(%arg0: i32) -> (i32, i32, i32) {
    %c0_i32 = arith.constant 0 : i32
    %c0_i32_0 = arith.constant 0 : i32
    %c0_i32_1 = arith.constant 0 : i32
    return %arg0, %c0_i32, %c0_i32_0 : i32, i32, i32
  }
  func.func @transform_4(%arg0: i32) -> (i32, i32) {
    %c0_i32 = arith.constant 0 : i32
    %c0_i32_0 = arith.constant 0 : i32
    %c0_i32_1 = arith.constant 0 : i32
    return %c0_i32, %c0_i32_0 : i32, i32
  }
  func.func @transform_5(%arg0: i32) -> (i32, i32) {
    %c0_i32 = arith.constant 0 : i32
    %c0_i32_0 = arith.constant 0 : i32
    %c0_i32_1 = arith.constant 0 : i32
    return %c0_i32, %c0_i32_0 : i32, i32
  }
  func.func @transform_6(%arg0: i32) -> (i32, i32) {
    %c0_i32 = arith.constant 0 : i32
    %c0_i32_0 = arith.constant 0 : i32
    %c0_i32_1 = arith.constant 0 : i32
    return %c0_i32, %c0_i32_0 : i32, i32
  }
  func.func @transform_7(%arg0: i32) -> (i32, i32) {
    %c0_i32 = arith.constant 0 : i32
    %c0_i32_0 = arith.constant 0 : i32
    %c0_i32_1 = arith.constant 0 : i32
    return %c0_i32, %c0_i32_0 : i32, i32
  }
  func.func @transform_8(%arg0: i32) -> (i32, i32) {
    %c0_i32 = arith.constant 0 : i32
    %c0_i32_0 = arith.constant 0 : i32
    %c0_i32_1 = arith.constant 0 : i32
    return %c0_i32, %c0_i32_0 : i32, i32
  }
  func.func @transform_9(%arg0: i32) -> (i32, i32) {
    %c0_i32 = arith.constant 0 : i32
    %c0_i32_0 = arith.constant 0 : i32
    %c0_i32_1 = arith.constant 0 : i32
    return %c0_i32, %c0_i32_0 : i32, i32
  }
  func.func @transform_10(%arg0: i32) -> (i32, i32) {
    %c0_i32 = arith.constant 0 : i32
    %c0_i32_0 = arith.constant 0 : i32
    %c0_i32_1 = arith.constant 0 : i32
    return %c0_i32, %c0_i32_0 : i32, i32
  }
  func.func @transform_11(%arg0: i32) -> (i32, i32) {
    %c0_i32 = arith.constant 0 : i32
    %c0_i32_0 = arith.constant 0 : i32
    %c0_i32_1 = arith.constant 0 : i32
    return %c0_i32, %c0_i32_0 : i32, i32
  }
  func.func @transform_12(%arg0: i32) -> (i32, i32) {
    %c0_i32 = arith.constant 0 : i32
    %c0_i32_0 = arith.constant 0 : i32
    %c0_i32_1 = arith.constant 0 : i32
    return %c0_i32, %c0_i32_0 : i32, i32
  }
  func.func @transform_13(%arg0: i32) -> (i32, i32) {
    %c0_i32 = arith.constant 0 : i32
    %c0_i32_0 = arith.constant 0 : i32
    %c0_i32_1 = arith.constant 0 : i32
    return %c0_i32, %c0_i32_0 : i32, i32
  }
  func.func @transform_14(%arg0: i32) -> (i32, i32) {
    %c0_i32 = arith.constant 0 : i32
    %c0_i32_0 = arith.constant 0 : i32
    %c0_i32_1 = arith.constant 0 : i32
    return %c0_i32, %c0_i32_0 : i32, i32
  }
  func.func @transform_15(%arg0: i32) -> (i32, i32) {
    %c0_i32 = arith.constant 0 : i32
    %c0_i32_0 = arith.constant 0 : i32
    %c0_i32_1 = arith.constant 0 : i32
    return %c0_i32, %c0_i32_0 : i32, i32
  }
  func.func @transform_16(%arg0: i32) -> (i32, i32) {
    %c0_i32 = arith.constant 0 : i32
    %c0_i32_0 = arith.constant 0 : i32
    %c0_i32_1 = arith.constant 0 : i32
    return %c0_i32, %c0_i32_0 : i32, i32
  }
  func.func @transform_17(%arg0: i32) -> (i32, i32) {
    %c0_i32 = arith.constant 0 : i32
    %c0_i32_0 = arith.constant 0 : i32
    %c0_i32_1 = arith.constant 0 : i32
    return %c0_i32, %c0_i32_0 : i32, i32
  }
  func.func @transform_18(%arg0: i32) -> (i32, i32) {
    %c0_i32 = arith.constant 0 : i32
    %c0_i32_0 = arith.constant 0 : i32
    return %arg0, %c0_i32 : i32, i32
  }
}

</mosaic_0001>

<llo_original>
// kernel: resnet_dual_tensor_goal_encoder.1
$region0: #{resnet_dual_tensor_goal_encoder.1}
  #allocation0 [shape = 'u32[]', space=smem, size = 0x4, offset = 0x4, fixed_abs, tag = 'smem constant byte address 0x4 - core index']
  #allocation1 [shape = 'u32[144,128]{1,0:T(1,128)}', space=vmem, size = 0x12000, scoped, tag = 'internal scratch']
  %s0 = inlined_call_operand.hbm [shape: f32[2048,64], index: 0, kind: input, shape index: {}]
  %s1 = inlined_call_operand.hbm [shape: f32[2048,64], index: 1, kind: input, shape index: {}]
  %s2 = inlined_call_operand.vmem [shape: f32[32,1,128], index: 2, kind: input, shape index: {}]
  %s3 = inlined_call_operand.vmem [shape: f32[32,1,128], index: 3, kind: input, shape index: {}]
  %s4 = inlined_call_operand.vmem [shape: bf16[64,128], index: 4, kind: input, shape index: {}]
  %s5 = inlined_call_operand.vmem [shape: f32[1,128], index: 5, kind: input, shape index: {}]
  %s6 = inlined_call_operand.vmem [shape: bf16[128,32], index: 6, kind: input, shape index: {}]
  %s7 = inlined_call_operand.vmem [shape: f32[1,32], index: 7, kind: input, shape index: {}]
  %s8 = inlined_call_operand.vmem [shape: bf16[32,128], index: 8, kind: input, shape index: {}]
  %s9 = inlined_call_operand.vmem [shape: bf16[128,32], index: 9, kind: input, shape index: {}]
  %s10 = inlined_call_operand.vmem [shape: f32[1,32], index: 10, kind: input, shape index: {}]
  %s11 = inlined_call_operand.vmem [shape: bf16[64,128], index: 11, kind: input, shape index: {}]
  %s12 = inlined_call_operand.vmem [shape: f32[1,128], index: 12, kind: input, shape index: {}]
  %s13 = inlined_call_operand.vmem [shape: bf16[128,32], index: 13, kind: input, shape index: {}]
  %s14 = inlined_call_operand.vmem [shape: f32[1,32], index: 14, kind: input, shape index: {}]
  %s15 = inlined_call_operand.vmem [shape: bf16[32,128], index: 15, kind: input, shape index: {}]
  %s16 = inlined_call_operand.vmem [shape: bf16[128,32], index: 16, kind: input, shape index: {}]
  %s17 = inlined_call_operand.vmem [shape: f32[1,32], index: 17, kind: input, shape index: {}]
  %s18 = inlined_call_operand.vmem [shape: f32[2048,64], index: 18, kind: output, shape index: {}]
  %s19 = sld [smem:[#allocation0]]
  $region113: #{resnet_dual_tensor_goal_encoder.1} parent=0
    _
  %s21 = ssub.s32 1, %s19
  %s22 = scalar_select 0, %s21, %s19
  $region1: #{resnet_dual_tensor_goal_encoder.1} parent=0
    #allocation2 [shape = 'u8[1048576]{0}', space=vmem, size = 0x100000, scoped, tag = 'input window, operand 0']
    #allocation3 [shape = 's32[2]{0}', space=sflag, size = 0x8, scoped, tag = 'scoped memory for resnet_dual_tensor_goal_encoder.1']
    #allocation4 [shape = 'u8[1048576]{0}', space=vmem, size = 0x100000, scoped, tag = 'input window, operand 1']
    #allocation5 [shape = 's32[2]{0}', space=sflag, size = 0x8, scoped, tag = 'scoped memory for resnet_dual_tensor_goal_encoder.1']
    %23 = vsyncpa [#allocation3], 0
    %s24 = scalar_lea.sflag [#allocation3], 1
    %25 = vsyncpa %s24, 0
    %26 = vsyncpa [#allocation5], 0
    %s27 = scalar_lea.sflag [#allocation5], 1
    %28 = vsyncpa %s27, 0
    loop: start=0, step=1, limit=4
    $region2: #{resnet_dual_tensor_goal_encoder.1} parent=1 // loop_pre_header
      _
    $region3: #{resnet_dual_tensor_goal_encoder.1} parent=1 // loop_header
      %s30 = sphi 0, %s34
      %p31 = scmp.ge.s32.totalorder %s30, 4
      %s40 = sphi 0, %s42
      %s43 = sphi 0, %s40
      %s44 = sphi 0, %s43
      %s60 = sphi 0, %s44
      %s66 = sphi 0, %s68
      %s69 = sphi 0, %s66
      %s70 = sphi 0, %s69
      %s86 = sphi 0, %s70
      %s92 = sphi 0, %s94
      %s95 = sphi 0, %s92
      %s96 = sphi 0, %s95
      %s112 = sphi 0, %s96
      %s118 = sphi 0, %s120
      %s121 = sphi 0, %s118
      %s122 = sphi 0, %s121
      %s138 = sphi 0, %s122
      %s142 = sphi 0, %s142
      %s144 = sphi 0, %s142
      %s145 = sphi 0, %s144
      %s159 = sphi 0, %s145
      %s163 = sphi 0, %s163
      %s165 = sphi 0, %s163
      %s166 = sphi 0, %s165
      %s180 = sphi 0, %s166
      %s184 = sphi 0, %s184
      %s186 = sphi 0, %s184
      %s187 = sphi 0, %s186
      %s201 = sphi 0, %s187
      %s205 = sphi 0, %s205
      %s207 = sphi 0, %s205
      %s208 = sphi 0, %s207
      %s222 = sphi 0, %s208
      %s226 = sphi 0, %s226
      %s228 = sphi 0, %s226
      %s229 = sphi 0, %s228
      %s243 = sphi 0, %s229
      %s247 = sphi 0, %s247
      %s249 = sphi 0, %s247
      %s250 = sphi 0, %s249
      %s264 = sphi 0, %s250
      %s268 = sphi 0, %s268
      %s270 = sphi 0, %s268
      %s271 = sphi 0, %s270
      %s285 = sphi 0, %s271
      %s289 = sphi 0, %s289
      %s291 = sphi 0, %s289
      %s292 = sphi 0, %s291
      %s306 = sphi 0, %s292
      %s310 = sphi 0, %s310
      %s312 = sphi 0, %s310
      %s313 = sphi 0, %s312
      %s327 = sphi 0, %s313
      %s331 = sphi 0, %s331
      %s333 = sphi 0, %s331
      %s334 = sphi 0, %s333
      %s348 = sphi 0, %s334
      %s352 = sphi 0, %s352
      %s354 = sphi 0, %s352
      %s355 = sphi 0, %s354
      %s369 = sphi 0, %s355
      %s373 = sphi 0, %s373
      %s375 = sphi 0, %s373
      %s376 = sphi 0, %s375
      %s390 = sphi 0, %s376
      %s394 = sphi 0, %s394
      %s396 = sphi 0, %s394
      %s397 = sphi 0, %s396
      %s411 = sphi 0, %s397
      %s415 = sphi 0, %s415
      %s417 = sphi 0, %s415
      %s418 = sphi 0, %s417
      %s432 = sphi 0, %s418
      %s438 = sphi 0, %s440
      %s441 = sphi 0, %s438
      %s442 = sphi 0, %s441
      %s458 = sphi 0, %s442
    $region4: #{resnet_dual_tensor_goal_encoder.1} parent=1 // loop_header_branch
      %33 = sbr.rel (%p31) target = $region8
    $region5: #{resnet_dual_tensor_goal_encoder.1} parent=1 // loop_body
      %s35 = ssub.s32 %s30, 1
      %s36 = ssub.s32 %s30, 2
      %s37 = sadd.s32 %s30, 1
      %s38 = ssub.s32 %s30, %s37
      %p39 = scmp.eq.s32.totalorder %s38, 0
      %s41 = sadd.s32 %s40, 1
      %s42 = scalar_select %p39, %s40, %s41
      %p45 = pneg %p39
      %p46 = scmp.eq.s32.totalorder %s30, 1
      %p47 = por %p45, %p46
      %p48 = scmp.ne.s32.totalorder %s40, %s43
      %p49 = scmp.eq.s32.totalorder %s30, 0
      %p50 = por %p48, %p49
      %p51 = scmp.ne.s32.totalorder %s40, %s43
      %p52 = scmp.eq.s32.totalorder %s35, 1
      %p53 = por %p51, %p52
      %p54 = scmp.ne.s32.totalorder %s43, %s44
      %p55 = scmp.eq.s32.totalorder %s35, 0
      %p56 = por %p54, %p55
      %p57 = scmp.ne.s32.totalorder %s43, %s44
      %p58 = scmp.eq.s32.totalorder %s36, 1
      %p59 = por %p57, %p58
      %p61 = scmp.ne.s32.totalorder %s44, %s60
      %p62 = scmp.eq.s32.totalorder %s36, 0
      %p63 = por %p61, %p62
      %s64 = ssub.s32 %s30, %s37
      %p65 = scmp.eq.s32.totalorder %s64, 0
      %s67 = sadd.s32 %s66, 1
      %s68 = scalar_select %p65, %s66, %s67
      %p71 = pneg %p65
      %p72 = scmp.eq.s32.totalorder %s30, 1
      %p73 = por %p71, %p72
      %p74 = scmp.ne.s32.totalorder %s66, %s69
      %p75 = scmp.eq.s32.totalorder %s30, 0
      %p76 = por %p74, %p75
      %p77 = scmp.ne.s32.totalorder %s66, %s69
      %p78 = scmp.eq.s32.totalorder %s35, 1
      %p79 = por %p77, %p78
      %p80 = scmp.ne.s32.totalorder %s69, %s70
      %p81 = scmp.eq.s32.totalorder %s35, 0
      %p82 = por %p80, %p81
      %p83 = scmp.ne.s32.totalorder %s69, %s70
      %p84 = scmp.eq.s32.totalorder %s36, 1
      %p85 = por %p83, %p84
      %p87 = scmp.ne.s32.totalorder %s70, %s86
      %p88 = scmp.eq.s32.totalorder %s36, 0
      %p89 = por %p87, %p88
      %s90 = ssub.s32 %s30, %s37
      %p91 = scmp.eq.s32.totalorder %s90, 0
      %s93 = sadd.s32 %s92, 1
      %s94 = scalar_select %p91, %s92, %s93
      %p97 = pneg %p91
      %p98 = scmp.eq.s32.totalorder %s30, 1
      %p99 = por %p97, %p98
      %p100 = scmp.ne.s32.totalorder %s92, %s95
      %p101 = scmp.eq.s32.totalorder %s30, 0
      %p102 = por %p100, %p101
      %p103 = scmp.ne.s32.totalorder %s92, %s95
      %p104 = scmp.eq.s32.totalorder %s35, 1
      %p105 = por %p103, %p104
      %p106 = scmp.ne.s32.totalorder %s95, %s96
      %p107 = scmp.eq.s32.totalorder %s35, 0
      %p108 = por %p106, %p107
      %p109 = scmp.ne.s32.totalorder %s95, %s96
      %p110 = scmp.eq.s32.totalorder %s36, 1
      %p111 = por %p109, %p110
      %p113 = scmp.ne.s32.totalorder %s96, %s112
      %p114 = scmp.eq.s32.totalorder %s36, 0
      %p115 = por %p113, %p114
      %s116 = ssub.s32 %s30, %s37
      %p117 = scmp.eq.s32.totalorder %s116, 0
      %s119 = sadd.s32 %s118, 1
      %s120 = scalar_select %p117, %s118, %s119
      %p123 = pneg %p117
      %p124 = scmp.eq.s32.totalorder %s30, 1
      %p125 = por %p123, %p124
      %p126 = scmp.ne.s32.totalorder %s118, %s121
      %p127 = scmp.eq.s32.totalorder %s30, 0
      %p128 = por %p126, %p127
      %p129 = scmp.ne.s32.totalorder %s118, %s121
      %p130 = scmp.eq.s32.totalorder %s35, 1
      %p131 = por %p129, %p130
      %p132 = scmp.ne.s32.totalorder %s121, %s122
      %p133 = scmp.eq.s32.totalorder %s35, 0
      %p134 = por %p132, %p133
      %p135 = scmp.ne.s32.totalorder %s121, %s122
      %p136 = scmp.eq.s32.totalorder %s36, 1
      %p137 = por %p135, %p136
      %p139 = scmp.ne.s32.totalorder %s122, %s138
      %p140 = scmp.eq.s32.totalorder %s36, 0
      %p141 = por %p139, %p140
      %s143 = sadd.s32 %s142, 1
      %p146 = scmp.eq.s32.totalorder %s30, 1
      %p147 = scmp.ne.s32.totalorder %s142, %s144
      %p148 = scmp.eq.s32.totalorder %s30, 0
      %p149 = por %p147, %p148
      %p150 = scmp.ne.s32.totalorder %s142, %s144
      %p151 = scmp.eq.s32.totalorder %s35, 1
      %p152 = por %p150, %p151
      %p153 = scmp.ne.s32.totalorder %s144, %s145
      %p154 = scmp.eq.s32.totalorder %s35, 0
      %p155 = por %p153, %p154
      %p156 = scmp.ne.s32.totalorder %s144, %s145
      %p157 = scmp.eq.s32.totalorder %s36, 1
      %p158 = por %p156, %p157
      %p160 = scmp.ne.s32.totalorder %s145, %s159
      %p161 = scmp.eq.s32.totalorder %s36, 0
      %p162 = por %p160, %p161
      %s164 = sadd.s32 %s163, 1
      %p167 = scmp.eq.s32.totalorder %s30, 1
      %p168 = scmp.ne.s32.totalorder %s163, %s165
      %p169 = scmp.eq.s32.totalorder %s30, 0
      %p170 = por %p168, %p169
      %p171 = scmp.ne.s32.totalorder %s163, %s165
      %p172 = scmp.eq.s32.totalorder %s35, 1
      %p173 = por %p171, %p172
      %p174 = scmp.ne.s32.totalorder %s165, %s166
      %p175 = scmp.eq.s32.totalorder %s35, 0
      %p176 = por %p174, %p175
      %p177 = scmp.ne.s32.totalorder %s165, %s166
      %p178 = scmp.eq.s32.totalorder %s36, 1
      %p179 = por %p177, %p178
      %p181 = scmp.ne.s32.totalorder %s166, %s180
      %p182 = scmp.eq.s32.totalorder %s36, 0
      %p183 = por %p181, %p182
      %s185 = sadd.s32 %s184, 1
      %p188 = scmp.eq.s32.totalorder %s30, 1
      %p189 = scmp.ne.s32.totalorder %s184, %s186
      %p190 = scmp.eq.s32.totalorder %s30, 0
      %p191 = por %p189, %p190
      %p192 = scmp.ne.s32.totalorder %s184, %s186
      %p193 = scmp.eq.s32.totalorder %s35, 1
      %p194 = por %p192, %p193
      %p195 = scmp.ne.s32.totalorder %s186, %s187
      %p196 = scmp.eq.s32.totalorder %s35, 0
      %p197 = por %p195, %p196
      %p198 = scmp.ne.s32.totalorder %s186, %s187
      %p199 = scmp.eq.s32.totalorder %s36, 1
      %p200 = por %p198, %p199
      %p202 = scmp.ne.s32.totalorder %s187, %s201
      %p203 = scmp.eq.s32.totalorder %s36, 0
      %p204 = por %p202, %p203
      %s206 = sadd.s32 %s205, 1
      %p209 = scmp.eq.s32.totalorder %s30, 1
      %p210 = scmp.ne.s32.totalorder %s205, %s207
      %p211 = scmp.eq.s32.totalorder %s30, 0
      %p212 = por %p210, %p211
      %p213 = scmp.ne.s32.totalorder %s205, %s207
      %p214 = scmp.eq.s32.totalorder %s35, 1
      %p215 = por %p213, %p214
      %p216 = scmp.ne.s32.totalorder %s207, %s208
      %p217 = scmp.eq.s32.totalorder %s35, 0
      %p218 = por %p216, %p217
      %p219 = scmp.ne.s32.totalorder %s207, %s208
      %p220 = scmp.eq.s32.totalorder %s36, 1
      %p221 = por %p219, %p220
      %p223 = scmp.ne.s32.totalorder %s208, %s222
      %p224 = scmp.eq.s32.totalorder %s36, 0
      %p225 = por %p223, %p224
      %s227 = sadd.s32 %s226, 1
      %p230 = scmp.eq.s32.totalorder %s30, 1
      %p231 = scmp.ne.s32.totalorder %s226, %s228
      %p232 = scmp.eq.s32.totalorder %s30, 0
      %p233 = por %p231, %p232
      %p234 = scmp.ne.s32.totalorder %s226, %s228
      %p235 = scmp.eq.s32.totalorder %s35, 1
      %p236 = por %p234, %p235
      %p237 = scmp.ne.s32.totalorder %s228, %s229
      %p238 = scmp.eq.s32.totalorder %s35, 0
      %p239 = por %p237, %p238
      %p240 = scmp.ne.s32.totalorder %s228, %s229
      %p241 = scmp.eq.s32.totalorder %s36, 1
      %p242 = por %p240, %p241
      %p244 = scmp.ne.s32.totalorder %s229, %s243
      %p245 = scmp.eq.s32.totalorder %s36, 0
      %p246 = por %p244, %p245
      %s248 = sadd.s32 %s247, 1
      %p251 = scmp.eq.s32.totalorder %s30, 1
      %p252 = scmp.ne.s32.totalorder %s247, %s249
      %p253 = scmp.eq.s32.totalorder %s30, 0
      %p254 = por %p252, %p253
      %p255 = scmp.ne.s32.totalorder %s247, %s249
      %p256 = scmp.eq.s32.totalorder %s35, 1
      %p257 = por %p255, %p256
      %p258 = scmp.ne.s32.totalorder %s249, %s250
      %p259 = scmp.eq.s32.totalorder %s35, 0
      %p260 = por %p258, %p259
      %p261 = scmp.ne.s32.totalorder %s249, %s250
      %p262 = scmp.eq.s32.totalorder %s36, 1
      %p263 = por %p261, %p262
      %p265 = scmp.ne.s32.totalorder %s250, %s264
      %p266 = scmp.eq.s32.totalorder %s36, 0
      %p267 = por %p265, %p266
      %s269 = sadd.s32 %s268, 1
      %p272 = scmp.eq.s32.totalorder %s30, 1
      %p273 = scmp.ne.s32.totalorder %s268, %s270
      %p274 = scmp.eq.s32.totalorder %s30, 0
      %p275 = por %p273, %p274
      %p276 = scmp.ne.s32.totalorder %s268, %s270
      %p277 = scmp.eq.s32.totalorder %s35, 1
      %p278 = por %p276, %p277
      %p279 = scmp.ne.s32.totalorder %s270, %s271
      %p280 = scmp.eq.s32.totalorder %s35, 0
      %p281 = por %p279, %p280
      %p282 = scmp.ne.s32.totalorder %s270, %s271
      %p283 = scmp.eq.s32.totalorder %s36, 1
      %p284 = por %p282, %p283
      %p286 = scmp.ne.s32.totalorder %s271, %s285
      %p287 = scmp.eq.s32.totalorder %s36, 0
      %p288 = por %p286, %p287
      %s290 = sadd.s32 %s289, 1
      %p293 = scmp.eq.s32.totalorder %s30, 1
      %p294 = scmp.ne.s32.totalorder %s289, %s291
      %p295 = scmp.eq.s32.totalorder %s30, 0
      %p296 = por %p294, %p295
      %p297 = scmp.ne.s32.totalorder %s289, %s291
      %p298 = scmp.eq.s32.totalorder %s35, 1
      %p299 = por %p297, %p298
      %p300 = scmp.ne.s32.totalorder %s291, %s292
      %p301 = scmp.eq.s32.totalorder %s35, 0
      %p302 = por %p300, %p301
      %p303 = scmp.ne.s32.totalorder %s291, %s292
      %p304 = scmp.eq.s32.totalorder %s36, 1
      %p305 = por %p303, %p304
      %p307 = scmp.ne.s32.totalorder %s292, %s306
      %p308 = scmp.eq.s32.totalorder %s36, 0
      %p309 = por %p307, %p308
      %s311 = sadd.s32 %s310, 1
      %p314 = scmp.eq.s32.totalorder %s30, 1
      %p315 = scmp.ne.s32.totalorder %s310, %s312
      %p316 = scmp.eq.s32.totalorder %s30, 0
      %p317 = por %p315, %p316
      %p318 = scmp.ne.s32.totalorder %s310, %s312
      %p319 = scmp.eq.s32.totalorder %s35, 1
      %p320 = por %p318, %p319
      %p321 = scmp.ne.s32.totalorder %s312, %s313
      %p322 = scmp.eq.s32.totalorder %s35, 0
      %p323 = por %p321, %p322
      %p324 = scmp.ne.s32.totalorder %s312, %s313
      %p325 = scmp.eq.s32.totalorder %s36, 1
      %p326 = por %p324, %p325
      %p328 = scmp.ne.s32.totalorder %s313, %s327
      %p329 = scmp.eq.s32.totalorder %s36, 0
      %p330 = por %p328, %p329
      %s332 = sadd.s32 %s331, 1
      %p335 = scmp.eq.s32.totalorder %s30, 1
      %p336 = scmp.ne.s32.totalorder %s331, %s333
      %p337 = scmp.eq.s32.totalorder %s30, 0
      %p338 = por %p336, %p337
      %p339 = scmp.ne.s32.totalorder %s331, %s333
      %p340 = scmp.eq.s32.totalorder %s35, 1
      %p341 = por %p339, %p340
      %p342 = scmp.ne.s32.totalorder %s333, %s334
      %p343 = scmp.eq.s32.totalorder %s35, 0
      %p344 = por %p342, %p343
      %p345 = scmp.ne.s32.totalorder %s333, %s334
      %p346 = scmp.eq.s32.totalorder %s36, 1
      %p347 = por %p345, %p346
      %p349 = scmp.ne.s32.totalorder %s334, %s348
      %p350 = scmp.eq.s32.totalorder %s36, 0
      %p351 = por %p349, %p350
      %s353 = sadd.s32 %s352, 1
      %p356 = scmp.eq.s32.totalorder %s30, 1
      %p357 = scmp.ne.s32.totalorder %s352, %s354
      %p358 = scmp.eq.s32.totalorder %s30, 0
      %p359 = por %p357, %p358
      %p360 = scmp.ne.s32.totalorder %s352, %s354
      %p361 = scmp.eq.s32.totalorder %s35, 1
      %p362 = por %p360, %p361
      %p363 = scmp.ne.s32.totalorder %s354, %s355
      %p364 = scmp.eq.s32.totalorder %s35, 0
      %p365 = por %p363, %p364
      %p366 = scmp.ne.s32.totalorder %s354, %s355
      %p367 = scmp.eq.s32.totalorder %s36, 1
      %p368 = por %p366, %p367
      %p370 = scmp.ne.s32.totalorder %s355, %s369
      %p371 = scmp.eq.s32.totalorder %s36, 0
      %p372 = por %p370, %p371
      %s374 = sadd.s32 %s373, 1
      %p377 = scmp.eq.s32.totalorder %s30, 1
      %p378 = scmp.ne.s32.totalorder %s373, %s375
      %p379 = scmp.eq.s32.totalorder %s30, 0
      %p380 = por %p378, %p379
      %p381 = scmp.ne.s32.totalorder %s373, %s375
      %p382 = scmp.eq.s32.totalorder %s35, 1
      %p383 = por %p381, %p382
      %p384 = scmp.ne.s32.totalorder %s375, %s376
      %p385 = scmp.eq.s32.totalorder %s35, 0
      %p386 = por %p384, %p385
      %p387 = scmp.ne.s32.totalorder %s375, %s376
      %p388 = scmp.eq.s32.totalorder %s36, 1
      %p389 = por %p387, %p388
      %p391 = scmp.ne.s32.totalorder %s376, %s390
      %p392 = scmp.eq.s32.totalorder %s36, 0
      %p393 = por %p391, %p392
      %s395 = sadd.s32 %s394, 1
      %p398 = scmp.eq.s32.totalorder %s30, 1
      %p399 = scmp.ne.s32.totalorder %s394, %s396
      %p400 = scmp.eq.s32.totalorder %s30, 0
      %p401 = por %p399, %p400
      %p402 = scmp.ne.s32.totalorder %s394, %s396
      %p403 = scmp.eq.s32.totalorder %s35, 1
      %p404 = por %p402, %p403
      %p405 = scmp.ne.s32.totalorder %s396, %s397
      %p406 = scmp.eq.s32.totalorder %s35, 0
      %p407 = por %p405, %p406
      %p408 = scmp.ne.s32.totalorder %s396, %s397
      %p409 = scmp.eq.s32.totalorder %s36, 1
      %p410 = por %p408, %p409
      %p412 = scmp.ne.s32.totalorder %s397, %s411
      %p413 = scmp.eq.s32.totalorder %s36, 0
      %p414 = por %p412, %p413
      %s416 = sadd.s32 %s415, 1
      %p419 = scmp.eq.s32.totalorder %s30, 1
      %p420 = scmp.ne.s32.totalorder %s415, %s417
      %p421 = scmp.eq.s32.totalorder %s30, 0
      %p422 = por %p420, %p421
      %p423 = scmp.ne.s32.totalorder %s415, %s417
      %p424 = scmp.eq.s32.totalorder %s35, 1
      %p425 = por %p423, %p424
      %p426 = scmp.ne.s32.totalorder %s417, %s418
      %p427 = scmp.eq.s32.totalorder %s35, 0
      %p428 = por %p426, %p427
      %p429 = scmp.ne.s32.totalorder %s417, %s418
      %p430 = scmp.eq.s32.totalorder %s36, 1
      %p431 = por %p429, %p430
      %p433 = scmp.ne.s32.totalorder %s418, %s432
      %p434 = scmp.eq.s32.totalorder %s36, 0
      %p435 = por %p433, %p434
      %s436 = ssub.s32 %s30, %s37
      %p437 = scmp.eq.s32.totalorder %s436, 0
      %s439 = sadd.s32 %s438, 1
      %s440 = scalar_select %p437, %s438, %s439
      %p443 = pneg %p437
      %p444 = scmp.eq.s32.totalorder %s30, 1
      %p445 = por %p443, %p444
      %p446 = scmp.ne.s32.totalorder %s438, %s441
      %p447 = scmp.eq.s32.totalorder %s30, 0
      %p448 = por %p446, %p447
      %p449 = scmp.ne.s32.totalorder %s438, %s441
      %p450 = scmp.eq.s32.totalorder %s35, 1
      %p451 = por %p449, %p450
      %p452 = scmp.ne.s32.totalorder %s441, %s442
      %p453 = scmp.eq.s32.totalorder %s35, 0
      %p454 = por %p452, %p453
      %p455 = scmp.ne.s32.totalorder %s441, %s442
      %p456 = scmp.eq.s32.totalorder %s36, 1
      %p457 = por %p455, %p456
      %p459 = scmp.ne.s32.totalorder %s442, %s458
      %p460 = scmp.eq.s32.totalorder %s36, 0
      %p461 = por %p459, %p460
      %p462 = scmp.le.s32.totalorder 1, %s30
      %p463 = scmp.lt.s32.totalorder %s30, 3
      %p464 = pnand %p462, %p463
      %p465 = pneg %p464
      // Predicated region
      $region9: #{resnet_dual_tensor_goal_encoder.1} parent=5 // pred_check
        _
      $region10: #{resnet_dual_tensor_goal_encoder.1} parent=5 // pred_check_branch
        %467 = sbr.rel (%p464) target = $region12
      $region11: #{resnet_dual_tensor_goal_encoder.1} parent=5 // pred_region
        %s468 = ssub.s32 %s30, 1
        // Predicated region
        $region13: #{resnet_dual_tensor_goal_encoder.1} parent=11 // pred_check
          %p469 = pneg %p155
        $region14: #{resnet_dual_tensor_goal_encoder.1} parent=11 // pred_check_branch
          %471 = sbr.rel (%p469) target = $region16
        $region15: #{resnet_dual_tensor_goal_encoder.1} parent=11 // pred_region
          _
        $region16: #{resnet_dual_tensor_goal_encoder.1} parent=11 // pred_fallthru
          _
        // Predicated region
        $region17: #{resnet_dual_tensor_goal_encoder.1} parent=11 // pred_check
          %p472 = pneg %p176
        $region18: #{resnet_dual_tensor_goal_encoder.1} parent=11 // pred_check_branch
          %474 = sbr.rel (%p472) target = $region20
        $region19: #{resnet_dual_tensor_goal_encoder.1} parent=11 // pred_region
          _
        $region20: #{resnet_dual_tensor_goal_encoder.1} parent=11 // pred_fallthru
          _
        // Predicated region
        $region21: #{resnet_dual_tensor_goal_encoder.1} parent=11 // pred_check
          %p475 = pneg %p197
        $region22: #{resnet_dual_tensor_goal_encoder.1} parent=11 // pred_check_branch
          %477 = sbr.rel (%p475) target = $region24
        $region23: #{resnet_dual_tensor_goal_encoder.1} parent=11 // pred_region
          _
        $region24: #{resnet_dual_tensor_goal_encoder.1} parent=11 // pred_fallthru
          _
        // Predicated region
        $region25: #{resnet_dual_tensor_goal_encoder.1} parent=11 // pred_check
          %p478 = pneg %p218
        $region26: #{resnet_dual_tensor_goal_encoder.1} parent=11 // pred_check_branch
          %480 = sbr.rel (%p478) target = $region28
        $region27: #{resnet_dual_tensor_goal_encoder.1} parent=11 // pred_region
          _
        $region28: #{resnet_dual_tensor_goal_encoder.1} parent=11 // pred_fallthru
          _
        // Predicated region
        $region29: #{resnet_dual_tensor_goal_encoder.1} parent=11 // pred_check
          %p481 = pneg %p239
        $region30: #{resnet_dual_tensor_goal_encoder.1} parent=11 // pred_check_branch
          %483 = sbr.rel (%p481) target = $region32
        $region31: #{resnet_dual_tensor_goal_encoder.1} parent=11 // pred_region
          _
        $region32: #{resnet_dual_tensor_goal_encoder.1} parent=11 // pred_fallthru
          _
        // Predicated region
        $region33: #{resnet_dual_tensor_goal_encoder.1} parent=11 // pred_check
          %p484 = pneg %p260
        $region34: #{resnet_dual_tensor_goal_encoder.1} parent=11 // pred_check_branch
          %486 = sbr.rel (%p484) target = $region36
        $region35: #{resnet_dual_tensor_goal_encoder.1} parent=11 // pred_region
          _
        $region36: #{resnet_dual_tensor_goal_encoder.1} parent=11 // pred_fallthru
          _
        // Predicated region
        $region37: #{resnet_dual_tensor_goal_encoder.1} parent=11 // pred_check
          %p487 = pneg %p281
        $region38: #{resnet_dual_tensor_goal_encoder.1} parent=11 // pred_check_branch
          %489 = sbr.rel (%p487) target = $region40
        $region39: #{resnet_dual_tensor_goal_encoder.1} parent=11 // pred_region
          _
        $region40: #{resnet_dual_tensor_goal_encoder.1} parent=11 // pred_fallthru
          _
        // Predicated region
        $region41: #{resnet_dual_tensor_goal_encoder.1} parent=11 // pred_check
          %p490 = pneg %p302
        $region42: #{resnet_dual_tensor_goal_encoder.1} parent=11 // pred_check_branch
          %492 = sbr.rel (%p490) target = $region44
        $region43: #{resnet_dual_tensor_goal_encoder.1} parent=11 // pred_region
          _
        $region44: #{resnet_dual_tensor_goal_encoder.1} parent=11 // pred_fallthru
          _
        // Predicated region
        $region45: #{resnet_dual_tensor_goal_encoder.1} parent=11 // pred_check
          %p493 = pneg %p323
        $region46: #{resnet_dual_tensor_goal_encoder.1} parent=11 // pred_check_branch
          %495 = sbr.rel (%p493) target = $region48
        $region47: #{resnet_dual_tensor_goal_encoder.1} parent=11 // pred_region
          _
        $region48: #{resnet_dual_tensor_goal_encoder.1} parent=11 // pred_fallthru
          _
        // Predicated region
        $region49: #{resnet_dual_tensor_goal_encoder.1} parent=11 // pred_check
          %p496 = pneg %p344
        $region50: #{resnet_dual_tensor_goal_encoder.1} parent=11 // pred_check_branch
          %498 = sbr.rel (%p496) target = $region52
        $region51: #{resnet_dual_tensor_goal_encoder.1} parent=11 // pred_region
          _
        $region52: #{resnet_dual_tensor_goal_encoder.1} parent=11 // pred_fallthru
          _
        // Predicated region
        $region53: #{resnet_dual_tensor_goal_encoder.1} parent=11 // pred_check
          %p499 = pneg %p365
        $region54: #{resnet_dual_tensor_goal_encoder.1} parent=11 // pred_check_branch
          %501 = sbr.rel (%p499) target = $region56
        $region55: #{resnet_dual_tensor_goal_encoder.1} parent=11 // pred_region
          _
        $region56: #{resnet_dual_tensor_goal_encoder.1} parent=11 // pred_fallthru
          _
        // Predicated region
        $region57: #{resnet_dual_tensor_goal_encoder.1} parent=11 // pred_check
          %p502 = pneg %p386
        $region58: #{resnet_dual_tensor_goal_encoder.1} parent=11 // pred_check_branch
          %504 = sbr.rel (%p502) target = $region60
        $region59: #{resnet_dual_tensor_goal_encoder.1} parent=11 // pred_region
          _
        $region60: #{resnet_dual_tensor_goal_encoder.1} parent=11 // pred_fallthru
          _
        // Predicated region
        $region61: #{resnet_dual_tensor_goal_encoder.1} parent=11 // pred_check
          %p505 = pneg %p407
        $region62: #{resnet_dual_tensor_goal_encoder.1} parent=11 // pred_check_branch
          %507 = sbr.rel (%p505) target = $region64
        $region63: #{resnet_dual_tensor_goal_encoder.1} parent=11 // pred_region
          _
        $region64: #{resnet_dual_tensor_goal_encoder.1} parent=11 // pred_fallthru
          _
        // Predicated region
        $region65: #{resnet_dual_tensor_goal_encoder.1} parent=11 // pred_check
          %p508 = pneg %p428
        $region66: #{resnet_dual_tensor_goal_encoder.1} parent=11 // pred_check_branch
          %510 = sbr.rel (%p508) target = $region68
        $region67: #{resnet_dual_tensor_goal_encoder.1} parent=11 // pred_region
          _
        $region68: #{resnet_dual_tensor_goal_encoder.1} parent=11 // pred_fallthru
          _
      $region12: #{resnet_dual_tensor_goal_encoder.1} parent=5 // pred_fallthru
        _
      %p511 = scmp.lt.s32.totalorder %s30, 2
      // Predicated region
      $region69: #{resnet_dual_tensor_goal_encoder.1} parent=5 // pred_check
        %p512 = pneg %p511
      $region70: #{resnet_dual_tensor_goal_encoder.1} parent=5 // pred_check_branch
        %514 = sbr.rel (%p512) target = $region72
      $region71: #{resnet_dual_tensor_goal_encoder.1} parent=5 // pred_region
        // Predicated region
        $region73: #{resnet_dual_tensor_goal_encoder.1} parent=71 // pred_check
          %p515 = pneg %p50
        $region74: #{resnet_dual_tensor_goal_encoder.1} parent=71 // pred_check_branch
          %517 = sbr.rel (%p515) target = $region76
        $region75: #{resnet_dual_tensor_goal_encoder.1} parent=71 // pred_region
          %s518 = sand.u32 %s40, 1
          %s519 = scalar_lea.sflag [#allocation3], %s518
          %s520 = sand.u32 %s40, 1
          %s521 = smul.addr %s520, 1024
          %s522 = scalar_lea.vmem [#allocation2], %s521
          %s523 = smul.u32 128, %s30
          %s525 = ssub.s32 16384, 16384
          %526 = vsyncadd %s519, %s525
          %s527 = smul.addr %s523, 128
          %s528 = scalar_lea.hbm %s0, %s527
          %s529 = sshll.u32 %s522, 4
          %s530 = int_to_ptr.vmem [resolvable:$true] %s529
          %535 = dma.hbm_to_vmem [thread:$0]  %s528, 16384, %s530, %s519, 128, 128, 8
        $region76: #{resnet_dual_tensor_goal_encoder.1} parent=71 // pred_fallthru
          _
        // Predicated region
        $region77: #{resnet_dual_tensor_goal_encoder.1} parent=71 // pred_check
          %p536 = pneg %p76
        $region78: #{resnet_dual_tensor_goal_encoder.1} parent=71 // pred_check_branch
          %538 = sbr.rel (%p536) target = $region80
        $region79: #{resnet_dual_tensor_goal_encoder.1} parent=71 // pred_region
          %s539 = sand.u32 %s66, 1
          %s540 = scalar_lea.sflag [#allocation5], %s539
          %s541 = sand.u32 %s66, 1
          %s542 = smul.addr %s541, 1024
          %s543 = scalar_lea.vmem [#allocation4], %s542
          %s544 = smul.u32 128, %s30
          %s546 = ssub.s32 16384, 16384
          %547 = vsyncadd %s540, %s546
          %s548 = smul.addr %s544, 128
          %s549 = scalar_lea.hbm %s1, %s548
          %s550 = sshll.u32 %s543, 4
          %s551 = int_to_ptr.vmem [resolvable:$true] %s550
          %556 = dma.hbm_to_vmem [thread:$0]  %s549, 16384, %s551, %s540, 128, 128, 8
        $region80: #{resnet_dual_tensor_goal_encoder.1} parent=71 // pred_fallthru
          _
        // Predicated region
        $region81: #{resnet_dual_tensor_goal_encoder.1} parent=71 // pred_check
          %p557 = pneg %p102
        $region82: #{resnet_dual_tensor_goal_encoder.1} parent=71 // pred_check_branch
          %559 = sbr.rel (%p557) target = $region84
        $region83: #{resnet_dual_tensor_goal_encoder.1} parent=71 // pred_region
          %s560 = smul.u32 16, %s30
          %p561 = scmp.lt.s32.totalorder %s560, 31
          %s562 = scalar_select %p561, %s560, 31
          %s563 = scalar_lea.vmem %s2, %s562
          %s564 = smul.u32 16, %s30
        $region84: #{resnet_dual_tensor_goal_encoder.1} parent=71 // pred_fallthru
          _
        // Predicated region
        $region85: #{resnet_dual_tensor_goal_encoder.1} parent=71 // pred_check
          %p565 = pneg %p128
        $region86: #{resnet_dual_tensor_goal_encoder.1} parent=71 // pred_check_branch
          %567 = sbr.rel (%p565) target = $region88
        $region87: #{resnet_dual_tensor_goal_encoder.1} parent=71 // pred_region
          %s568 = smul.u32 16, %s30
          %p569 = scmp.lt.s32.totalorder %s568, 31
          %s570 = scalar_select %p569, %s568, 31
          %s571 = scalar_lea.vmem %s3, %s570
          %s572 = smul.u32 16, %s30
        $region88: #{resnet_dual_tensor_goal_encoder.1} parent=71 // pred_fallthru
          _
      $region72: #{resnet_dual_tensor_goal_encoder.1} parent=5 // pred_fallthru
        _
      %p573 = scmp.le.s32.totalorder 1, %s30
      %p574 = scmp.lt.s32.totalorder %s30, 3
      %p575 = pnand %p573, %p574
      %p576 = pneg %p575
      // Predicated region
      $region89: #{resnet_dual_tensor_goal_encoder.1} parent=5 // pred_check
        _
      $region90: #{resnet_dual_tensor_goal_encoder.1} parent=5 // pred_check_branch
        %578 = sbr.rel (%p575) target = $region92
      $region91: #{resnet_dual_tensor_goal_encoder.1} parent=5 // pred_region
        %s579 = ssub.s32 %s30, 1
        %s580 = sand.u32 %s43, 1
        %s581 = scalar_lea.sflag [#allocation3], %s580
        %s582 = sand.u32 %s43, 1
        %s583 = smul.addr %s582, 1024
        %s584 = scalar_lea.vmem [#allocation2], %s583
        // Predicated region
        $region93: #{resnet_dual_tensor_goal_encoder.1} parent=91 // pred_check
          %p585 = pneg %p56
        $region94: #{resnet_dual_tensor_goal_encoder.1} parent=91 // pred_check_branch
          %587 = sbr.rel (%p585) target = $region96
        $region95: #{resnet_dual_tensor_goal_encoder.1} parent=91 // pred_region
          %588 = dma.done %s581, 16384
        $region96: #{resnet_dual_tensor_goal_encoder.1} parent=91 // pred_fallthru
          _
        %s589 = sand.u32 %s69, 1
        %s590 = scalar_lea.sflag [#allocation5], %s589
        %s591 = sand.u32 %s69, 1
        %s592 = smul.addr %s591, 1024
        %s593 = scalar_lea.vmem [#allocation4], %s592
        // Predicated region
        $region97: #{resnet_dual_tensor_goal_encoder.1} parent=91 // pred_check
          %p594 = pneg %p82
        $region98: #{resnet_dual_tensor_goal_encoder.1} parent=91 // pred_check_branch
          %596 = sbr.rel (%p594) target = $region100
        $region99: #{resnet_dual_tensor_goal_encoder.1} parent=91 // pred_region
          %597 = dma.done %s590, 16384
        $region100: #{resnet_dual_tensor_goal_encoder.1} parent=91 // pred_fallthru
          _
        %s598 = sand.u32 %s43, 1
        %s599 = scalar_lea.sflag [#allocation3], %s598
        %s600 = sand.u32 %s43, 1
        %s601 = smul.addr %s600, 1024
        %s602 = scalar_lea.vmem [#allocation2], %s601
        %p603 = pneg %p56
        %p604 = pneg %p53
        %s605 = sand.u32 %s69, 1
        %s606 = scalar_lea.sflag [#allocation5], %s605
        %s607 = sand.u32 %s69, 1
        %s608 = smul.addr %s607, 1024
        %s609 = scalar_lea.vmem [#allocation4], %s608
        %p610 = pneg %p82
        %p611 = pneg %p79
        %s612 = smul.u32 16, %s35
        %p613 = scmp.lt.s32.totalorder %s612, 31
        %s614 = scalar_select %p613, %s612, 31
        %s615 = scalar_lea.vmem %s2, %s614
        %p616 = pneg %p108
        %p617 = pneg %p105
        %s618 = smul.u32 16, %s35
        %p619 = scmp.lt.s32.totalorder %s618, 31
        %s620 = scalar_select %p619, %s618, 31
        %s621 = scalar_lea.vmem %s3, %s620
        %p622 = pneg %p134
        %p623 = pneg %p131
        %p624 = pneg %p155
        %p625 = pneg %p152
        %p626 = pneg %p176
        %p627 = pneg %p173
        %p628 = pneg %p197
        %p629 = pneg %p194
        %p630 = pneg %p218
        %p631 = pneg %p215
        %p632 = pneg %p239
        %p633 = pneg %p236
        %p634 = pneg %p260
        %p635 = pneg %p257
        %p636 = pneg %p281
        %p637 = pneg %p278
        %p638 = pneg %p302
        %p639 = pneg %p299
        %p640 = pneg %p323
        %p641 = pneg %p320
        %p642 = pneg %p344
        %p643 = pneg %p341
        %p644 = pneg %p365
        %p645 = pneg %p362
        %p646 = pneg %p386
        %p647 = pneg %p383
        %p648 = pneg %p407
        %p649 = pneg %p404
        %p650 = pneg %p428
        %p651 = pneg %p425
        %p652 = pneg %p454
        %p653 = pneg %p451
        %s654 = smul.u32 128, %s35
        %p655 = scmp.lt.s32.totalorder %s654, 255
        %s656 = scalar_select %p655, %s654, 255
        %s657 = smul.addr %s656, 8
        %s658 = scalar_lea.vmem %s18, %s657
        %s659 = smul.u32 128, %s35
        %s660 = smul.u32 128, %s35
        %s661 = smul.u32 16, %s35
        %p662 = scmp.lt.s32.totalorder %s661, 31
        %s663 = scalar_select %p662, %s661, 31
        %s664 = scalar_lea.vmem %s2, %s663
        %s665 = smul.u32 16, %s35
        %s666 = smul.u32 16, %s35
        %p667 = scmp.lt.s32.totalorder %s666, 31
        %s668 = scalar_select %p667, %s666, 31
        %s669 = scalar_lea.vmem %s3, %s668
        %s670 = smul.u32 16, %s35
        %s671 = smul.u32 128, %s35
        %p672 = scmp.lt.s32.totalorder %s671, 255
        %s673 = scalar_select %p672, %s671, 255
        %s674 = smul.addr %s673, 8
        %s675 = scalar_lea.vmem %s18, %s674
        %s676 = smul.u32 128, %s35
        %v678 = vld [vmem:[%s584] sm:$0xff]
        %v679 = vld [vmem:[%s584 + $0x8] sm:$0xff]
        %v680 = vld [vmem:[%s584 + $0x10] sm:$0xff]
        %v681 = vld [vmem:[%s584 + $0x18] sm:$0xff]
        %v682 = vld [vmem:[%s584 + $0x20] sm:$0xff]
        %v683 = vld [vmem:[%s584 + $0x28] sm:$0xff]
        %v684 = vld [vmem:[%s584 + $0x30] sm:$0xff]
        %v685 = vld [vmem:[%s584 + $0x38] sm:$0xff]
        %v686 = vld [vmem:[%s584 + $0x40] sm:$0xff]
        %v687 = vld [vmem:[%s584 + $0x48] sm:$0xff]
        %v688 = vld [vmem:[%s584 + $0x50] sm:$0xff]
        %v689 = vld [vmem:[%s584 + $0x58] sm:$0xff]
        %v690 = vld [vmem:[%s584 + $0x60] sm:$0xff]
        %v691 = vld [vmem:[%s584 + $0x68] sm:$0xff]
        %v692 = vld [vmem:[%s584 + $0x70] sm:$0xff]
        %v693 = vld [vmem:[%s584 + $0x78] sm:$0xff]
        %v694 = vld [vmem:[%s584 + $0x80] sm:$0xff]
        %v695 = vld [vmem:[%s584 + $0x88] sm:$0xff]
        %v696 = vld [vmem:[%s584 + $0x90] sm:$0xff]
        %v697 = vld [vmem:[%s584 + $0x98] sm:$0xff]
        %v698 = vld [vmem:[%s584 + $0xa0] sm:$0xff]
        %v699 = vld [vmem:[%s584 + $0xa8] sm:$0xff]
        %v700 = vld [vmem:[%s584 + $0xb0] sm:$0xff]
        %v701 = vld [vmem:[%s584 + $0xb8] sm:$0xff]
        %v702 = vld [vmem:[%s584 + $0xc0] sm:$0xff]
        %v703 = vld [vmem:[%s584 + $0xc8] sm:$0xff]
        %v704 = vld [vmem:[%s584 + $0xd0] sm:$0xff]
        %v705 = vld [vmem:[%s584 + $0xd8] sm:$0xff]
        %v706 = vld [vmem:[%s584 + $0xe0] sm:$0xff]
        %v707 = vld [vmem:[%s584 + $0xe8] sm:$0xff]
        %v708 = vld [vmem:[%s584 + $0xf0] sm:$0xff]
        %v709 = vld [vmem:[%s584 + $0xf8] sm:$0xff]
        %v710 = vld [vmem:[%s584 + $0x100] sm:$0xff]
        %v711 = vld [vmem:[%s584 + $0x108] sm:$0xff]
        %v712 = vld [vmem:[%s584 + $0x110] sm:$0xff]
        %v713 = vld [vmem:[%s584 + $0x118] sm:$0xff]
        %v714 = vld [vmem:[%s584 + $0x120] sm:$0xff]
        %v715 = vld [vmem:[%s584 + $0x128] sm:$0xff]
        %v716 = vld [vmem:[%s584 + $0x130] sm:$0xff]
        %v717 = vld [vmem:[%s584 + $0x138] sm:$0xff]
        %v718 = vld [vmem:[%s584 + $0x140] sm:$0xff]
        %v719 = vld [vmem:[%s584 + $0x148] sm:$0xff]
        %v720 = vld [vmem:[%s584 + $0x150] sm:$0xff]
        %v721 = vld [vmem:[%s584 + $0x158] sm:$0xff]
        %v722 = vld [vmem:[%s584 + $0x160] sm:$0xff]
        %v723 = vld [vmem:[%s584 + $0x168] sm:$0xff]
        %v724 = vld [vmem:[%s584 + $0x170] sm:$0xff]
        %v725 = vld [vmem:[%s584 + $0x178] sm:$0xff]
        %v726 = vld [vmem:[%s584 + $0x180] sm:$0xff]
        %v727 = vld [vmem:[%s584 + $0x188] sm:$0xff]
        %v728 = vld [vmem:[%s584 + $0x190] sm:$0xff]
        %v729 = vld [vmem:[%s584 + $0x198] sm:$0xff]
        %v730 = vld [vmem:[%s584 + $0x1a0] sm:$0xff]
        %v731 = vld [vmem:[%s584 + $0x1a8] sm:$0xff]
        %v732 = vld [vmem:[%s584 + $0x1b0] sm:$0xff]
        %v733 = vld [vmem:[%s584 + $0x1b8] sm:$0xff]
        %v734 = vld [vmem:[%s584 + $0x1c0] sm:$0xff]
        %v735 = vld [vmem:[%s584 + $0x1c8] sm:$0xff]
        %v736 = vld [vmem:[%s584 + $0x1d0] sm:$0xff]
        %v737 = vld [vmem:[%s584 + $0x1d8] sm:$0xff]
        %v738 = vld [vmem:[%s584 + $0x1e0] sm:$0xff]
        %v739 = vld [vmem:[%s584 + $0x1e8] sm:$0xff]
        %v740 = vld [vmem:[%s584 + $0x1f0] sm:$0xff]
        %v741 = vld [vmem:[%s584 + $0x1f8] sm:$0xff]
        %v742 = vld [vmem:[%s584 + $0x200] sm:$0xff]
        %v743 = vld [vmem:[%s584 + $0x208] sm:$0xff]
        %v744 = vld [vmem:[%s584 + $0x210] sm:$0xff]
        %v745 = vld [vmem:[%s584 + $0x218] sm:$0xff]
        %v746 = vld [vmem:[%s584 + $0x220] sm:$0xff]
        %v747 = vld [vmem:[%s584 + $0x228] sm:$0xff]
        %v748 = vld [vmem:[%s584 + $0x230] sm:$0xff]
        %v749 = vld [vmem:[%s584 + $0x238] sm:$0xff]
        %v750 = vld [vmem:[%s584 + $0x240] sm:$0xff]
        %v751 = vld [vmem:[%s584 + $0x248] sm:$0xff]
        %v752 = vld [vmem:[%s584 + $0x250] sm:$0xff]
        %v753 = vld [vmem:[%s584 + $0x258] sm:$0xff]
        %v754 = vld [vmem:[%s584 + $0x260] sm:$0xff]
        %v755 = vld [vmem:[%s584 + $0x268] sm:$0xff]
        %v756 = vld [vmem:[%s584 + $0x270] sm:$0xff]
        %v757 = vld [vmem:[%s584 + $0x278] sm:$0xff]
        %v758 = vld [vmem:[%s584 + $0x280] sm:$0xff]
        %v759 = vld [vmem:[%s584 + $0x288] sm:$0xff]
        %v760 = vld [vmem:[%s584 + $0x290] sm:$0xff]
        %v761 = vld [vmem:[%s584 + $0x298] sm:$0xff]
        %v762 = vld [vmem:[%s584 + $0x2a0] sm:$0xff]
        %v763 = vld [vmem:[%s584 + $0x2a8] sm:$0xff]
        %v764 = vld [vmem:[%s584 + $0x2b0] sm:$0xff]
        %v765 = vld [vmem:[%s584 + $0x2b8] sm:$0xff]
        %v766 = vld [vmem:[%s584 + $0x2c0] sm:$0xff]
        %v767 = vld [vmem:[%s584 + $0x2c8] sm:$0xff]
        %v768 = vld [vmem:[%s584 + $0x2d0] sm:$0xff]
        %v769 = vld [vmem:[%s584 + $0x2d8] sm:$0xff]
        %v770 = vld [vmem:[%s584 + $0x2e0] sm:$0xff]
        %v771 = vld [vmem:[%s584 + $0x2e8] sm:$0xff]
        %v772 = vld [vmem:[%s584 + $0x2f0] sm:$0xff]
        %v773 = vld [vmem:[%s584 + $0x2f8] sm:$0xff]
        %v774 = vld [vmem:[%s584 + $0x300] sm:$0xff]
        %v775 = vld [vmem:[%s584 + $0x308] sm:$0xff]
        %v776 = vld [vmem:[%s584 + $0x310] sm:$0xff]
        %v777 = vld [vmem:[%s584 + $0x318] sm:$0xff]
        %v778 = vld [vmem:[%s584 + $0x320] sm:$0xff]
        %v779 = vld [vmem:[%s584 + $0x328] sm:$0xff]
        %v780 = vld [vmem:[%s584 + $0x330] sm:$0xff]
        %v781 = vld [vmem:[%s584 + $0x338] sm:$0xff]
        %v782 = vld [vmem:[%s584 + $0x340] sm:$0xff]
        %v783 = vld [vmem:[%s584 + $0x348] sm:$0xff]
        %v784 = vld [vmem:[%s584 + $0x350] sm:$0xff]
        %v785 = vld [vmem:[%s584 + $0x358] sm:$0xff]
        %v786 = vld [vmem:[%s584 + $0x360] sm:$0xff]
        %v787 = vld [vmem:[%s584 + $0x368] sm:$0xff]
        %v788 = vld [vmem:[%s584 + $0x370] sm:$0xff]
        %v789 = vld [vmem:[%s584 + $0x378] sm:$0xff]
        %v790 = vld [vmem:[%s584 + $0x380] sm:$0xff]
        %v791 = vld [vmem:[%s584 + $0x388] sm:$0xff]
        %v792 = vld [vmem:[%s584 + $0x390] sm:$0xff]
        %v793 = vld [vmem:[%s584 + $0x398] sm:$0xff]
        %v794 = vld [vmem:[%s584 + $0x3a0] sm:$0xff]
        %v795 = vld [vmem:[%s584 + $0x3a8] sm:$0xff]
        %v796 = vld [vmem:[%s584 + $0x3b0] sm:$0xff]
        %v797 = vld [vmem:[%s584 + $0x3b8] sm:$0xff]
        %v798 = vld [vmem:[%s584 + $0x3c0] sm:$0xff]
        %v799 = vld [vmem:[%s584 + $0x3c8] sm:$0xff]
        %v800 = vld [vmem:[%s584 + $0x3d0] sm:$0xff]
        %v801 = vld [vmem:[%s584 + $0x3d8] sm:$0xff]
        %v802 = vld [vmem:[%s584 + $0x3e0] sm:$0xff]
        %v803 = vld [vmem:[%s584 + $0x3e8] sm:$0xff]
        %v804 = vld [vmem:[%s584 + $0x3f0] sm:$0xff]
        %v805 = vld [vmem:[%s584 + $0x3f8] sm:$0xff]
        %v806 = vpack.c.bf16 %v679, %v678
        %v807 = vpack.c.bf16 %v681, %v680
        %v808 = vpack.c.bf16 %v683, %v682
        %v809 = vpack.c.bf16 %v685, %v684
        %v810 = vpack.c.bf16 %v687, %v686
        %v811 = vpack.c.bf16 %v689, %v688
        %v812 = vpack.c.bf16 %v691, %v690
        %v813 = vpack.c.bf16 %v693, %v692
        %v814 = vpack.c.bf16 %v695, %v694
        %v815 = vpack.c.bf16 %v697, %v696
        %v816 = vpack.c.bf16 %v699, %v698
        %v817 = vpack.c.bf16 %v701, %v700
        %v818 = vpack.c.bf16 %v703, %v702
        %v819 = vpack.c.bf16 %v705, %v704
        %v820 = vpack.c.bf16 %v707, %v706
        %v821 = vpack.c.bf16 %v709, %v708
        %v822 = vpack.c.bf16 %v711, %v710
        %v823 = vpack.c.bf16 %v713, %v712
        %v824 = vpack.c.bf16 %v715, %v714
        %v825 = vpack.c.bf16 %v717, %v716
        %v826 = vpack.c.bf16 %v719, %v718
        %v827 = vpack.c.bf16 %v721, %v720
        %v828 = vpack.c.bf16 %v723, %v722
        %v829 = vpack.c.bf16 %v725, %v724
        %v830 = vpack.c.bf16 %v727, %v726
        %v831 = vpack.c.bf16 %v729, %v728
        %v832 = vpack.c.bf16 %v731, %v730
        %v833 = vpack.c.bf16 %v733, %v732
        %v834 = vpack.c.bf16 %v735, %v734
        %v835 = vpack.c.bf16 %v737, %v736
        %v836 = vpack.c.bf16 %v739, %v738
        %v837 = vpack.c.bf16 %v741, %v740
        %v838 = vpack.c.bf16 %v743, %v742
        %v839 = vpack.c.bf16 %v745, %v744
        %v840 = vpack.c.bf16 %v747, %v746
        %v841 = vpack.c.bf16 %v749, %v748
        %v842 = vpack.c.bf16 %v751, %v750
        %v843 = vpack.c.bf16 %v753, %v752
        %v844 = vpack.c.bf16 %v755, %v754
        %v845 = vpack.c.bf16 %v757, %v756
        %v846 = vpack.c.bf16 %v759, %v758
        %v847 = vpack.c.bf16 %v761, %v760
        %v848 = vpack.c.bf16 %v763, %v762
        %v849 = vpack.c.bf16 %v765, %v764
        %v850 = vpack.c.bf16 %v767, %v766
        %v851 = vpack.c.bf16 %v769, %v768
        %v852 = vpack.c.bf16 %v771, %v770
        %v853 = vpack.c.bf16 %v773, %v772
        %v854 = vpack.c.bf16 %v775, %v774
        %v855 = vpack.c.bf16 %v777, %v776
        %v856 = vpack.c.bf16 %v779, %v778
        %v857 = vpack.c.bf16 %v781, %v780
        %v858 = vpack.c.bf16 %v783, %v782
        %v859 = vpack.c.bf16 %v785, %v784
        %v860 = vpack.c.bf16 %v787, %v786
        %v861 = vpack.c.bf16 %v789, %v788
        %v862 = vpack.c.bf16 %v791, %v790
        %v863 = vpack.c.bf16 %v793, %v792
        %v864 = vpack.c.bf16 %v795, %v794
        %v865 = vpack.c.bf16 %v797, %v796
        %v866 = vpack.c.bf16 %v799, %v798
        %v867 = vpack.c.bf16 %v801, %v800
        %v868 = vpack.c.bf16 %v803, %v802
        %v869 = vpack.c.bf16 %v805, %v804
        %v870 = vld [vmem:[%s4] sm:$0xf]
        %v871 = vld [vmem:[%s4 + $0x4] sm:$0xf]
        %v872 = vld [vmem:[%s4 + $0x8] sm:$0xf]
        %v873 = vld [vmem:[%s4 + $0xc] sm:$0xf]
        %v874 = vld [vmem:[%s4 + $0x10] sm:$0xf]
        %v875 = vld [vmem:[%s4 + $0x14] sm:$0xf]
        %v876 = vld [vmem:[%s4 + $0x18] sm:$0xf]
        %v877 = vld [vmem:[%s4 + $0x1c] sm:$0xf]
        %v878 = vld [vmem:[%s5] sm:$0x1]
        %v880 = vlaneseq
        %v881 = vshrl.u32 %v880, 7
        %v882 = vsub.s32 0, %v881
        %v883 = vrot.slane %v878, %v882
        %v893 = vunpack.c.l.b16 %v870
        %v894 = vunpack.c.l.b16 %v871
        %v895 = vunpack.c.l.b16 %v872
        %v896 = vunpack.c.l.b16 %v873
        %v897 = vunpack.c.l.b16 %v874
        %v898 = vunpack.c.l.b16 %v875
        %v899 = vunpack.c.l.b16 %v876
        %v900 = vunpack.c.l.b16 %v877
        %v901 = vpack.c.b16 %v894, %v893
        %v902 = vpack.c.b16 %v896, %v895
        %v903 = vpack.c.b16 %v898, %v897
        %v904 = vpack.c.b16 %v900, %v899
        %vm909 = vcmask 523264
        %v911 = vsel %vm909, %v806, 0
        %v914 = vsel %vm909, %v807, 0
        %v917 = vsel %vm909, %v808, 0
        %v920 = vsel %vm909, %v809, 0
        %v923 = vsel %vm909, %v810, 0
        %v926 = vsel %vm909, %v811, 0
        %v929 = vsel %vm909, %v812, 0
        %v932 = vsel %vm909, %v813, 0
        %v935 = vsel %vm909, %v814, 0
        %v938 = vsel %vm909, %v815, 0
        %v941 = vsel %vm909, %v816, 0
        %v944 = vsel %vm909, %v817, 0
        %v947 = vsel %vm909, %v818, 0
        %v950 = vsel %vm909, %v819, 0
        %v953 = vsel %vm909, %v820, 0
        %v956 = vsel %vm909, %v821, 0
        %v959 = vsel %vm909, %v822, 0
        %v962 = vsel %vm909, %v823, 0
        %v965 = vsel %vm909, %v824, 0
        %v968 = vsel %vm909, %v825, 0
        %v971 = vsel %vm909, %v826, 0
        %v974 = vsel %vm909, %v827, 0
        %v977 = vsel %vm909, %v828, 0
        %v980 = vsel %vm909, %v829, 0
        %v983 = vsel %vm909, %v830, 0
        %v986 = vsel %vm909, %v831, 0
        %v989 = vsel %vm909, %v832, 0
        %v992 = vsel %vm909, %v833, 0
        %v995 = vsel %vm909, %v834, 0
        %v998 = vsel %vm909, %v835, 0
        %v1001 = vsel %vm909, %v836, 0
        %v1004 = vsel %vm909, %v837, 0
        %v1007 = vsel %vm909, %v838, 0
        %v1010 = vsel %vm909, %v839, 0
        %v1013 = vsel %vm909, %v840, 0
        %v1016 = vsel %vm909, %v841, 0
        %v1019 = vsel %vm909, %v842, 0
        %v1022 = vsel %vm909, %v843, 0
        %v1025 = vsel %vm909, %v844, 0
        %v1028 = vsel %vm909, %v845, 0
        %v1031 = vsel %vm909, %v846, 0
        %v1034 = vsel %vm909, %v847, 0
        %v1037 = vsel %vm909, %v848, 0
        %v1040 = vsel %vm909, %v849, 0
        %v1043 = vsel %vm909, %v850, 0
        %v1046 = vsel %vm909, %v851, 0
        %v1049 = vsel %vm909, %v852, 0
        %v1052 = vsel %vm909, %v853, 0
        %v1055 = vsel %vm909, %v854, 0
        %v1058 = vsel %vm909, %v855, 0
        %v1061 = vsel %vm909, %v856, 0
        %v1064 = vsel %vm909, %v857, 0
        %v1067 = vsel %vm909, %v858, 0
        %v1070 = vsel %vm909, %v859, 0
        %v1073 = vsel %vm909, %v860, 0
        %v1076 = vsel %vm909, %v861, 0
        %v1079 = vsel %vm909, %v862, 0
        %v1082 = vsel %vm909, %v863, 0
        %v1085 = vsel %vm909, %v864, 0
        %v1088 = vsel %vm909, %v865, 0
        %v1091 = vsel %vm909, %v866, 0
        %v1094 = vsel %vm909, %v867, 0
        %v1097 = vsel %vm909, %v868, 0
        %v1100 = vsel %vm909, %v869, 0
        %1102 = vmatprep.subr.bf16.mxu0 0
        %1103 = vmatpush1.bf16.msra.mxu0 %v901
        %1104 = vmatprep.subr.bf16.mxu0 0
        %1105 = vmatpush1.bf16.msra.mxu0 %v902
        %1106 = vmatprep.subr.bf16.mxu0 0
        %1107 = vmatpush1.bf16.msra.mxu0 %v903
        %1108 = vmatprep.subr.bf16.mxu0 0
        %1109 = vmatpush1.bf16.msra.mxu0 %v904
        %1110 = vmatprep.subr.bf16.mxu0 0
        %1111 = vmatpush1.bf16.msra.mxu0 0
        %1112 = vmatprep.subr.bf16.mxu0 0
        %1113 = vmatpush1.bf16.msra.mxu0 0
        %1114 = vmatprep.subr.bf16.mxu0 0
        %1115 = vmatpush1.bf16.msra.mxu0 0
        %1116 = vmatprep.subr.bf16.mxu0 0
        %1117 = vmatpush1.bf16.msra.mxu0 0
        %1118 = vmatprep.subr.bf16.mxu0 0
        %1119 = vmatpush1.bf16.msra.mxu0 0
        %1120 = vmatprep.subr.bf16.mxu0 0
        %1121 = vmatpush1.bf16.msra.mxu0 0
        %1122 = vmatprep.subr.bf16.mxu0 0
        %1123 = vmatpush1.bf16.msra.mxu0 0
        %1124 = vmatprep.subr.bf16.mxu0 0
        %1125 = vmatpush1.bf16.msra.mxu0 0
        %1126 = vmatprep.subr.bf16.mxu0 0
        %1127 = vmatpush1.bf16.msra.mxu0 0
        %1128 = vmatprep.subr.bf16.mxu0 0
        %1129 = vmatpush1.bf16.msra.mxu0 0
        %1130 = vmatprep.subr.bf16.mxu0 0
        %1131 = vmatpush1.bf16.msra.mxu0 0
        %1132 = vmatprep.subr.bf16.mxu0 0
        %1133 = vmatpush1.bf16.msra.mxu0 0
        %1134 = vmatprep.mubr.bf16.mxu0 0
        %1135 = vmatmul.mubr.bf16.gmra.mrb[0].mxu0 %v911
        %v1136 = vpop.f32.mrb[0].mxu0
        %v1137 = vadd.f32 %v883, %v1136
        %v1138 = vpop.f32.mrb[0].mxu0
        %v1139 = vpop.f32.mrb[0].mxu0
        %v1140 = vadd.f32 %v883, %v1139
        %v1141 = vpop.f32.mrb[0].mxu0
        %1142 = vmatprep.mubr.bf16.mxu0 0
        %1143 = vmatmul.mubr.bf16.gmra.mrb[0].mxu0 %v914
        %v1144 = vpop.f32.mrb[0].mxu0
        %v1145 = vadd.f32 %v883, %v1144
        %v1146 = vpop.f32.mrb[0].mxu0
        %v1147 = vpop.f32.mrb[0].mxu0
        %v1148 = vadd.f32 %v883, %v1147
        %v1149 = vpop.f32.mrb[0].mxu0
        %1150 = vmatprep.mubr.bf16.mxu0 0
        %1151 = vmatmul.mubr.bf16.gmra.mrb[0].mxu0 %v917
        %v1152 = vpop.f32.mrb[0].mxu0
        %v1153 = vadd.f32 %v883, %v1152
        %v1154 = vpop.f32.mrb[0].mxu0
        %v1155 = vpop.f32.mrb[0].mxu0
        %v1156 = vadd.f32 %v883, %v1155
        %v1157 = vpop.f32.mrb[0].mxu0
        %1158 = vmatprep.mubr.bf16.mxu0 0
        %1159 = vmatmul.mubr.bf16.gmra.mrb[0].mxu0 %v920
        %v1160 = vpop.f32.mrb[0].mxu0
        %v1161 = vadd.f32 %v883, %v1160
        %v1162 = vpop.f32.mrb[0].mxu0
        %v1163 = vpop.f32.mrb[0].mxu0
        %v1164 = vadd.f32 %v883, %v1163
        %v1165 = vpop.f32.mrb[0].mxu0
        %1166 = vmatprep.mubr.bf16.mxu0 0
        %1167 = vmatmul.mubr.bf16.gmra.mrb[0].mxu0 %v923
        %v1168 = vpop.f32.mrb[0].mxu0
        %v1169 = vadd.f32 %v883, %v1168
        %v1170 = vpop.f32.mrb[0].mxu0
        %v1171 = vpop.f32.mrb[0].mxu0
        %v1172 = vadd.f32 %v883, %v1171
        %v1173 = vpop.f32.mrb[0].mxu0
        %1174 = vmatprep.mubr.bf16.mxu0 0
        %1175 = vmatmul.mubr.bf16.gmra.mrb[0].mxu0 %v926
        %v1176 = vpop.f32.mrb[0].mxu0
        %v1177 = vadd.f32 %v883, %v1176
        %v1178 = vpop.f32.mrb[0].mxu0
        %v1179 = vpop.f32.mrb[0].mxu0
        %v1180 = vadd.f32 %v883, %v1179
        %v1181 = vpop.f32.mrb[0].mxu0
        %1182 = vmatprep.mubr.bf16.mxu0 0
        %1183 = vmatmul.mubr.bf16.gmra.mrb[0].mxu0 %v929
        %v1184 = vpop.f32.mrb[0].mxu0
        %v1185 = vadd.f32 %v883, %v1184
        %v1186 = vpop.f32.mrb[0].mxu0
        %v1187 = vpop.f32.mrb[0].mxu0
        %v1188 = vadd.f32 %v883, %v1187
        %v1189 = vpop.f32.mrb[0].mxu0
        %1190 = vmatprep.mubr.bf16.mxu0 0
        %1191 = vmatmul.mubr.bf16.gmra.mrb[0].mxu0 %v932
        %v1192 = vpop.f32.mrb[0].mxu0
        %v1193 = vadd.f32 %v883, %v1192
        %v1194 = vpop.f32.mrb[0].mxu0
        %v1195 = vpop.f32.mrb[0].mxu0
        %v1196 = vadd.f32 %v883, %v1195
        %v1197 = vpop.f32.mrb[0].mxu0
        %1198 = vmatprep.mubr.bf16.mxu0 0
        %1199 = vmatmul.mubr.bf16.gmra.mrb[0].mxu0 %v935
        %v1200 = vpop.f32.mrb[0].mxu0
        %v1201 = vadd.f32 %v883, %v1200
        %v1202 = vpop.f32.mrb[0].mxu0
        %v1203 = vpop.f32.mrb[0].mxu0
        %v1204 = vadd.f32 %v883, %v1203
        %v1205 = vpop.f32.mrb[0].mxu0
        %1206 = vmatprep.mubr.bf16.mxu0 0
        %1207 = vmatmul.mubr.bf16.gmra.mrb[0].mxu0 %v938
        %v1208 = vpop.f32.mrb[0].mxu0
        %v1209 = vadd.f32 %v883, %v1208
        %v1210 = vpop.f32.mrb[0].mxu0
        %v1211 = vpop.f32.mrb[0].mxu0
        %v1212 = vadd.f32 %v883, %v1211
        %v1213 = vpop.f32.mrb[0].mxu0
        %1214 = vmatprep.mubr.bf16.mxu0 0
        %1215 = vmatmul.mubr.bf16.gmra.mrb[0].mxu0 %v941
        %v1216 = vpop.f32.mrb[0].mxu0
        %v1217 = vadd.f32 %v883, %v1216
        %v1218 = vpop.f32.mrb[0].mxu0
        %v1219 = vpop.f32.mrb[0].mxu0
        %v1220 = vadd.f32 %v883, %v1219
        %v1221 = vpop.f32.mrb[0].mxu0
        %1222 = vmatprep.mubr.bf16.mxu0 0
        %1223 = vmatmul.mubr.bf16.gmra.mrb[0].mxu0 %v944
        %v1224 = vpop.f32.mrb[0].mxu0
        %v1225 = vadd.f32 %v883, %v1224
        %v1226 = vpop.f32.mrb[0].mxu0
        %v1227 = vpop.f32.mrb[0].mxu0
        %v1228 = vadd.f32 %v883, %v1227
        %v1229 = vpop.f32.mrb[0].mxu0
        %1230 = vmatprep.mubr.bf16.mxu0 0
        %1231 = vmatmul.mubr.bf16.gmra.mrb[0].mxu0 %v947
        %v1232 = vpop.f32.mrb[0].mxu0
        %v1233 = vadd.f32 %v883, %v1232
        %v1234 = vpop.f32.mrb[0].mxu0
        %v1235 = vpop.f32.mrb[0].mxu0
        %v1236 = vadd.f32 %v883, %v1235
        %v1237 = vpop.f32.mrb[0].mxu0
        %1238 = vmatprep.mubr.bf16.mxu0 0
        %1239 = vmatmul.mubr.bf16.gmra.mrb[0].mxu0 %v950
        %v1240 = vpop.f32.mrb[0].mxu0
        %v1241 = vadd.f32 %v883, %v1240
        %v1242 = vpop.f32.mrb[0].mxu0
        %v1243 = vpop.f32.mrb[0].mxu0
        %v1244 = vadd.f32 %v883, %v1243
        %v1245 = vpop.f32.mrb[0].mxu0
        %1246 = vmatprep.mubr.bf16.mxu0 0
        %1247 = vmatmul.mubr.bf16.gmra.mrb[0].mxu0 %v953
        %v1248 = vpop.f32.mrb[0].mxu0
        %v1249 = vadd.f32 %v883, %v1248
        %v1250 = vpop.f32.mrb[0].mxu0
        %v1251 = vpop.f32.mrb[0].mxu0
        %v1252 = vadd.f32 %v883, %v1251
        %v1253 = vpop.f32.mrb[0].mxu0
        %1254 = vmatprep.mubr.bf16.mxu0 0
        %1255 = vmatmul.mubr.bf16.gmra.mrb[0].mxu0 %v956
        %v1256 = vpop.f32.mrb[0].mxu0
        %v1257 = vadd.f32 %v883, %v1256
        %v1258 = vpop.f32.mrb[0].mxu0
        %v1259 = vpop.f32.mrb[0].mxu0
        %v1260 = vadd.f32 %v883, %v1259
        %v1261 = vpop.f32.mrb[0].mxu0
        %1262 = vmatprep.mubr.bf16.mxu0 0
        %1263 = vmatmul.mubr.bf16.gmra.mrb[0].mxu0 %v959
        %v1264 = vpop.f32.mrb[0].mxu0
        %v1265 = vadd.f32 %v883, %v1264
        %v1266 = vpop.f32.mrb[0].mxu0
        %v1267 = vpop.f32.mrb[0].mxu0
        %v1268 = vadd.f32 %v883, %v1267
        %v1269 = vpop.f32.mrb[0].mxu0
        %1270 = vmatprep.mubr.bf16.mxu0 0
        %1271 = vmatmul.mubr.bf16.gmra.mrb[0].mxu0 %v962
        %v1272 = vpop.f32.mrb[0].mxu0
        %v1273 = vadd.f32 %v883, %v1272
        %v1274 = vpop.f32.mrb[0].mxu0
        %v1275 = vpop.f32.mrb[0].mxu0
        %v1276 = vadd.f32 %v883, %v1275
        %v1277 = vpop.f32.mrb[0].mxu0
        %1278 = vmatprep.mubr.bf16.mxu0 0
        %1279 = vmatmul.mubr.bf16.gmra.mrb[0].mxu0 %v965
        %v1280 = vpop.f32.mrb[0].mxu0
        %v1281 = vadd.f32 %v883, %v1280
        %v1282 = vpop.f32.mrb[0].mxu0
        %v1283 = vpop.f32.mrb[0].mxu0
        %v1284 = vadd.f32 %v883, %v1283
        %v1285 = vpop.f32.mrb[0].mxu0
        %1286 = vmatprep.mubr.bf16.mxu0 0
        %1287 = vmatmul.mubr.bf16.gmra.mrb[0].mxu0 %v968
        %v1288 = vpop.f32.mrb[0].mxu0
        %v1289 = vadd.f32 %v883, %v1288
        %v1290 = vpop.f32.mrb[0].mxu0
        %v1291 = vpop.f32.mrb[0].mxu0
        %v1292 = vadd.f32 %v883, %v1291
        %v1293 = vpop.f32.mrb[0].mxu0
        %1294 = vmatprep.mubr.bf16.mxu0 0
        %1295 = vmatmul.mubr.bf16.gmra.mrb[0].mxu0 %v971
        %v1296 = vpop.f32.mrb[0].mxu0
        %v1297 = vadd.f32 %v883, %v1296
        %v1298 = vpop.f32.mrb[0].mxu0
        %v1299 = vpop.f32.mrb[0].mxu0
        %v1300 = vadd.f32 %v883, %v1299
        %v1301 = vpop.f32.mrb[0].mxu0
        %1302 = vmatprep.mubr.bf16.mxu0 0
        %1303 = vmatmul.mubr.bf16.gmra.mrb[0].mxu0 %v974
        %v1304 = vpop.f32.mrb[0].mxu0
        %v1305 = vadd.f32 %v883, %v1304
        %v1306 = vpop.f32.mrb[0].mxu0
        %v1307 = vpop.f32.mrb[0].mxu0
        %v1308 = vadd.f32 %v883, %v1307
        %v1309 = vpop.f32.mrb[0].mxu0
        %1310 = vmatprep.mubr.bf16.mxu0 0
        %1311 = vmatmul.mubr.bf16.gmra.mrb[0].mxu0 %v977
        %v1312 = vpop.f32.mrb[0].mxu0
        %v1313 = vadd.f32 %v883, %v1312
        %v1314 = vpop.f32.mrb[0].mxu0
        %v1315 = vpop.f32.mrb[0].mxu0
        %v1316 = vadd.f32 %v883, %v1315
        %v1317 = vpop.f32.mrb[0].mxu0
        %1318 = vmatprep.mubr.bf16.mxu0 0
        %1319 = vmatmul.mubr.bf16.gmra.mrb[0].mxu0 %v980
        %v1320 = vpop.f32.mrb[0].mxu0
        %v1321 = vadd.f32 %v883, %v1320
        %v1322 = vpop.f32.mrb[0].mxu0
        %v1323 = vpop.f32.mrb[0].mxu0
        %v1324 = vadd.f32 %v883, %v1323
        %v1325 = vpop.f32.mrb[0].mxu0
        %1326 = vmatprep.mubr.bf16.mxu0 0
        %1327 = vmatmul.mubr.bf16.gmra.mrb[0].mxu0 %v983
        %v1328 = vpop.f32.mrb[0].mxu0
        %v1329 = vadd.f32 %v883, %v1328
        %v1330 = vpop.f32.mrb[0].mxu0
        %v1331 = vpop.f32.mrb[0].mxu0
        %v1332 = vadd.f32 %v883, %v1331
        %v1333 = vpop.f32.mrb[0].mxu0
        %1334 = vmatprep.mubr.bf16.mxu0 0
        %1335 = vmatmul.mubr.bf16.gmra.mrb[0].mxu0 %v986
        %v1336 = vpop.f32.mrb[0].mxu0
        %v1337 = vadd.f32 %v883, %v1336
        %v1338 = vpop.f32.mrb[0].mxu0
        %v1339 = vpop.f32.mrb[0].mxu0
        %v1340 = vadd.f32 %v883, %v1339
        %v1341 = vpop.f32.mrb[0].mxu0
        %1342 = vmatprep.mubr.bf16.mxu0 0
        %1343 = vmatmul.mubr.bf16.gmra.mrb[0].mxu0 %v989
        %v1344 = vpop.f32.mrb[0].mxu0
        %v1345 = vadd.f32 %v883, %v1344
        %v1346 = vpop.f32.mrb[0].mxu0
        %v1347 = vpop.f32.mrb[0].mxu0
        %v1348 = vadd.f32 %v883, %v1347
        %v1349 = vpop.f32.mrb[0].mxu0
        %1350 = vmatprep.mubr.bf16.mxu0 0
        %1351 = vmatmul.mubr.bf16.gmra.mrb[0].mxu0 %v992
        %v1352 = vpop.f32.mrb[0].mxu0
        %v1353 = vadd.f32 %v883, %v1352
        %v1354 = vpop.f32.mrb[0].mxu0
        %v1355 = vpop.f32.mrb[0].mxu0
        %v1356 = vadd.f32 %v883, %v1355
        %v1357 = vpop.f32.mrb[0].mxu0
        %1358 = vmatprep.mubr.bf16.mxu0 0
        %1359 = vmatmul.mubr.bf16.gmra.mrb[0].mxu0 %v995
        %v1360 = vpop.f32.mrb[0].mxu0
        %v1361 = vadd.f32 %v883, %v1360
        %v1362 = vpop.f32.mrb[0].mxu0
        %v1363 = vpop.f32.mrb[0].mxu0
        %v1364 = vadd.f32 %v883, %v1363
        %v1365 = vpop.f32.mrb[0].mxu0
        %1366 = vmatprep.mubr.bf16.mxu0 0
        %1367 = vmatmul.mubr.bf16.gmra.mrb[0].mxu0 %v998
        %v1368 = vpop.f32.mrb[0].mxu0
        %v1369 = vadd.f32 %v883, %v1368
        %v1370 = vpop.f32.mrb[0].mxu0
        %v1371 = vpop.f32.mrb[0].mxu0
        %v1372 = vadd.f32 %v883, %v1371
        %v1373 = vpop.f32.mrb[0].mxu0
        %1374 = vmatprep.mubr.bf16.mxu0 0
        %1375 = vmatmul.mubr.bf16.gmra.mrb[0].mxu0 %v1001
        %v1376 = vpop.f32.mrb[0].mxu0
        %v1377 = vadd.f32 %v883, %v1376
        %v1378 = vpop.f32.mrb[0].mxu0
        %v1379 = vpop.f32.mrb[0].mxu0
        %v1380 = vadd.f32 %v883, %v1379
        %v1381 = vpop.f32.mrb[0].mxu0
        %1382 = vmatprep.mubr.bf16.mxu0 0
        %1383 = vmatmul.mubr.bf16.gmra.mrb[0].mxu0 %v1004
        %v1384 = vpop.f32.mrb[0].mxu0
        %v1385 = vadd.f32 %v883, %v1384
        %v1386 = vpop.f32.mrb[0].mxu0
        %v1387 = vpop.f32.mrb[0].mxu0
        %v1388 = vadd.f32 %v883, %v1387
        %v1389 = vpop.f32.mrb[0].mxu0
        %1390 = vmatprep.mubr.bf16.mxu0 0
        %1391 = vmatmul.mubr.bf16.gmra.mrb[0].mxu0 %v1007
        %v1392 = vpop.f32.mrb[0].mxu0
        %v1393 = vadd.f32 %v883, %v1392
        %v1394 = vpop.f32.mrb[0].mxu0
        %v1395 = vpop.f32.mrb[0].mxu0
        %v1396 = vadd.f32 %v883, %v1395
        %v1397 = vpop.f32.mrb[0].mxu0
        %1398 = vmatprep.mubr.bf16.mxu0 0
        %1399 = vmatmul.mubr.bf16.gmra.mrb[0].mxu0 %v1010
        %v1400 = vpop.f32.mrb[0].mxu0
        %v1401 = vadd.f32 %v883, %v1400
        %v1402 = vpop.f32.mrb[0].mxu0
        %v1403 = vpop.f32.mrb[0].mxu0
        %v1404 = vadd.f32 %v883, %v1403
        %v1405 = vpop.f32.mrb[0].mxu0
        %1406 = vmatprep.mubr.bf16.mxu0 0
        %1407 = vmatmul.mubr.bf16.gmra.mrb[0].mxu0 %v1013
        %v1408 = vpop.f32.mrb[0].mxu0
        %v1409 = vadd.f32 %v883, %v1408
        %v1410 = vpop.f32.mrb[0].mxu0
        %v1411 = vpop.f32.mrb[0].mxu0
        %v1412 = vadd.f32 %v883, %v1411
        %v1413 = vpop.f32.mrb[0].mxu0
        %1414 = vmatprep.mubr.bf16.mxu0 0
        %1415 = vmatmul.mubr.bf16.gmra.mrb[0].mxu0 %v1016
        %v1416 = vpop.f32.mrb[0].mxu0
        %v1417 = vadd.f32 %v883, %v1416
        %v1418 = vpop.f32.mrb[0].mxu0
        %v1419 = vpop.f32.mrb[0].mxu0
        %v1420 = vadd.f32 %v883, %v1419
        %v1421 = vpop.f32.mrb[0].mxu0
        %1422 = vmatprep.mubr.bf16.mxu0 0
        %1423 = vmatmul.mubr.bf16.gmra.mrb[0].mxu0 %v1019
        %v1424 = vpop.f32.mrb[0].mxu0
        %v1425 = vadd.f32 %v883, %v1424
        %v1426 = vpop.f32.mrb[0].mxu0
        %v1427 = vpop.f32.mrb[0].mxu0
        %v1428 = vadd.f32 %v883, %v1427
        %v1429 = vpop.f32.mrb[0].mxu0
        %1430 = vmatprep.mubr.bf16.mxu0 0
        %1431 = vmatmul.mubr.bf16.gmra.mrb[0].mxu0 %v1022
        %v1432 = vpop.f32.mrb[0].mxu0
        %v1433 = vadd.f32 %v883, %v1432
        %v1434 = vpop.f32.mrb[0].mxu0
        %v1435 = vpop.f32.mrb[0].mxu0
        %v1436 = vadd.f32 %v883, %v1435
        %v1437 = vpop.f32.mrb[0].mxu0
        %1438 = vmatprep.mubr.bf16.mxu0 0
        %1439 = vmatmul.mubr.bf16.gmra.mrb[0].mxu0 %v1025
        %v1440 = vpop.f32.mrb[0].mxu0
        %v1441 = vadd.f32 %v883, %v1440
        %v1442 = vpop.f32.mrb[0].mxu0
        %v1443 = vpop.f32.mrb[0].mxu0
        %v1444 = vadd.f32 %v883, %v1443
        %v1445 = vpop.f32.mrb[0].mxu0
        %1446 = vmatprep.mubr.bf16.mxu0 0
        %1447 = vmatmul.mubr.bf16.gmra.mrb[0].mxu0 %v1028
        %v1448 = vpop.f32.mrb[0].mxu0
        %v1449 = vadd.f32 %v883, %v1448
        %v1450 = vpop.f32.mrb[0].mxu0
        %v1451 = vpop.f32.mrb[0].mxu0
        %v1452 = vadd.f32 %v883, %v1451
        %v1453 = vpop.f32.mrb[0].mxu0
        %1454 = vmatprep.mubr.bf16.mxu0 0
        %1455 = vmatmul.mubr.bf16.gmra.mrb[0].mxu0 %v1031
        %v1456 = vpop.f32.mrb[0].mxu0
        %v1457 = vadd.f32 %v883, %v1456
        %v1458 = vpop.f32.mrb[0].mxu0
        %v1459 = vpop.f32.mrb[0].mxu0
        %v1460 = vadd.f32 %v883, %v1459
        %v1461 = vpop.f32.mrb[0].mxu0
        %1462 = vmatprep.mubr.bf16.mxu0 0
        %1463 = vmatmul.mubr.bf16.gmra.mrb[0].mxu0 %v1034
        %v1464 = vpop.f32.mrb[0].mxu0
        %v1465 = vadd.f32 %v883, %v1464
        %v1466 = vpop.f32.mrb[0].mxu0
        %v1467 = vpop.f32.mrb[0].mxu0
        %v1468 = vadd.f32 %v883, %v1467
        %v1469 = vpop.f32.mrb[0].mxu0
        %1470 = vmatprep.mubr.bf16.mxu0 0
        %1471 = vmatmul.mubr.bf16.gmra.mrb[0].mxu0 %v1037
        %v1472 = vpop.f32.mrb[0].mxu0
        %v1473 = vadd.f32 %v883, %v1472
        %v1474 = vpop.f32.mrb[0].mxu0
        %v1475 = vpop.f32.mrb[0].mxu0
        %v1476 = vadd.f32 %v883, %v1475
        %v1477 = vpop.f32.mrb[0].mxu0
        %1478 = vmatprep.mubr.bf16.mxu0 0
        %1479 = vmatmul.mubr.bf16.gmra.mrb[0].mxu0 %v1040
        %v1480 = vpop.f32.mrb[0].mxu0
        %v1481 = vadd.f32 %v883, %v1480
        %v1482 = vpop.f32.mrb[0].mxu0
        %v1483 = vpop.f32.mrb[0].mxu0
        %v1484 = vadd.f32 %v883, %v1483
        %v1485 = vpop.f32.mrb[0].mxu0
        %1486 = vmatprep.mubr.bf16.mxu0 0
        %1487 = vmatmul.mubr.bf16.gmra.mrb[0].mxu0 %v1043
        %v1488 = vpop.f32.mrb[0].mxu0
        %v1489 = vadd.f32 %v883, %v1488
        %v1490 = vpop.f32.mrb[0].mxu0
        %v1491 = vpop.f32.mrb[0].mxu0
        %v1492 = vadd.f32 %v883, %v1491
        %v1493 = vpop.f32.mrb[0].mxu0
        %1494 = vmatprep.mubr.bf16.mxu0 0
        %1495 = vmatmul.mubr.bf16.gmra.mrb[0].mxu0 %v1046
        %v1496 = vpop.f32.mrb[0].mxu0
        %v1497 = vadd.f32 %v883, %v1496
        %v1498 = vpop.f32.mrb[0].mxu0
        %v1499 = vpop.f32.mrb[0].mxu0
        %v1500 = vadd.f32 %v883, %v1499
        %v1501 = vpop.f32.mrb[0].mxu0
        %1502 = vmatprep.mubr.bf16.mxu0 0
        %1503 = vmatmul.mubr.bf16.gmra.mrb[0].mxu0 %v1049
        %v1504 = vpop.f32.mrb[0].mxu0
        %v1505 = vadd.f32 %v883, %v1504
        %v1506 = vpop.f32.mrb[0].mxu0
        %v1507 = vpop.f32.mrb[0].mxu0
        %v1508 = vadd.f32 %v883, %v1507
        %v1509 = vpop.f32.mrb[0].mxu0
        %1510 = vmatprep.mubr.bf16.mxu0 0
        %1511 = vmatmul.mubr.bf16.gmra.mrb[0].mxu0 %v1052
        %v1512 = vpop.f32.mrb[0].mxu0
        %v1513 = vadd.f32 %v883, %v1512
        %v1514 = vpop.f32.mrb[0].mxu0
        %v1515 = vpop.f32.mrb[0].mxu0
        %v1516 = vadd.f32 %v883, %v1515
        %v1517 = vpop.f32.mrb[0].mxu0
        %1518 = vmatprep.mubr.bf16.mxu0 0
        %1519 = vmatmul.mubr.bf16.gmra.mrb[0].mxu0 %v1055
        %v1520 = vpop.f32.mrb[0].mxu0
        %v1521 = vadd.f32 %v883, %v1520
        %v1522 = vpop.f32.mrb[0].mxu0
        %v1523 = vpop.f32.mrb[0].mxu0
        %v1524 = vadd.f32 %v883, %v1523
        %v1525 = vpop.f32.mrb[0].mxu0
        %1526 = vmatprep.mubr.bf16.mxu0 0
        %1527 = vmatmul.mubr.bf16.gmra.mrb[0].mxu0 %v1058
        %v1528 = vpop.f32.mrb[0].mxu0
        %v1529 = vadd.f32 %v883, %v1528
        %v1530 = vpop.f32.mrb[0].mxu0
        %v1531 = vpop.f32.mrb[0].mxu0
        %v1532 = vadd.f32 %v883, %v1531
        %v1533 = vpop.f32.mrb[0].mxu0
        %1534 = vmatprep.mubr.bf16.mxu0 0
        %1535 = vmatmul.mubr.bf16.gmra.mrb[0].mxu0 %v1061
        %v1536 = vpop.f32.mrb[0].mxu0
        %v1537 = vadd.f32 %v883, %v1536
        %v1538 = vpop.f32.mrb[0].mxu0
        %v1539 = vpop.f32.mrb[0].mxu0
        %v1540 = vadd.f32 %v883, %v1539
        %v1541 = vpop.f32.mrb[0].mxu0
        %1542 = vmatprep.mubr.bf16.mxu0 0
        %1543 = vmatmul.mubr.bf16.gmra.mrb[0].mxu0 %v1064
        %v1544 = vpop.f32.mrb[0].mxu0
        %v1545 = vadd.f32 %v883, %v1544
        %v1546 = vpop.f32.mrb[0].mxu0
        %v1547 = vpop.f32.mrb[0].mxu0
        %v1548 = vadd.f32 %v883, %v1547
        %v1549 = vpop.f32.mrb[0].mxu0
        %1550 = vmatprep.mubr.bf16.mxu0 0
        %1551 = vmatmul.mubr.bf16.gmra.mrb[0].mxu0 %v1067
        %v1552 = vpop.f32.mrb[0].mxu0
        %v1553 = vadd.f32 %v883, %v1552
        %v1554 = vpop.f32.mrb[0].mxu0
        %v1555 = vpop.f32.mrb[0].mxu0
        %v1556 = vadd.f32 %v883, %v1555
        %v1557 = vpop.f32.mrb[0].mxu0
        %1558 = vmatprep.mubr.bf16.mxu0 0
        %1559 = vmatmul.mubr.bf16.gmra.mrb[0].mxu0 %v1070
        %v1560 = vpop.f32.mrb[0].mxu0
        %v1561 = vadd.f32 %v883, %v1560
        %v1562 = vpop.f32.mrb[0].mxu0
        %v1563 = vpop.f32.mrb[0].mxu0
        %v1564 = vadd.f32 %v883, %v1563
        %v1565 = vpop.f32.mrb[0].mxu0
        %1566 = vmatprep.mubr.bf16.mxu0 0
        %1567 = vmatmul.mubr.bf16.gmra.mrb[0].mxu0 %v1073
        %v1568 = vpop.f32.mrb[0].mxu0
        %v1569 = vadd.f32 %v883, %v1568
        %v1570 = vpop.f32.mrb[0].mxu0
        %v1571 = vpop.f32.mrb[0].mxu0
        %v1572 = vadd.f32 %v883, %v1571
        %v1573 = vpop.f32.mrb[0].mxu0
        %1574 = vmatprep.mubr.bf16.mxu0 0
        %1575 = vmatmul.mubr.bf16.gmra.mrb[0].mxu0 %v1076
        %v1576 = vpop.f32.mrb[0].mxu0
        %v1577 = vadd.f32 %v883, %v1576
        %v1578 = vpop.f32.mrb[0].mxu0
        %v1579 = vpop.f32.mrb[0].mxu0
        %v1580 = vadd.f32 %v883, %v1579
        %v1581 = vpop.f32.mrb[0].mxu0
        %1582 = vmatprep.mubr.bf16.mxu0 0
        %1583 = vmatmul.mubr.bf16.gmra.mrb[0].mxu0 %v1079
        %v1584 = vpop.f32.mrb[0].mxu0
        %v1585 = vadd.f32 %v883, %v1584
        %v1586 = vpop.f32.mrb[0].mxu0
        %v1587 = vpop.f32.mrb[0].mxu0
        %v1588 = vadd.f32 %v883, %v1587
        %v1589 = vpop.f32.mrb[0].mxu0
        %1590 = vmatprep.mubr.bf16.mxu0 0
        %1591 = vmatmul.mubr.bf16.gmra.mrb[0].mxu0 %v1082
        %v1592 = vpop.f32.mrb[0].mxu0
        %v1593 = vadd.f32 %v883, %v1592
        %v1594 = vpop.f32.mrb[0].mxu0
        %v1595 = vpop.f32.mrb[0].mxu0
        %v1596 = vadd.f32 %v883, %v1595
        %v1597 = vpop.f32.mrb[0].mxu0
        %1598 = vmatprep.mubr.bf16.mxu0 0
        %1599 = vmatmul.mubr.bf16.gmra.mrb[0].mxu0 %v1085
        %v1600 = vpop.f32.mrb[0].mxu0
        %v1601 = vadd.f32 %v883, %v1600
        %v1602 = vpop.f32.mrb[0].mxu0
        %v1603 = vpop.f32.mrb[0].mxu0
        %v1604 = vadd.f32 %v883, %v1603
        %v1605 = vpop.f32.mrb[0].mxu0
        %1606 = vmatprep.mubr.bf16.mxu0 0
        %1607 = vmatmul.mubr.bf16.gmra.mrb[0].mxu0 %v1088
        %v1608 = vpop.f32.mrb[0].mxu0
        %v1609 = vadd.f32 %v883, %v1608
        %v1610 = vpop.f32.mrb[0].mxu0
        %v1611 = vpop.f32.mrb[0].mxu0
        %v1612 = vadd.f32 %v883, %v1611
        %v1613 = vpop.f32.mrb[0].mxu0
        %1614 = vmatprep.mubr.bf16.mxu0 0
        %1615 = vmatmul.mubr.bf16.gmra.mrb[0].mxu0 %v1091
        %v1616 = vpop.f32.mrb[0].mxu0
        %v1617 = vadd.f32 %v883, %v1616
        %v1618 = vpop.f32.mrb[0].mxu0
        %v1619 = vpop.f32.mrb[0].mxu0
        %v1620 = vadd.f32 %v883, %v1619
        %v1621 = vpop.f32.mrb[0].mxu0
        %1622 = vmatprep.mubr.bf16.mxu0 0
        %1623 = vmatmul.mubr.bf16.gmra.mrb[0].mxu0 %v1094
        %v1624 = vpop.f32.mrb[0].mxu0
        %v1625 = vadd.f32 %v883, %v1624
        %v1626 = vpop.f32.mrb[0].mxu0
        %v1627 = vpop.f32.mrb[0].mxu0
        %v1628 = vadd.f32 %v883, %v1627
        %v1629 = vpop.f32.mrb[0].mxu0
        %1630 = vmatprep.mubr.bf16.mxu0 0
        %1631 = vmatmul.mubr.bf16.gmra.mrb[0].mxu0 %v1097
        %v1632 = vpop.f32.mrb[0].mxu0
        %v1633 = vadd.f32 %v883, %v1632
        %v1634 = vpop.f32.mrb[0].mxu0
        %v1635 = vpop.f32.mrb[0].mxu0
        %v1636 = vadd.f32 %v883, %v1635
        %v1637 = vpop.f32.mrb[0].mxu0
        %1638 = vmatprep.mubr.bf16.mxu0 0
        %1639 = vmatmul.mubr.bf16.gmra.mrb[0].mxu0 %v1100
        %v1640 = vpop.f32.mrb[0].mxu0
        %v1641 = vadd.f32 %v883, %v1640
        %v1642 = vpop.f32.mrb[0].mxu0
        %v1643 = vpop.f32.mrb[0].mxu0
        %v1644 = vadd.f32 %v883, %v1643
        %v1645 = vpop.f32.mrb[0].mxu0
        %1646 = vdwg.mxu0
        %v1647 = vmax.f32 %v1137, 0.0
        %v1648 = vmax.f32 %v1140, 0.0
        %v1649 = vmax.f32 %v1145, 0.0
        %v1650 = vmax.f32 %v1148, 0.0
        %v1651 = vmax.f32 %v1153, 0.0
        %v1652 = vmax.f32 %v1156, 0.0
        %v1653 = vmax.f32 %v1161, 0.0
        %v1654 = vmax.f32 %v1164, 0.0
        %v1655 = vmax.f32 %v1169, 0.0
        %v1656 = vmax.f32 %v1172, 0.0
        %v1657 = vmax.f32 %v1177, 0.0
        %v1658 = vmax.f32 %v1180, 0.0
        %v1659 = vmax.f32 %v1185, 0.0
        %v1660 = vmax.f32 %v1188, 0.0
        %v1661 = vmax.f32 %v1193, 0.0
        %v1662 = vmax.f32 %v1196, 0.0
        %v1663 = vmax.f32 %v1201, 0.0
        %v1664 = vmax.f32 %v1204, 0.0
        %v1665 = vmax.f32 %v1209, 0.0
        %v1666 = vmax.f32 %v1212, 0.0
        %v1667 = vmax.f32 %v1217, 0.0
        %v1668 = vmax.f32 %v1220, 0.0
        %v1669 = vmax.f32 %v1225, 0.0
        %v1670 = vmax.f32 %v1228, 0.0
        %v1671 = vmax.f32 %v1233, 0.0
        %v1672 = vmax.f32 %v1236, 0.0
        %v1673 = vmax.f32 %v1241, 0.0
        %v1674 = vmax.f32 %v1244, 0.0
        %v1675 = vmax.f32 %v1249, 0.0
        %v1676 = vmax.f32 %v1252, 0.0
        %v1677 = vmax.f32 %v1257, 0.0
        %v1678 = vmax.f32 %v1260, 0.0
        %v1679 = vmax.f32 %v1265, 0.0
        %v1680 = vmax.f32 %v1268, 0.0
        %v1681 = vmax.f32 %v1273, 0.0
        %v1682 = vmax.f32 %v1276, 0.0
        %v1683 = vmax.f32 %v1281, 0.0
        %v1684 = vmax.f32 %v1284, 0.0
        %v1685 = vmax.f32 %v1289, 0.0
        %v1686 = vmax.f32 %v1292, 0.0
        %v1687 = vmax.f32 %v1297, 0.0
        %v1688 = vmax.f32 %v1300, 0.0
        %v1689 = vmax.f32 %v1305, 0.0
        %v1690 = vmax.f32 %v1308, 0.0
        %v1691 = vmax.f32 %v1313, 0.0
        %v1692 = vmax.f32 %v1316, 0.0
        %v1693 = vmax.f32 %v1321, 0.0
        %v1694 = vmax.f32 %v1324, 0.0
        %v1695 = vmax.f32 %v1329, 0.0
        %v1696 = vmax.f32 %v1332, 0.0
        %v1697 = vmax.f32 %v1337, 0.0
        %v1698 = vmax.f32 %v1340, 0.0
        %v1699 = vmax.f32 %v1345, 0.0
        %v1700 = vmax.f32 %v1348, 0.0
        %v1701 = vmax.f32 %v1353, 0.0
        %v1702 = vmax.f32 %v1356, 0.0
        %v1703 = vmax.f32 %v1361, 0.0
        %v1704 = vmax.f32 %v1364, 0.0
        %v1705 = vmax.f32 %v1369, 0.0
        %v1706 = vmax.f32 %v1372, 0.0
        %v1707 = vmax.f32 %v1377, 0.0
        %v1708 = vmax.f32 %v1380, 0.0
        %v1709 = vmax.f32 %v1385, 0.0
        %v1710 = vmax.f32 %v1388, 0.0
        %v1711 = vmax.f32 %v1393, 0.0
        %v1712 = vmax.f32 %v1396, 0.0
        %v1713 = vmax.f32 %v1401, 0.0
        %v1714 = vmax.f32 %v1404, 0.0
        %v1715 = vmax.f32 %v1409, 0.0
        %v1716 = vmax.f32 %v1412, 0.0
        %v1717 = vmax.f32 %v1417, 0.0
        %v1718 = vmax.f32 %v1420, 0.0
        %v1719 = vmax.f32 %v1425, 0.0
        %v1720 = vmax.f32 %v1428, 0.0
        %v1721 = vmax.f32 %v1433, 0.0
        %v1722 = vmax.f32 %v1436, 0.0
        %v1723 = vmax.f32 %v1441, 0.0
        %v1724 = vmax.f32 %v1444, 0.0
        %v1725 = vmax.f32 %v1449, 0.0
        %v1726 = vmax.f32 %v1452, 0.0
        %v1727 = vmax.f32 %v1457, 0.0
        %v1728 = vmax.f32 %v1460, 0.0
        %v1729 = vmax.f32 %v1465, 0.0
        %v1730 = vmax.f32 %v1468, 0.0
        %v1731 = vmax.f32 %v1473, 0.0
        %v1732 = vmax.f32 %v1476, 0.0
        %v1733 = vmax.f32 %v1481, 0.0
        %v1734 = vmax.f32 %v1484, 0.0
        %v1735 = vmax.f32 %v1489, 0.0
        %v1736 = vmax.f32 %v1492, 0.0
        %v1737 = vmax.f32 %v1497, 0.0
        %v1738 = vmax.f32 %v1500, 0.0
        %v1739 = vmax.f32 %v1505, 0.0
        %v1740 = vmax.f32 %v1508, 0.0
        %v1741 = vmax.f32 %v1513, 0.0
        %v1742 = vmax.f32 %v1516, 0.0
        %v1743 = vmax.f32 %v1521, 0.0
        %v1744 = vmax.f32 %v1524, 0.0
        %v1745 = vmax.f32 %v1529, 0.0
        %v1746 = vmax.f32 %v1532, 0.0
        %v1747 = vmax.f32 %v1537, 0.0
        %v1748 = vmax.f32 %v1540, 0.0
        %v1749 = vmax.f32 %v1545, 0.0
        %v1750 = vmax.f32 %v1548, 0.0
        %v1751 = vmax.f32 %v1553, 0.0
        %v1752 = vmax.f32 %v1556, 0.0
        %v1753 = vmax.f32 %v1561, 0.0
        %v1754 = vmax.f32 %v1564, 0.0
        %v1755 = vmax.f32 %v1569, 0.0
        %v1756 = vmax.f32 %v1572, 0.0
        %v1757 = vmax.f32 %v1577, 0.0
        %v1758 = vmax.f32 %v1580, 0.0
        %v1759 = vmax.f32 %v1585, 0.0
        %v1760 = vmax.f32 %v1588, 0.0
        %v1761 = vmax.f32 %v1593, 0.0
        %v1762 = vmax.f32 %v1596, 0.0
        %v1763 = vmax.f32 %v1601, 0.0
        %v1764 = vmax.f32 %v1604, 0.0
        %v1765 = vmax.f32 %v1609, 0.0
        %v1766 = vmax.f32 %v1612, 0.0
        %v1767 = vmax.f32 %v1617, 0.0
        %v1768 = vmax.f32 %v1620, 0.0
        %v1769 = vmax.f32 %v1625, 0.0
        %v1770 = vmax.f32 %v1628, 0.0
        %v1771 = vmax.f32 %v1633, 0.0
        %v1772 = vmax.f32 %v1636, 0.0
        %v1773 = vmax.f32 %v1641, 0.0
        %v1774 = vmax.f32 %v1644, 0.0
        %v1775 = vpack.c.bf16 %v1648, %v1647
        %v1776 = vpack.c.bf16 %v1650, %v1649
        %v1777 = vpack.c.bf16 %v1652, %v1651
        %v1778 = vpack.c.bf16 %v1654, %v1653
        %v1779 = vpack.c.bf16 %v1656, %v1655
        %v1780 = vpack.c.bf16 %v1658, %v1657
        %v1781 = vpack.c.bf16 %v1660, %v1659
        %v1782 = vpack.c.bf16 %v1662, %v1661
        %v1783 = vpack.c.bf16 %v1664, %v1663
        %v1784 = vpack.c.bf16 %v1666, %v1665
        %v1785 = vpack.c.bf16 %v1668, %v1667
        %v1786 = vpack.c.bf16 %v1670, %v1669
        %v1787 = vpack.c.bf16 %v1672, %v1671
        %v1788 = vpack.c.bf16 %v1674, %v1673
        %v1789 = vpack.c.bf16 %v1676, %v1675
        %v1790 = vpack.c.bf16 %v1678, %v1677
        %v1791 = vpack.c.bf16 %v1680, %v1679
        %v1792 = vpack.c.bf16 %v1682, %v1681
        %v1793 = vpack.c.bf16 %v1684, %v1683
        %v1794 = vpack.c.bf16 %v1686, %v1685
        %v1795 = vpack.c.bf16 %v1688, %v1687
        %v1796 = vpack.c.bf16 %v1690, %v1689
        %v1797 = vpack.c.bf16 %v1692, %v1691
        %v1798 = vpack.c.bf16 %v1694, %v1693
        %v1799 = vpack.c.bf16 %v1696, %v1695
        %v1800 = vpack.c.bf16 %v1698, %v1697
        %v1801 = vpack.c.bf16 %v1700, %v1699
        %v1802 = vpack.c.bf16 %v1702, %v1701
        %v1803 = vpack.c.bf16 %v1704, %v1703
        %v1804 = vpack.c.bf16 %v1706, %v1705
        %v1805 = vpack.c.bf16 %v1708, %v1707
        %v1806 = vpack.c.bf16 %v1710, %v1709
        %v1807 = vpack.c.bf16 %v1712, %v1711
        %v1808 = vpack.c.bf16 %v1714, %v1713
        %v1809 = vpack.c.bf16 %v1716, %v1715
        %v1810 = vpack.c.bf16 %v1718, %v1717
        %v1811 = vpack.c.bf16 %v1720, %v1719
        %v1812 = vpack.c.bf16 %v1722, %v1721
        %v1813 = vpack.c.bf16 %v1724, %v1723
        %v1814 = vpack.c.bf16 %v1726, %v1725
        %v1815 = vpack.c.bf16 %v1728, %v1727
        %v1816 = vpack.c.bf16 %v1730, %v1729
        %v1817 = vpack.c.bf16 %v1732, %v1731
        %v1818 = vpack.c.bf16 %v1734, %v1733
        %v1819 = vpack.c.bf16 %v1736, %v1735
        %v1820 = vpack.c.bf16 %v1738, %v1737
        %v1821 = vpack.c.bf16 %v1740, %v1739
        %v1822 = vpack.c.bf16 %v1742, %v1741
        %v1823 = vpack.c.bf16 %v1744, %v1743
        %v1824 = vpack.c.bf16 %v1746, %v1745
        %v1825 = vpack.c.bf16 %v1748, %v1747
        %v1826 = vpack.c.bf16 %v1750, %v1749
        %v1827 = vpack.c.bf16 %v1752, %v1751
        %v1828 = vpack.c.bf16 %v1754, %v1753
        %v1829 = vpack.c.bf16 %v1756, %v1755
        %v1830 = vpack.c.bf16 %v1758, %v1757
        %v1831 = vpack.c.bf16 %v1760, %v1759
        %v1832 = vpack.c.bf16 %v1762, %v1761
        %v1833 = vpack.c.bf16 %v1764, %v1763
        %v1834 = vpack.c.bf16 %v1766, %v1765
        %v1835 = vpack.c.bf16 %v1768, %v1767
        %v1836 = vpack.c.bf16 %v1770, %v1769
        %v1837 = vpack.c.bf16 %v1772, %v1771
        %v1838 = vpack.c.bf16 %v1774, %v1773
        %v1839 = vld [vmem:[%s6] sm:$0xf]
        %v1840 = vld [vmem:[%s6 + $0x4] sm:$0xf]
        %v1841 = vld [vmem:[%s6 + $0x8] sm:$0xf]
        %v1842 = vld [vmem:[%s6 + $0xc] sm:$0xf]
        %v1843 = vld [vmem:[%s6 + $0x10] sm:$0xf]
        %v1844 = vld [vmem:[%s6 + $0x14] sm:$0xf]
        %v1845 = vld [vmem:[%s6 + $0x18] sm:$0xf]
        %v1846 = vld [vmem:[%s6 + $0x1c] sm:$0xf]
        %v1847 = vld [vmem:[%s6 + $0x20] sm:$0xf]
        %v1848 = vld [vmem:[%s6 + $0x24] sm:$0xf]
        %v1849 = vld [vmem:[%s6 + $0x28] sm:$0xf]
        %v1850 = vld [vmem:[%s6 + $0x2c] sm:$0xf]
        %v1851 = vld [vmem:[%s6 + $0x30] sm:$0xf]
        %v1852 = vld [vmem:[%s6 + $0x34] sm:$0xf]
        %v1853 = vld [vmem:[%s6 + $0x38] sm:$0xf]
        %v1854 = vld [vmem:[%s6 + $0x3c] sm:$0xf]
        %v1855 = vld [vmem:[%s7] sm:$0x1]
        %v1857 = vlaneseq
        %v1858 = vshrl.u32 %v1857, 7
        %v1859 = vsub.s32 0, %v1858
        %v1860 = vrot.slane %v1855, %v1859
        %v1878 = vunpack.c.l.b16 %v1839
        %v1879 = vunpack.c.l.b16 %v1840
        %v1880 = vunpack.c.l.b16 %v1841
        %v1881 = vunpack.c.l.b16 %v1842
        %v1882 = vunpack.c.l.b16 %v1843
        %v1883 = vunpack.c.l.b16 %v1844
        %v1884 = vunpack.c.l.b16 %v1845
        %v1885 = vunpack.c.l.b16 %v1846
        %v1886 = vunpack.c.l.b16 %v1847
        %v1887 = vunpack.c.l.b16 %v1848
        %v1888 = vunpack.c.l.b16 %v1849
        %v1889 = vunpack.c.l.b16 %v1850
        %v1890 = vunpack.c.l.b16 %v1851
        %v1891 = vunpack.c.l.b16 %v1852
        %v1892 = vunpack.c.l.b16 %v1853
        %v1893 = vunpack.c.l.b16 %v1854
        %v1894 = vpack.c.b16 %v1879, %v1878
        %v1895 = vpack.c.b16 %v1881, %v1880
        %v1896 = vpack.c.b16 %v1883, %v1882
        %v1897 = vpack.c.b16 %v1885, %v1884
        %v1898 = vpack.c.b16 %v1887, %v1886
        %v1899 = vpack.c.b16 %v1889, %v1888
        %v1900 = vpack.c.b16 %v1891, %v1890
        %v1901 = vpack.c.b16 %v1893, %v1892
        %1910 = vmatprep.subr.bf16.mxu0 0
        %1911 = vmatpush1.bf16.msra.mxu0 %v1894
        %1912 = vmatprep.subr.bf16.mxu0 0
        %1913 = vmatpush1.bf16.msra.mxu0 %v1895
        %1914 = vmatprep.subr.bf16.mxu0 0
        %1915 = vmatpush1.bf16.msra.mxu0 %v1896
        %1916 = vmatprep.subr.bf16.mxu0 0
        %1917 = vmatpush1.bf16.msra.mxu0 %v1897
        %1918 = vmatprep.subr.bf16.mxu0 0
        %1919 = vmatpush1.bf16.msra.mxu0 %v1898
        %1920 = vmatprep.subr.bf16.mxu0 0
        %1921 = vmatpush1.bf16.msra.mxu0 %v1899
        %1922 = vmatprep.subr.bf16.mxu0 0
        %1923 = vmatpush1.bf16.msra.mxu0 %v1900
        %1924 = vmatprep.subr.bf16.mxu0 0
        %1925 = vmatpush1.bf16.msra.mxu0 %v1901
        %1926 = vmatprep.subr.bf16.mxu0 0
        %1927 = vmatpush1.bf16.msra.mxu0 0
        %1928 = vmatprep.subr.bf16.mxu0 0
        %1929 = vmatpush1.bf16.msra.mxu0 0
        %1930 = vmatprep.subr.bf16.mxu0 0
        %1931 = vmatpush1.bf16.msra.mxu0 0
        %1932 = vmatprep.subr.bf16.mxu0 0
        %1933 = vmatpush1.bf16.msra.mxu0 0
        %1934 = vmatprep.subr.bf16.mxu0 0
        %1935 = vmatpush1.bf16.msra.mxu0 0
        %1936 = vmatprep.subr.bf16.mxu0 0
        %1937 = vmatpush1.bf16.msra.mxu0 0
        %1938 = vmatprep.subr.bf16.mxu0 0
        %1939 = vmatpush1.bf16.msra.mxu0 0
        %1940 = vmatprep.subr.bf16.mxu0 0
        %1941 = vmatpush1.bf16.msra.mxu0 0
        %1942 = vmatprep.mubr.bf16.mxu0 0
        %1943 = vmatmul.mubr.bf16.gmra.mrb[0].mxu0 %v1775
        %v1944 = vpop.f32.mrb[0].mxu0
        %v1945 = vadd.f32 %v1860, %v1944
        %v1946 = vpop.f32.mrb[0].mxu0
        %v1947 = vpop.f32.mrb[0].mxu0
        %v1948 = vadd.f32 %v1860, %v1947
        %v1949 = vpop.f32.mrb[0].mxu0
        %1950 = vmatprep.mubr.bf16.mxu0 0
        %1951 = vmatmul.mubr.bf16.gmra.mrb[0].mxu0 %v1776
        %v1952 = vpop.f32.mrb[0].mxu0
        %v1953 = vadd.f32 %v1860, %v1952
        %v1954 = vpop.f32.mrb[0].mxu0
        %v1955 = vpop.f32.mrb[0].mxu0
        %v1956 = vadd.f32 %v1860, %v1955
        %v1957 = vpop.f32.mrb[0].mxu0
        %1958 = vmatprep.mubr.bf16.mxu0 0
        %1959 = vmatmul.mubr.bf16.gmra.mrb[0].mxu0 %v1777
        %v1960 = vpop.f32.mrb[0].mxu0
        %v1961 = vadd.f32 %v1860, %v1960
        %v1962 = vpop.f32.mrb[0].mxu0
        %v1963 = vpop.f32.mrb[0].mxu0
        %v1964 = vadd.f32 %v1860, %v1963
        %v1965 = vpop.f32.mrb[0].mxu0
        %1966 = vmatprep.mubr.bf16.mxu0 0
        %1967 = vmatmul.mubr.bf16.gmra.mrb[0].mxu0 %v1778
        %v1968 = vpop.f32.mrb[0].mxu0
        %v1969 = vadd.f32 %v1860, %v1968
        %v1970 = vpop.f32.mrb[0].mxu0
        %v1971 = vpop.f32.mrb[0].mxu0
        %v1972 = vadd.f32 %v1860, %v1971
        %v1973 = vpop.f32.mrb[0].mxu0
        %1974 = vmatprep.mubr.bf16.mxu0 0
        %1975 = vmatmul.mubr.bf16.gmra.mrb[0].mxu0 %v1779
        %v1976 = vpop.f32.mrb[0].mxu0
        %v1977 = vadd.f32 %v1860, %v1976
        %v1978 = vpop.f32.mrb[0].mxu0
        %v1979 = vpop.f32.mrb[0].mxu0
        %v1980 = vadd.f32 %v1860, %v1979
        %v1981 = vpop.f32.mrb[0].mxu0
        %1982 = vmatprep.mubr.bf16.mxu0 0
        %1983 = vmatmul.mubr.bf16.gmra.mrb[0].mxu0 %v1780
        %v1984 = vpop.f32.mrb[0].mxu0
        %v1985 = vadd.f32 %v1860, %v1984
        %v1986 = vpop.f32.mrb[0].mxu0
        %v1987 = vpop.f32.mrb[0].mxu0
        %v1988 = vadd.f32 %v1860, %v1987
        %v1989 = vpop.f32.mrb[0].mxu0
        %1990 = vmatprep.mubr.bf16.mxu0 0
        %1991 = vmatmul.mubr.bf16.gmra.mrb[0].mxu0 %v1781
        %v1992 = vpop.f32.mrb[0].mxu0
        %v1993 = vadd.f32 %v1860, %v1992
        %v1994 = vpop.f32.mrb[0].mxu0
        %v1995 = vpop.f32.mrb[0].mxu0
        %v1996 = vadd.f32 %v1860, %v1995
        %v1997 = vpop.f32.mrb[0].mxu0
        %1998 = vmatprep.mubr.bf16.mxu0 0
        %1999 = vmatmul.mubr.bf16.gmra.mrb[0].mxu0 %v1782
        %v2000 = vpop.f32.mrb[0].mxu0
        %v2001 = vadd.f32 %v1860, %v2000
        %v2002 = vpop.f32.mrb[0].mxu0
        %v2003 = vpop.f32.mrb[0].mxu0
        %v2004 = vadd.f32 %v1860, %v2003
        %v2005 = vpop.f32.mrb[0].mxu0
        %2006 = vmatprep.mubr.bf16.mxu0 0
        %2007 = vmatmul.mubr.bf16.gmra.mrb[0].mxu0 %v1783
        %v2008 = vpop.f32.mrb[0].mxu0
        %v2009 = vadd.f32 %v1860, %v2008
        %v2010 = vpop.f32.mrb[0].mxu0
        %v2011 = vpop.f32.mrb[0].mxu0
        %v2012 = vadd.f32 %v1860, %v2011
        %v2013 = vpop.f32.mrb[0].mxu0
        %2014 = vmatprep.mubr.bf16.mxu0 0
        %2015 = vmatmul.mubr.bf16.gmra.mrb[0].mxu0 %v1784
        %v2016 = vpop.f32.mrb[0].mxu0
        %v2017 = vadd.f32 %v1860, %v2016
        %v2018 = vpop.f32.mrb[0].mxu0
        %v2019 = vpop.f32.mrb[0].mxu0
        %v2020 = vadd.f32 %v1860, %v2019
        %v2021 = vpop.f32.mrb[0].mxu0
        %2022 = vmatprep.mubr.bf16.mxu0 0
        %2023 = vmatmul.mubr.bf16.gmra.mrb[0].mxu0 %v1785
        %v2024 = vpop.f32.mrb[0].mxu0
        %v2025 = vadd.f32 %v1860, %v2024
        %v2026 = vpop.f32.mrb[0].mxu0
        %v2027 = vpop.f32.mrb[0].mxu0
        %v2028 = vadd.f32 %v1860, %v2027
        %v2029 = vpop.f32.mrb[0].mxu0
        %2030 = vmatprep.mubr.bf16.mxu0 0
        %2031 = vmatmul.mubr.bf16.gmra.mrb[0].mxu0 %v1786
        %v2032 = vpop.f32.mrb[0].mxu0
        %v2033 = vadd.f32 %v1860, %v2032
        %v2034 = vpop.f32.mrb[0].mxu0
        %v2035 = vpop.f32.mrb[0].mxu0
        %v2036 = vadd.f32 %v1860, %v2035
        %v2037 = vpop.f32.mrb[0].mxu0
        %2038 = vmatprep.mubr.bf16.mxu0 0
        %2039 = vmatmul.mubr.bf16.gmra.mrb[0].mxu0 %v1787
        %v2040 = vpop.f32.mrb[0].mxu0
        %v2041 = vadd.f32 %v1860, %v2040
        %v2042 = vpop.f32.mrb[0].mxu0
        %v2043 = vpop.f32.mrb[0].mxu0
        %v2044 = vadd.f32 %v1860, %v2043
        %v2045 = vpop.f32.mrb[0].mxu0
        %2046 = vmatprep.mubr.bf16.mxu0 0
        %2047 = vmatmul.mubr.bf16.gmra.mrb[0].mxu0 %v1788
        %v2048 = vpop.f32.mrb[0].mxu0
        %v2049 = vadd.f32 %v1860, %v2048
        %v2050 = vpop.f32.mrb[0].mxu0
        %v2051 = vpop.f32.mrb[0].mxu0
        %v2052 = vadd.f32 %v1860, %v2051
        %v2053 = vpop.f32.mrb[0].mxu0
        %2054 = vmatprep.mubr.bf16.mxu0 0
        %2055 = vmatmul.mubr.bf16.gmra.mrb[0].mxu0 %v1789
        %v2056 = vpop.f32.mrb[0].mxu0
        %v2057 = vadd.f32 %v1860, %v2056
        %v2058 = vpop.f32.mrb[0].mxu0
        %v2059 = vpop.f32.mrb[0].mxu0
        %v2060 = vadd.f32 %v1860, %v2059
        %v2061 = vpop.f32.mrb[0].mxu0
        %2062 = vmatprep.mubr.bf16.mxu0 0
        %2063 = vmatmul.mubr.bf16.gmra.mrb[0].mxu0 %v1790
        %v2064 = vpop.f32.mrb[0].mxu0
        %v2065 = vadd.f32 %v1860, %v2064
        %v2066 = vpop.f32.mrb[0].mxu0
        %v2067 = vpop.f32.mrb[0].mxu0
        %v2068 = vadd.f32 %v1860, %v2067
        %v2069 = vpop.f32.mrb[0].mxu0
        %2070 = vmatprep.mubr.bf16.mxu0 0
        %2071 = vmatmul.mubr.bf16.gmra.mrb[0].mxu0 %v1791
        %v2072 = vpop.f32.mrb[0].mxu0
        %v2073 = vadd.f32 %v1860, %v2072
        %v2074 = vpop.f32.mrb[0].mxu0
        %v2075 = vpop.f32.mrb[0].mxu0
        %v2076 = vadd.f32 %v1860, %v2075
        %v2077 = vpop.f32.mrb[0].mxu0
        %2078 = vmatprep.mubr.bf16.mxu0 0
        %2079 = vmatmul.mubr.bf16.gmra.mrb[0].mxu0 %v1792
        %v2080 = vpop.f32.mrb[0].mxu0
        %v2081 = vadd.f32 %v1860, %v2080
        %v2082 = vpop.f32.mrb[0].mxu0
        %v2083 = vpop.f32.mrb[0].mxu0
        %v2084 = vadd.f32 %v1860, %v2083
        %v2085 = vpop.f32.mrb[0].mxu0
        %2086 = vmatprep.mubr.bf16.mxu0 0
        %2087 = vmatmul.mubr.bf16.gmra.mrb[0].mxu0 %v1793
        %v2088 = vpop.f32.mrb[0].mxu0
        %v2089 = vadd.f32 %v1860, %v2088
        %v2090 = vpop.f32.mrb[0].mxu0
        %v2091 = vpop.f32.mrb[0].mxu0
        %v2092 = vadd.f32 %v1860, %v2091
        %v2093 = vpop.f32.mrb[0].mxu0
        %2094 = vmatprep.mubr.bf16.mxu0 0
        %2095 = vmatmul.mubr.bf16.gmra.mrb[0].mxu0 %v1794
        %v2096 = vpop.f32.mrb[0].mxu0
        %v2097 = vadd.f32 %v1860, %v2096
        %v2098 = vpop.f32.mrb[0].mxu0
        %v2099 = vpop.f32.mrb[0].mxu0
        %v2100 = vadd.f32 %v1860, %v2099
        %v2101 = vpop.f32.mrb[0].mxu0
        %2102 = vmatprep.mubr.bf16.mxu0 0
        %2103 = vmatmul.mubr.bf16.gmra.mrb[0].mxu0 %v1795
        %v2104 = vpop.f32.mrb[0].mxu0
        %v2105 = vadd.f32 %v1860, %v2104
        %v2106 = vpop.f32.mrb[0].mxu0
        %v2107 = vpop.f32.mrb[0].mxu0
        %v2108 = vadd.f32 %v1860, %v2107
        %v2109 = vpop.f32.mrb[0].mxu0
        %2110 = vmatprep.mubr.bf16.mxu0 0
        %2111 = vmatmul.mubr.bf16.gmra.mrb[0].mxu0 %v1796
        %v2112 = vpop.f32.mrb[0].mxu0
        %v2113 = vadd.f32 %v1860, %v2112
        %v2114 = vpop.f32.mrb[0].mxu0
        %v2115 = vpop.f32.mrb[0].mxu0
        %v2116 = vadd.f32 %v1860, %v2115
        %v2117 = vpop.f32.mrb[0].mxu0
        %2118 = vmatprep.mubr.bf16.mxu0 0
        %2119 = vmatmul.mubr.bf16.gmra.mrb[0].mxu0 %v1797
        %v2120 = vpop.f32.mrb[0].mxu0
        %v2121 = vadd.f32 %v1860, %v2120
        %v2122 = vpop.f32.mrb[0].mxu0
        %v2123 = vpop.f32.mrb[0].mxu0
        %v2124 = vadd.f32 %v1860, %v2123
        %v2125 = vpop.f32.mrb[0].mxu0
        %2126 = vmatprep.mubr.bf16.mxu0 0
        %2127 = vmatmul.mubr.bf16.gmra.mrb[0].mxu0 %v1798
        %v2128 = vpop.f32.mrb[0].mxu0
        %v2129 = vadd.f32 %v1860, %v2128
        %v2130 = vpop.f32.mrb[0].mxu0
        %v2131 = vpop.f32.mrb[0].mxu0
        %v2132 = vadd.f32 %v1860, %v2131
        %v2133 = vpop.f32.mrb[0].mxu0
        %2134 = vmatprep.mubr.bf16.mxu0 0
        %2135 = vmatmul.mubr.bf16.gmra.mrb[0].mxu0 %v1799
        %v2136 = vpop.f32.mrb[0].mxu0
        %v2137 = vadd.f32 %v1860, %v2136
        %v2138 = vpop.f32.mrb[0].mxu0
        %v2139 = vpop.f32.mrb[0].mxu0
        %v2140 = vadd.f32 %v1860, %v2139
        %v2141 = vpop.f32.mrb[0].mxu0
        %2142 = vmatprep.mubr.bf16.mxu0 0
        %2143 = vmatmul.mubr.bf16.gmra.mrb[0].mxu0 %v1800
        %v2144 = vpop.f32.mrb[0].mxu0
        %v2145 = vadd.f32 %v1860, %v2144
        %v2146 = vpop.f32.mrb[0].mxu0
        %v2147 = vpop.f32.mrb[0].mxu0
        %v2148 = vadd.f32 %v1860, %v2147
        %v2149 = vpop.f32.mrb[0].mxu0
        %2150 = vmatprep.mubr.bf16.mxu0 0
        %2151 = vmatmul.mubr.bf16.gmra.mrb[0].mxu0 %v1801
        %v2152 = vpop.f32.mrb[0].mxu0
        %v2153 = vadd.f32 %v1860, %v2152
        %v2154 = vpop.f32.mrb[0].mxu0
        %v2155 = vpop.f32.mrb[0].mxu0
        %v2156 = vadd.f32 %v1860, %v2155
        %v2157 = vpop.f32.mrb[0].mxu0
        %2158 = vmatprep.mubr.bf16.mxu0 0
        %2159 = vmatmul.mubr.bf16.gmra.mrb[0].mxu0 %v1802
        %v2160 = vpop.f32.mrb[0].mxu0
        %v2161 = vadd.f32 %v1860, %v2160
        %v2162 = vpop.f32.mrb[0].mxu0
        %v2163 = vpop.f32.mrb[0].mxu0
        %v2164 = vadd.f32 %v1860, %v2163
        %v2165 = vpop.f32.mrb[0].mxu0
        %2166 = vmatprep.mubr.bf16.mxu0 0
        %2167 = vmatmul.mubr.bf16.gmra.mrb[0].mxu0 %v1803
        %v2168 = vpop.f32.mrb[0].mxu0
        %v2169 = vadd.f32 %v1860, %v2168
        %v2170 = vpop.f32.mrb[0].mxu0
        %v2171 = vpop.f32.mrb[0].mxu0
        %v2172 = vadd.f32 %v1860, %v2171
        %v2173 = vpop.f32.mrb[0].mxu0
        %2174 = vmatprep.mubr.bf16.mxu0 0
        %2175 = vmatmul.mubr.bf16.gmra.mrb[0].mxu0 %v1804
        %v2176 = vpop.f32.mrb[0].mxu0
        %v2177 = vadd.f32 %v1860, %v2176
        %v2178 = vpop.f32.mrb[0].mxu0
        %v2179 = vpop.f32.mrb[0].mxu0
        %v2180 = vadd.f32 %v1860, %v2179
        %v2181 = vpop.f32.mrb[0].mxu0
        %2182 = vmatprep.mubr.bf16.mxu0 0
        %2183 = vmatmul.mubr.bf16.gmra.mrb[0].mxu0 %v1805
        %v2184 = vpop.f32.mrb[0].mxu0
        %v2185 = vadd.f32 %v1860, %v2184
        %v2186 = vpop.f32.mrb[0].mxu0
        %v2187 = vpop.f32.mrb[0].mxu0
        %v2188 = vadd.f32 %v1860, %v2187
        %v2189 = vpop.f32.mrb[0].mxu0
        %2190 = vmatprep.mubr.bf16.mxu0 0
        %2191 = vmatmul.mubr.bf16.gmra.mrb[0].mxu0 %v1806
        %v2192 = vpop.f32.mrb[0].mxu0
        %v2193 = vadd.f32 %v1860, %v2192
        %v2194 = vpop.f32.mrb[0].mxu0
        %v2195 = vpop.f32.mrb[0].mxu0
        %v2196 = vadd.f32 %v1860, %v2195
        %v2197 = vpop.f32.mrb[0].mxu0
        %2198 = vmatprep.mubr.bf16.mxu0 0
        %2199 = vmatmul.mubr.bf16.gmra.mrb[0].mxu0 %v1807
        %v2200 = vpop.f32.mrb[0].mxu0
        %v2201 = vadd.f32 %v1860, %v2200
        %v2202 = vpop.f32.mrb[0].mxu0
        %v2203 = vpop.f32.mrb[0].mxu0
        %v2204 = vadd.f32 %v1860, %v2203
        %v2205 = vpop.f32.mrb[0].mxu0
        %2206 = vmatprep.mubr.bf16.mxu0 0
        %2207 = vmatmul.mubr.bf16.gmra.mrb[0].mxu0 %v1808
        %v2208 = vpop.f32.mrb[0].mxu0
        %v2209 = vadd.f32 %v1860, %v2208
        %v2210 = vpop.f32.mrb[0].mxu0
        %v2211 = vpop.f32.mrb[0].mxu0
        %v2212 = vadd.f32 %v1860, %v2211
        %v2213 = vpop.f32.mrb[0].mxu0
        %2214 = vmatprep.mubr.bf16.mxu0 0
        %2215 = vmatmul.mubr.bf16.gmra.mrb[0].mxu0 %v1809
        %v2216 = vpop.f32.mrb[0].mxu0
        %v2217 = vadd.f32 %v1860, %v2216
        %v2218 = vpop.f32.mrb[0].mxu0
        %v2219 = vpop.f32.mrb[0].mxu0
        %v2220 = vadd.f32 %v1860, %v2219
        %v2221 = vpop.f32.mrb[0].mxu0
        %2222 = vmatprep.mubr.bf16.mxu0 0
        %2223 = vmatmul.mubr.bf16.gmra.mrb[0].mxu0 %v1810
        %v2224 = vpop.f32.mrb[0].mxu0
        %v2225 = vadd.f32 %v1860, %v2224
        %v2226 = vpop.f32.mrb[0].mxu0
        %v2227 = vpop.f32.mrb[0].mxu0
        %v2228 = vadd.f32 %v1860, %v2227
        %v2229 = vpop.f32.mrb[0].mxu0
        %2230 = vmatprep.mubr.bf16.mxu0 0
        %2231 = vmatmul.mubr.bf16.gmra.mrb[0].mxu0 %v1811
        %v2232 = vpop.f32.mrb[0].mxu0
        %v2233 = vadd.f32 %v1860, %v2232
        %v2234 = vpop.f32.mrb[0].mxu0
        %v2235 = vpop.f32.mrb[0].mxu0
        %v2236 = vadd.f32 %v1860, %v2235
        %v2237 = vpop.f32.mrb[0].mxu0
        %2238 = vmatprep.mubr.bf16.mxu0 0
        %2239 = vmatmul.mubr.bf16.gmra.mrb[0].mxu0 %v1812
        %v2240 = vpop.f32.mrb[0].mxu0
        %v2241 = vadd.f32 %v1860, %v2240
        %v2242 = vpop.f32.mrb[0].mxu0
        %v2243 = vpop.f32.mrb[0].mxu0
        %v2244 = vadd.f32 %v1860, %v2243
        %v2245 = vpop.f32.mrb[0].mxu0
        %2246 = vmatprep.mubr.bf16.mxu0 0
        %2247 = vmatmul.mubr.bf16.gmra.mrb[0].mxu0 %v1813
        %v2248 = vpop.f32.mrb[0].mxu0
        %v2249 = vadd.f32 %v1860, %v2248
        %v2250 = vpop.f32.mrb[0].mxu0
        %v2251 = vpop.f32.mrb[0].mxu0
        %v2252 = vadd.f32 %v1860, %v2251
        %v2253 = vpop.f32.mrb[0].mxu0
        %2254 = vmatprep.mubr.bf16.mxu0 0
        %2255 = vmatmul.mubr.bf16.gmra.mrb[0].mxu0 %v1814
        %v2256 = vpop.f32.mrb[0].mxu0
        %v2257 = vadd.f32 %v1860, %v2256
        %v2258 = vpop.f32.mrb[0].mxu0
        %v2259 = vpop.f32.mrb[0].mxu0
        %v2260 = vadd.f32 %v1860, %v2259
        %v2261 = vpop.f32.mrb[0].mxu0
        %2262 = vmatprep.mubr.bf16.mxu0 0
        %2263 = vmatmul.mubr.bf16.gmra.mrb[0].mxu0 %v1815
        %v2264 = vpop.f32.mrb[0].mxu0
        %v2265 = vadd.f32 %v1860, %v2264
        %v2266 = vpop.f32.mrb[0].mxu0
        %v2267 = vpop.f32.mrb[0].mxu0
        %v2268 = vadd.f32 %v1860, %v2267
        %v2269 = vpop.f32.mrb[0].mxu0
        %2270 = vmatprep.mubr.bf16.mxu0 0
        %2271 = vmatmul.mubr.bf16.gmra.mrb[0].mxu0 %v1816
        %v2272 = vpop.f32.mrb[0].mxu0
        %v2273 = vadd.f32 %v1860, %v2272
        %v2274 = vpop.f32.mrb[0].mxu0
        %v2275 = vpop.f32.mrb[0].mxu0
        %v2276 = vadd.f32 %v1860, %v2275
        %v2277 = vpop.f32.mrb[0].mxu0
        %2278 = vmatprep.mubr.bf16.mxu0 0
        %2279 = vmatmul.mubr.bf16.gmra.mrb[0].mxu0 %v1817
        %v2280 = vpop.f32.mrb[0].mxu0
        %v2281 = vadd.f32 %v1860, %v2280
        %v2282 = vpop.f32.mrb[0].mxu0
        %v2283 = vpop.f32.mrb[0].mxu0
        %v2284 = vadd.f32 %v1860, %v2283
        %v2285 = vpop.f32.mrb[0].mxu0
        %2286 = vmatprep.mubr.bf16.mxu0 0
        %2287 = vmatmul.mubr.bf16.gmra.mrb[0].mxu0 %v1818
        %v2288 = vpop.f32.mrb[0].mxu0
        %v2289 = vadd.f32 %v1860, %v2288
        %v2290 = vpop.f32.mrb[0].mxu0
        %v2291 = vpop.f32.mrb[0].mxu0
        %v2292 = vadd.f32 %v1860, %v2291
        %v2293 = vpop.f32.mrb[0].mxu0
        %2294 = vmatprep.mubr.bf16.mxu0 0
        %2295 = vmatmul.mubr.bf16.gmra.mrb[0].mxu0 %v1819
        %v2296 = vpop.f32.mrb[0].mxu0
        %v2297 = vadd.f32 %v1860, %v2296
        %v2298 = vpop.f32.mrb[0].mxu0
        %v2299 = vpop.f32.mrb[0].mxu0
        %v2300 = vadd.f32 %v1860, %v2299
        %v2301 = vpop.f32.mrb[0].mxu0
        %2302 = vmatprep.mubr.bf16.mxu0 0
        %2303 = vmatmul.mubr.bf16.gmra.mrb[0].mxu0 %v1820
        %v2304 = vpop.f32.mrb[0].mxu0
        %v2305 = vadd.f32 %v1860, %v2304
        %v2306 = vpop.f32.mrb[0].mxu0
        %v2307 = vpop.f32.mrb[0].mxu0
        %v2308 = vadd.f32 %v1860, %v2307
        %v2309 = vpop.f32.mrb[0].mxu0
        %2310 = vmatprep.mubr.bf16.mxu0 0
        %2311 = vmatmul.mubr.bf16.gmra.mrb[0].mxu0 %v1821
        %v2312 = vpop.f32.mrb[0].mxu0
        %v2313 = vadd.f32 %v1860, %v2312
        %v2314 = vpop.f32.mrb[0].mxu0
        %v2315 = vpop.f32.mrb[0].mxu0
        %v2316 = vadd.f32 %v1860, %v2315
        %v2317 = vpop.f32.mrb[0].mxu0
        %2318 = vmatprep.mubr.bf16.mxu0 0
        %2319 = vmatmul.mubr.bf16.gmra.mrb[0].mxu0 %v1822
        %v2320 = vpop.f32.mrb[0].mxu0
        %v2321 = vadd.f32 %v1860, %v2320
        %v2322 = vpop.f32.mrb[0].mxu0
        %v2323 = vpop.f32.mrb[0].mxu0
        %v2324 = vadd.f32 %v1860, %v2323
        %v2325 = vpop.f32.mrb[0].mxu0
        %2326 = vmatprep.mubr.bf16.mxu0 0
        %2327 = vmatmul.mubr.bf16.gmra.mrb[0].mxu0 %v1823
        %v2328 = vpop.f32.mrb[0].mxu0
        %v2329 = vadd.f32 %v1860, %v2328
        %v2330 = vpop.f32.mrb[0].mxu0
        %v2331 = vpop.f32.mrb[0].mxu0
        %v2332 = vadd.f32 %v1860, %v2331
        %v2333 = vpop.f32.mrb[0].mxu0
        %2334 = vmatprep.mubr.bf16.mxu0 0
        %2335 = vmatmul.mubr.bf16.gmra.mrb[0].mxu0 %v1824
        %v2336 = vpop.f32.mrb[0].mxu0
        %v2337 = vadd.f32 %v1860, %v2336
        %v2338 = vpop.f32.mrb[0].mxu0
        %v2339 = vpop.f32.mrb[0].mxu0
        %v2340 = vadd.f32 %v1860, %v2339
        %v2341 = vpop.f32.mrb[0].mxu0
        %2342 = vmatprep.mubr.bf16.mxu0 0
        %2343 = vmatmul.mubr.bf16.gmra.mrb[0].mxu0 %v1825
        %v2344 = vpop.f32.mrb[0].mxu0
        %v2345 = vadd.f32 %v1860, %v2344
        %v2346 = vpop.f32.mrb[0].mxu0
        %v2347 = vpop.f32.mrb[0].mxu0
        %v2348 = vadd.f32 %v1860, %v2347
        %v2349 = vpop.f32.mrb[0].mxu0
        %2350 = vmatprep.mubr.bf16.mxu0 0
        %2351 = vmatmul.mubr.bf16.gmra.mrb[0].mxu0 %v1826
        %v2352 = vpop.f32.mrb[0].mxu0
        %v2353 = vadd.f32 %v1860, %v2352
        %v2354 = vpop.f32.mrb[0].mxu0
        %v2355 = vpop.f32.mrb[0].mxu0
        %v2356 = vadd.f32 %v1860, %v2355
        %v2357 = vpop.f32.mrb[0].mxu0
        %2358 = vmatprep.mubr.bf16.mxu0 0
        %2359 = vmatmul.mubr.bf16.gmra.mrb[0].mxu0 %v1827
        %v2360 = vpop.f32.mrb[0].mxu0
        %v2361 = vadd.f32 %v1860, %v2360
        %v2362 = vpop.f32.mrb[0].mxu0
        %v2363 = vpop.f32.mrb[0].mxu0
        %v2364 = vadd.f32 %v1860, %v2363
        %v2365 = vpop.f32.mrb[0].mxu0
        %2366 = vmatprep.mubr.bf16.mxu0 0
        %2367 = vmatmul.mubr.bf16.gmra.mrb[0].mxu0 %v1828
        %v2368 = vpop.f32.mrb[0].mxu0
        %v2369 = vadd.f32 %v1860, %v2368
        %v2370 = vpop.f32.mrb[0].mxu0
        %v2371 = vpop.f32.mrb[0].mxu0
        %v2372 = vadd.f32 %v1860, %v2371
        %v2373 = vpop.f32.mrb[0].mxu0
        %2374 = vmatprep.mubr.bf16.mxu0 0
        %2375 = vmatmul.mubr.bf16.gmra.mrb[0].mxu0 %v1829
        %v2376 = vpop.f32.mrb[0].mxu0
        %v2377 = vadd.f32 %v1860, %v2376
        %v2378 = vpop.f32.mrb[0].mxu0
        %v2379 = vpop.f32.mrb[0].mxu0
        %v2380 = vadd.f32 %v1860, %v2379
        %v2381 = vpop.f32.mrb[0].mxu0
        %2382 = vmatprep.mubr.bf16.mxu0 0
        %2383 = vmatmul.mubr.bf16.gmra.mrb[0].mxu0 %v1830
        %v2384 = vpop.f32.mrb[0].mxu0
        %v2385 = vadd.f32 %v1860, %v2384
        %v2386 = vpop.f32.mrb[0].mxu0
        %v2387 = vpop.f32.mrb[0].mxu0
        %v2388 = vadd.f32 %v1860, %v2387
        %v2389 = vpop.f32.mrb[0].mxu0
        %2390 = vmatprep.mubr.bf16.mxu0 0
        %2391 = vmatmul.mubr.bf16.gmra.mrb[0].mxu0 %v1831
        %v2392 = vpop.f32.mrb[0].mxu0
        %v2393 = vadd.f32 %v1860, %v2392
        %v2394 = vpop.f32.mrb[0].mxu0
        %v2395 = vpop.f32.mrb[0].mxu0
        %v2396 = vadd.f32 %v1860, %v2395
        %v2397 = vpop.f32.mrb[0].mxu0
        %2398 = vmatprep.mubr.bf16.mxu0 0
        %2399 = vmatmul.mubr.bf16.gmra.mrb[0].mxu0 %v1832
        %v2400 = vpop.f32.mrb[0].mxu0
        %v2401 = vadd.f32 %v1860, %v2400
        %v2402 = vpop.f32.mrb[0].mxu0
        %v2403 = vpop.f32.mrb[0].mxu0
        %v2404 = vadd.f32 %v1860, %v2403
        %v2405 = vpop.f32.mrb[0].mxu0
        %2406 = vmatprep.mubr.bf16.mxu0 0
        %2407 = vmatmul.mubr.bf16.gmra.mrb[0].mxu0 %v1833
        %v2408 = vpop.f32.mrb[0].mxu0
        %v2409 = vadd.f32 %v1860, %v2408
        %v2410 = vpop.f32.mrb[0].mxu0
        %v2411 = vpop.f32.mrb[0].mxu0
        %v2412 = vadd.f32 %v1860, %v2411
        %v2413 = vpop.f32.mrb[0].mxu0
        %2414 = vmatprep.mubr.bf16.mxu0 0
        %2415 = vmatmul.mubr.bf16.gmra.mrb[0].mxu0 %v1834
        %v2416 = vpop.f32.mrb[0].mxu0
        %v2417 = vadd.f32 %v1860, %v2416
        %v2418 = vpop.f32.mrb[0].mxu0
        %v2419 = vpop.f32.mrb[0].mxu0
        %v2420 = vadd.f32 %v1860, %v2419
        %v2421 = vpop.f32.mrb[0].mxu0
        %2422 = vmatprep.mubr.bf16.mxu0 0
        %2423 = vmatmul.mubr.bf16.gmra.mrb[0].mxu0 %v1835
        %v2424 = vpop.f32.mrb[0].mxu0
        %v2425 = vadd.f32 %v1860, %v2424
        %v2426 = vpop.f32.mrb[0].mxu0
        %v2427 = vpop.f32.mrb[0].mxu0
        %v2428 = vadd.f32 %v1860, %v2427
        %v2429 = vpop.f32.mrb[0].mxu0
        %2430 = vmatprep.mubr.bf16.mxu0 0
        %2431 = vmatmul.mubr.bf16.gmra.mrb[0].mxu0 %v1836
        %v2432 = vpop.f32.mrb[0].mxu0
        %v2433 = vadd.f32 %v1860, %v2432
        %v2434 = vpop.f32.mrb[0].mxu0
        %v2435 = vpop.f32.mrb[0].mxu0
        %v2436 = vadd.f32 %v1860, %v2435
        %v2437 = vpop.f32.mrb[0].mxu0
        %2438 = vmatprep.mubr.bf16.mxu0 0
        %2439 = vmatmul.mubr.bf16.gmra.mrb[0].mxu0 %v1837
        %v2440 = vpop.f32.mrb[0].mxu0
        %v2441 = vadd.f32 %v1860, %v2440
        %v2442 = vpop.f32.mrb[0].mxu0
        %v2443 = vpop.f32.mrb[0].mxu0
        %v2444 = vadd.f32 %v1860, %v2443
        %v2445 = vpop.f32.mrb[0].mxu0
        %2446 = vmatprep.mubr.bf16.mxu0 0
        %2447 = vmatmul.mubr.bf16.gmra.mrb[0].mxu0 %v1838
        %v2448 = vpop.f32.mrb[0].mxu0
        %v2449 = vadd.f32 %v1860, %v2448
        %v2450 = vpop.f32.mrb[0].mxu0
        %v2451 = vpop.f32.mrb[0].mxu0
        %v2452 = vadd.f32 %v1860, %v2451
        %v2453 = vpop.f32.mrb[0].mxu0
        %2454 = vdwg.mxu0
        %v2455 = vmax.f32 %v1945, 0.0
        %v2456 = vmax.f32 %v1948, 0.0
        %v2457 = vmax.f32 %v1953, 0.0
        %v2458 = vmax.f32 %v1956, 0.0
        %v2459 = vmax.f32 %v1961, 0.0
        %v2460 = vmax.f32 %v1964, 0.0
        %v2461 = vmax.f32 %v1969, 0.0
        %v2462 = vmax.f32 %v1972, 0.0
        %v2463 = vmax.f32 %v1977, 0.0
        %v2464 = vmax.f32 %v1980, 0.0
        %v2465 = vmax.f32 %v1985, 0.0
        %v2466 = vmax.f32 %v1988, 0.0
        %v2467 = vmax.f32 %v1993, 0.0
        %v2468 = vmax.f32 %v1996, 0.0
        %v2469 = vmax.f32 %v2001, 0.0
        %v2470 = vmax.f32 %v2004, 0.0
        %v2471 = vmax.f32 %v2009, 0.0
        %v2472 = vmax.f32 %v2012, 0.0
        %v2473 = vmax.f32 %v2017, 0.0
        %v2474 = vmax.f32 %v2020, 0.0
        %v2475 = vmax.f32 %v2025, 0.0
        %v2476 = vmax.f32 %v2028, 0.0
        %v2477 = vmax.f32 %v2033, 0.0
        %v2478 = vmax.f32 %v2036, 0.0
        %v2479 = vmax.f32 %v2041, 0.0
        %v2480 = vmax.f32 %v2044, 0.0
        %v2481 = vmax.f32 %v2049, 0.0
        %v2482 = vmax.f32 %v2052, 0.0
        %v2483 = vmax.f32 %v2057, 0.0
        %v2484 = vmax.f32 %v2060, 0.0
        %v2485 = vmax.f32 %v2065, 0.0
        %v2486 = vmax.f32 %v2068, 0.0
        %v2487 = vmax.f32 %v2073, 0.0
        %v2488 = vmax.f32 %v2076, 0.0
        %v2489 = vmax.f32 %v2081, 0.0
        %v2490 = vmax.f32 %v2084, 0.0
        %v2491 = vmax.f32 %v2089, 0.0
        %v2492 = vmax.f32 %v2092, 0.0
        %v2493 = vmax.f32 %v2097, 0.0
        %v2494 = vmax.f32 %v2100, 0.0
        %v2495 = vmax.f32 %v2105, 0.0
        %v2496 = vmax.f32 %v2108, 0.0
        %v2497 = vmax.f32 %v2113, 0.0
        %v2498 = vmax.f32 %v2116, 0.0
        %v2499 = vmax.f32 %v2121, 0.0
        %v2500 = vmax.f32 %v2124, 0.0
        %v2501 = vmax.f32 %v2129, 0.0
        %v2502 = vmax.f32 %v2132, 0.0
        %v2503 = vmax.f32 %v2137, 0.0
        %v2504 = vmax.f32 %v2140, 0.0
        %v2505 = vmax.f32 %v2145, 0.0
        %v2506 = vmax.f32 %v2148, 0.0
        %v2507 = vmax.f32 %v2153, 0.0
        %v2508 = vmax.f32 %v2156, 0.0
        %v2509 = vmax.f32 %v2161, 0.0
        %v2510 = vmax.f32 %v2164, 0.0
        %v2511 = vmax.f32 %v2169, 0.0
        %v2512 = vmax.f32 %v2172, 0.0
        %v2513 = vmax.f32 %v2177, 0.0
        %v2514 = vmax.f32 %v2180, 0.0
        %v2515 = vmax.f32 %v2185, 0.0
        %v2516 = vmax.f32 %v2188, 0.0
        %v2517 = vmax.f32 %v2193, 0.0
        %v2518 = vmax.f32 %v2196, 0.0
        %v2519 = vmax.f32 %v2201, 0.0
        %v2520 = vmax.f32 %v2204, 0.0
        %v2521 = vmax.f32 %v2209, 0.0
        %v2522 = vmax.f32 %v2212, 0.0
        %v2523 = vmax.f32 %v2217, 0.0
        %v2524 = vmax.f32 %v2220, 0.0
        %v2525 = vmax.f32 %v2225, 0.0
        %v2526 = vmax.f32 %v2228, 0.0
        %v2527 = vmax.f32 %v2233, 0.0
        %v2528 = vmax.f32 %v2236, 0.0
        %v2529 = vmax.f32 %v2241, 0.0
        %v2530 = vmax.f32 %v2244, 0.0
        %v2531 = vmax.f32 %v2249, 0.0
        %v2532 = vmax.f32 %v2252, 0.0
        %v2533 = vmax.f32 %v2257, 0.0
        %v2534 = vmax.f32 %v2260, 0.0
        %v2535 = vmax.f32 %v2265, 0.0
        %v2536 = vmax.f32 %v2268, 0.0
        %v2537 = vmax.f32 %v2273, 0.0
        %v2538 = vmax.f32 %v2276, 0.0
        %v2539 = vmax.f32 %v2281, 0.0
        %v2540 = vmax.f32 %v2284, 0.0
        %v2541 = vmax.f32 %v2289, 0.0
        %v2542 = vmax.f32 %v2292, 0.0
        %v2543 = vmax.f32 %v2297, 0.0
        %v2544 = vmax.f32 %v2300, 0.0
        %v2545 = vmax.f32 %v2305, 0.0
        %v2546 = vmax.f32 %v2308, 0.0
        %v2547 = vmax.f32 %v2313, 0.0
        %v2548 = vmax.f32 %v2316, 0.0
        %v2549 = vmax.f32 %v2321, 0.0
        %v2550 = vmax.f32 %v2324, 0.0
        %v2551 = vmax.f32 %v2329, 0.0
        %v2552 = vmax.f32 %v2332, 0.0
        %v2553 = vmax.f32 %v2337, 0.0
        %v2554 = vmax.f32 %v2340, 0.0
        %v2555 = vmax.f32 %v2345, 0.0
        %v2556 = vmax.f32 %v2348, 0.0
        %v2557 = vmax.f32 %v2353, 0.0
        %v2558 = vmax.f32 %v2356, 0.0
        %v2559 = vmax.f32 %v2361, 0.0
        %v2560 = vmax.f32 %v2364, 0.0
        %v2561 = vmax.f32 %v2369, 0.0
        %v2562 = vmax.f32 %v2372, 0.0
        %v2563 = vmax.f32 %v2377, 0.0
        %v2564 = vmax.f32 %v2380, 0.0
        %v2565 = vmax.f32 %v2385, 0.0
        %v2566 = vmax.f32 %v2388, 0.0
        %v2567 = vmax.f32 %v2393, 0.0
        %v2568 = vmax.f32 %v2396, 0.0
        %v2569 = vmax.f32 %v2401, 0.0
        %v2570 = vmax.f32 %v2404, 0.0
        %v2571 = vmax.f32 %v2409, 0.0
        %v2572 = vmax.f32 %v2412, 0.0
        %v2573 = vmax.f32 %v2417, 0.0
        %v2574 = vmax.f32 %v2420, 0.0
        %v2575 = vmax.f32 %v2425, 0.0
        %v2576 = vmax.f32 %v2428, 0.0
        %v2577 = vmax.f32 %v2433, 0.0
        %v2578 = vmax.f32 %v2436, 0.0
        %v2579 = vmax.f32 %v2441, 0.0
        %v2580 = vmax.f32 %v2444, 0.0
        %v2581 = vmax.f32 %v2449, 0.0
        %v2582 = vmax.f32 %v2452, 0.0
        %v2583 = vpack.c.bf16 %v2456, %v2455
        %v2584 = vpack.c.bf16 %v2458, %v2457
        %v2585 = vpack.c.bf16 %v2460, %v2459
        %v2586 = vpack.c.bf16 %v2462, %v2461
        %v2587 = vpack.c.bf16 %v2464, %v2463
        %v2588 = vpack.c.bf16 %v2466, %v2465
        %v2589 = vpack.c.bf16 %v2468, %v2467
        %v2590 = vpack.c.bf16 %v2470, %v2469
        %v2591 = vpack.c.bf16 %v2472, %v2471
        %v2592 = vpack.c.bf16 %v2474, %v2473
        %v2593 = vpack.c.bf16 %v2476, %v2475
        %v2594 = vpack.c.bf16 %v2478, %v2477
        %v2595 = vpack.c.bf16 %v2480, %v2479
        %v2596 = vpack.c.bf16 %v2482, %v2481
        %v2597 = vpack.c.bf16 %v2484, %v2483
        %v2598 = vpack.c.bf16 %v2486, %v2485
        %v2599 = vpack.c.bf16 %v2488, %v2487
        %v2600 = vpack.c.bf16 %v2490, %v2489
        %v2601 = vpack.c.bf16 %v2492, %v2491
        %v2602 = vpack.c.bf16 %v2494, %v2493
        %v2603 = vpack.c.bf16 %v2496, %v2495
        %v2604 = vpack.c.bf16 %v2498, %v2497
        %v2605 = vpack.c.bf16 %v2500, %v2499
        %v2606 = vpack.c.bf16 %v2502, %v2501
        %v2607 = vpack.c.bf16 %v2504, %v2503
        %v2608 = vpack.c.bf16 %v2506, %v2505
        %v2609 = vpack.c.bf16 %v2508, %v2507
        %v2610 = vpack.c.bf16 %v2510, %v2509
        %v2611 = vpack.c.bf16 %v2512, %v2511
        %v2612 = vpack.c.bf16 %v2514, %v2513
        %v2613 = vpack.c.bf16 %v2516, %v2515
        %v2614 = vpack.c.bf16 %v2518, %v2517
        %v2615 = vpack.c.bf16 %v2520, %v2519
        %v2616 = vpack.c.bf16 %v2522, %v2521
        %v2617 = vpack.c.bf16 %v2524, %v2523
        %v2618 = vpack.c.bf16 %v2526, %v2525
        %v2619 = vpack.c.bf16 %v2528, %v2527
        %v2620 = vpack.c.bf16 %v2530, %v2529
        %v2621 = vpack.c.bf16 %v2532, %v2531
        %v2622 = vpack.c.bf16 %v2534, %v2533
        %v2623 = vpack.c.bf16 %v2536, %v2535
        %v2624 = vpack.c.bf16 %v2538, %v2537
        %v2625 = vpack.c.bf16 %v2540, %v2539
        %v2626 = vpack.c.bf16 %v2542, %v2541
        %v2627 = vpack.c.bf16 %v2544, %v2543
        %v2628 = vpack.c.bf16 %v2546, %v2545
        %v2629 = vpack.c.bf16 %v2548, %v2547
        %v2630 = vpack.c.bf16 %v2550, %v2549
        %v2631 = vpack.c.bf16 %v2552, %v2551
        %v2632 = vpack.c.bf16 %v2554, %v2553
        %v2633 = vpack.c.bf16 %v2556, %v2555
        %v2634 = vpack.c.bf16 %v2558, %v2557
        %v2635 = vpack.c.bf16 %v2560, %v2559
        %v2636 = vpack.c.bf16 %v2562, %v2561
        %v2637 = vpack.c.bf16 %v2564, %v2563
        %v2638 = vpack.c.bf16 %v2566, %v2565
        %v2639 = vpack.c.bf16 %v2568, %v2567
        %v2640 = vpack.c.bf16 %v2570, %v2569
        %v2641 = vpack.c.bf16 %v2572, %v2571
        %v2642 = vpack.c.bf16 %v2574, %v2573
        %v2643 = vpack.c.bf16 %v2576, %v2575
        %v2644 = vpack.c.bf16 %v2578, %v2577
        %v2645 = vpack.c.bf16 %v2580, %v2579
        %v2646 = vpack.c.bf16 %v2582, %v2581
        %v2647 = vld [vmem:[%s8] sm:$0xf]
        %v2648 = vld [vmem:[%s8 + $0x4] sm:$0xf]
        %v2649 = vld [vmem:[%s8 + $0x8] sm:$0xf]
        %v2650 = vld [vmem:[%s8 + $0xc] sm:$0xf]
        %v2655 = vunpack.c.l.b16 %v2647
        %v2656 = vunpack.c.l.b16 %v2648
        %v2657 = vunpack.c.l.b16 %v2649
        %v2658 = vunpack.c.l.b16 %v2650
        %v2659 = vpack.c.b16 %v2656, %v2655
        %v2660 = vpack.c.b16 %v2658, %v2657
        %vm2663 = vcmask 261120
        %v2665 = vsel %vm2663, %v2583, 0
        %v2668 = vsel %vm2663, %v2584, 0
        %v2671 = vsel %vm2663, %v2585, 0
        %v2674 = vsel %vm2663, %v2586, 0
        %v2677 = vsel %vm2663, %v2587, 0
        %v2680 = vsel %vm2663, %v2588, 0
        %v2683 = vsel %vm2663, %v2589, 0
        %v2686 = vsel %vm2663, %v2590, 0
        %v2689 = vsel %vm2663, %v2591, 0
        %v2692 = vsel %vm2663, %v2592, 0
        %v2695 = vsel %vm2663, %v2593, 0
        %v2698 = vsel %vm2663, %v2594, 0
        %v2701 = vsel %vm2663, %v2595, 0
        %v2704 = vsel %vm2663, %v2596, 0
        %v2707 = vsel %vm2663, %v2597, 0
        %v2710 = vsel %vm2663, %v2598, 0
        %v2713 = vsel %vm2663, %v2599, 0
        %v2716 = vsel %vm2663, %v2600, 0
        %v2719 = vsel %vm2663, %v2601, 0
        %v2722 = vsel %vm2663, %v2602, 0
        %v2725 = vsel %vm2663, %v2603, 0
        %v2728 = vsel %vm2663, %v2604, 0
        %v2731 = vsel %vm2663, %v2605, 0
        %v2734 = vsel %vm2663, %v2606, 0
        %v2737 = vsel %vm2663, %v2607, 0
        %v2740 = vsel %vm2663, %v2608, 0
        %v2743 = vsel %vm2663, %v2609, 0
        %v2746 = vsel %vm2663, %v2610, 0
        %v2749 = vsel %vm2663, %v2611, 0
        %v2752 = vsel %vm2663, %v2612, 0
        %v2755 = vsel %vm2663, %v2613, 0
        %v2758 = vsel %vm2663, %v2614, 0
        %v2761 = vsel %vm2663, %v2615, 0
        %v2764 = vsel %vm2663, %v2616, 0
        %v2767 = vsel %vm2663, %v2617, 0
        %v2770 = vsel %vm2663, %v2618, 0
        %v2773 = vsel %vm2663, %v2619, 0
        %v2776 = vsel %vm2663, %v2620, 0
        %v2779 = vsel %vm2663, %v2621, 0
        %v2782 = vsel %vm2663, %v2622, 0
        %v2785 = vsel %vm2663, %v2623, 0
        %v2788 = vsel %vm2663, %v2624, 0
        %v2791 = vsel %vm2663, %v2625, 0
        %v2794 = vsel %vm2663, %v2626, 0
        %v2797 = vsel %vm2663, %v2627, 0
        %v2800 = vsel %vm2663, %v2628, 0
        %v2803 = vsel %vm2663, %v2629, 0
        %v2806 = vsel %vm2663, %v2630, 0
        %v2809 = vsel %vm2663, %v2631, 0
        %v2812 = vsel %vm2663, %v2632, 0
        %v2815 = vsel %vm2663, %v2633, 0
        %v2818 = vsel %vm2663, %v2634, 0
        %v2821 = vsel %vm2663, %v2635, 0
        %v2824 = vsel %vm2663, %v2636, 0
        %v2827 = vsel %vm2663, %v2637, 0
        %v2830 = vsel %vm2663, %v2638, 0
        %v2833 = vsel %vm2663, %v2639, 0
        %v2836 = vsel %vm2663, %v2640, 0
        %v2839 = vsel %vm2663, %v2641, 0
        %v2842 = vsel %vm2663, %v2642, 0
        %v2845 = vsel %vm2663, %v2643, 0
        %v2848 = vsel %vm2663, %v2644, 0
        %v2851 = vsel %vm2663, %v2645, 0
        %v2854 = vsel %vm2663, %v2646, 0
        %2856 = vmatprep.subr.bf16.mxu0 0
        %2857 = vmatpush1.bf16.msra.mxu0 %v2659
        %2858 = vmatprep.subr.bf16.mxu0 0
        %2859 = vmatpush1.bf16.msra.mxu0 %v2660
        %2860 = vmatprep.subr.bf16.mxu0 0
        %2861 = vmatpush1.bf16.msra.mxu0 0
        %2862 = vmatprep.subr.bf16.mxu0 0
        %2863 = vmatpush1.bf16.msra.mxu0 0
        %2864 = vmatprep.subr.bf16.mxu0 0
        %2865 = vmatpush1.bf16.msra.mxu0 0
        %2866 = vmatprep.subr.bf16.mxu0 0
        %2867 = vmatpush1.bf16.msra.mxu0 0
        %2868 = vmatprep.subr.bf16.mxu0 0
        %2869 = vmatpush1.bf16.msra.mxu0 0
        %2870 = vmatprep.subr.bf16.mxu0 0
        %2871 = vmatpush1.bf16.msra.mxu0 0
        %2872 = vmatprep.subr.bf16.mxu0 0
        %2873 = vmatpush1.bf16.msra.mxu0 0
        %2874 = vmatprep.subr.bf16.mxu0 0
        %2875 = vmatpush1.bf16.msra.mxu0 0
        %2876 = vmatprep.subr.bf16.mxu0 0
        %2877 = vmatpush1.bf16.msra.mxu0 0
        %2878 = vmatprep.subr.bf16.mxu0 0
        %2879 = vmatpush1.bf16.msra.mxu0 0
        %2880 = vmatprep.subr.bf16.mxu0 0
        %2881 = vmatpush1.bf16.msra.mxu0 0
        %2882 = vmatprep.subr.bf16.mxu0 0
        %2883 = vmatpush1.bf16.msra.mxu0 0
        %2884 = vmatprep.subr.bf16.mxu0 0
        %2885 = vmatpush1.bf16.msra.mxu0 0
        %2886 = vmatprep.subr.bf16.mxu0 0
        %2887 = vmatpush1.bf16.msra.mxu0 0
        %2888 = vmatprep.mubr.bf16.mxu0 0
        %2889 = vmatmul.mubr.bf16.gmra.mrb[0].mxu0 %v2665
        %v2890 = vpop.f32.mrb[0].mxu0
        %v2891 = vadd.f32 0.0, %v2890
        %v2892 = vpop.f32.mrb[0].mxu0
        %v2893 = vpop.f32.mrb[0].mxu0
        %v2894 = vadd.f32 0.0, %v2893
        %v2895 = vpop.f32.mrb[0].mxu0
        %2896 = vmatprep.mubr.bf16.mxu0 0
        %2897 = vmatmul.mubr.bf16.gmra.mrb[0].mxu0 %v2668
        %v2898 = vpop.f32.mrb[0].mxu0
        %v2899 = vadd.f32 0.0, %v2898
        %v2900 = vpop.f32.mrb[0].mxu0
        %v2901 = vpop.f32.mrb[0].mxu0
        %v2902 = vadd.f32 0.0, %v2901
        %v2903 = vpop.f32.mrb[0].mxu0
        %2904 = vmatprep.mubr.bf16.mxu0 0
        %2905 = vmatmul.mubr.bf16.gmra.mrb[0].mxu0 %v2671
        %v2906 = vpop.f32.mrb[0].mxu0
        %v2907 = vadd.f32 0.0, %v2906
        %v2908 = vpop.f32.mrb[0].mxu0
        %v2909 = vpop.f32.mrb[0].mxu0
        %v2910 = vadd.f32 0.0, %v2909
        %v2911 = vpop.f32.mrb[0].mxu0
        %2912 = vmatprep.mubr.bf16.mxu0 0
        %2913 = vmatmul.mubr.bf16.gmra.mrb[0].mxu0 %v2674
        %v2914 = vpop.f32.mrb[0].mxu0
        %v2915 = vadd.f32 0.0, %v2914
        %v2916 = vpop.f32.mrb[0].mxu0
        %v2917 = vpop.f32.mrb[0].mxu0
        %v2918 = vadd.f32 0.0, %v2917
        %v2919 = vpop.f32.mrb[0].mxu0
        %2920 = vmatprep.mubr.bf16.mxu0 0
        %2921 = vmatmul.mubr.bf16.gmra.mrb[0].mxu0 %v2677
        %v2922 = vpop.f32.mrb[0].mxu0
        %v2923 = vadd.f32 0.0, %v2922
        %v2924 = vpop.f32.mrb[0].mxu0
        %v2925 = vpop.f32.mrb[0].mxu0
        %v2926 = vadd.f32 0.0, %v2925
        %v2927 = vpop.f32.mrb[0].mxu0
        %2928 = vmatprep.mubr.bf16.mxu0 0
        %2929 = vmatmul.mubr.bf16.gmra.mrb[0].mxu0 %v2680
        %v2930 = vpop.f32.mrb[0].mxu0
        %v2931 = vadd.f32 0.0, %v2930
        %v2932 = vpop.f32.mrb[0].mxu0
        %v2933 = vpop.f32.mrb[0].mxu0
        %v2934 = vadd.f32 0.0, %v2933
        %v2935 = vpop.f32.mrb[0].mxu0
        %2936 = vmatprep.mubr.bf16.mxu0 0
        %2937 = vmatmul.mubr.bf16.gmra.mrb[0].mxu0 %v2683
        %v2938 = vpop.f32.mrb[0].mxu0
        %v2939 = vadd.f32 0.0, %v2938
        %v2940 = vpop.f32.mrb[0].mxu0
        %v2941 = vpop.f32.mrb[0].mxu0
        %v2942 = vadd.f32 0.0, %v2941
        %v2943 = vpop.f32.mrb[0].mxu0
        %2944 = vmatprep.mubr.bf16.mxu0 0
        %2945 = vmatmul.mubr.bf16.gmra.mrb[0].mxu0 %v2686
        %v2946 = vpop.f32.mrb[0].mxu0
        %v2947 = vadd.f32 0.0, %v2946
        %v2948 = vpop.f32.mrb[0].mxu0
        %v2949 = vpop.f32.mrb[0].mxu0
        %v2950 = vadd.f32 0.0, %v2949
        %v2951 = vpop.f32.mrb[0].mxu0
        %2952 = vmatprep.mubr.bf16.mxu0 0
        %2953 = vmatmul.mubr.bf16.gmra.mrb[0].mxu0 %v2689
        %v2954 = vpop.f32.mrb[0].mxu0
        %v2955 = vadd.f32 0.0, %v2954
        %v2956 = vpop.f32.mrb[0].mxu0
        %v2957 = vpop.f32.mrb[0].mxu0
        %v2958 = vadd.f32 0.0, %v2957
        %v2959 = vpop.f32.mrb[0].mxu0
        %2960 = vmatprep.mubr.bf16.mxu0 0
        %2961 = vmatmul.mubr.bf16.gmra.mrb[0].mxu0 %v2692
        %v2962 = vpop.f32.mrb[0].mxu0
        %v2963 = vadd.f32 0.0, %v2962
        %v2964 = vpop.f32.mrb[0].mxu0
        %v2965 = vpop.f32.mrb[0].mxu0
        %v2966 = vadd.f32 0.0, %v2965
        %v2967 = vpop.f32.mrb[0].mxu0
        %2968 = vmatprep.mubr.bf16.mxu0 0
        %2969 = vmatmul.mubr.bf16.gmra.mrb[0].mxu0 %v2695
        %v2970 = vpop.f32.mrb[0].mxu0
        %v2971 = vadd.f32 0.0, %v2970
        %v2972 = vpop.f32.mrb[0].mxu0
        %v2973 = vpop.f32.mrb[0].mxu0
        %v2974 = vadd.f32 0.0, %v2973
        %v2975 = vpop.f32.mrb[0].mxu0
        %2976 = vmatprep.mubr.bf16.mxu0 0
        %2977 = vmatmul.mubr.bf16.gmra.mrb[0].mxu0 %v2698
        %v2978 = vpop.f32.mrb[0].mxu0
        %v2979 = vadd.f32 0.0, %v2978
        %v2980 = vpop.f32.mrb[0].mxu0
        %v2981 = vpop.f32.mrb[0].mxu0
        %v2982 = vadd.f32 0.0, %v2981
        %v2983 = vpop.f32.mrb[0].mxu0
        %2984 = vmatprep.mubr.bf16.mxu0 0
        %2985 = vmatmul.mubr.bf16.gmra.mrb[0].mxu0 %v2701
        %v2986 = vpop.f32.mrb[0].mxu0
        %v2987 = vadd.f32 0.0, %v2986
        %v2988 = vpop.f32.mrb[0].mxu0
        %v2989 = vpop.f32.mrb[0].mxu0
        %v2990 = vadd.f32 0.0, %v2989
        %v2991 = vpop.f32.mrb[0].mxu0
        %2992 = vmatprep.mubr.bf16.mxu0 0
        %2993 = vmatmul.mubr.bf16.gmra.mrb[0].mxu0 %v2704
        %v2994 = vpop.f32.mrb[0].mxu0
        %v2995 = vadd.f32 0.0, %v2994
        %v2996 = vpop.f32.mrb[0].mxu0
        %v2997 = vpop.f32.mrb[0].mxu0
        %v2998 = vadd.f32 0.0, %v2997
        %v2999 = vpop.f32.mrb[0].mxu0
        %3000 = vmatprep.mubr.bf16.mxu0 0
        %3001 = vmatmul.mubr.bf16.gmra.mrb[0].mxu0 %v2707
        %v3002 = vpop.f32.mrb[0].mxu0
        %v3003 = vadd.f32 0.0, %v3002
        %v3004 = vpop.f32.mrb[0].mxu0
        %v3005 = vpop.f32.mrb[0].mxu0
        %v3006 = vadd.f32 0.0, %v3005
        %v3007 = vpop.f32.mrb[0].mxu0
        %3008 = vmatprep.mubr.bf16.mxu0 0
        %3009 = vmatmul.mubr.bf16.gmra.mrb[0].mxu0 %v2710
        %v3010 = vpop.f32.mrb[0].mxu0
        %v3011 = vadd.f32 0.0, %v3010
        %v3012 = vpop.f32.mrb[0].mxu0
        %v3013 = vpop.f32.mrb[0].mxu0
        %v3014 = vadd.f32 0.0, %v3013
        %v3015 = vpop.f32.mrb[0].mxu0
        %3016 = vmatprep.mubr.bf16.mxu0 0
        %3017 = vmatmul.mubr.bf16.gmra.mrb[0].mxu0 %v2713
        %v3018 = vpop.f32.mrb[0].mxu0
        %v3019 = vadd.f32 0.0, %v3018
        %v3020 = vpop.f32.mrb[0].mxu0
        %v3021 = vpop.f32.mrb[0].mxu0
        %v3022 = vadd.f32 0.0, %v3021
        %v3023 = vpop.f32.mrb[0].mxu0
        %3024 = vmatprep.mubr.bf16.mxu0 0
        %3025 = vmatmul.mubr.bf16.gmra.mrb[0].mxu0 %v2716
        %v3026 = vpop.f32.mrb[0].mxu0
        %v3027 = vadd.f32 0.0, %v3026
        %v3028 = vpop.f32.mrb[0].mxu0
        %v3029 = vpop.f32.mrb[0].mxu0
        %v3030 = vadd.f32 0.0, %v3029
        %v3031 = vpop.f32.mrb[0].mxu0
        %3032 = vmatprep.mubr.bf16.mxu0 0
        %3033 = vmatmul.mubr.bf16.gmra.mrb[0].mxu0 %v2719
        %v3034 = vpop.f32.mrb[0].mxu0
        %v3035 = vadd.f32 0.0, %v3034
        %v3036 = vpop.f32.mrb[0].mxu0
        %v3037 = vpop.f32.mrb[0].mxu0
        %v3038 = vadd.f32 0.0, %v3037
        %v3039 = vpop.f32.mrb[0].mxu0
        %3040 = vmatprep.mubr.bf16.mxu0 0
        %3041 = vmatmul.mubr.bf16.gmra.mrb[0].mxu0 %v2722
        %v3042 = vpop.f32.mrb[0].mxu0
        %v3043 = vadd.f32 0.0, %v3042
        %v3044 = vpop.f32.mrb[0].mxu0
        %v3045 = vpop.f32.mrb[0].mxu0
        %v3046 = vadd.f32 0.0, %v3045
        %v3047 = vpop.f32.mrb[0].mxu0
        %3048 = vmatprep.mubr.bf16.mxu0 0
        %3049 = vmatmul.mubr.bf16.gmra.mrb[0].mxu0 %v2725
        %v3050 = vpop.f32.mrb[0].mxu0
        %v3051 = vadd.f32 0.0, %v3050
        %v3052 = vpop.f32.mrb[0].mxu0
        %v3053 = vpop.f32.mrb[0].mxu0
        %v3054 = vadd.f32 0.0, %v3053
        %v3055 = vpop.f32.mrb[0].mxu0
        %3056 = vmatprep.mubr.bf16.mxu0 0
        %3057 = vmatmul.mubr.bf16.gmra.mrb[0].mxu0 %v2728
        %v3058 = vpop.f32.mrb[0].mxu0
        %v3059 = vadd.f32 0.0, %v3058
        %v3060 = vpop.f32.mrb[0].mxu0
        %v3061 = vpop.f32.mrb[0].mxu0
        %v3062 = vadd.f32 0.0, %v3061
        %v3063 = vpop.f32.mrb[0].mxu0
        %3064 = vmatprep.mubr.bf16.mxu0 0
        %3065 = vmatmul.mubr.bf16.gmra.mrb[0].mxu0 %v2731
        %v3066 = vpop.f32.mrb[0].mxu0
        %v3067 = vadd.f32 0.0, %v3066
        %v3068 = vpop.f32.mrb[0].mxu0
        %v3069 = vpop.f32.mrb[0].mxu0
        %v3070 = vadd.f32 0.0, %v3069
        %v3071 = vpop.f32.mrb[0].mxu0
        %3072 = vmatprep.mubr.bf16.mxu0 0
        %3073 = vmatmul.mubr.bf16.gmra.mrb[0].mxu0 %v2734
        %v3074 = vpop.f32.mrb[0].mxu0
        %v3075 = vadd.f32 0.0, %v3074
        %v3076 = vpop.f32.mrb[0].mxu0
        %v3077 = vpop.f32.mrb[0].mxu0
        %v3078 = vadd.f32 0.0, %v3077
        %v3079 = vpop.f32.mrb[0].mxu0
        %3080 = vmatprep.mubr.bf16.mxu0 0
        %3081 = vmatmul.mubr.bf16.gmra.mrb[0].mxu0 %v2737
        %v3082 = vpop.f32.mrb[0].mxu0
        %v3083 = vadd.f32 0.0, %v3082
        %v3084 = vpop.f32.mrb[0].mxu0
        %v3085 = vpop.f32.mrb[0].mxu0
        %v3086 = vadd.f32 0.0, %v3085
        %v3087 = vpop.f32.mrb[0].mxu0
        %3088 = vmatprep.mubr.bf16.mxu0 0
        %3089 = vmatmul.mubr.bf16.gmra.mrb[0].mxu0 %v2740
        %v3090 = vpop.f32.mrb[0].mxu0
        %v3091 = vadd.f32 0.0, %v3090
        %v3092 = vpop.f32.mrb[0].mxu0
        %v3093 = vpop.f32.mrb[0].mxu0
        %v3094 = vadd.f32 0.0, %v3093
        %v3095 = vpop.f32.mrb[0].mxu0
        %3096 = vmatprep.mubr.bf16.mxu0 0
        %3097 = vmatmul.mubr.bf16.gmra.mrb[0].mxu0 %v2743
        %v3098 = vpop.f32.mrb[0].mxu0
        %v3099 = vadd.f32 0.0, %v3098
        %v3100 = vpop.f32.mrb[0].mxu0
        %v3101 = vpop.f32.mrb[0].mxu0
        %v3102 = vadd.f32 0.0, %v3101
        %v3103 = vpop.f32.mrb[0].mxu0
        %3104 = vmatprep.mubr.bf16.mxu0 0
        %3105 = vmatmul.mubr.bf16.gmra.mrb[0].mxu0 %v2746
        %v3106 = vpop.f32.mrb[0].mxu0
        %v3107 = vadd.f32 0.0, %v3106
        %v3108 = vpop.f32.mrb[0].mxu0
        %v3109 = vpop.f32.mrb[0].mxu0
        %v3110 = vadd.f32 0.0, %v3109
        %v3111 = vpop.f32.mrb[0].mxu0
        %3112 = vmatprep.mubr.bf16.mxu0 0
        %3113 = vmatmul.mubr.bf16.gmra.mrb[0].mxu0 %v2749
        %v3114 = vpop.f32.mrb[0].mxu0
        %v3115 = vadd.f32 0.0, %v3114
        %v3116 = vpop.f32.mrb[0].mxu0
        %v3117 = vpop.f32.mrb[0].mxu0
        %v3118 = vadd.f32 0.0, %v3117
        %v3119 = vpop.f32.mrb[0].mxu0
        %3120 = vmatprep.mubr.bf16.mxu0 0
        %3121 = vmatmul.mubr.bf16.gmra.mrb[0].mxu0 %v2752
        %v3122 = vpop.f32.mrb[0].mxu0
        %v3123 = vadd.f32 0.0, %v3122
        %v3124 = vpop.f32.mrb[0].mxu0
        %v3125 = vpop.f32.mrb[0].mxu0
        %v3126 = vadd.f32 0.0, %v3125
        %v3127 = vpop.f32.mrb[0].mxu0
        %3128 = vmatprep.mubr.bf16.mxu0 0
        %3129 = vmatmul.mubr.bf16.gmra.mrb[0].mxu0 %v2755
        %v3130 = vpop.f32.mrb[0].mxu0
        %v3131 = vadd.f32 0.0, %v3130
        %v3132 = vpop.f32.mrb[0].mxu0
        %v3133 = vpop.f32.mrb[0].mxu0
        %v3134 = vadd.f32 0.0, %v3133
        %v3135 = vpop.f32.mrb[0].mxu0
        %3136 = vmatprep.mubr.bf16.mxu0 0
        %3137 = vmatmul.mubr.bf16.gmra.mrb[0].mxu0 %v2758
        %v3138 = vpop.f32.mrb[0].mxu0
        %v3139 = vadd.f32 0.0, %v3138
        %v3140 = vpop.f32.mrb[0].mxu0
        %v3141 = vpop.f32.mrb[0].mxu0
        %v3142 = vadd.f32 0.0, %v3141
        %v3143 = vpop.f32.mrb[0].mxu0
        %3144 = vmatprep.mubr.bf16.mxu0 0
        %3145 = vmatmul.mubr.bf16.gmra.mrb[0].mxu0 %v2761
        %v3146 = vpop.f32.mrb[0].mxu0
        %v3147 = vadd.f32 0.0, %v3146
        %v3148 = vpop.f32.mrb[0].mxu0
        %v3149 = vpop.f32.mrb[0].mxu0
        %v3150 = vadd.f32 0.0, %v3149
        %v3151 = vpop.f32.mrb[0].mxu0
        %3152 = vmatprep.mubr.bf16.mxu0 0
        %3153 = vmatmul.mubr.bf16.gmra.mrb[0].mxu0 %v2764
        %v3154 = vpop.f32.mrb[0].mxu0
        %v3155 = vadd.f32 0.0, %v3154
        %v3156 = vpop.f32.mrb[0].mxu0
        %v3157 = vpop.f32.mrb[0].mxu0
        %v3158 = vadd.f32 0.0, %v3157
        %v3159 = vpop.f32.mrb[0].mxu0
        %3160 = vmatprep.mubr.bf16.mxu0 0
        %3161 = vmatmul.mubr.bf16.gmra.mrb[0].mxu0 %v2767
        %v3162 = vpop.f32.mrb[0].mxu0
        %v3163 = vadd.f32 0.0, %v3162
        %v3164 = vpop.f32.mrb[0].mxu0
        %v3165 = vpop.f32.mrb[0].mxu0
        %v3166 = vadd.f32 0.0, %v3165
        %v3167 = vpop.f32.mrb[0].mxu0
        %3168 = vmatprep.mubr.bf16.mxu0 0
        %3169 = vmatmul.mubr.bf16.gmra.mrb[0].mxu0 %v2770
        %v3170 = vpop.f32.mrb[0].mxu0
        %v3171 = vadd.f32 0.0, %v3170
        %v3172 = vpop.f32.mrb[0].mxu0
        %v3173 = vpop.f32.mrb[0].mxu0
        %v3174 = vadd.f32 0.0, %v3173
        %v3175 = vpop.f32.mrb[0].mxu0
        %3176 = vmatprep.mubr.bf16.mxu0 0
        %3177 = vmatmul.mubr.bf16.gmra.mrb[0].mxu0 %v2773
        %v3178 = vpop.f32.mrb[0].mxu0
        %v3179 = vadd.f32 0.0, %v3178
        %v3180 = vpop.f32.mrb[0].mxu0
        %v3181 = vpop.f32.mrb[0].mxu0
        %v3182 = vadd.f32 0.0, %v3181
        %v3183 = vpop.f32.mrb[0].mxu0
        %3184 = vmatprep.mubr.bf16.mxu0 0
        %3185 = vmatmul.mubr.bf16.gmra.mrb[0].mxu0 %v2776
        %v3186 = vpop.f32.mrb[0].mxu0
        %v3187 = vadd.f32 0.0, %v3186
        %v3188 = vpop.f32.mrb[0].mxu0
        %v3189 = vpop.f32.mrb[0].mxu0
        %v3190 = vadd.f32 0.0, %v3189
        %v3191 = vpop.f32.mrb[0].mxu0
        %3192 = vmatprep.mubr.bf16.mxu0 0
        %3193 = vmatmul.mubr.bf16.gmra.mrb[0].mxu0 %v2779
        %v3194 = vpop.f32.mrb[0].mxu0
        %v3195 = vadd.f32 0.0, %v3194
        %v3196 = vpop.f32.mrb[0].mxu0
        %v3197 = vpop.f32.mrb[0].mxu0
        %v3198 = vadd.f32 0.0, %v3197
        %v3199 = vpop.f32.mrb[0].mxu0
        %3200 = vmatprep.mubr.bf16.mxu0 0
        %3201 = vmatmul.mubr.bf16.gmra.mrb[0].mxu0 %v2782
        %v3202 = vpop.f32.mrb[0].mxu0
        %v3203 = vadd.f32 0.0, %v3202
        %v3204 = vpop.f32.mrb[0].mxu0
        %v3205 = vpop.f32.mrb[0].mxu0
        %v3206 = vadd.f32 0.0, %v3205
        %v3207 = vpop.f32.mrb[0].mxu0
        %3208 = vmatprep.mubr.bf16.mxu0 0
        %3209 = vmatmul.mubr.bf16.gmra.mrb[0].mxu0 %v2785
        %v3210 = vpop.f32.mrb[0].mxu0
        %v3211 = vadd.f32 0.0, %v3210
        %v3212 = vpop.f32.mrb[0].mxu0
        %v3213 = vpop.f32.mrb[0].mxu0
        %v3214 = vadd.f32 0.0, %v3213
        %v3215 = vpop.f32.mrb[0].mxu0
        %3216 = vmatprep.mubr.bf16.mxu0 0
        %3217 = vmatmul.mubr.bf16.gmra.mrb[0].mxu0 %v2788
        %v3218 = vpop.f32.mrb[0].mxu0
        %v3219 = vadd.f32 0.0, %v3218
        %v3220 = vpop.f32.mrb[0].mxu0
        %v3221 = vpop.f32.mrb[0].mxu0
        %v3222 = vadd.f32 0.0, %v3221
        %v3223 = vpop.f32.mrb[0].mxu0
        %3224 = vmatprep.mubr.bf16.mxu0 0
        %3225 = vmatmul.mubr.bf16.gmra.mrb[0].mxu0 %v2791
        %v3226 = vpop.f32.mrb[0].mxu0
        %v3227 = vadd.f32 0.0, %v3226
        %v3228 = vpop.f32.mrb[0].mxu0
        %v3229 = vpop.f32.mrb[0].mxu0
        %v3230 = vadd.f32 0.0, %v3229
        %v3231 = vpop.f32.mrb[0].mxu0
        %3232 = vmatprep.mubr.bf16.mxu0 0
        %3233 = vmatmul.mubr.bf16.gmra.mrb[0].mxu0 %v2794
        %v3234 = vpop.f32.mrb[0].mxu0
        %v3235 = vadd.f32 0.0, %v3234
        %v3236 = vpop.f32.mrb[0].mxu0
        %v3237 = vpop.f32.mrb[0].mxu0
        %v3238 = vadd.f32 0.0, %v3237
        %v3239 = vpop.f32.mrb[0].mxu0
        %3240 = vmatprep.mubr.bf16.mxu0 0
        %3241 = vmatmul.mubr.bf16.gmra.mrb[0].mxu0 %v2797
        %v3242 = vpop.f32.mrb[0].mxu0
        %v3243 = vadd.f32 0.0, %v3242
        %v3244 = vpop.f32.mrb[0].mxu0
        %v3245 = vpop.f32.mrb[0].mxu0
        %v3246 = vadd.f32 0.0, %v3245
        %v3247 = vpop.f32.mrb[0].mxu0
        %3248 = vmatprep.mubr.bf16.mxu0 0
        %3249 = vmatmul.mubr.bf16.gmra.mrb[0].mxu0 %v2800
        %v3250 = vpop.f32.mrb[0].mxu0
        %v3251 = vadd.f32 0.0, %v3250
        %v3252 = vpop.f32.mrb[0].mxu0
        %v3253 = vpop.f32.mrb[0].mxu0
        %v3254 = vadd.f32 0.0, %v3253
        %v3255 = vpop.f32.mrb[0].mxu0
        %3256 = vmatprep.mubr.bf16.mxu0 0
        %3257 = vmatmul.mubr.bf16.gmra.mrb[0].mxu0 %v2803
        %v3258 = vpop.f32.mrb[0].mxu0
        %v3259 = vadd.f32 0.0, %v3258
        %v3260 = vpop.f32.mrb[0].mxu0
        %v3261 = vpop.f32.mrb[0].mxu0
        %v3262 = vadd.f32 0.0, %v3261
        %v3263 = vpop.f32.mrb[0].mxu0
        %3264 = vmatprep.mubr.bf16.mxu0 0
        %3265 = vmatmul.mubr.bf16.gmra.mrb[0].mxu0 %v2806
        %v3266 = vpop.f32.mrb[0].mxu0
        %v3267 = vadd.f32 0.0, %v3266
        %v3268 = vpop.f32.mrb[0].mxu0
        %v3269 = vpop.f32.mrb[0].mxu0
        %v3270 = vadd.f32 0.0, %v3269
        %v3271 = vpop.f32.mrb[0].mxu0
        %3272 = vmatprep.mubr.bf16.mxu0 0
        %3273 = vmatmul.mubr.bf16.gmra.mrb[0].mxu0 %v2809
        %v3274 = vpop.f32.mrb[0].mxu0
        %v3275 = vadd.f32 0.0, %v3274
        %v3276 = vpop.f32.mrb[0].mxu0
        %v3277 = vpop.f32.mrb[0].mxu0
        %v3278 = vadd.f32 0.0, %v3277
        %v3279 = vpop.f32.mrb[0].mxu0
        %3280 = vmatprep.mubr.bf16.mxu0 0
        %3281 = vmatmul.mubr.bf16.gmra.mrb[0].mxu0 %v2812
        %v3282 = vpop.f32.mrb[0].mxu0
        %v3283 = vadd.f32 0.0, %v3282
        %v3284 = vpop.f32.mrb[0].mxu0
        %v3285 = vpop.f32.mrb[0].mxu0
        %v3286 = vadd.f32 0.0, %v3285
        %v3287 = vpop.f32.mrb[0].mxu0
        %3288 = vmatprep.mubr.bf16.mxu0 0
        %3289 = vmatmul.mubr.bf16.gmra.mrb[0].mxu0 %v2815
        %v3290 = vpop.f32.mrb[0].mxu0
        %v3291 = vadd.f32 0.0, %v3290
        %v3292 = vpop.f32.mrb[0].mxu0
        %v3293 = vpop.f32.mrb[0].mxu0
        %v3294 = vadd.f32 0.0, %v3293
        %v3295 = vpop.f32.mrb[0].mxu0
        %3296 = vmatprep.mubr.bf16.mxu0 0
        %3297 = vmatmul.mubr.bf16.gmra.mrb[0].mxu0 %v2818
        %v3298 = vpop.f32.mrb[0].mxu0
        %v3299 = vadd.f32 0.0, %v3298
        %v3300 = vpop.f32.mrb[0].mxu0
        %v3301 = vpop.f32.mrb[0].mxu0
        %v3302 = vadd.f32 0.0, %v3301
        %v3303 = vpop.f32.mrb[0].mxu0
        %3304 = vmatprep.mubr.bf16.mxu0 0
        %3305 = vmatmul.mubr.bf16.gmra.mrb[0].mxu0 %v2821
        %v3306 = vpop.f32.mrb[0].mxu0
        %v3307 = vadd.f32 0.0, %v3306
        %v3308 = vpop.f32.mrb[0].mxu0
        %v3309 = vpop.f32.mrb[0].mxu0
        %v3310 = vadd.f32 0.0, %v3309
        %v3311 = vpop.f32.mrb[0].mxu0
        %3312 = vmatprep.mubr.bf16.mxu0 0
        %3313 = vmatmul.mubr.bf16.gmra.mrb[0].mxu0 %v2824
        %v3314 = vpop.f32.mrb[0].mxu0
        %v3315 = vadd.f32 0.0, %v3314
        %v3316 = vpop.f32.mrb[0].mxu0
        %v3317 = vpop.f32.mrb[0].mxu0
        %v3318 = vadd.f32 0.0, %v3317
        %v3319 = vpop.f32.mrb[0].mxu0
        %3320 = vmatprep.mubr.bf16.mxu0 0
        %3321 = vmatmul.mubr.bf16.gmra.mrb[0].mxu0 %v2827
        %v3322 = vpop.f32.mrb[0].mxu0
        %v3323 = vadd.f32 0.0, %v3322
        %v3324 = vpop.f32.mrb[0].mxu0
        %v3325 = vpop.f32.mrb[0].mxu0
        %v3326 = vadd.f32 0.0, %v3325
        %v3327 = vpop.f32.mrb[0].mxu0
        %3328 = vmatprep.mubr.bf16.mxu0 0
        %3329 = vmatmul.mubr.bf16.gmra.mrb[0].mxu0 %v2830
        %v3330 = vpop.f32.mrb[0].mxu0
        %v3331 = vadd.f32 0.0, %v3330
        %v3332 = vpop.f32.mrb[0].mxu0
        %v3333 = vpop.f32.mrb[0].mxu0
        %v3334 = vadd.f32 0.0, %v3333
        %v3335 = vpop.f32.mrb[0].mxu0
        %3336 = vmatprep.mubr.bf16.mxu0 0
        %3337 = vmatmul.mubr.bf16.gmra.mrb[0].mxu0 %v2833
        %v3338 = vpop.f32.mrb[0].mxu0
        %v3339 = vadd.f32 0.0, %v3338
        %v3340 = vpop.f32.mrb[0].mxu0
        %v3341 = vpop.f32.mrb[0].mxu0
        %v3342 = vadd.f32 0.0, %v3341
        %v3343 = vpop.f32.mrb[0].mxu0
        %3344 = vmatprep.mubr.bf16.mxu0 0
        %3345 = vmatmul.mubr.bf16.gmra.mrb[0].mxu0 %v2836
        %v3346 = vpop.f32.mrb[0].mxu0
        %v3347 = vadd.f32 0.0, %v3346
        %v3348 = vpop.f32.mrb[0].mxu0
        %v3349 = vpop.f32.mrb[0].mxu0
        %v3350 = vadd.f32 0.0, %v3349
        %v3351 = vpop.f32.mrb[0].mxu0
        %3352 = vmatprep.mubr.bf16.mxu0 0
        %3353 = vmatmul.mubr.bf16.gmra.mrb[0].mxu0 %v2839
        %v3354 = vpop.f32.mrb[0].mxu0
        %v3355 = vadd.f32 0.0, %v3354
        %v3356 = vpop.f32.mrb[0].mxu0
        %v3357 = vpop.f32.mrb[0].mxu0
        %v3358 = vadd.f32 0.0, %v3357
        %v3359 = vpop.f32.mrb[0].mxu0
        %3360 = vmatprep.mubr.bf16.mxu0 0
        %3361 = vmatmul.mubr.bf16.gmra.mrb[0].mxu0 %v2842
        %v3362 = vpop.f32.mrb[0].mxu0
        %v3363 = vadd.f32 0.0, %v3362
        %v3364 = vpop.f32.mrb[0].mxu0
        %v3365 = vpop.f32.mrb[0].mxu0
        %v3366 = vadd.f32 0.0, %v3365
        %v3367 = vpop.f32.mrb[0].mxu0
        %3368 = vmatprep.mubr.bf16.mxu0 0
        %3369 = vmatmul.mubr.bf16.gmra.mrb[0].mxu0 %v2845
        %v3370 = vpop.f32.mrb[0].mxu0
        %v3371 = vadd.f32 0.0, %v3370
        %v3372 = vpop.f32.mrb[0].mxu0
        %v3373 = vpop.f32.mrb[0].mxu0
        %v3374 = vadd.f32 0.0, %v3373
        %v3375 = vpop.f32.mrb[0].mxu0
        %3376 = vmatprep.mubr.bf16.mxu0 0
        %3377 = vmatmul.mubr.bf16.gmra.mrb[0].mxu0 %v2848
        %v3378 = vpop.f32.mrb[0].mxu0
        %v3379 = vadd.f32 0.0, %v3378
        %v3380 = vpop.f32.mrb[0].mxu0
        %v3381 = vpop.f32.mrb[0].mxu0
        %v3382 = vadd.f32 0.0, %v3381
        %v3383 = vpop.f32.mrb[0].mxu0
        %3384 = vmatprep.mubr.bf16.mxu0 0
        %3385 = vmatmul.mubr.bf16.gmra.mrb[0].mxu0 %v2851
        %v3386 = vpop.f32.mrb[0].mxu0
        %v3387 = vadd.f32 0.0, %v3386
        %v3388 = vpop.f32.mrb[0].mxu0
        %v3389 = vpop.f32.mrb[0].mxu0
        %v3390 = vadd.f32 0.0, %v3389
        %v3391 = vpop.f32.mrb[0].mxu0
        %3392 = vmatprep.mubr.bf16.mxu0 0
        %3393 = vmatmul.mubr.bf16.gmra.mrb[0].mxu0 %v2854
        %v3394 = vpop.f32.mrb[0].mxu0
        %v3395 = vadd.f32 0.0, %v3394
        %v3396 = vpop.f32.mrb[0].mxu0
        %v3397 = vpop.f32.mrb[0].mxu0
        %v3398 = vadd.f32 0.0, %v3397
        %v3399 = vpop.f32.mrb[0].mxu0
        %3400 = vdwg.mxu0
        %v3401 = vld [vmem:[%s664] sm:$0x1]
        %v3402 = vld [vmem:[%s664 + $0x1] sm:$0x1]
        %v3403 = vld [vmem:[%s664 + $0x2] sm:$0x1]
        %v3404 = vld [vmem:[%s664 + $0x3] sm:$0x1]
        %v3405 = vld [vmem:[%s664 + $0x4] sm:$0x1]
        %v3406 = vld [vmem:[%s664 + $0x5] sm:$0x1]
        %v3407 = vld [vmem:[%s664 + $0x6] sm:$0x1]
        %v3408 = vld [vmem:[%s664 + $0x7] sm:$0x1]
        %v3409 = vld [vmem:[%s664 + $0x8] sm:$0x1]
        %v3410 = vld [vmem:[%s664 + $0x9] sm:$0x1]
        %v3411 = vld [vmem:[%s664 + $0xa] sm:$0x1]
        %v3412 = vld [vmem:[%s664 + $0xb] sm:$0x1]
        %v3413 = vld [vmem:[%s664 + $0xc] sm:$0x1]
        %v3414 = vld [vmem:[%s664 + $0xd] sm:$0x1]
        %v3415 = vld [vmem:[%s664 + $0xe] sm:$0x1]
        %v3416 = vld [vmem:[%s664 + $0xf] sm:$0x1]
        %v3433 = vlaneseq
        %v3434 = vshrl.u32 %v3433, 7
        %v3435 = vsub.s32 0, %v3434
        %v3436 = vrot.slane %v3401, %v3435
        %v3437 = vlaneseq
        %v3438 = vshrl.u32 %v3437, 7
        %v3439 = vsub.s32 0, %v3438
        %v3440 = vrot.slane %v3402, %v3439
        %v3441 = vlaneseq
        %v3442 = vshrl.u32 %v3441, 7
        %v3443 = vsub.s32 0, %v3442
        %v3444 = vrot.slane %v3403, %v3443
        %v3445 = vlaneseq
        %v3446 = vshrl.u32 %v3445, 7
        %v3447 = vsub.s32 0, %v3446
        %v3448 = vrot.slane %v3404, %v3447
        %v3449 = vlaneseq
        %v3450 = vshrl.u32 %v3449, 7
        %v3451 = vsub.s32 0, %v3450
        %v3452 = vrot.slane %v3405, %v3451
        %v3453 = vlaneseq
        %v3454 = vshrl.u32 %v3453, 7
        %v3455 = vsub.s32 0, %v3454
        %v3456 = vrot.slane %v3406, %v3455
        %v3457 = vlaneseq
        %v3458 = vshrl.u32 %v3457, 7
        %v3459 = vsub.s32 0, %v3458
        %v3460 = vrot.slane %v3407, %v3459
        %v3461 = vlaneseq
        %v3462 = vshrl.u32 %v3461, 7
        %v3463 = vsub.s32 0, %v3462
        %v3464 = vrot.slane %v3408, %v3463
        %v3465 = vlaneseq
        %v3466 = vshrl.u32 %v3465, 7
        %v3467 = vsub.s32 0, %v3466
        %v3468 = vrot.slane %v3409, %v3467
        %v3469 = vlaneseq
        %v3470 = vshrl.u32 %v3469, 7
        %v3471 = vsub.s32 0, %v3470
        %v3472 = vrot.slane %v3410, %v3471
        %v3473 = vlaneseq
        %v3474 = vshrl.u32 %v3473, 7
        %v3475 = vsub.s32 0, %v3474
        %v3476 = vrot.slane %v3411, %v3475
        %v3477 = vlaneseq
        %v3478 = vshrl.u32 %v3477, 7
        %v3479 = vsub.s32 0, %v3478
        %v3480 = vrot.slane %v3412, %v3479
        %v3481 = vlaneseq
        %v3482 = vshrl.u32 %v3481, 7
        %v3483 = vsub.s32 0, %v3482
        %v3484 = vrot.slane %v3413, %v3483
        %v3485 = vlaneseq
        %v3486 = vshrl.u32 %v3485, 7
        %v3487 = vsub.s32 0, %v3486
        %v3488 = vrot.slane %v3414, %v3487
        %v3489 = vlaneseq
        %v3490 = vshrl.u32 %v3489, 7
        %v3491 = vsub.s32 0, %v3490
        %v3492 = vrot.slane %v3415, %v3491
        %v3493 = vlaneseq
        %v3494 = vshrl.u32 %v3493, 7
        %v3495 = vsub.s32 0, %v3494
        %v3496 = vrot.slane %v3416, %v3495
        %v3513 = vadd.f32 %v2891, %v3436
        %v3514 = vadd.f32 %v2894, %v3436
        %v3515 = vadd.f32 %v2899, %v3436
        %v3516 = vadd.f32 %v2902, %v3436
        %v3517 = vadd.f32 %v2907, %v3436
        %v3518 = vadd.f32 %v2910, %v3436
        %v3519 = vadd.f32 %v2915, %v3436
        %v3520 = vadd.f32 %v2918, %v3436
        %v3521 = vadd.f32 %v2923, %v3440
        %v3522 = vadd.f32 %v2926, %v3440
        %v3523 = vadd.f32 %v2931, %v3440
        %v3524 = vadd.f32 %v2934, %v3440
        %v3525 = vadd.f32 %v2939, %v3440
        %v3526 = vadd.f32 %v2942, %v3440
        %v3527 = vadd.f32 %v2947, %v3440
        %v3528 = vadd.f32 %v2950, %v3440
        %v3529 = vadd.f32 %v2955, %v3444
        %v3530 = vadd.f32 %v2958, %v3444
        %v3531 = vadd.f32 %v2963, %v3444
        %v3532 = vadd.f32 %v2966, %v3444
        %v3533 = vadd.f32 %v2971, %v3444
        %v3534 = vadd.f32 %v2974, %v3444
        %v3535 = vadd.f32 %v2979, %v3444
        %v3536 = vadd.f32 %v2982, %v3444
        %v3537 = vadd.f32 %v2987, %v3448
        %v3538 = vadd.f32 %v2990, %v3448
        %v3539 = vadd.f32 %v2995, %v3448
        %v3540 = vadd.f32 %v2998, %v3448
        %v3541 = vadd.f32 %v3003, %v3448
        %v3542 = vadd.f32 %v3006, %v3448
        %v3543 = vadd.f32 %v3011, %v3448
        %v3544 = vadd.f32 %v3014, %v3448
        %v3545 = vadd.f32 %v3019, %v3452
        %v3546 = vadd.f32 %v3022, %v3452
        %v3547 = vadd.f32 %v3027, %v3452
        %v3548 = vadd.f32 %v3030, %v3452
        %v3549 = vadd.f32 %v3035, %v3452
        %v3550 = vadd.f32 %v3038, %v3452
        %v3551 = vadd.f32 %v3043, %v3452
        %v3552 = vadd.f32 %v3046, %v3452
        %v3553 = vadd.f32 %v3051, %v3456
        %v3554 = vadd.f32 %v3054, %v3456
        %v3555 = vadd.f32 %v3059, %v3456
        %v3556 = vadd.f32 %v3062, %v3456
        %v3557 = vadd.f32 %v3067, %v3456
        %v3558 = vadd.f32 %v3070, %v3456
        %v3559 = vadd.f32 %v3075, %v3456
        %v3560 = vadd.f32 %v3078, %v3456
        %v3561 = vadd.f32 %v3083, %v3460
        %v3562 = vadd.f32 %v3086, %v3460
        %v3563 = vadd.f32 %v3091, %v3460
        %v3564 = vadd.f32 %v3094, %v3460
        %v3565 = vadd.f32 %v3099, %v3460
        %v3566 = vadd.f32 %v3102, %v3460
        %v3567 = vadd.f32 %v3107, %v3460
        %v3568 = vadd.f32 %v3110, %v3460
        %v3569 = vadd.f32 %v3115, %v3464
        %v3570 = vadd.f32 %v3118, %v3464
        %v3571 = vadd.f32 %v3123, %v3464
        %v3572 = vadd.f32 %v3126, %v3464
        %v3573 = vadd.f32 %v3131, %v3464
        %v3574 = vadd.f32 %v3134, %v3464
        %v3575 = vadd.f32 %v3139, %v3464
        %v3576 = vadd.f32 %v3142, %v3464
        %v3577 = vadd.f32 %v3147, %v3468
        %v3578 = vadd.f32 %v3150, %v3468
        %v3579 = vadd.f32 %v3155, %v3468
        %v3580 = vadd.f32 %v3158, %v3468
        %v3581 = vadd.f32 %v3163, %v3468
        %v3582 = vadd.f32 %v3166, %v3468
        %v3583 = vadd.f32 %v3171, %v3468
        %v3584 = vadd.f32 %v3174, %v3468
        %v3585 = vadd.f32 %v3179, %v3472
        %v3586 = vadd.f32 %v3182, %v3472
        %v3587 = vadd.f32 %v3187, %v3472
        %v3588 = vadd.f32 %v3190, %v3472
        %v3589 = vadd.f32 %v3195, %v3472
        %v3590 = vadd.f32 %v3198, %v3472
        %v3591 = vadd.f32 %v3203, %v3472
        %v3592 = vadd.f32 %v3206, %v3472
        %v3593 = vadd.f32 %v3211, %v3476
        %v3594 = vadd.f32 %v3214, %v3476
        %v3595 = vadd.f32 %v3219, %v3476
        %v3596 = vadd.f32 %v3222, %v3476
        %v3597 = vadd.f32 %v3227, %v3476
        %v3598 = vadd.f32 %v3230, %v3476
        %v3599 = vadd.f32 %v3235, %v3476
        %v3600 = vadd.f32 %v3238, %v3476
        %v3601 = vadd.f32 %v3243, %v3480
        %v3602 = vadd.f32 %v3246, %v3480
        %v3603 = vadd.f32 %v3251, %v3480
        %v3604 = vadd.f32 %v3254, %v3480
        %v3605 = vadd.f32 %v3259, %v3480
        %v3606 = vadd.f32 %v3262, %v3480
        %v3607 = vadd.f32 %v3267, %v3480
        %v3608 = vadd.f32 %v3270, %v3480
        %v3609 = vadd.f32 %v3275, %v3484
        %v3610 = vadd.f32 %v3278, %v3484
        %v3611 = vadd.f32 %v3283, %v3484
        %v3612 = vadd.f32 %v3286, %v3484
        %v3613 = vadd.f32 %v3291, %v3484
        %v3614 = vadd.f32 %v3294, %v3484
        %v3615 = vadd.f32 %v3299, %v3484
        %v3616 = vadd.f32 %v3302, %v3484
        %v3617 = vadd.f32 %v3307, %v3488
        %v3618 = vadd.f32 %v3310, %v3488
        %v3619 = vadd.f32 %v3315, %v3488
        %v3620 = vadd.f32 %v3318, %v3488
        %v3621 = vadd.f32 %v3323, %v3488
        %v3622 = vadd.f32 %v3326, %v3488
        %v3623 = vadd.f32 %v3331, %v3488
        %v3624 = vadd.f32 %v3334, %v3488
        %v3625 = vadd.f32 %v3339, %v3492
        %v3626 = vadd.f32 %v3342, %v3492
        %v3627 = vadd.f32 %v3347, %v3492
        %v3628 = vadd.f32 %v3350, %v3492
        %v3629 = vadd.f32 %v3355, %v3492
        %v3630 = vadd.f32 %v3358, %v3492
        %v3631 = vadd.f32 %v3363, %v3492
        %v3632 = vadd.f32 %v3366, %v3492
        %v3633 = vadd.f32 %v3371, %v3496
        %v3634 = vadd.f32 %v3374, %v3496
        %v3635 = vadd.f32 %v3379, %v3496
        %v3636 = vadd.f32 %v3382, %v3496
        %v3637 = vadd.f32 %v3387, %v3496
        %v3638 = vadd.f32 %v3390, %v3496
        %v3639 = vadd.f32 %v3395, %v3496
        %v3640 = vadd.f32 %v3398, %v3496
        %v3641 = vmax.f32 %v3513, 0.0
        %v3642 = vmax.f32 %v3514, 0.0
        %v3643 = vmax.f32 %v3515, 0.0
        %v3644 = vmax.f32 %v3516, 0.0
        %v3645 = vmax.f32 %v3517, 0.0
        %v3646 = vmax.f32 %v3518, 0.0
        %v3647 = vmax.f32 %v3519, 0.0
        %v3648 = vmax.f32 %v3520, 0.0
        %v3649 = vmax.f32 %v3521, 0.0
        %v3650 = vmax.f32 %v3522, 0.0
        %v3651 = vmax.f32 %v3523, 0.0
        %v3652 = vmax.f32 %v3524, 0.0
        %v3653 = vmax.f32 %v3525, 0.0
        %v3654 = vmax.f32 %v3526, 0.0
        %v3655 = vmax.f32 %v3527, 0.0
        %v3656 = vmax.f32 %v3528, 0.0
        %v3657 = vmax.f32 %v3529, 0.0
        %v3658 = vmax.f32 %v3530, 0.0
        %v3659 = vmax.f32 %v3531, 0.0
        %v3660 = vmax.f32 %v3532, 0.0
        %v3661 = vmax.f32 %v3533, 0.0
        %v3662 = vmax.f32 %v3534, 0.0
        %v3663 = vmax.f32 %v3535, 0.0
        %v3664 = vmax.f32 %v3536, 0.0
        %v3665 = vmax.f32 %v3537, 0.0
        %v3666 = vmax.f32 %v3538, 0.0
        %v3667 = vmax.f32 %v3539, 0.0
        %v3668 = vmax.f32 %v3540, 0.0
        %v3669 = vmax.f32 %v3541, 0.0
        %v3670 = vmax.f32 %v3542, 0.0
        %v3671 = vmax.f32 %v3543, 0.0
        %v3672 = vmax.f32 %v3544, 0.0
        %v3673 = vmax.f32 %v3545, 0.0
        %v3674 = vmax.f32 %v3546, 0.0
        %v3675 = vmax.f32 %v3547, 0.0
        %v3676 = vmax.f32 %v3548, 0.0
        %v3677 = vmax.f32 %v3549, 0.0
        %v3678 = vmax.f32 %v3550, 0.0
        %v3679 = vmax.f32 %v3551, 0.0
        %v3680 = vmax.f32 %v3552, 0.0
        %v3681 = vmax.f32 %v3553, 0.0
        %v3682 = vmax.f32 %v3554, 0.0
        %v3683 = vmax.f32 %v3555, 0.0
        %v3684 = vmax.f32 %v3556, 0.0
        %v3685 = vmax.f32 %v3557, 0.0
        %v3686 = vmax.f32 %v3558, 0.0
        %v3687 = vmax.f32 %v3559, 0.0
        %v3688 = vmax.f32 %v3560, 0.0
        %v3689 = vmax.f32 %v3561, 0.0
        %v3690 = vmax.f32 %v3562, 0.0
        %v3691 = vmax.f32 %v3563, 0.0
        %v3692 = vmax.f32 %v3564, 0.0
        %v3693 = vmax.f32 %v3565, 0.0
        %v3694 = vmax.f32 %v3566, 0.0
        %v3695 = vmax.f32 %v3567, 0.0
        %v3696 = vmax.f32 %v3568, 0.0
        %v3697 = vmax.f32 %v3569, 0.0
        %v3698 = vmax.f32 %v3570, 0.0
        %v3699 = vmax.f32 %v3571, 0.0
        %v3700 = vmax.f32 %v3572, 0.0
        %v3701 = vmax.f32 %v3573, 0.0
        %v3702 = vmax.f32 %v3574, 0.0
        %v3703 = vmax.f32 %v3575, 0.0
        %v3704 = vmax.f32 %v3576, 0.0
        %v3705 = vmax.f32 %v3577, 0.0
        %v3706 = vmax.f32 %v3578, 0.0
        %v3707 = vmax.f32 %v3579, 0.0
        %v3708 = vmax.f32 %v3580, 0.0
        %v3709 = vmax.f32 %v3581, 0.0
        %v3710 = vmax.f32 %v3582, 0.0
        %v3711 = vmax.f32 %v3583, 0.0
        %v3712 = vmax.f32 %v3584, 0.0
        %v3713 = vmax.f32 %v3585, 0.0
        %v3714 = vmax.f32 %v3586, 0.0
        %v3715 = vmax.f32 %v3587, 0.0
        %v3716 = vmax.f32 %v3588, 0.0
        %v3717 = vmax.f32 %v3589, 0.0
        %v3718 = vmax.f32 %v3590, 0.0
        %v3719 = vmax.f32 %v3591, 0.0
        %v3720 = vmax.f32 %v3592, 0.0
        %v3721 = vmax.f32 %v3593, 0.0
        %v3722 = vmax.f32 %v3594, 0.0
        %v3723 = vmax.f32 %v3595, 0.0
        %v3724 = vmax.f32 %v3596, 0.0
        %v3725 = vmax.f32 %v3597, 0.0
        %v3726 = vmax.f32 %v3598, 0.0
        %v3727 = vmax.f32 %v3599, 0.0
        %v3728 = vmax.f32 %v3600, 0.0
        %v3729 = vmax.f32 %v3601, 0.0
        %v3730 = vmax.f32 %v3602, 0.0
        %v3731 = vmax.f32 %v3603, 0.0
        %v3732 = vmax.f32 %v3604, 0.0
        %v3733 = vmax.f32 %v3605, 0.0
        %v3734 = vmax.f32 %v3606, 0.0
        %v3735 = vmax.f32 %v3607, 0.0
        %v3736 = vmax.f32 %v3608, 0.0
        %v3737 = vmax.f32 %v3609, 0.0
        %v3738 = vmax.f32 %v3610, 0.0
        %v3739 = vmax.f32 %v3611, 0.0
        %v3740 = vmax.f32 %v3612, 0.0
        %v3741 = vmax.f32 %v3613, 0.0
        %v3742 = vmax.f32 %v3614, 0.0
        %v3743 = vmax.f32 %v3615, 0.0
        %v3744 = vmax.f32 %v3616, 0.0
        %v3745 = vmax.f32 %v3617, 0.0
        %v3746 = vmax.f32 %v3618, 0.0
        %v3747 = vmax.f32 %v3619, 0.0
        %v3748 = vmax.f32 %v3620, 0.0
        %v3749 = vmax.f32 %v3621, 0.0
        %v3750 = vmax.f32 %v3622, 0.0
        %v3751 = vmax.f32 %v3623, 0.0
        %v3752 = vmax.f32 %v3624, 0.0
        %v3753 = vmax.f32 %v3625, 0.0
        %v3754 = vmax.f32 %v3626, 0.0
        %v3755 = vmax.f32 %v3627, 0.0
        %v3756 = vmax.f32 %v3628, 0.0
        %v3757 = vmax.f32 %v3629, 0.0
        %v3758 = vmax.f32 %v3630, 0.0
        %v3759 = vmax.f32 %v3631, 0.0
        %v3760 = vmax.f32 %v3632, 0.0
        %v3761 = vmax.f32 %v3633, 0.0
        %v3762 = vmax.f32 %v3634, 0.0
        %v3763 = vmax.f32 %v3635, 0.0
        %v3764 = vmax.f32 %v3636, 0.0
        %v3765 = vmax.f32 %v3637, 0.0
        %v3766 = vmax.f32 %v3638, 0.0
        %v3767 = vmax.f32 %v3639, 0.0
        %v3768 = vmax.f32 %v3640, 0.0
        %v3769 = vpack.c.bf16 %v3642, %v3641
        %v3770 = vpack.c.bf16 %v3644, %v3643
        %v3771 = vpack.c.bf16 %v3646, %v3645
        %v3772 = vpack.c.bf16 %v3648, %v3647
        %v3773 = vpack.c.bf16 %v3650, %v3649
        %v3774 = vpack.c.bf16 %v3652, %v3651
        %v3775 = vpack.c.bf16 %v3654, %v3653
        %v3776 = vpack.c.bf16 %v3656, %v3655
        %v3777 = vpack.c.bf16 %v3658, %v3657
        %v3778 = vpack.c.bf16 %v3660, %v3659
        %v3779 = vpack.c.bf16 %v3662, %v3661
        %v3780 = vpack.c.bf16 %v3664, %v3663
        %v3781 = vpack.c.bf16 %v3666, %v3665
        %v3782 = vpack.c.bf16 %v3668, %v3667
        %v3783 = vpack.c.bf16 %v3670, %v3669
        %v3784 = vpack.c.bf16 %v3672, %v3671
        %v3785 = vpack.c.bf16 %v3674, %v3673
        %v3786 = vpack.c.bf16 %v3676, %v3675
        %v3787 = vpack.c.bf16 %v3678, %v3677
        %v3788 = vpack.c.bf16 %v3680, %v3679
        %v3789 = vpack.c.bf16 %v3682, %v3681
        %v3790 = vpack.c.bf16 %v3684, %v3683
        %v3791 = vpack.c.bf16 %v3686, %v3685
        %v3792 = vpack.c.bf16 %v3688, %v3687
        %v3793 = vpack.c.bf16 %v3690, %v3689
        %v3794 = vpack.c.bf16 %v3692, %v3691
        %v3795 = vpack.c.bf16 %v3694, %v3693
        %v3796 = vpack.c.bf16 %v3696, %v3695
        %v3797 = vpack.c.bf16 %v3698, %v3697
        %v3798 = vpack.c.bf16 %v3700, %v3699
        %v3799 = vpack.c.bf16 %v3702, %v3701
        %v3800 = vpack.c.bf16 %v3704, %v3703
        %v3801 = vpack.c.bf16 %v3706, %v3705
        %v3802 = vpack.c.bf16 %v3708, %v3707
        %v3803 = vpack.c.bf16 %v3710, %v3709
        %v3804 = vpack.c.bf16 %v3712, %v3711
        %v3805 = vpack.c.bf16 %v3714, %v3713
        %v3806 = vpack.c.bf16 %v3716, %v3715
        %v3807 = vpack.c.bf16 %v3718, %v3717
        %v3808 = vpack.c.bf16 %v3720, %v3719
        %v3809 = vpack.c.bf16 %v3722, %v3721
        %v3810 = vpack.c.bf16 %v3724, %v3723
        %v3811 = vpack.c.bf16 %v3726, %v3725
        %v3812 = vpack.c.bf16 %v3728, %v3727
        %v3813 = vpack.c.bf16 %v3730, %v3729
        %v3814 = vpack.c.bf16 %v3732, %v3731
        %v3815 = vpack.c.bf16 %v3734, %v3733
        %v3816 = vpack.c.bf16 %v3736, %v3735
        %v3817 = vpack.c.bf16 %v3738, %v3737
        %v3818 = vpack.c.bf16 %v3740, %v3739
        %v3819 = vpack.c.bf16 %v3742, %v3741
        %v3820 = vpack.c.bf16 %v3744, %v3743
        %v3821 = vpack.c.bf16 %v3746, %v3745
        %v3822 = vpack.c.bf16 %v3748, %v3747
        %v3823 = vpack.c.bf16 %v3750, %v3749
        %v3824 = vpack.c.bf16 %v3752, %v3751
        %v3825 = vpack.c.bf16 %v3754, %v3753
        %v3826 = vpack.c.bf16 %v3756, %v3755
        %v3827 = vpack.c.bf16 %v3758, %v3757
        %v3828 = vpack.c.bf16 %v3760, %v3759
        %v3829 = vpack.c.bf16 %v3762, %v3761
        %v3830 = vpack.c.bf16 %v3764, %v3763
        %v3831 = vpack.c.bf16 %v3766, %v3765
        %v3832 = vpack.c.bf16 %v3768, %v3767
        %v3833 = vld [vmem:[%s9] sm:$0xf]
        %v3834 = vld [vmem:[%s9 + $0x4] sm:$0xf]
        %v3835 = vld [vmem:[%s9 + $0x8] sm:$0xf]
        %v3836 = vld [vmem:[%s9 + $0xc] sm:$0xf]
        %v3837 = vld [vmem:[%s9 + $0x10] sm:$0xf]
        %v3838 = vld [vmem:[%s9 + $0x14] sm:$0xf]
        %v3839 = vld [vmem:[%s9 + $0x18] sm:$0xf]
        %v3840 = vld [vmem:[%s9 + $0x1c] sm:$0xf]
        %v3841 = vld [vmem:[%s9 + $0x20] sm:$0xf]
        %v3842 = vld [vmem:[%s9 + $0x24] sm:$0xf]
        %v3843 = vld [vmem:[%s9 + $0x28] sm:$0xf]
        %v3844 = vld [vmem:[%s9 + $0x2c] sm:$0xf]
        %v3845 = vld [vmem:[%s9 + $0x30] sm:$0xf]
        %v3846 = vld [vmem:[%s9 + $0x34] sm:$0xf]
        %v3847 = vld [vmem:[%s9 + $0x38] sm:$0xf]
        %v3848 = vld [vmem:[%s9 + $0x3c] sm:$0xf]
        %v3849 = vld [vmem:[%s10] sm:$0x1]
        %v3851 = vlaneseq
        %v3852 = vshrl.u32 %v3851, 7
        %v3853 = vsub.s32 0, %v3852
        %v3854 = vrot.slane %v3849, %v3853
        %v3872 = vunpack.c.l.b16 %v3833
        %v3873 = vunpack.c.l.b16 %v3834
        %v3874 = vunpack.c.l.b16 %v3835
        %v3875 = vunpack.c.l.b16 %v3836
        %v3876 = vunpack.c.l.b16 %v3837
        %v3877 = vunpack.c.l.b16 %v3838
        %v3878 = vunpack.c.l.b16 %v3839
        %v3879 = vunpack.c.l.b16 %v3840
        %v3880 = vunpack.c.l.b16 %v3841
        %v3881 = vunpack.c.l.b16 %v3842
        %v3882 = vunpack.c.l.b16 %v3843
        %v3883 = vunpack.c.l.b16 %v3844
        %v3884 = vunpack.c.l.b16 %v3845
        %v3885 = vunpack.c.l.b16 %v3846
        %v3886 = vunpack.c.l.b16 %v3847
        %v3887 = vunpack.c.l.b16 %v3848
        %v3888 = vpack.c.b16 %v3873, %v3872
        %v3889 = vpack.c.b16 %v3875, %v3874
        %v3890 = vpack.c.b16 %v3877, %v3876
        %v3891 = vpack.c.b16 %v3879, %v3878
        %v3892 = vpack.c.b16 %v3881, %v3880
        %v3893 = vpack.c.b16 %v3883, %v3882
        %v3894 = vpack.c.b16 %v3885, %v3884
        %v3895 = vpack.c.b16 %v3887, %v3886
        %3904 = vmatprep.subr.bf16.mxu0 0
        %3905 = vmatpush1.bf16.msra.mxu0 %v3888
        %3906 = vmatprep.subr.bf16.mxu0 0
        %3907 = vmatpush1.bf16.msra.mxu0 %v3889
        %3908 = vmatprep.subr.bf16.mxu0 0
        %3909 = vmatpush1.bf16.msra.mxu0 %v3890
        %3910 = vmatprep.subr.bf16.mxu0 0
        %3911 = vmatpush1.bf16.msra.mxu0 %v3891
        %3912 = vmatprep.subr.bf16.mxu0 0
        %3913 = vmatpush1.bf16.msra.mxu0 %v3892
        %3914 = vmatprep.subr.bf16.mxu0 0
        %3915 = vmatpush1.bf16.msra.mxu0 %v3893
        %3916 = vmatprep.subr.bf16.mxu0 0
        %3917 = vmatpush1.bf16.msra.mxu0 %v3894
        %3918 = vmatprep.subr.bf16.mxu0 0
        %3919 = vmatpush1.bf16.msra.mxu0 %v3895
        %3920 = vmatprep.subr.bf16.mxu0 0
        %3921 = vmatpush1.bf16.msra.mxu0 0
        %3922 = vmatprep.subr.bf16.mxu0 0
        %3923 = vmatpush1.bf16.msra.mxu0 0
        %3924 = vmatprep.subr.bf16.mxu0 0
        %3925 = vmatpush1.bf16.msra.mxu0 0
        %3926 = vmatprep.subr.bf16.mxu0 0
        %3927 = vmatpush1.bf16.msra.mxu0 0
        %3928 = vmatprep.subr.bf16.mxu0 0
        %3929 = vmatpush1.bf16.msra.mxu0 0
        %3930 = vmatprep.subr.bf16.mxu0 0
        %3931 = vmatpush1.bf16.msra.mxu0 0
        %3932 = vmatprep.subr.bf16.mxu0 0
        %3933 = vmatpush1.bf16.msra.mxu0 0
        %3934 = vmatprep.subr.bf16.mxu0 0
        %3935 = vmatpush1.bf16.msra.mxu0 0
        %3936 = vmatprep.mubr.bf16.mxu0 0
        %3937 = vmatmul.mubr.bf16.gmra.mrb[0].mxu0 %v3769
        %v3938 = vpop.f32.mrb[0].mxu0
        %v3939 = vadd.f32 %v3854, %v3938
        %v3940 = vpop.f32.mrb[0].mxu0
        %v3941 = vpop.f32.mrb[0].mxu0
        %v3942 = vadd.f32 %v3854, %v3941
        %v3943 = vpop.f32.mrb[0].mxu0
        %3944 = vmatprep.mubr.bf16.mxu0 0
        %3945 = vmatmul.mubr.bf16.gmra.mrb[0].mxu0 %v3770
        %v3946 = vpop.f32.mrb[0].mxu0
        %v3947 = vadd.f32 %v3854, %v3946
        %v3948 = vpop.f32.mrb[0].mxu0
        %v3949 = vpop.f32.mrb[0].mxu0
        %v3950 = vadd.f32 %v3854, %v3949
        %v3951 = vpop.f32.mrb[0].mxu0
        %3952 = vmatprep.mubr.bf16.mxu0 0
        %3953 = vmatmul.mubr.bf16.gmra.mrb[0].mxu0 %v3771
        %v3954 = vpop.f32.mrb[0].mxu0
        %v3955 = vadd.f32 %v3854, %v3954
        %v3956 = vpop.f32.mrb[0].mxu0
        %v3957 = vpop.f32.mrb[0].mxu0
        %v3958 = vadd.f32 %v3854, %v3957
        %v3959 = vpop.f32.mrb[0].mxu0
        %3960 = vmatprep.mubr.bf16.mxu0 0
        %3961 = vmatmul.mubr.bf16.gmra.mrb[0].mxu0 %v3772
        %v3962 = vpop.f32.mrb[0].mxu0
        %v3963 = vadd.f32 %v3854, %v3962
        %v3964 = vpop.f32.mrb[0].mxu0
        %v3965 = vpop.f32.mrb[0].mxu0
        %v3966 = vadd.f32 %v3854, %v3965
        %v3967 = vpop.f32.mrb[0].mxu0
        %3968 = vmatprep.mubr.bf16.mxu0 0
        %3969 = vmatmul.mubr.bf16.gmra.mrb[0].mxu0 %v3773
        %v3970 = vpop.f32.mrb[0].mxu0
        %v3971 = vadd.f32 %v3854, %v3970
        %v3972 = vpop.f32.mrb[0].mxu0
        %v3973 = vpop.f32.mrb[0].mxu0
        %v3974 = vadd.f32 %v3854, %v3973
        %v3975 = vpop.f32.mrb[0].mxu0
        %3976 = vmatprep.mubr.bf16.mxu0 0
        %3977 = vmatmul.mubr.bf16.gmra.mrb[0].mxu0 %v3774
        %v3978 = vpop.f32.mrb[0].mxu0
        %v3979 = vadd.f32 %v3854, %v3978
        %v3980 = vpop.f32.mrb[0].mxu0
        %v3981 = vpop.f32.mrb[0].mxu0
        %v3982 = vadd.f32 %v3854, %v3981
        %v3983 = vpop.f32.mrb[0].mxu0
        %3984 = vmatprep.mubr.bf16.mxu0 0
        %3985 = vmatmul.mubr.bf16.gmra.mrb[0].mxu0 %v3775
        %v3986 = vpop.f32.mrb[0].mxu0
        %v3987 = vadd.f32 %v3854, %v3986
        %v3988 = vpop.f32.mrb[0].mxu0
        %v3989 = vpop.f32.mrb[0].mxu0
        %v3990 = vadd.f32 %v3854, %v3989
        %v3991 = vpop.f32.mrb[0].mxu0
        %3992 = vmatprep.mubr.bf16.mxu0 0
        %3993 = vmatmul.mubr.bf16.gmra.mrb[0].mxu0 %v3776
        %v3994 = vpop.f32.mrb[0].mxu0
        %v3995 = vadd.f32 %v3854, %v3994
        %v3996 = vpop.f32.mrb[0].mxu0
        %v3997 = vpop.f32.mrb[0].mxu0
        %v3998 = vadd.f32 %v3854, %v3997
        %v3999 = vpop.f32.mrb[0].mxu0
        %4000 = vmatprep.mubr.bf16.mxu0 0
        %4001 = vmatmul.mubr.bf16.gmra.mrb[0].mxu0 %v3777
        %v4002 = vpop.f32.mrb[0].mxu0
        %v4003 = vadd.f32 %v3854, %v4002
        %v4004 = vpop.f32.mrb[0].mxu0
        %v4005 = vpop.f32.mrb[0].mxu0
        %v4006 = vadd.f32 %v3854, %v4005
        %v4007 = vpop.f32.mrb[0].mxu0
        %4008 = vmatprep.mubr.bf16.mxu0 0
        %4009 = vmatmul.mubr.bf16.gmra.mrb[0].mxu0 %v3778
        %v4010 = vpop.f32.mrb[0].mxu0
        %v4011 = vadd.f32 %v3854, %v4010
        %v4012 = vpop.f32.mrb[0].mxu0
        %v4013 = vpop.f32.mrb[0].mxu0
        %v4014 = vadd.f32 %v3854, %v4013
        %v4015 = vpop.f32.mrb[0].mxu0
        %4016 = vmatprep.mubr.bf16.mxu0 0
        %4017 = vmatmul.mubr.bf16.gmra.mrb[0].mxu0 %v3779
        %v4018 = vpop.f32.mrb[0].mxu0
        %v4019 = vadd.f32 %v3854, %v4018
        %v4020 = vpop.f32.mrb[0].mxu0
        %v4021 = vpop.f32.mrb[0].mxu0
        %v4022 = vadd.f32 %v3854, %v4021
        %v4023 = vpop.f32.mrb[0].mxu0
        %4024 = vmatprep.mubr.bf16.mxu0 0
        %4025 = vmatmul.mubr.bf16.gmra.mrb[0].mxu0 %v3780
        %v4026 = vpop.f32.mrb[0].mxu0
        %v4027 = vadd.f32 %v3854, %v4026
        %v4028 = vpop.f32.mrb[0].mxu0
        %v4029 = vpop.f32.mrb[0].mxu0
        %v4030 = vadd.f32 %v3854, %v4029
        %v4031 = vpop.f32.mrb[0].mxu0
        %4032 = vmatprep.mubr.bf16.mxu0 0
        %4033 = vmatmul.mubr.bf16.gmra.mrb[0].mxu0 %v3781
        %v4034 = vpop.f32.mrb[0].mxu0
        %v4035 = vadd.f32 %v3854, %v4034
        %v4036 = vpop.f32.mrb[0].mxu0
        %v4037 = vpop.f32.mrb[0].mxu0
        %v4038 = vadd.f32 %v3854, %v4037
        %v4039 = vpop.f32.mrb[0].mxu0
        %4040 = vmatprep.mubr.bf16.mxu0 0
        %4041 = vmatmul.mubr.bf16.gmra.mrb[0].mxu0 %v3782
        %v4042 = vpop.f32.mrb[0].mxu0
        %v4043 = vadd.f32 %v3854, %v4042
        %v4044 = vpop.f32.mrb[0].mxu0
        %v4045 = vpop.f32.mrb[0].mxu0
        %v4046 = vadd.f32 %v3854, %v4045
        %v4047 = vpop.f32.mrb[0].mxu0
        %4048 = vmatprep.mubr.bf16.mxu0 0
        %4049 = vmatmul.mubr.bf16.gmra.mrb[0].mxu0 %v3783
        %v4050 = vpop.f32.mrb[0].mxu0
        %v4051 = vadd.f32 %v3854, %v4050
        %v4052 = vpop.f32.mrb[0].mxu0
        %v4053 = vpop.f32.mrb[0].mxu0
        %v4054 = vadd.f32 %v3854, %v4053
        %v4055 = vpop.f32.mrb[0].mxu0
        %4056 = vmatprep.mubr.bf16.mxu0 0
        %4057 = vmatmul.mubr.bf16.gmra.mrb[0].mxu0 %v3784
        %v4058 = vpop.f32.mrb[0].mxu0
        %v4059 = vadd.f32 %v3854, %v4058
        %v4060 = vpop.f32.mrb[0].mxu0
        %v4061 = vpop.f32.mrb[0].mxu0
        %v4062 = vadd.f32 %v3854, %v4061
        %v4063 = vpop.f32.mrb[0].mxu0
        %4064 = vmatprep.mubr.bf16.mxu0 0
        %4065 = vmatmul.mubr.bf16.gmra.mrb[0].mxu0 %v3785
        %v4066 = vpop.f32.mrb[0].mxu0
        %v4067 = vadd.f32 %v3854, %v4066
        %v4068 = vpop.f32.mrb[0].mxu0
        %v4069 = vpop.f32.mrb[0].mxu0
        %v4070 = vadd.f32 %v3854, %v4069
        %v4071 = vpop.f32.mrb[0].mxu0
        %4072 = vmatprep.mubr.bf16.mxu0 0
        %4073 = vmatmul.mubr.bf16.gmra.mrb[0].mxu0 %v3786
        %v4074 = vpop.f32.mrb[0].mxu0
        %v4075 = vadd.f32 %v3854, %v4074
        %v4076 = vpop.f32.mrb[0].mxu0
        %v4077 = vpop.f32.mrb[0].mxu0
        %v4078 = vadd.f32 %v3854, %v4077
        %v4079 = vpop.f32.mrb[0].mxu0
        %4080 = vmatprep.mubr.bf16.mxu0 0
        %4081 = vmatmul.mubr.bf16.gmra.mrb[0].mxu0 %v3787
        %v4082 = vpop.f32.mrb[0].mxu0
        %v4083 = vadd.f32 %v3854, %v4082
        %v4084 = vpop.f32.mrb[0].mxu0
        %v4085 = vpop.f32.mrb[0].mxu0
        %v4086 = vadd.f32 %v3854, %v4085
        %v4087 = vpop.f32.mrb[0].mxu0
        %4088 = vmatprep.mubr.bf16.mxu0 0
        %4089 = vmatmul.mubr.bf16.gmra.mrb[0].mxu0 %v3788
        %v4090 = vpop.f32.mrb[0].mxu0
        %v4091 = vadd.f32 %v3854, %v4090
        %v4092 = vpop.f32.mrb[0].mxu0
        %v4093 = vpop.f32.mrb[0].mxu0
        %v4094 = vadd.f32 %v3854, %v4093
        %v4095 = vpop.f32.mrb[0].mxu0
        %4096 = vmatprep.mubr.bf16.mxu0 0
        %4097 = vmatmul.mubr.bf16.gmra.mrb[0].mxu0 %v3789
        %v4098 = vpop.f32.mrb[0].mxu0
        %v4099 = vadd.f32 %v3854, %v4098
        %v4100 = vpop.f32.mrb[0].mxu0
        %v4101 = vpop.f32.mrb[0].mxu0
        %v4102 = vadd.f32 %v3854, %v4101
        %v4103 = vpop.f32.mrb[0].mxu0
        %4104 = vmatprep.mubr.bf16.mxu0 0
        %4105 = vmatmul.mubr.bf16.gmra.mrb[0].mxu0 %v3790
        %v4106 = vpop.f32.mrb[0].mxu0
        %v4107 = vadd.f32 %v3854, %v4106
        %v4108 = vpop.f32.mrb[0].mxu0
        %v4109 = vpop.f32.mrb[0].mxu0
        %v4110 = vadd.f32 %v3854, %v4109
        %v4111 = vpop.f32.mrb[0].mxu0
        %4112 = vmatprep.mubr.bf16.mxu0 0
        %4113 = vmatmul.mubr.bf16.gmra.mrb[0].mxu0 %v3791
        %v4114 = vpop.f32.mrb[0].mxu0
        %v4115 = vadd.f32 %v3854, %v4114
        %v4116 = vpop.f32.mrb[0].mxu0
        %v4117 = vpop.f32.mrb[0].mxu0
        %v4118 = vadd.f32 %v3854, %v4117
        %v4119 = vpop.f32.mrb[0].mxu0
        %4120 = vmatprep.mubr.bf16.mxu0 0
        %4121 = vmatmul.mubr.bf16.gmra.mrb[0].mxu0 %v3792
        %v4122 = vpop.f32.mrb[0].mxu0
        %v4123 = vadd.f32 %v3854, %v4122
        %v4124 = vpop.f32.mrb[0].mxu0
        %v4125 = vpop.f32.mrb[0].mxu0
        %v4126 = vadd.f32 %v3854, %v4125
        %v4127 = vpop.f32.mrb[0].mxu0
        %4128 = vmatprep.mubr.bf16.mxu0 0
        %4129 = vmatmul.mubr.bf16.gmra.mrb[0].mxu0 %v3793
        %v4130 = vpop.f32.mrb[0].mxu0
        %v4131 = vadd.f32 %v3854, %v4130
        %v4132 = vpop.f32.mrb[0].mxu0
        %v4133 = vpop.f32.mrb[0].mxu0
        %v4134 = vadd.f32 %v3854, %v4133
        %v4135 = vpop.f32.mrb[0].mxu0
        %4136 = vmatprep.mubr.bf16.mxu0 0
        %4137 = vmatmul.mubr.bf16.gmra.mrb[0].mxu0 %v3794
        %v4138 = vpop.f32.mrb[0].mxu0
        %v4139 = vadd.f32 %v3854, %v4138
        %v4140 = vpop.f32.mrb[0].mxu0
        %v4141 = vpop.f32.mrb[0].mxu0
        %v4142 = vadd.f32 %v3854, %v4141
        %v4143 = vpop.f32.mrb[0].mxu0
        %4144 = vmatprep.mubr.bf16.mxu0 0
        %4145 = vmatmul.mubr.bf16.gmra.mrb[0].mxu0 %v3795
        %v4146 = vpop.f32.mrb[0].mxu0
        %v4147 = vadd.f32 %v3854, %v4146
        %v4148 = vpop.f32.mrb[0].mxu0
        %v4149 = vpop.f32.mrb[0].mxu0
        %v4150 = vadd.f32 %v3854, %v4149
        %v4151 = vpop.f32.mrb[0].mxu0
        %4152 = vmatprep.mubr.bf16.mxu0 0
        %4153 = vmatmul.mubr.bf16.gmra.mrb[0].mxu0 %v3796
        %v4154 = vpop.f32.mrb[0].mxu0
        %v4155 = vadd.f32 %v3854, %v4154
        %v4156 = vpop.f32.mrb[0].mxu0
        %v4157 = vpop.f32.mrb[0].mxu0
        %v4158 = vadd.f32 %v3854, %v4157
        %v4159 = vpop.f32.mrb[0].mxu0
        %4160 = vmatprep.mubr.bf16.mxu0 0
        %4161 = vmatmul.mubr.bf16.gmra.mrb[0].mxu0 %v3797
        %v4162 = vpop.f32.mrb[0].mxu0
        %v4163 = vadd.f32 %v3854, %v4162
        %v4164 = vpop.f32.mrb[0].mxu0
        %v4165 = vpop.f32.mrb[0].mxu0
        %v4166 = vadd.f32 %v3854, %v4165
        %v4167 = vpop.f32.mrb[0].mxu0
        %4168 = vmatprep.mubr.bf16.mxu0 0
        %4169 = vmatmul.mubr.bf16.gmra.mrb[0].mxu0 %v3798
        %v4170 = vpop.f32.mrb[0].mxu0
        %v4171 = vadd.f32 %v3854, %v4170
        %v4172 = vpop.f32.mrb[0].mxu0
        %v4173 = vpop.f32.mrb[0].mxu0
        %v4174 = vadd.f32 %v3854, %v4173
        %v4175 = vpop.f32.mrb[0].mxu0
        %4176 = vmatprep.mubr.bf16.mxu0 0
        %4177 = vmatmul.mubr.bf16.gmra.mrb[0].mxu0 %v3799
        %v4178 = vpop.f32.mrb[0].mxu0
        %v4179 = vadd.f32 %v3854, %v4178
        %v4180 = vpop.f32.mrb[0].mxu0
        %v4181 = vpop.f32.mrb[0].mxu0
        %v4182 = vadd.f32 %v3854, %v4181
        %v4183 = vpop.f32.mrb[0].mxu0
        %4184 = vmatprep.mubr.bf16.mxu0 0
        %4185 = vmatmul.mubr.bf16.gmra.mrb[0].mxu0 %v3800
        %v4186 = vpop.f32.mrb[0].mxu0
        %v4187 = vadd.f32 %v3854, %v4186
        %v4188 = vpop.f32.mrb[0].mxu0
        %v4189 = vpop.f32.mrb[0].mxu0
        %v4190 = vadd.f32 %v3854, %v4189
        %v4191 = vpop.f32.mrb[0].mxu0
        %4192 = vmatprep.mubr.bf16.mxu0 0
        %4193 = vmatmul.mubr.bf16.gmra.mrb[0].mxu0 %v3801
        %v4194 = vpop.f32.mrb[0].mxu0
        %v4195 = vadd.f32 %v3854, %v4194
        %v4196 = vpop.f32.mrb[0].mxu0
        %v4197 = vpop.f32.mrb[0].mxu0
        %v4198 = vadd.f32 %v3854, %v4197
        %v4199 = vpop.f32.mrb[0].mxu0
        %4200 = vmatprep.mubr.bf16.mxu0 0
        %4201 = vmatmul.mubr.bf16.gmra.mrb[0].mxu0 %v3802
        %v4202 = vpop.f32.mrb[0].mxu0
        %v4203 = vadd.f32 %v3854, %v4202
        %v4204 = vpop.f32.mrb[0].mxu0
        %v4205 = vpop.f32.mrb[0].mxu0
        %v4206 = vadd.f32 %v3854, %v4205
        %v4207 = vpop.f32.mrb[0].mxu0
        %4208 = vmatprep.mubr.bf16.mxu0 0
        %4209 = vmatmul.mubr.bf16.gmra.mrb[0].mxu0 %v3803
        %v4210 = vpop.f32.mrb[0].mxu0
        %v4211 = vadd.f32 %v3854, %v4210
        %v4212 = vpop.f32.mrb[0].mxu0
        %v4213 = vpop.f32.mrb[0].mxu0
        %v4214 = vadd.f32 %v3854, %v4213
        %v4215 = vpop.f32.mrb[0].mxu0
        %4216 = vmatprep.mubr.bf16.mxu0 0
        %4217 = vmatmul.mubr.bf16.gmra.mrb[0].mxu0 %v3804
        %v4218 = vpop.f32.mrb[0].mxu0
        %v4219 = vadd.f32 %v3854, %v4218
        %v4220 = vpop.f32.mrb[0].mxu0
        %v4221 = vpop.f32.mrb[0].mxu0
        %v4222 = vadd.f32 %v3854, %v4221
        %v4223 = vpop.f32.mrb[0].mxu0
        %4224 = vmatprep.mubr.bf16.mxu0 0
        %4225 = vmatmul.mubr.bf16.gmra.mrb[0].mxu0 %v3805
        %v4226 = vpop.f32.mrb[0].mxu0
        %v4227 = vadd.f32 %v3854, %v4226
        %v4228 = vpop.f32.mrb[0].mxu0
        %v4229 = vpop.f32.mrb[0].mxu0
        %v4230 = vadd.f32 %v3854, %v4229
        %v4231 = vpop.f32.mrb[0].mxu0
        %4232 = vmatprep.mubr.bf16.mxu0 0
        %4233 = vmatmul.mubr.bf16.gmra.mrb[0].mxu0 %v3806
        %v4234 = vpop.f32.mrb[0].mxu0
        %v4235 = vadd.f32 %v3854, %v4234
        %v4236 = vpop.f32.mrb[0].mxu0
        %v4237 = vpop.f32.mrb[0].mxu0
        %v4238 = vadd.f32 %v3854, %v4237
        %v4239 = vpop.f32.mrb[0].mxu0
        %4240 = vmatprep.mubr.bf16.mxu0 0
        %4241 = vmatmul.mubr.bf16.gmra.mrb[0].mxu0 %v3807
        %v4242 = vpop.f32.mrb[0].mxu0
        %v4243 = vadd.f32 %v3854, %v4242
        %v4244 = vpop.f32.mrb[0].mxu0
        %v4245 = vpop.f32.mrb[0].mxu0
        %v4246 = vadd.f32 %v3854, %v4245
        %v4247 = vpop.f32.mrb[0].mxu0
        %4248 = vmatprep.mubr.bf16.mxu0 0
        %4249 = vmatmul.mubr.bf16.gmra.mrb[0].mxu0 %v3808
        %v4250 = vpop.f32.mrb[0].mxu0
        %v4251 = vadd.f32 %v3854, %v4250
        %v4252 = vpop.f32.mrb[0].mxu0
        %v4253 = vpop.f32.mrb[0].mxu0
        %v4254 = vadd.f32 %v3854, %v4253
        %v4255 = vpop.f32.mrb[0].mxu0
        %4256 = vmatprep.mubr.bf16.mxu0 0
        %4257 = vmatmul.mubr.bf16.gmra.mrb[0].mxu0 %v3809
        %v4258 = vpop.f32.mrb[0].mxu0
        %v4259 = vadd.f32 %v3854, %v4258
        %v4260 = vpop.f32.mrb[0].mxu0
        %v4261 = vpop.f32.mrb[0].mxu0
        %v4262 = vadd.f32 %v3854, %v4261
        %v4263 = vpop.f32.mrb[0].mxu0
        %4264 = vmatprep.mubr.bf16.mxu0 0
        %4265 = vmatmul.mubr.bf16.gmra.mrb[0].mxu0 %v3810
        %v4266 = vpop.f32.mrb[0].mxu0
        %v4267 = vadd.f32 %v3854, %v4266
        %v4268 = vpop.f32.mrb[0].mxu0
        %v4269 = vpop.f32.mrb[0].mxu0
        %v4270 = vadd.f32 %v3854, %v4269
        %v4271 = vpop.f32.mrb[0].mxu0
        %4272 = vmatprep.mubr.bf16.mxu0 0
        %4273 = vmatmul.mubr.bf16.gmra.mrb[0].mxu0 %v3811
        %v4274 = vpop.f32.mrb[0].mxu0
        %v4275 = vadd.f32 %v3854, %v4274
        %v4276 = vpop.f32.mrb[0].mxu0
        %v4277 = vpop.f32.mrb[0].mxu0
        %v4278 = vadd.f32 %v3854, %v4277
        %v4279 = vpop.f32.mrb[0].mxu0
        %4280 = vmatprep.mubr.bf16.mxu0 0
        %4281 = vmatmul.mubr.bf16.gmra.mrb[0].mxu0 %v3812
        %v4282 = vpop.f32.mrb[0].mxu0
        %v4283 = vadd.f32 %v3854, %v4282
        %v4284 = vpop.f32.mrb[0].mxu0
        %v4285 = vpop.f32.mrb[0].mxu0
        %v4286 = vadd.f32 %v3854, %v4285
        %v4287 = vpop.f32.mrb[0].mxu0
        %4288 = vmatprep.mubr.bf16.mxu0 0
        %4289 = vmatmul.mubr.bf16.gmra.mrb[0].mxu0 %v3813
        %v4290 = vpop.f32.mrb[0].mxu0
        %v4291 = vadd.f32 %v3854, %v4290
        %v4292 = vpop.f32.mrb[0].mxu0
        %v4293 = vpop.f32.mrb[0].mxu0
        %v4294 = vadd.f32 %v3854, %v4293
        %v4295 = vpop.f32.mrb[0].mxu0
        %4296 = vmatprep.mubr.bf16.mxu0 0
        %4297 = vmatmul.mubr.bf16.gmra.mrb[0].mxu0 %v3814
        %v4298 = vpop.f32.mrb[0].mxu0
        %v4299 = vadd.f32 %v3854, %v4298
        %v4300 = vpop.f32.mrb[0].mxu0
        %v4301 = vpop.f32.mrb[0].mxu0
        %v4302 = vadd.f32 %v3854, %v4301
        %v4303 = vpop.f32.mrb[0].mxu0
        %4304 = vmatprep.mubr.bf16.mxu0 0
        %4305 = vmatmul.mubr.bf16.gmra.mrb[0].mxu0 %v3815
        %v4306 = vpop.f32.mrb[0].mxu0
        %v4307 = vadd.f32 %v3854, %v4306
        %v4308 = vpop.f32.mrb[0].mxu0
        %v4309 = vpop.f32.mrb[0].mxu0
        %v4310 = vadd.f32 %v3854, %v4309
        %v4311 = vpop.f32.mrb[0].mxu0
        %4312 = vmatprep.mubr.bf16.mxu0 0
        %4313 = vmatmul.mubr.bf16.gmra.mrb[0].mxu0 %v3816
        %v4314 = vpop.f32.mrb[0].mxu0
        %v4315 = vadd.f32 %v3854, %v4314
        %v4316 = vpop.f32.mrb[0].mxu0
        %v4317 = vpop.f32.mrb[0].mxu0
        %v4318 = vadd.f32 %v3854, %v4317
        %v4319 = vpop.f32.mrb[0].mxu0
        %4320 = vmatprep.mubr.bf16.mxu0 0
        %4321 = vmatmul.mubr.bf16.gmra.mrb[0].mxu0 %v3817
        %v4322 = vpop.f32.mrb[0].mxu0
        %v4323 = vadd.f32 %v3854, %v4322
        %v4324 = vpop.f32.mrb[0].mxu0
        %v4325 = vpop.f32.mrb[0].mxu0
        %v4326 = vadd.f32 %v3854, %v4325
        %v4327 = vpop.f32.mrb[0].mxu0
        %4328 = vmatprep.mubr.bf16.mxu0 0
        %4329 = vmatmul.mubr.bf16.gmra.mrb[0].mxu0 %v3818
        %v4330 = vpop.f32.mrb[0].mxu0
        %v4331 = vadd.f32 %v3854, %v4330
        %v4332 = vpop.f32.mrb[0].mxu0
        %v4333 = vpop.f32.mrb[0].mxu0
        %v4334 = vadd.f32 %v3854, %v4333
        %v4335 = vpop.f32.mrb[0].mxu0
        %4336 = vmatprep.mubr.bf16.mxu0 0
        %4337 = vmatmul.mubr.bf16.gmra.mrb[0].mxu0 %v3819
        %v4338 = vpop.f32.mrb[0].mxu0
        %v4339 = vadd.f32 %v3854, %v4338
        %v4340 = vpop.f32.mrb[0].mxu0
        %v4341 = vpop.f32.mrb[0].mxu0
        %v4342 = vadd.f32 %v3854, %v4341
        %v4343 = vpop.f32.mrb[0].mxu0
        %4344 = vmatprep.mubr.bf16.mxu0 0
        %4345 = vmatmul.mubr.bf16.gmra.mrb[0].mxu0 %v3820
        %v4346 = vpop.f32.mrb[0].mxu0
        %v4347 = vadd.f32 %v3854, %v4346
        %v4348 = vpop.f32.mrb[0].mxu0
        %v4349 = vpop.f32.mrb[0].mxu0
        %v4350 = vadd.f32 %v3854, %v4349
        %v4351 = vpop.f32.mrb[0].mxu0
        %4352 = vmatprep.mubr.bf16.mxu0 0
        %4353 = vmatmul.mubr.bf16.gmra.mrb[0].mxu0 %v3821
        %v4354 = vpop.f32.mrb[0].mxu0
        %v4355 = vadd.f32 %v3854, %v4354
        %v4356 = vpop.f32.mrb[0].mxu0
        %v4357 = vpop.f32.mrb[0].mxu0
        %v4358 = vadd.f32 %v3854, %v4357
        %v4359 = vpop.f32.mrb[0].mxu0
        %4360 = vmatprep.mubr.bf16.mxu0 0
        %4361 = vmatmul.mubr.bf16.gmra.mrb[0].mxu0 %v3822
        %v4362 = vpop.f32.mrb[0].mxu0
        %v4363 = vadd.f32 %v3854, %v4362
        %v4364 = vpop.f32.mrb[0].mxu0
        %v4365 = vpop.f32.mrb[0].mxu0
        %v4366 = vadd.f32 %v3854, %v4365
        %v4367 = vpop.f32.mrb[0].mxu0
        %4368 = vmatprep.mubr.bf16.mxu0 0
        %4369 = vmatmul.mubr.bf16.gmra.mrb[0].mxu0 %v3823
        %v4370 = vpop.f32.mrb[0].mxu0
        %v4371 = vadd.f32 %v3854, %v4370
        %v4372 = vpop.f32.mrb[0].mxu0
        %v4373 = vpop.f32.mrb[0].mxu0
        %v4374 = vadd.f32 %v3854, %v4373
        %v4375 = vpop.f32.mrb[0].mxu0
        %4376 = vmatprep.mubr.bf16.mxu0 0
        %4377 = vmatmul.mubr.bf16.gmra.mrb[0].mxu0 %v3824
        %v4378 = vpop.f32.mrb[0].mxu0
        %v4379 = vadd.f32 %v3854, %v4378
        %v4380 = vpop.f32.mrb[0].mxu0
        %v4381 = vpop.f32.mrb[0].mxu0
        %v4382 = vadd.f32 %v3854, %v4381
        %v4383 = vpop.f32.mrb[0].mxu0
        %4384 = vmatprep.mubr.bf16.mxu0 0
        %4385 = vmatmul.mubr.bf16.gmra.mrb[0].mxu0 %v3825
        %v4386 = vpop.f32.mrb[0].mxu0
        %v4387 = vadd.f32 %v3854, %v4386
        %v4388 = vpop.f32.mrb[0].mxu0
        %v4389 = vpop.f32.mrb[0].mxu0
        %v4390 = vadd.f32 %v3854, %v4389
        %v4391 = vpop.f32.mrb[0].mxu0
        %4392 = vmatprep.mubr.bf16.mxu0 0
        %4393 = vmatmul.mubr.bf16.gmra.mrb[0].mxu0 %v3826
        %v4394 = vpop.f32.mrb[0].mxu0
        %v4395 = vadd.f32 %v3854, %v4394
        %v4396 = vpop.f32.mrb[0].mxu0
        %v4397 = vpop.f32.mrb[0].mxu0
        %v4398 = vadd.f32 %v3854, %v4397
        %v4399 = vpop.f32.mrb[0].mxu0
        %4400 = vmatprep.mubr.bf16.mxu0 0
        %4401 = vmatmul.mubr.bf16.gmra.mrb[0].mxu0 %v3827
        %v4402 = vpop.f32.mrb[0].mxu0
        %v4403 = vadd.f32 %v3854, %v4402
        %v4404 = vpop.f32.mrb[0].mxu0
        %v4405 = vpop.f32.mrb[0].mxu0
        %v4406 = vadd.f32 %v3854, %v4405
        %v4407 = vpop.f32.mrb[0].mxu0
        %4408 = vmatprep.mubr.bf16.mxu0 0
        %4409 = vmatmul.mubr.bf16.gmra.mrb[0].mxu0 %v3828
        %v4410 = vpop.f32.mrb[0].mxu0
        %v4411 = vadd.f32 %v3854, %v4410
        %v4412 = vpop.f32.mrb[0].mxu0
        %v4413 = vpop.f32.mrb[0].mxu0
        %v4414 = vadd.f32 %v3854, %v4413
        %v4415 = vpop.f32.mrb[0].mxu0
        %4416 = vmatprep.mubr.bf16.mxu0 0
        %4417 = vmatmul.mubr.bf16.gmra.mrb[0].mxu0 %v3829
        %v4418 = vpop.f32.mrb[0].mxu0
        %v4419 = vadd.f32 %v3854, %v4418
        %v4420 = vpop.f32.mrb[0].mxu0
        %v4421 = vpop.f32.mrb[0].mxu0
        %v4422 = vadd.f32 %v3854, %v4421
        %v4423 = vpop.f32.mrb[0].mxu0
        %4424 = vmatprep.mubr.bf16.mxu0 0
        %4425 = vmatmul.mubr.bf16.gmra.mrb[0].mxu0 %v3830
        %v4426 = vpop.f32.mrb[0].mxu0
        %v4427 = vadd.f32 %v3854, %v4426
        %v4428 = vpop.f32.mrb[0].mxu0
        %v4429 = vpop.f32.mrb[0].mxu0
        %v4430 = vadd.f32 %v3854, %v4429
        %v4431 = vpop.f32.mrb[0].mxu0
        %4432 = vmatprep.mubr.bf16.mxu0 0
        %4433 = vmatmul.mubr.bf16.gmra.mrb[0].mxu0 %v3831
        %v4434 = vpop.f32.mrb[0].mxu0
        %v4435 = vadd.f32 %v3854, %v4434
        %v4436 = vpop.f32.mrb[0].mxu0
        %v4437 = vpop.f32.mrb[0].mxu0
        %v4438 = vadd.f32 %v3854, %v4437
        %v4439 = vpop.f32.mrb[0].mxu0
        %4440 = vmatprep.mubr.bf16.mxu0 0
        %4441 = vmatmul.mubr.bf16.gmra.mrb[0].mxu0 %v3832
        %v4442 = vpop.f32.mrb[0].mxu0
        %v4443 = vadd.f32 %v3854, %v4442
        %v4444 = vpop.f32.mrb[0].mxu0
        %v4445 = vpop.f32.mrb[0].mxu0
        %v4446 = vadd.f32 %v3854, %v4445
        %v4447 = vpop.f32.mrb[0].mxu0
        %4448 = vdwg.mxu0
        %v4449 = vld [vmem:[%s593] sm:$0xff]
        %v4450 = vld [vmem:[%s593 + $0x8] sm:$0xff]
        %v4451 = vld [vmem:[%s593 + $0x10] sm:$0xff]
        %v4452 = vld [vmem:[%s593 + $0x18] sm:$0xff]
        %v4453 = vld [vmem:[%s593 + $0x20] sm:$0xff]
        %v4454 = vld [vmem:[%s593 + $0x28] sm:$0xff]
        %v4455 = vld [vmem:[%s593 + $0x30] sm:$0xff]
        %v4456 = vld [vmem:[%s593 + $0x38] sm:$0xff]
        %v4457 = vld [vmem:[%s593 + $0x40] sm:$0xff]
        %v4458 = vld [vmem:[%s593 + $0x48] sm:$0xff]
        %v4459 = vld [vmem:[%s593 + $0x50] sm:$0xff]
        %v4460 = vld [vmem:[%s593 + $0x58] sm:$0xff]
        %v4461 = vld [vmem:[%s593 + $0x60] sm:$0xff]
        %v4462 = vld [vmem:[%s593 + $0x68] sm:$0xff]
        %v4463 = vld [vmem:[%s593 + $0x70] sm:$0xff]
        %v4464 = vld [vmem:[%s593 + $0x78] sm:$0xff]
        %v4465 = vld [vmem:[%s593 + $0x80] sm:$0xff]
        %v4466 = vld [vmem:[%s593 + $0x88] sm:$0xff]
        %v4467 = vld [vmem:[%s593 + $0x90] sm:$0xff]
        %v4468 = vld [vmem:[%s593 + $0x98] sm:$0xff]
        %v4469 = vld [vmem:[%s593 + $0xa0] sm:$0xff]
        %v4470 = vld [vmem:[%s593 + $0xa8] sm:$0xff]
        %v4471 = vld [vmem:[%s593 + $0xb0] sm:$0xff]
        %v4472 = vld [vmem:[%s593 + $0xb8] sm:$0xff]
        %v4473 = vld [vmem:[%s593 + $0xc0] sm:$0xff]
        %v4474 = vld [vmem:[%s593 + $0xc8] sm:$0xff]
        %v4475 = vld [vmem:[%s593 + $0xd0] sm:$0xff]
        %v4476 = vld [vmem:[%s593 + $0xd8] sm:$0xff]
        %v4477 = vld [vmem:[%s593 + $0xe0] sm:$0xff]
        %v4478 = vld [vmem:[%s593 + $0xe8] sm:$0xff]
        %v4479 = vld [vmem:[%s593 + $0xf0] sm:$0xff]
        %v4480 = vld [vmem:[%s593 + $0xf8] sm:$0xff]
        %v4481 = vld [vmem:[%s593 + $0x100] sm:$0xff]
        %v4482 = vld [vmem:[%s593 + $0x108] sm:$0xff]
        %v4483 = vld [vmem:[%s593 + $0x110] sm:$0xff]
        %v4484 = vld [vmem:[%s593 + $0x118] sm:$0xff]
        %v4485 = vld [vmem:[%s593 + $0x120] sm:$0xff]
        %v4486 = vld [vmem:[%s593 + $0x128] sm:$0xff]
        %v4487 = vld [vmem:[%s593 + $0x130] sm:$0xff]
        %v4488 = vld [vmem:[%s593 + $0x138] sm:$0xff]
        %v4489 = vld [vmem:[%s593 + $0x140] sm:$0xff]
        %v4490 = vld [vmem:[%s593 + $0x148] sm:$0xff]
        %v4491 = vld [vmem:[%s593 + $0x150] sm:$0xff]
        %v4492 = vld [vmem:[%s593 + $0x158] sm:$0xff]
        %v4493 = vld [vmem:[%s593 + $0x160] sm:$0xff]
        %v4494 = vld [vmem:[%s593 + $0x168] sm:$0xff]
        %v4495 = vld [vmem:[%s593 + $0x170] sm:$0xff]
        %v4496 = vld [vmem:[%s593 + $0x178] sm:$0xff]
        %v4497 = vld [vmem:[%s593 + $0x180] sm:$0xff]
        %v4498 = vld [vmem:[%s593 + $0x188] sm:$0xff]
        %v4499 = vld [vmem:[%s593 + $0x190] sm:$0xff]
        %v4500 = vld [vmem:[%s593 + $0x198] sm:$0xff]
        %v4501 = vld [vmem:[%s593 + $0x1a0] sm:$0xff]
        %v4502 = vld [vmem:[%s593 + $0x1a8] sm:$0xff]
        %v4503 = vld [vmem:[%s593 + $0x1b0] sm:$0xff]
        %v4504 = vld [vmem:[%s593 + $0x1b8] sm:$0xff]
        %v4505 = vld [vmem:[%s593 + $0x1c0] sm:$0xff]
        %v4506 = vld [vmem:[%s593 + $0x1c8] sm:$0xff]
        %v4507 = vld [vmem:[%s593 + $0x1d0] sm:$0xff]
        %v4508 = vld [vmem:[%s593 + $0x1d8] sm:$0xff]
        %v4509 = vld [vmem:[%s593 + $0x1e0] sm:$0xff]
        %v4510 = vld [vmem:[%s593 + $0x1e8] sm:$0xff]
        %v4511 = vld [vmem:[%s593 + $0x1f0] sm:$0xff]
        %v4512 = vld [vmem:[%s593 + $0x1f8] sm:$0xff]
        %v4513 = vld [vmem:[%s593 + $0x200] sm:$0xff]
        %v4514 = vld [vmem:[%s593 + $0x208] sm:$0xff]
        %v4515 = vld [vmem:[%s593 + $0x210] sm:$0xff]
        %v4516 = vld [vmem:[%s593 + $0x218] sm:$0xff]
        %v4517 = vld [vmem:[%s593 + $0x220] sm:$0xff]
        %v4518 = vld [vmem:[%s593 + $0x228] sm:$0xff]
        %v4519 = vld [vmem:[%s593 + $0x230] sm:$0xff]
        %v4520 = vld [vmem:[%s593 + $0x238] sm:$0xff]
        %v4521 = vld [vmem:[%s593 + $0x240] sm:$0xff]
        %v4522 = vld [vmem:[%s593 + $0x248] sm:$0xff]
        %v4523 = vld [vmem:[%s593 + $0x250] sm:$0xff]
        %v4524 = vld [vmem:[%s593 + $0x258] sm:$0xff]
        %v4525 = vld [vmem:[%s593 + $0x260] sm:$0xff]
        %v4526 = vld [vmem:[%s593 + $0x268] sm:$0xff]
        %v4527 = vld [vmem:[%s593 + $0x270] sm:$0xff]
        %v4528 = vld [vmem:[%s593 + $0x278] sm:$0xff]
        %v4529 = vld [vmem:[%s593 + $0x280] sm:$0xff]
        %v4530 = vld [vmem:[%s593 + $0x288] sm:$0xff]
        %v4531 = vld [vmem:[%s593 + $0x290] sm:$0xff]
        %v4532 = vld [vmem:[%s593 + $0x298] sm:$0xff]
        %v4533 = vld [vmem:[%s593 + $0x2a0] sm:$0xff]
        %v4534 = vld [vmem:[%s593 + $0x2a8] sm:$0xff]
        %v4535 = vld [vmem:[%s593 + $0x2b0] sm:$0xff]
        %v4536 = vld [vmem:[%s593 + $0x2b8] sm:$0xff]
        %v4537 = vld [vmem:[%s593 + $0x2c0] sm:$0xff]
        %v4538 = vld [vmem:[%s593 + $0x2c8] sm:$0xff]
        %v4539 = vld [vmem:[%s593 + $0x2d0] sm:$0xff]
        %v4540 = vld [vmem:[%s593 + $0x2d8] sm:$0xff]
        %v4541 = vld [vmem:[%s593 + $0x2e0] sm:$0xff]
        %v4542 = vld [vmem:[%s593 + $0x2e8] sm:$0xff]
        %v4543 = vld [vmem:[%s593 + $0x2f0] sm:$0xff]
        %v4544 = vld [vmem:[%s593 + $0x2f8] sm:$0xff]
        %v4545 = vld [vmem:[%s593 + $0x300] sm:$0xff]
        %v4546 = vld [vmem:[%s593 + $0x308] sm:$0xff]
        %v4547 = vld [vmem:[%s593 + $0x310] sm:$0xff]
        %v4548 = vld [vmem:[%s593 + $0x318] sm:$0xff]
        %v4549 = vld [vmem:[%s593 + $0x320] sm:$0xff]
        %v4550 = vld [vmem:[%s593 + $0x328] sm:$0xff]
        %v4551 = vld [vmem:[%s593 + $0x330] sm:$0xff]
        %v4552 = vld [vmem:[%s593 + $0x338] sm:$0xff]
        %v4553 = vld [vmem:[%s593 + $0x340] sm:$0xff]
        %v4554 = vld [vmem:[%s593 + $0x348] sm:$0xff]
        %v4555 = vld [vmem:[%s593 + $0x350] sm:$0xff]
        %v4556 = vld [vmem:[%s593 + $0x358] sm:$0xff]
        %v4557 = vld [vmem:[%s593 + $0x360] sm:$0xff]
        %v4558 = vld [vmem:[%s593 + $0x368] sm:$0xff]
        %v4559 = vld [vmem:[%s593 + $0x370] sm:$0xff]
        %v4560 = vld [vmem:[%s593 + $0x378] sm:$0xff]
        %v4561 = vld [vmem:[%s593 + $0x380] sm:$0xff]
        %v4562 = vld [vmem:[%s593 + $0x388] sm:$0xff]
        %v4563 = vld [vmem:[%s593 + $0x390] sm:$0xff]
        %v4564 = vld [vmem:[%s593 + $0x398] sm:$0xff]
        %v4565 = vld [vmem:[%s593 + $0x3a0] sm:$0xff]
        %v4566 = vld [vmem:[%s593 + $0x3a8] sm:$0xff]
        %v4567 = vld [vmem:[%s593 + $0x3b0] sm:$0xff]
        %v4568 = vld [vmem:[%s593 + $0x3b8] sm:$0xff]
        %v4569 = vld [vmem:[%s593 + $0x3c0] sm:$0xff]
        %v4570 = vld [vmem:[%s593 + $0x3c8] sm:$0xff]
        %v4571 = vld [vmem:[%s593 + $0x3d0] sm:$0xff]
        %v4572 = vld [vmem:[%s593 + $0x3d8] sm:$0xff]
        %v4573 = vld [vmem:[%s593 + $0x3e0] sm:$0xff]
        %v4574 = vld [vmem:[%s593 + $0x3e8] sm:$0xff]
        %v4575 = vld [vmem:[%s593 + $0x3f0] sm:$0xff]
        %v4576 = vld [vmem:[%s593 + $0x3f8] sm:$0xff]
        %v4577 = vpack.c.bf16 %v4450, %v4449
        %v4578 = vpack.c.bf16 %v4452, %v4451
        %v4579 = vpack.c.bf16 %v4454, %v4453
        %v4580 = vpack.c.bf16 %v4456, %v4455
        %v4581 = vpack.c.bf16 %v4458, %v4457
        %v4582 = vpack.c.bf16 %v4460, %v4459
        %v4583 = vpack.c.bf16 %v4462, %v4461
        %v4584 = vpack.c.bf16 %v4464, %v4463
        %v4585 = vpack.c.bf16 %v4466, %v4465
        %v4586 = vpack.c.bf16 %v4468, %v4467
        %v4587 = vpack.c.bf16 %v4470, %v4469
        %v4588 = vpack.c.bf16 %v4472, %v4471
        %v4589 = vpack.c.bf16 %v4474, %v4473
        %v4590 = vpack.c.bf16 %v4476, %v4475
        %v4591 = vpack.c.bf16 %v4478, %v4477
        %v4592 = vpack.c.bf16 %v4480, %v4479
        %v4593 = vpack.c.bf16 %v4482, %v4481
        %v4594 = vpack.c.bf16 %v4484, %v4483
        %v4595 = vpack.c.bf16 %v4486, %v4485
        %v4596 = vpack.c.bf16 %v4488, %v4487
        %v4597 = vpack.c.bf16 %v4490, %v4489
        %v4598 = vpack.c.bf16 %v4492, %v4491
        %v4599 = vpack.c.bf16 %v4494, %v4493
        %v4600 = vpack.c.bf16 %v4496, %v4495
        %v4601 = vpack.c.bf16 %v4498, %v4497
        %v4602 = vpack.c.bf16 %v4500, %v4499
        %v4603 = vpack.c.bf16 %v4502, %v4501
        %v4604 = vpack.c.bf16 %v4504, %v4503
        %v4605 = vpack.c.bf16 %v4506, %v4505
        %v4606 = vpack.c.bf16 %v4508, %v4507
        %v4607 = vpack.c.bf16 %v4510, %v4509
        %v4608 = vpack.c.bf16 %v4512, %v4511
        %v4609 = vpack.c.bf16 %v4514, %v4513
        %v4610 = vpack.c.bf16 %v4516, %v4515
        %v4611 = vpack.c.bf16 %v4518, %v4517
        %v4612 = vpack.c.bf16 %v4520, %v4519
        %v4613 = vpack.c.bf16 %v4522, %v4521
        %v4614 = vpack.c.bf16 %v4524, %v4523
        %v4615 = vpack.c.bf16 %v4526, %v4525
        %v4616 = vpack.c.bf16 %v4528, %v4527
        %v4617 = vpack.c.bf16 %v4530, %v4529
        %v4618 = vpack.c.bf16 %v4532, %v4531
        %v4619 = vpack.c.bf16 %v4534, %v4533
        %v4620 = vpack.c.bf16 %v4536, %v4535
        %v4621 = vpack.c.bf16 %v4538, %v4537
        %v4622 = vpack.c.bf16 %v4540, %v4539
        %v4623 = vpack.c.bf16 %v4542, %v4541
        %v4624 = vpack.c.bf16 %v4544, %v4543
        %v4625 = vpack.c.bf16 %v4546, %v4545
        %v4626 = vpack.c.bf16 %v4548, %v4547
        %v4627 = vpack.c.bf16 %v4550, %v4549
        %v4628 = vpack.c.bf16 %v4552, %v4551
        %v4629 = vpack.c.bf16 %v4554, %v4553
        %v4630 = vpack.c.bf16 %v4556, %v4555
        %v4631 = vpack.c.bf16 %v4558, %v4557
        %v4632 = vpack.c.bf16 %v4560, %v4559
        %v4633 = vpack.c.bf16 %v4562, %v4561
        %v4634 = vpack.c.bf16 %v4564, %v4563
        %v4635 = vpack.c.bf16 %v4566, %v4565
        %v4636 = vpack.c.bf16 %v4568, %v4567
        %v4637 = vpack.c.bf16 %v4570, %v4569
        %v4638 = vpack.c.bf16 %v4572, %v4571
        %v4639 = vpack.c.bf16 %v4574, %v4573
        %v4640 = vpack.c.bf16 %v4576, %v4575
        %v4641 = vld [vmem:[%s11] sm:$0xf]
        %v4642 = vld [vmem:[%s11 + $0x4] sm:$0xf]
        %v4643 = vld [vmem:[%s11 + $0x8] sm:$0xf]
        %v4644 = vld [vmem:[%s11 + $0xc] sm:$0xf]
        %v4645 = vld [vmem:[%s11 + $0x10] sm:$0xf]
        %v4646 = vld [vmem:[%s11 + $0x14] sm:$0xf]
        %v4647 = vld [vmem:[%s11 + $0x18] sm:$0xf]
        %v4648 = vld [vmem:[%s11 + $0x1c] sm:$0xf]
        %v4649 = vld [vmem:[%s12] sm:$0x1]
        %v4651 = vlaneseq
        %v4652 = vshrl.u32 %v4651, 7
        %v4653 = vsub.s32 0, %v4652
        %v4654 = vrot.slane %v4649, %v4653
        %v4664 = vunpack.c.l.b16 %v4641
        %v4665 = vunpack.c.l.b16 %v4642
        %v4666 = vunpack.c.l.b16 %v4643
        %v4667 = vunpack.c.l.b16 %v4644
        %v4668 = vunpack.c.l.b16 %v4645
        %v4669 = vunpack.c.l.b16 %v4646
        %v4670 = vunpack.c.l.b16 %v4647
        %v4671 = vunpack.c.l.b16 %v4648
        %v4672 = vpack.c.b16 %v4665, %v4664
        %v4673 = vpack.c.b16 %v4667, %v4666
        %v4674 = vpack.c.b16 %v4669, %v4668
        %v4675 = vpack.c.b16 %v4671, %v4670
        %v4681 = vsel %vm909, %v4577, 0
        %v4684 = vsel %vm909, %v4578, 0
        %v4687 = vsel %vm909, %v4579, 0
        %v4690 = vsel %vm909, %v4580, 0
        %v4693 = vsel %vm909, %v4581, 0
        %v4696 = vsel %vm909, %v4582, 0
        %v4699 = vsel %vm909, %v4583, 0
        %v4702 = vsel %vm909, %v4584, 0
        %v4705 = vsel %vm909, %v4585, 0
        %v4708 = vsel %vm909, %v4586, 0
        %v4711 = vsel %vm909, %v4587, 0
        %v4714 = vsel %vm909, %v4588, 0
        %v4717 = vsel %vm909, %v4589, 0
        %v4720 = vsel %vm909, %v4590, 0
        %v4723 = vsel %vm909, %v4591, 0
        %v4726 = vsel %vm909, %v4592, 0
        %v4729 = vsel %vm909, %v4593, 0
        %v4732 = vsel %vm909, %v4594, 0
        %v4735 = vsel %vm909, %v4595, 0
        %v4738 = vsel %vm909, %v4596, 0
        %v4741 = vsel %vm909, %v4597, 0
        %v4744 = vsel %vm909, %v4598, 0
        %v4747 = vsel %vm909, %v4599, 0
        %v4750 = vsel %vm909, %v4600, 0
        %v4753 = vsel %vm909, %v4601, 0
        %v4756 = vsel %vm909, %v4602, 0
        %v4759 = vsel %vm909, %v4603, 0
        %v4762 = vsel %vm909, %v4604, 0
        %v4765 = vsel %vm909, %v4605, 0
        %v4768 = vsel %vm909, %v4606, 0
        %v4771 = vsel %vm909, %v4607, 0
        %v4774 = vsel %vm909, %v4608, 0
        %v4777 = vsel %vm909, %v4609, 0
        %v4780 = vsel %vm909, %v4610, 0
        %v4783 = vsel %vm909, %v4611, 0
        %v4786 = vsel %vm909, %v4612, 0
        %v4789 = vsel %vm909, %v4613, 0
        %v4792 = vsel %vm909, %v4614, 0
        %v4795 = vsel %vm909, %v4615, 0
        %v4798 = vsel %vm909, %v4616, 0
        %v4801 = vsel %vm909, %v4617, 0
        %v4804 = vsel %vm909, %v4618, 0
        %v4807 = vsel %vm909, %v4619, 0
        %v4810 = vsel %vm909, %v4620, 0
        %v4813 = vsel %vm909, %v4621, 0
        %v4816 = vsel %vm909, %v4622, 0
        %v4819 = vsel %vm909, %v4623, 0
        %v4822 = vsel %vm909, %v4624, 0
        %v4825 = vsel %vm909, %v4625, 0
        %v4828 = vsel %vm909, %v4626, 0
        %v4831 = vsel %vm909, %v4627, 0
        %v4834 = vsel %vm909, %v4628, 0
        %v4837 = vsel %vm909, %v4629, 0
        %v4840 = vsel %vm909, %v4630, 0
        %v4843 = vsel %vm909, %v4631, 0
        %v4846 = vsel %vm909, %v4632, 0
        %v4849 = vsel %vm909, %v4633, 0
        %v4852 = vsel %vm909, %v4634, 0
        %v4855 = vsel %vm909, %v4635, 0
        %v4858 = vsel %vm909, %v4636, 0
        %v4861 = vsel %vm909, %v4637, 0
        %v4864 = vsel %vm909, %v4638, 0
        %v4867 = vsel %vm909, %v4639, 0
        %v4870 = vsel %vm909, %v4640, 0
        %4872 = vmatprep.subr.bf16.mxu0 0
        %4873 = vmatpush1.bf16.msra.mxu0 %v4672
        %4874 = vmatprep.subr.bf16.mxu0 0
        %4875 = vmatpush1.bf16.msra.mxu0 %v4673
        %4876 = vmatprep.subr.bf16.mxu0 0
        %4877 = vmatpush1.bf16.msra.mxu0 %v4674
        %4878 = vmatprep.subr.bf16.mxu0 0
        %4879 = vmatpush1.bf16.msra.mxu0 %v4675
        %4880 = vmatprep.subr.bf16.mxu0 0
        %4881 = vmatpush1.bf16.msra.mxu0 0
        %4882 = vmatprep.subr.bf16.mxu0 0
        %4883 = vmatpush1.bf16.msra.mxu0 0
        %4884 = vmatprep.subr.bf16.mxu0 0
        %4885 = vmatpush1.bf16.msra.mxu0 0
        %4886 = vmatprep.subr.bf16.mxu0 0
        %4887 = vmatpush1.bf16.msra.mxu0 0
        %4888 = vmatprep.subr.bf16.mxu0 0
        %4889 = vmatpush1.bf16.msra.mxu0 0
        %4890 = vmatprep.subr.bf16.mxu0 0
        %4891 = vmatpush1.bf16.msra.mxu0 0
        %4892 = vmatprep.subr.bf16.mxu0 0
        %4893 = vmatpush1.bf16.msra.mxu0 0
        %4894 = vmatprep.subr.bf16.mxu0 0
        %4895 = vmatpush1.bf16.msra.mxu0 0
        %4896 = vmatprep.subr.bf16.mxu0 0
        %4897 = vmatpush1.bf16.msra.mxu0 0
        %4898 = vmatprep.subr.bf16.mxu0 0
        %4899 = vmatpush1.bf16.msra.mxu0 0
        %4900 = vmatprep.subr.bf16.mxu0 0
        %4901 = vmatpush1.bf16.msra.mxu0 0
        %4902 = vmatprep.subr.bf16.mxu0 0
        %4903 = vmatpush1.bf16.msra.mxu0 0
        %4904 = vmatprep.mubr.bf16.mxu0 0
        %4905 = vmatmul.mubr.bf16.gmra.mrb[0].mxu0 %v4681
        %v4906 = vpop.f32.mrb[0].mxu0
        %v4907 = vadd.f32 %v4654, %v4906
        %v4908 = vpop.f32.mrb[0].mxu0
        %v4909 = vpop.f32.mrb[0].mxu0
        %v4910 = vadd.f32 %v4654, %v4909
        %v4911 = vpop.f32.mrb[0].mxu0
        %4912 = vmatprep.mubr.bf16.mxu0 0
        %4913 = vmatmul.mubr.bf16.gmra.mrb[0].mxu0 %v4684
        %v4914 = vpop.f32.mrb[0].mxu0
        %v4915 = vadd.f32 %v4654, %v4914
        %v4916 = vpop.f32.mrb[0].mxu0
        %v4917 = vpop.f32.mrb[0].mxu0
        %v4918 = vadd.f32 %v4654, %v4917
        %v4919 = vpop.f32.mrb[0].mxu0
        %4920 = vmatprep.mubr.bf16.mxu0 0
        %4921 = vmatmul.mubr.bf16.gmra.mrb[0].mxu0 %v4687
        %v4922 = vpop.f32.mrb[0].mxu0
        %v4923 = vadd.f32 %v4654, %v4922
        %v4924 = vpop.f32.mrb[0].mxu0
        %v4925 = vpop.f32.mrb[0].mxu0
        %v4926 = vadd.f32 %v4654, %v4925
        %v4927 = vpop.f32.mrb[0].mxu0
        %4928 = vmatprep.mubr.bf16.mxu0 0
        %4929 = vmatmul.mubr.bf16.gmra.mrb[0].mxu0 %v4690
        %v4930 = vpop.f32.mrb[0].mxu0
        %v4931 = vadd.f32 %v4654, %v4930
        %v4932 = vpop.f32.mrb[0].mxu0
        %v4933 = vpop.f32.mrb[0].mxu0
        %v4934 = vadd.f32 %v4654, %v4933
        %v4935 = vpop.f32.mrb[0].mxu0
        %4936 = vmatprep.mubr.bf16.mxu0 0
        %4937 = vmatmul.mubr.bf16.gmra.mrb[0].mxu0 %v4693
        %v4938 = vpop.f32.mrb[0].mxu0
        %v4939 = vadd.f32 %v4654, %v4938
        %v4940 = vpop.f32.mrb[0].mxu0
        %v4941 = vpop.f32.mrb[0].mxu0
        %v4942 = vadd.f32 %v4654, %v4941
        %v4943 = vpop.f32.mrb[0].mxu0
        %4944 = vmatprep.mubr.bf16.mxu0 0
        %4945 = vmatmul.mubr.bf16.gmra.mrb[0].mxu0 %v4696
        %v4946 = vpop.f32.mrb[0].mxu0
        %v4947 = vadd.f32 %v4654, %v4946
        %v4948 = vpop.f32.mrb[0].mxu0
        %v4949 = vpop.f32.mrb[0].mxu0
        %v4950 = vadd.f32 %v4654, %v4949
        %v4951 = vpop.f32.mrb[0].mxu0
        %4952 = vmatprep.mubr.bf16.mxu0 0
        %4953 = vmatmul.mubr.bf16.gmra.mrb[0].mxu0 %v4699
        %v4954 = vpop.f32.mrb[0].mxu0
        %v4955 = vadd.f32 %v4654, %v4954
        %v4956 = vpop.f32.mrb[0].mxu0
        %v4957 = vpop.f32.mrb[0].mxu0
        %v4958 = vadd.f32 %v4654, %v4957
        %v4959 = vpop.f32.mrb[0].mxu0
        %4960 = vmatprep.mubr.bf16.mxu0 0
        %4961 = vmatmul.mubr.bf16.gmra.mrb[0].mxu0 %v4702
        %v4962 = vpop.f32.mrb[0].mxu0
        %v4963 = vadd.f32 %v4654, %v4962
        %v4964 = vpop.f32.mrb[0].mxu0
        %v4965 = vpop.f32.mrb[0].mxu0
        %v4966 = vadd.f32 %v4654, %v4965
        %v4967 = vpop.f32.mrb[0].mxu0
        %4968 = vmatprep.mubr.bf16.mxu0 0
        %4969 = vmatmul.mubr.bf16.gmra.mrb[0].mxu0 %v4705
        %v4970 = vpop.f32.mrb[0].mxu0
        %v4971 = vadd.f32 %v4654, %v4970
        %v4972 = vpop.f32.mrb[0].mxu0
        %v4973 = vpop.f32.mrb[0].mxu0
        %v4974 = vadd.f32 %v4654, %v4973
        %v4975 = vpop.f32.mrb[0].mxu0
        %4976 = vmatprep.mubr.bf16.mxu0 0
        %4977 = vmatmul.mubr.bf16.gmra.mrb[0].mxu0 %v4708
        %v4978 = vpop.f32.mrb[0].mxu0
        %v4979 = vadd.f32 %v4654, %v4978
        %v4980 = vpop.f32.mrb[0].mxu0
        %v4981 = vpop.f32.mrb[0].mxu0
        %v4982 = vadd.f32 %v4654, %v4981
        %v4983 = vpop.f32.mrb[0].mxu0
        %4984 = vmatprep.mubr.bf16.mxu0 0
        %4985 = vmatmul.mubr.bf16.gmra.mrb[0].mxu0 %v4711
        %v4986 = vpop.f32.mrb[0].mxu0
        %v4987 = vadd.f32 %v4654, %v4986
        %v4988 = vpop.f32.mrb[0].mxu0
        %v4989 = vpop.f32.mrb[0].mxu0
        %v4990 = vadd.f32 %v4654, %v4989
        %v4991 = vpop.f32.mrb[0].mxu0
        %4992 = vmatprep.mubr.bf16.mxu0 0
        %4993 = vmatmul.mubr.bf16.gmra.mrb[0].mxu0 %v4714
        %v4994 = vpop.f32.mrb[0].mxu0
        %v4995 = vadd.f32 %v4654, %v4994
        %v4996 = vpop.f32.mrb[0].mxu0
        %v4997 = vpop.f32.mrb[0].mxu0
        %v4998 = vadd.f32 %v4654, %v4997
        %v4999 = vpop.f32.mrb[0].mxu0
        %5000 = vmatprep.mubr.bf16.mxu0 0
        %5001 = vmatmul.mubr.bf16.gmra.mrb[0].mxu0 %v4717
        %v5002 = vpop.f32.mrb[0].mxu0
        %v5003 = vadd.f32 %v4654, %v5002
        %v5004 = vpop.f32.mrb[0].mxu0
        %v5005 = vpop.f32.mrb[0].mxu0
        %v5006 = vadd.f32 %v4654, %v5005
        %v5007 = vpop.f32.mrb[0].mxu0
        %5008 = vmatprep.mubr.bf16.mxu0 0
        %5009 = vmatmul.mubr.bf16.gmra.mrb[0].mxu0 %v4720
        %v5010 = vpop.f32.mrb[0].mxu0
        %v5011 = vadd.f32 %v4654, %v5010
        %v5012 = vpop.f32.mrb[0].mxu0
        %v5013 = vpop.f32.mrb[0].mxu0
        %v5014 = vadd.f32 %v4654, %v5013
        %v5015 = vpop.f32.mrb[0].mxu0
        %5016 = vmatprep.mubr.bf16.mxu0 0
        %5017 = vmatmul.mubr.bf16.gmra.mrb[0].mxu0 %v4723
        %v5018 = vpop.f32.mrb[0].mxu0
        %v5019 = vadd.f32 %v4654, %v5018
        %v5020 = vpop.f32.mrb[0].mxu0
        %v5021 = vpop.f32.mrb[0].mxu0
        %v5022 = vadd.f32 %v4654, %v5021
        %v5023 = vpop.f32.mrb[0].mxu0
        %5024 = vmatprep.mubr.bf16.mxu0 0
        %5025 = vmatmul.mubr.bf16.gmra.mrb[0].mxu0 %v4726
        %v5026 = vpop.f32.mrb[0].mxu0
        %v5027 = vadd.f32 %v4654, %v5026
        %v5028 = vpop.f32.mrb[0].mxu0
        %v5029 = vpop.f32.mrb[0].mxu0
        %v5030 = vadd.f32 %v4654, %v5029
        %v5031 = vpop.f32.mrb[0].mxu0
        %5032 = vmatprep.mubr.bf16.mxu0 0
        %5033 = vmatmul.mubr.bf16.gmra.mrb[0].mxu0 %v4729
        %v5034 = vpop.f32.mrb[0].mxu0
        %v5035 = vadd.f32 %v4654, %v5034
        %v5036 = vpop.f32.mrb[0].mxu0
        %v5037 = vpop.f32.mrb[0].mxu0
        %v5038 = vadd.f32 %v4654, %v5037
        %v5039 = vpop.f32.mrb[0].mxu0
        %5040 = vmatprep.mubr.bf16.mxu0 0
        %5041 = vmatmul.mubr.bf16.gmra.mrb[0].mxu0 %v4732
        %v5042 = vpop.f32.mrb[0].mxu0
        %v5043 = vadd.f32 %v4654, %v5042
        %v5044 = vpop.f32.mrb[0].mxu0
        %v5045 = vpop.f32.mrb[0].mxu0
        %v5046 = vadd.f32 %v4654, %v5045
        %v5047 = vpop.f32.mrb[0].mxu0
        %5048 = vmatprep.mubr.bf16.mxu0 0
        %5049 = vmatmul.mubr.bf16.gmra.mrb[0].mxu0 %v4735
        %v5050 = vpop.f32.mrb[0].mxu0
        %v5051 = vadd.f32 %v4654, %v5050
        %v5052 = vpop.f32.mrb[0].mxu0
        %v5053 = vpop.f32.mrb[0].mxu0
        %v5054 = vadd.f32 %v4654, %v5053
        %v5055 = vpop.f32.mrb[0].mxu0
        %5056 = vmatprep.mubr.bf16.mxu0 0
        %5057 = vmatmul.mubr.bf16.gmra.mrb[0].mxu0 %v4738
        %v5058 = vpop.f32.mrb[0].mxu0
        %v5059 = vadd.f32 %v4654, %v5058
        %v5060 = vpop.f32.mrb[0].mxu0
        %v5061 = vpop.f32.mrb[0].mxu0
        %v5062 = vadd.f32 %v4654, %v5061
        %v5063 = vpop.f32.mrb[0].mxu0
        %5064 = vmatprep.mubr.bf16.mxu0 0
        %5065 = vmatmul.mubr.bf16.gmra.mrb[0].mxu0 %v4741
        %v5066 = vpop.f32.mrb[0].mxu0
        %v5067 = vadd.f32 %v4654, %v5066
        %v5068 = vpop.f32.mrb[0].mxu0
        %v5069 = vpop.f32.mrb[0].mxu0
        %v5070 = vadd.f32 %v4654, %v5069
        %v5071 = vpop.f32.mrb[0].mxu0
        %5072 = vmatprep.mubr.bf16.mxu0 0
        %5073 = vmatmul.mubr.bf16.gmra.mrb[0].mxu0 %v4744
        %v5074 = vpop.f32.mrb[0].mxu0
        %v5075 = vadd.f32 %v4654, %v5074
        %v5076 = vpop.f32.mrb[0].mxu0
        %v5077 = vpop.f32.mrb[0].mxu0
        %v5078 = vadd.f32 %v4654, %v5077
        %v5079 = vpop.f32.mrb[0].mxu0
        %5080 = vmatprep.mubr.bf16.mxu0 0
        %5081 = vmatmul.mubr.bf16.gmra.mrb[0].mxu0 %v4747
        %v5082 = vpop.f32.mrb[0].mxu0
        %v5083 = vadd.f32 %v4654, %v5082
        %v5084 = vpop.f32.mrb[0].mxu0
        %v5085 = vpop.f32.mrb[0].mxu0
        %v5086 = vadd.f32 %v4654, %v5085
        %v5087 = vpop.f32.mrb[0].mxu0
        %5088 = vmatprep.mubr.bf16.mxu0 0
        %5089 = vmatmul.mubr.bf16.gmra.mrb[0].mxu0 %v4750
        %v5090 = vpop.f32.mrb[0].mxu0
        %v5091 = vadd.f32 %v4654, %v5090
        %v5092 = vpop.f32.mrb[0].mxu0
        %v5093 = vpop.f32.mrb[0].mxu0
        %v5094 = vadd.f32 %v4654, %v5093
        %v5095 = vpop.f32.mrb[0].mxu0
        %5096 = vmatprep.mubr.bf16.mxu0 0
        %5097 = vmatmul.mubr.bf16.gmra.mrb[0].mxu0 %v4753
        %v5098 = vpop.f32.mrb[0].mxu0
        %v5099 = vadd.f32 %v4654, %v5098
        %v5100 = vpop.f32.mrb[0].mxu0
        %v5101 = vpop.f32.mrb[0].mxu0
        %v5102 = vadd.f32 %v4654, %v5101
        %v5103 = vpop.f32.mrb[0].mxu0
        %5104 = vmatprep.mubr.bf16.mxu0 0
        %5105 = vmatmul.mubr.bf16.gmra.mrb[0].mxu0 %v4756
        %v5106 = vpop.f32.mrb[0].mxu0
        %v5107 = vadd.f32 %v4654, %v5106
        %v5108 = vpop.f32.mrb[0].mxu0
        %v5109 = vpop.f32.mrb[0].mxu0
        %v5110 = vadd.f32 %v4654, %v5109
        %v5111 = vpop.f32.mrb[0].mxu0
        %5112 = vmatprep.mubr.bf16.mxu0 0
        %5113 = vmatmul.mubr.bf16.gmra.mrb[0].mxu0 %v4759
        %v5114 = vpop.f32.mrb[0].mxu0
        %v5115 = vadd.f32 %v4654, %v5114
        %v5116 = vpop.f32.mrb[0].mxu0
        %v5117 = vpop.f32.mrb[0].mxu0
        %v5118 = vadd.f32 %v4654, %v5117
        %v5119 = vpop.f32.mrb[0].mxu0
        %5120 = vmatprep.mubr.bf16.mxu0 0
        %5121 = vmatmul.mubr.bf16.gmra.mrb[0].mxu0 %v4762
        %v5122 = vpop.f32.mrb[0].mxu0
        %v5123 = vadd.f32 %v4654, %v5122
        %v5124 = vpop.f32.mrb[0].mxu0
        %v5125 = vpop.f32.mrb[0].mxu0
        %v5126 = vadd.f32 %v4654, %v5125
        %v5127 = vpop.f32.mrb[0].mxu0
        %5128 = vmatprep.mubr.bf16.mxu0 0
        %5129 = vmatmul.mubr.bf16.gmra.mrb[0].mxu0 %v4765
        %v5130 = vpop.f32.mrb[0].mxu0
        %v5131 = vadd.f32 %v4654, %v5130
        %v5132 = vpop.f32.mrb[0].mxu0
        %v5133 = vpop.f32.mrb[0].mxu0
        %v5134 = vadd.f32 %v4654, %v5133
        %v5135 = vpop.f32.mrb[0].mxu0
        %5136 = vmatprep.mubr.bf16.mxu0 0
        %5137 = vmatmul.mubr.bf16.gmra.mrb[0].mxu0 %v4768
        %v5138 = vpop.f32.mrb[0].mxu0
        %v5139 = vadd.f32 %v4654, %v5138
        %v5140 = vpop.f32.mrb[0].mxu0
        %v5141 = vpop.f32.mrb[0].mxu0
        %v5142 = vadd.f32 %v4654, %v5141
        %v5143 = vpop.f32.mrb[0].mxu0
        %5144 = vmatprep.mubr.bf16.mxu0 0
        %5145 = vmatmul.mubr.bf16.gmra.mrb[0].mxu0 %v4771
        %v5146 = vpop.f32.mrb[0].mxu0
        %v5147 = vadd.f32 %v4654, %v5146
        %v5148 = vpop.f32.mrb[0].mxu0
        %v5149 = vpop.f32.mrb[0].mxu0
        %v5150 = vadd.f32 %v4654, %v5149
        %v5151 = vpop.f32.mrb[0].mxu0
        %5152 = vmatprep.mubr.bf16.mxu0 0
        %5153 = vmatmul.mubr.bf16.gmra.mrb[0].mxu0 %v4774
        %v5154 = vpop.f32.mrb[0].mxu0
        %v5155 = vadd.f32 %v4654, %v5154
        %v5156 = vpop.f32.mrb[0].mxu0
        %v5157 = vpop.f32.mrb[0].mxu0
        %v5158 = vadd.f32 %v4654, %v5157
        %v5159 = vpop.f32.mrb[0].mxu0
        %5160 = vmatprep.mubr.bf16.mxu0 0
        %5161 = vmatmul.mubr.bf16.gmra.mrb[0].mxu0 %v4777
        %v5162 = vpop.f32.mrb[0].mxu0
        %v5163 = vadd.f32 %v4654, %v5162
        %v5164 = vpop.f32.mrb[0].mxu0
        %v5165 = vpop.f32.mrb[0].mxu0
        %v5166 = vadd.f32 %v4654, %v5165
        %v5167 = vpop.f32.mrb[0].mxu0
        %5168 = vmatprep.mubr.bf16.mxu0 0
        %5169 = vmatmul.mubr.bf16.gmra.mrb[0].mxu0 %v4780
        %v5170 = vpop.f32.mrb[0].mxu0
        %v5171 = vadd.f32 %v4654, %v5170
        %v5172 = vpop.f32.mrb[0].mxu0
        %v5173 = vpop.f32.mrb[0].mxu0
        %v5174 = vadd.f32 %v4654, %v5173
        %v5175 = vpop.f32.mrb[0].mxu0
        %5176 = vmatprep.mubr.bf16.mxu0 0
        %5177 = vmatmul.mubr.bf16.gmra.mrb[0].mxu0 %v4783
        %v5178 = vpop.f32.mrb[0].mxu0
        %v5179 = vadd.f32 %v4654, %v5178
        %v5180 = vpop.f32.mrb[0].mxu0
        %v5181 = vpop.f32.mrb[0].mxu0
        %v5182 = vadd.f32 %v4654, %v5181
        %v5183 = vpop.f32.mrb[0].mxu0
        %5184 = vmatprep.mubr.bf16.mxu0 0
        %5185 = vmatmul.mubr.bf16.gmra.mrb[0].mxu0 %v4786
        %v5186 = vpop.f32.mrb[0].mxu0
        %v5187 = vadd.f32 %v4654, %v5186
        %v5188 = vpop.f32.mrb[0].mxu0
        %v5189 = vpop.f32.mrb[0].mxu0
        %v5190 = vadd.f32 %v4654, %v5189
        %v5191 = vpop.f32.mrb[0].mxu0
        %5192 = vmatprep.mubr.bf16.mxu0 0
        %5193 = vmatmul.mubr.bf16.gmra.mrb[0].mxu0 %v4789
        %v5194 = vpop.f32.mrb[0].mxu0
        %v5195 = vadd.f32 %v4654, %v5194
        %v5196 = vpop.f32.mrb[0].mxu0
        %v5197 = vpop.f32.mrb[0].mxu0
        %v5198 = vadd.f32 %v4654, %v5197
        %v5199 = vpop.f32.mrb[0].mxu0
        %5200 = vmatprep.mubr.bf16.mxu0 0
        %5201 = vmatmul.mubr.bf16.gmra.mrb[0].mxu0 %v4792
        %v5202 = vpop.f32.mrb[0].mxu0
        %v5203 = vadd.f32 %v4654, %v5202
        %v5204 = vpop.f32.mrb[0].mxu0
        %v5205 = vpop.f32.mrb[0].mxu0
        %v5206 = vadd.f32 %v4654, %v5205
        %v5207 = vpop.f32.mrb[0].mxu0
        %5208 = vmatprep.mubr.bf16.mxu0 0
        %5209 = vmatmul.mubr.bf16.gmra.mrb[0].mxu0 %v4795
        %v5210 = vpop.f32.mrb[0].mxu0
        %v5211 = vadd.f32 %v4654, %v5210
        %v5212 = vpop.f32.mrb[0].mxu0
        %v5213 = vpop.f32.mrb[0].mxu0
        %v5214 = vadd.f32 %v4654, %v5213
        %v5215 = vpop.f32.mrb[0].mxu0
        %5216 = vmatprep.mubr.bf16.mxu0 0
        %5217 = vmatmul.mubr.bf16.gmra.mrb[0].mxu0 %v4798
        %v5218 = vpop.f32.mrb[0].mxu0
        %v5219 = vadd.f32 %v4654, %v5218
        %v5220 = vpop.f32.mrb[0].mxu0
        %v5221 = vpop.f32.mrb[0].mxu0
        %v5222 = vadd.f32 %v4654, %v5221
        %v5223 = vpop.f32.mrb[0].mxu0
        %5224 = vmatprep.mubr.bf16.mxu0 0
        %5225 = vmatmul.mubr.bf16.gmra.mrb[0].mxu0 %v4801
        %v5226 = vpop.f32.mrb[0].mxu0
        %v5227 = vadd.f32 %v4654, %v5226
        %v5228 = vpop.f32.mrb[0].mxu0
        %v5229 = vpop.f32.mrb[0].mxu0
        %v5230 = vadd.f32 %v4654, %v5229
        %v5231 = vpop.f32.mrb[0].mxu0
        %5232 = vmatprep.mubr.bf16.mxu0 0
        %5233 = vmatmul.mubr.bf16.gmra.mrb[0].mxu0 %v4804
        %v5234 = vpop.f32.mrb[0].mxu0
        %v5235 = vadd.f32 %v4654, %v5234
        %v5236 = vpop.f32.mrb[0].mxu0
        %v5237 = vpop.f32.mrb[0].mxu0
        %v5238 = vadd.f32 %v4654, %v5237
        %v5239 = vpop.f32.mrb[0].mxu0
        %5240 = vmatprep.mubr.bf16.mxu0 0
        %5241 = vmatmul.mubr.bf16.gmra.mrb[0].mxu0 %v4807
        %v5242 = vpop.f32.mrb[0].mxu0
        %v5243 = vadd.f32 %v4654, %v5242
        %v5244 = vpop.f32.mrb[0].mxu0
        %v5245 = vpop.f32.mrb[0].mxu0
        %v5246 = vadd.f32 %v4654, %v5245
        %v5247 = vpop.f32.mrb[0].mxu0
        %5248 = vmatprep.mubr.bf16.mxu0 0
        %5249 = vmatmul.mubr.bf16.gmra.mrb[0].mxu0 %v4810
        %v5250 = vpop.f32.mrb[0].mxu0
        %v5251 = vadd.f32 %v4654, %v5250
        %v5252 = vpop.f32.mrb[0].mxu0
        %v5253 = vpop.f32.mrb[0].mxu0
        %v5254 = vadd.f32 %v4654, %v5253
        %v5255 = vpop.f32.mrb[0].mxu0
        %5256 = vmatprep.mubr.bf16.mxu0 0
        %5257 = vmatmul.mubr.bf16.gmra.mrb[0].mxu0 %v4813
        %v5258 = vpop.f32.mrb[0].mxu0
        %v5259 = vadd.f32 %v4654, %v5258
        %v5260 = vpop.f32.mrb[0].mxu0
        %v5261 = vpop.f32.mrb[0].mxu0
        %v5262 = vadd.f32 %v4654, %v5261
        %v5263 = vpop.f32.mrb[0].mxu0
        %5264 = vmatprep.mubr.bf16.mxu0 0
        %5265 = vmatmul.mubr.bf16.gmra.mrb[0].mxu0 %v4816
        %v5266 = vpop.f32.mrb[0].mxu0
        %v5267 = vadd.f32 %v4654, %v5266
        %v5268 = vpop.f32.mrb[0].mxu0
        %v5269 = vpop.f32.mrb[0].mxu0
        %v5270 = vadd.f32 %v4654, %v5269
        %v5271 = vpop.f32.mrb[0].mxu0
        %5272 = vmatprep.mubr.bf16.mxu0 0
        %5273 = vmatmul.mubr.bf16.gmra.mrb[0].mxu0 %v4819
        %v5274 = vpop.f32.mrb[0].mxu0
        %v5275 = vadd.f32 %v4654, %v5274
        %v5276 = vpop.f32.mrb[0].mxu0
        %v5277 = vpop.f32.mrb[0].mxu0
        %v5278 = vadd.f32 %v4654, %v5277
        %v5279 = vpop.f32.mrb[0].mxu0
        %5280 = vmatprep.mubr.bf16.mxu0 0
        %5281 = vmatmul.mubr.bf16.gmra.mrb[0].mxu0 %v4822
        %v5282 = vpop.f32.mrb[0].mxu0
        %v5283 = vadd.f32 %v4654, %v5282
        %v5284 = vpop.f32.mrb[0].mxu0
        %v5285 = vpop.f32.mrb[0].mxu0
        %v5286 = vadd.f32 %v4654, %v5285
        %v5287 = vpop.f32.mrb[0].mxu0
        %5288 = vmatprep.mubr.bf16.mxu0 0
        %5289 = vmatmul.mubr.bf16.gmra.mrb[0].mxu0 %v4825
        %v5290 = vpop.f32.mrb[0].mxu0
        %v5291 = vadd.f32 %v4654, %v5290
        %v5292 = vpop.f32.mrb[0].mxu0
        %v5293 = vpop.f32.mrb[0].mxu0
        %v5294 = vadd.f32 %v4654, %v5293
        %v5295 = vpop.f32.mrb[0].mxu0
        %5296 = vmatprep.mubr.bf16.mxu0 0
        %5297 = vmatmul.mubr.bf16.gmra.mrb[0].mxu0 %v4828
        %v5298 = vpop.f32.mrb[0].mxu0
        %v5299 = vadd.f32 %v4654, %v5298
        %v5300 = vpop.f32.mrb[0].mxu0
        %v5301 = vpop.f32.mrb[0].mxu0
        %v5302 = vadd.f32 %v4654, %v5301
        %v5303 = vpop.f32.mrb[0].mxu0
        %5304 = vmatprep.mubr.bf16.mxu0 0
        %5305 = vmatmul.mubr.bf16.gmra.mrb[0].mxu0 %v4831
        %v5306 = vpop.f32.mrb[0].mxu0
        %v5307 = vadd.f32 %v4654, %v5306
        %v5308 = vpop.f32.mrb[0].mxu0
        %v5309 = vpop.f32.mrb[0].mxu0
        %v5310 = vadd.f32 %v4654, %v5309
        %v5311 = vpop.f32.mrb[0].mxu0
        %5312 = vmatprep.mubr.bf16.mxu0 0
        %5313 = vmatmul.mubr.bf16.gmra.mrb[0].mxu0 %v4834
        %v5314 = vpop.f32.mrb[0].mxu0
        %v5315 = vadd.f32 %v4654, %v5314
        %v5316 = vpop.f32.mrb[0].mxu0
        %v5317 = vpop.f32.mrb[0].mxu0
        %v5318 = vadd.f32 %v4654, %v5317
        %v5319 = vpop.f32.mrb[0].mxu0
        %5320 = vmatprep.mubr.bf16.mxu0 0
        %5321 = vmatmul.mubr.bf16.gmra.mrb[0].mxu0 %v4837
        %v5322 = vpop.f32.mrb[0].mxu0
        %v5323 = vadd.f32 %v4654, %v5322
        %v5324 = vpop.f32.mrb[0].mxu0
        %v5325 = vpop.f32.mrb[0].mxu0
        %v5326 = vadd.f32 %v4654, %v5325
        %v5327 = vpop.f32.mrb[0].mxu0
        %5328 = vmatprep.mubr.bf16.mxu0 0
        %5329 = vmatmul.mubr.bf16.gmra.mrb[0].mxu0 %v4840
        %v5330 = vpop.f32.mrb[0].mxu0
        %v5331 = vadd.f32 %v4654, %v5330
        %v5332 = vpop.f32.mrb[0].mxu0
        %v5333 = vpop.f32.mrb[0].mxu0
        %v5334 = vadd.f32 %v4654, %v5333
        %v5335 = vpop.f32.mrb[0].mxu0
        %5336 = vmatprep.mubr.bf16.mxu0 0
        %5337 = vmatmul.mubr.bf16.gmra.mrb[0].mxu0 %v4843
        %v5338 = vpop.f32.mrb[0].mxu0
        %v5339 = vadd.f32 %v4654, %v5338
        %v5340 = vpop.f32.mrb[0].mxu0
        %v5341 = vpop.f32.mrb[0].mxu0
        %v5342 = vadd.f32 %v4654, %v5341
        %v5343 = vpop.f32.mrb[0].mxu0
        %5344 = vmatprep.mubr.bf16.mxu0 0
        %5345 = vmatmul.mubr.bf16.gmra.mrb[0].mxu0 %v4846
        %v5346 = vpop.f32.mrb[0].mxu0
        %v5347 = vadd.f32 %v4654, %v5346
        %v5348 = vpop.f32.mrb[0].mxu0
        %v5349 = vpop.f32.mrb[0].mxu0
        %v5350 = vadd.f32 %v4654, %v5349
        %v5351 = vpop.f32.mrb[0].mxu0
        %5352 = vmatprep.mubr.bf16.mxu0 0
        %5353 = vmatmul.mubr.bf16.gmra.mrb[0].mxu0 %v4849
        %v5354 = vpop.f32.mrb[0].mxu0
        %v5355 = vadd.f32 %v4654, %v5354
        %v5356 = vpop.f32.mrb[0].mxu0
        %v5357 = vpop.f32.mrb[0].mxu0
        %v5358 = vadd.f32 %v4654, %v5357
        %v5359 = vpop.f32.mrb[0].mxu0
        %5360 = vmatprep.mubr.bf16.mxu0 0
        %5361 = vmatmul.mubr.bf16.gmra.mrb[0].mxu0 %v4852
        %v5362 = vpop.f32.mrb[0].mxu0
        %v5363 = vadd.f32 %v4654, %v5362
        %v5364 = vpop.f32.mrb[0].mxu0
        %v5365 = vpop.f32.mrb[0].mxu0
        %v5366 = vadd.f32 %v4654, %v5365
        %v5367 = vpop.f32.mrb[0].mxu0
        %5368 = vmatprep.mubr.bf16.mxu0 0
        %5369 = vmatmul.mubr.bf16.gmra.mrb[0].mxu0 %v4855
        %v5370 = vpop.f32.mrb[0].mxu0
        %v5371 = vadd.f32 %v4654, %v5370
        %v5372 = vpop.f32.mrb[0].mxu0
        %v5373 = vpop.f32.mrb[0].mxu0
        %v5374 = vadd.f32 %v4654, %v5373
        %v5375 = vpop.f32.mrb[0].mxu0
        %5376 = vmatprep.mubr.bf16.mxu0 0
        %5377 = vmatmul.mubr.bf16.gmra.mrb[0].mxu0 %v4858
        %v5378 = vpop.f32.mrb[0].mxu0
        %v5379 = vadd.f32 %v4654, %v5378
        %v5380 = vpop.f32.mrb[0].mxu0
        %v5381 = vpop.f32.mrb[0].mxu0
        %v5382 = vadd.f32 %v4654, %v5381
        %v5383 = vpop.f32.mrb[0].mxu0
        %5384 = vmatprep.mubr.bf16.mxu0 0
        %5385 = vmatmul.mubr.bf16.gmra.mrb[0].mxu0 %v4861
        %v5386 = vpop.f32.mrb[0].mxu0
        %v5387 = vadd.f32 %v4654, %v5386
        %v5388 = vpop.f32.mrb[0].mxu0
        %v5389 = vpop.f32.mrb[0].mxu0
        %v5390 = vadd.f32 %v4654, %v5389
        %v5391 = vpop.f32.mrb[0].mxu0
        %5392 = vmatprep.mubr.bf16.mxu0 0
        %5393 = vmatmul.mubr.bf16.gmra.mrb[0].mxu0 %v4864
        %v5394 = vpop.f32.mrb[0].mxu0
        %v5395 = vadd.f32 %v4654, %v5394
        %v5396 = vpop.f32.mrb[0].mxu0
        %v5397 = vpop.f32.mrb[0].mxu0
        %v5398 = vadd.f32 %v4654, %v5397
        %v5399 = vpop.f32.mrb[0].mxu0
        %5400 = vmatprep.mubr.bf16.mxu0 0
        %5401 = vmatmul.mubr.bf16.gmra.mrb[0].mxu0 %v4867
        %v5402 = vpop.f32.mrb[0].mxu0
        %v5403 = vadd.f32 %v4654, %v5402
        %v5404 = vpop.f32.mrb[0].mxu0
        %v5405 = vpop.f32.mrb[0].mxu0
        %v5406 = vadd.f32 %v4654, %v5405
        %v5407 = vpop.f32.mrb[0].mxu0
        %5408 = vmatprep.mubr.bf16.mxu0 0
        %5409 = vmatmul.mubr.bf16.gmra.mrb[0].mxu0 %v4870
        %v5410 = vpop.f32.mrb[0].mxu0
        %v5411 = vadd.f32 %v4654, %v5410
        %v5412 = vpop.f32.mrb[0].mxu0
        %v5413 = vpop.f32.mrb[0].mxu0
        %v5414 = vadd.f32 %v4654, %v5413
        %v5415 = vpop.f32.mrb[0].mxu0
        %5416 = vdwg.mxu0
        %v5417 = vmax.f32 %v4907, 0.0
        %v5418 = vmax.f32 %v4910, 0.0
        %v5419 = vmax.f32 %v4915, 0.0
        %v5420 = vmax.f32 %v4918, 0.0
        %v5421 = vmax.f32 %v4923, 0.0
        %v5422 = vmax.f32 %v4926, 0.0
        %v5423 = vmax.f32 %v4931, 0.0
        %v5424 = vmax.f32 %v4934, 0.0
        %v5425 = vmax.f32 %v4939, 0.0
        %v5426 = vmax.f32 %v4942, 0.0
        %v5427 = vmax.f32 %v4947, 0.0
        %v5428 = vmax.f32 %v4950, 0.0
        %v5429 = vmax.f32 %v4955, 0.0
        %v5430 = vmax.f32 %v4958, 0.0
        %v5431 = vmax.f32 %v4963, 0.0
        %v5432 = vmax.f32 %v4966, 0.0
        %v5433 = vmax.f32 %v4971, 0.0
        %v5434 = vmax.f32 %v4974, 0.0
        %v5435 = vmax.f32 %v4979, 0.0
        %v5436 = vmax.f32 %v4982, 0.0
        %v5437 = vmax.f32 %v4987, 0.0
        %v5438 = vmax.f32 %v4990, 0.0
        %v5439 = vmax.f32 %v4995, 0.0
        %v5440 = vmax.f32 %v4998, 0.0
        %v5441 = vmax.f32 %v5003, 0.0
        %v5442 = vmax.f32 %v5006, 0.0
        %v5443 = vmax.f32 %v5011, 0.0
        %v5444 = vmax.f32 %v5014, 0.0
        %v5445 = vmax.f32 %v5019, 0.0
        %v5446 = vmax.f32 %v5022, 0.0
        %v5447 = vmax.f32 %v5027, 0.0
        %v5448 = vmax.f32 %v5030, 0.0
        %v5449 = vmax.f32 %v5035, 0.0
        %v5450 = vmax.f32 %v5038, 0.0
        %v5451 = vmax.f32 %v5043, 0.0
        %v5452 = vmax.f32 %v5046, 0.0
        %v5453 = vmax.f32 %v5051, 0.0
        %v5454 = vmax.f32 %v5054, 0.0
        %v5455 = vmax.f32 %v5059, 0.0
        %v5456 = vmax.f32 %v5062, 0.0
        %v5457 = vmax.f32 %v5067, 0.0
        %v5458 = vmax.f32 %v5070, 0.0
        %v5459 = vmax.f32 %v5075, 0.0
        %v5460 = vmax.f32 %v5078, 0.0
        %v5461 = vmax.f32 %v5083, 0.0
        %v5462 = vmax.f32 %v5086, 0.0
        %v5463 = vmax.f32 %v5091, 0.0
        %v5464 = vmax.f32 %v5094, 0.0
        %v5465 = vmax.f32 %v5099, 0.0
        %v5466 = vmax.f32 %v5102, 0.0
        %v5467 = vmax.f32 %v5107, 0.0
        %v5468 = vmax.f32 %v5110, 0.0
        %v5469 = vmax.f32 %v5115, 0.0
        %v5470 = vmax.f32 %v5118, 0.0
        %v5471 = vmax.f32 %v5123, 0.0
        %v5472 = vmax.f32 %v5126, 0.0
        %v5473 = vmax.f32 %v5131, 0.0
        %v5474 = vmax.f32 %v5134, 0.0
        %v5475 = vmax.f32 %v5139, 0.0
        %v5476 = vmax.f32 %v5142, 0.0
        %v5477 = vmax.f32 %v5147, 0.0
        %v5478 = vmax.f32 %v5150, 0.0
        %v5479 = vmax.f32 %v5155, 0.0
        %v5480 = vmax.f32 %v5158, 0.0
        %v5481 = vmax.f32 %v5163, 0.0
        %v5482 = vmax.f32 %v5166, 0.0
        %v5483 = vmax.f32 %v5171, 0.0
        %v5484 = vmax.f32 %v5174, 0.0
        %v5485 = vmax.f32 %v5179, 0.0
        %v5486 = vmax.f32 %v5182, 0.0
        %v5487 = vmax.f32 %v5187, 0.0
        %v5488 = vmax.f32 %v5190, 0.0
        %v5489 = vmax.f32 %v5195, 0.0
        %v5490 = vmax.f32 %v5198, 0.0
        %v5491 = vmax.f32 %v5203, 0.0
        %v5492 = vmax.f32 %v5206, 0.0
        %v5493 = vmax.f32 %v5211, 0.0
        %v5494 = vmax.f32 %v5214, 0.0
        %v5495 = vmax.f32 %v5219, 0.0
        %v5496 = vmax.f32 %v5222, 0.0
        %v5497 = vmax.f32 %v5227, 0.0
        %v5498 = vmax.f32 %v5230, 0.0
        %v5499 = vmax.f32 %v5235, 0.0
        %v5500 = vmax.f32 %v5238, 0.0
        %v5501 = vmax.f32 %v5243, 0.0
        %v5502 = vmax.f32 %v5246, 0.0
        %v5503 = vmax.f32 %v5251, 0.0
        %v5504 = vmax.f32 %v5254, 0.0
        %v5505 = vmax.f32 %v5259, 0.0
        %v5506 = vmax.f32 %v5262, 0.0
        %v5507 = vmax.f32 %v5267, 0.0
        %v5508 = vmax.f32 %v5270, 0.0
        %v5509 = vmax.f32 %v5275, 0.0
        %v5510 = vmax.f32 %v5278, 0.0
        %v5511 = vmax.f32 %v5283, 0.0
        %v5512 = vmax.f32 %v5286, 0.0
        %v5513 = vmax.f32 %v5291, 0.0
        %v5514 = vmax.f32 %v5294, 0.0
        %v5515 = vmax.f32 %v5299, 0.0
        %v5516 = vmax.f32 %v5302, 0.0
        %v5517 = vmax.f32 %v5307, 0.0
        %v5518 = vmax.f32 %v5310, 0.0
        %v5519 = vmax.f32 %v5315, 0.0
        %v5520 = vmax.f32 %v5318, 0.0
        %v5521 = vmax.f32 %v5323, 0.0
        %v5522 = vmax.f32 %v5326, 0.0
        %v5523 = vmax.f32 %v5331, 0.0
        %v5524 = vmax.f32 %v5334, 0.0
        %v5525 = vmax.f32 %v5339, 0.0
        %v5526 = vmax.f32 %v5342, 0.0
        %v5527 = vmax.f32 %v5347, 0.0
        %v5528 = vmax.f32 %v5350, 0.0
        %v5529 = vmax.f32 %v5355, 0.0
        %v5530 = vmax.f32 %v5358, 0.0
        %v5531 = vmax.f32 %v5363, 0.0
        %v5532 = vmax.f32 %v5366, 0.0
        %v5533 = vmax.f32 %v5371, 0.0
        %v5534 = vmax.f32 %v5374, 0.0
        %v5535 = vmax.f32 %v5379, 0.0
        %v5536 = vmax.f32 %v5382, 0.0
        %v5537 = vmax.f32 %v5387, 0.0
        %v5538 = vmax.f32 %v5390, 0.0
        %v5539 = vmax.f32 %v5395, 0.0
        %v5540 = vmax.f32 %v5398, 0.0
        %v5541 = vmax.f32 %v5403, 0.0
        %v5542 = vmax.f32 %v5406, 0.0
        %v5543 = vmax.f32 %v5411, 0.0
        %v5544 = vmax.f32 %v5414, 0.0
        %v5545 = vpack.c.bf16 %v5418, %v5417
        %v5546 = vpack.c.bf16 %v5420, %v5419
        %v5547 = vpack.c.bf16 %v5422, %v5421
        %v5548 = vpack.c.bf16 %v5424, %v5423
        %v5549 = vpack.c.bf16 %v5426, %v5425
        %v5550 = vpack.c.bf16 %v5428, %v5427
        %v5551 = vpack.c.bf16 %v5430, %v5429
        %v5552 = vpack.c.bf16 %v5432, %v5431
        %v5553 = vpack.c.bf16 %v5434, %v5433
        %v5554 = vpack.c.bf16 %v5436, %v5435
        %v5555 = vpack.c.bf16 %v5438, %v5437
        %v5556 = vpack.c.bf16 %v5440, %v5439
        %v5557 = vpack.c.bf16 %v5442, %v5441
        %v5558 = vpack.c.bf16 %v5444, %v5443
        %v5559 = vpack.c.bf16 %v5446, %v5445
        %v5560 = vpack.c.bf16 %v5448, %v5447
        %v5561 = vpack.c.bf16 %v5450, %v5449
        %v5562 = vpack.c.bf16 %v5452, %v5451
        %v5563 = vpack.c.bf16 %v5454, %v5453
        %v5564 = vpack.c.bf16 %v5456, %v5455
        %v5565 = vpack.c.bf16 %v5458, %v5457
        %v5566 = vpack.c.bf16 %v5460, %v5459
        %v5567 = vpack.c.bf16 %v5462, %v5461
        %v5568 = vpack.c.bf16 %v5464, %v5463
        %v5569 = vpack.c.bf16 %v5466, %v5465
        %v5570 = vpack.c.bf16 %v5468, %v5467
        %v5571 = vpack.c.bf16 %v5470, %v5469
        %v5572 = vpack.c.bf16 %v5472, %v5471
        %v5573 = vpack.c.bf16 %v5474, %v5473
        %v5574 = vpack.c.bf16 %v5476, %v5475
        %v5575 = vpack.c.bf16 %v5478, %v5477
        %v5576 = vpack.c.bf16 %v5480, %v5479
        %v5577 = vpack.c.bf16 %v5482, %v5481
        %v5578 = vpack.c.bf16 %v5484, %v5483
        %v5579 = vpack.c.bf16 %v5486, %v5485
        %v5580 = vpack.c.bf16 %v5488, %v5487
        %v5581 = vpack.c.bf16 %v5490, %v5489
        %v5582 = vpack.c.bf16 %v5492, %v5491
        %v5583 = vpack.c.bf16 %v5494, %v5493
        %v5584 = vpack.c.bf16 %v5496, %v5495
        %v5585 = vpack.c.bf16 %v5498, %v5497
        %v5586 = vpack.c.bf16 %v5500, %v5499
        %v5587 = vpack.c.bf16 %v5502, %v5501
        %v5588 = vpack.c.bf16 %v5504, %v5503
        %v5589 = vpack.c.bf16 %v5506, %v5505
        %v5590 = vpack.c.bf16 %v5508, %v5507
        %v5591 = vpack.c.bf16 %v5510, %v5509
        %v5592 = vpack.c.bf16 %v5512, %v5511
        %v5593 = vpack.c.bf16 %v5514, %v5513
        %v5594 = vpack.c.bf16 %v5516, %v5515
        %v5595 = vpack.c.bf16 %v5518, %v5517
        %v5596 = vpack.c.bf16 %v5520, %v5519
        %v5597 = vpack.c.bf16 %v5522, %v5521
        %v5598 = vpack.c.bf16 %v5524, %v5523
        %v5599 = vpack.c.bf16 %v5526, %v5525
        %v5600 = vpack.c.bf16 %v5528, %v5527
        %v5601 = vpack.c.bf16 %v5530, %v5529
        %v5602 = vpack.c.bf16 %v5532, %v5531
        %v5603 = vpack.c.bf16 %v5534, %v5533
        %v5604 = vpack.c.bf16 %v5536, %v5535
        %v5605 = vpack.c.bf16 %v5538, %v5537
        %v5606 = vpack.c.bf16 %v5540, %v5539
        %v5607 = vpack.c.bf16 %v5542, %v5541
        %v5608 = vpack.c.bf16 %v5544, %v5543
        %v5609 = vld [vmem:[%s13] sm:$0xf]
        %v5610 = vld [vmem:[%s13 + $0x4] sm:$0xf]
        %v5611 = vld [vmem:[%s13 + $0x8] sm:$0xf]
        %v5612 = vld [vmem:[%s13 + $0xc] sm:$0xf]
        %v5613 = vld [vmem:[%s13 + $0x10] sm:$0xf]
        %v5614 = vld [vmem:[%s13 + $0x14] sm:$0xf]
        %v5615 = vld [vmem:[%s13 + $0x18] sm:$0xf]
        %v5616 = vld [vmem:[%s13 + $0x1c] sm:$0xf]
        %v5617 = vld [vmem:[%s13 + $0x20] sm:$0xf]
        %v5618 = vld [vmem:[%s13 + $0x24] sm:$0xf]
        %v5619 = vld [vmem:[%s13 + $0x28] sm:$0xf]
        %v5620 = vld [vmem:[%s13 + $0x2c] sm:$0xf]
        %v5621 = vld [vmem:[%s13 + $0x30] sm:$0xf]
        %v5622 = vld [vmem:[%s13 + $0x34] sm:$0xf]
        %v5623 = vld [vmem:[%s13 + $0x38] sm:$0xf]
        %v5624 = vld [vmem:[%s13 + $0x3c] sm:$0xf]
        %v5625 = vld [vmem:[%s14] sm:$0x1]
        %v5627 = vlaneseq
        %v5628 = vshrl.u32 %v5627, 7
        %v5629 = vsub.s32 0, %v5628
        %v5630 = vrot.slane %v5625, %v5629
        %v5648 = vunpack.c.l.b16 %v5609
        %v5649 = vunpack.c.l.b16 %v5610
        %v5650 = vunpack.c.l.b16 %v5611
        %v5651 = vunpack.c.l.b16 %v5612
        %v5652 = vunpack.c.l.b16 %v5613
        %v5653 = vunpack.c.l.b16 %v5614
        %v5654 = vunpack.c.l.b16 %v5615
        %v5655 = vunpack.c.l.b16 %v5616
        %v5656 = vunpack.c.l.b16 %v5617
        %v5657 = vunpack.c.l.b16 %v5618
        %v5658 = vunpack.c.l.b16 %v5619
        %v5659 = vunpack.c.l.b16 %v5620
        %v5660 = vunpack.c.l.b16 %v5621
        %v5661 = vunpack.c.l.b16 %v5622
        %v5662 = vunpack.c.l.b16 %v5623
        %v5663 = vunpack.c.l.b16 %v5624
        %v5664 = vpack.c.b16 %v5649, %v5648
        %v5665 = vpack.c.b16 %v5651, %v5650
        %v5666 = vpack.c.b16 %v5653, %v5652
        %v5667 = vpack.c.b16 %v5655, %v5654
        %v5668 = vpack.c.b16 %v5657, %v5656
        %v5669 = vpack.c.b16 %v5659, %v5658
        %v5670 = vpack.c.b16 %v5661, %v5660
        %v5671 = vpack.c.b16 %v5663, %v5662
        %5680 = vmatprep.subr.bf16.mxu0 0
        %5681 = vmatpush1.bf16.msra.mxu0 %v5664
        %5682 = vmatprep.subr.bf16.mxu0 0
        %5683 = vmatpush1.bf16.msra.mxu0 %v5665
        %5684 = vmatprep.subr.bf16.mxu0 0
        %5685 = vmatpush1.bf16.msra.mxu0 %v5666
        %5686 = vmatprep.subr.bf16.mxu0 0
        %5687 = vmatpush1.bf16.msra.mxu0 %v5667
        %5688 = vmatprep.subr.bf16.mxu0 0
        %5689 = vmatpush1.bf16.msra.mxu0 %v5668
        %5690 = vmatprep.subr.bf16.mxu0 0
        %5691 = vmatpush1.bf16.msra.mxu0 %v5669
        %5692 = vmatprep.subr.bf16.mxu0 0
        %5693 = vmatpush1.bf16.msra.mxu0 %v5670
        %5694 = vmatprep.subr.bf16.mxu0 0
        %5695 = vmatpush1.bf16.msra.mxu0 %v5671
        %5696 = vmatprep.subr.bf16.mxu0 0
        %5697 = vmatpush1.bf16.msra.mxu0 0
        %5698 = vmatprep.subr.bf16.mxu0 0
        %5699 = vmatpush1.bf16.msra.mxu0 0
        %5700 = vmatprep.subr.bf16.mxu0 0
        %5701 = vmatpush1.bf16.msra.mxu0 0
        %5702 = vmatprep.subr.bf16.mxu0 0
        %5703 = vmatpush1.bf16.msra.mxu0 0
        %5704 = vmatprep.subr.bf16.mxu0 0
        %5705 = vmatpush1.bf16.msra.mxu0 0
        %5706 = vmatprep.subr.bf16.mxu0 0
        %5707 = vmatpush1.bf16.msra.mxu0 0
        %5708 = vmatprep.subr.bf16.mxu0 0
        %5709 = vmatpush1.bf16.msra.mxu0 0
        %5710 = vmatprep.subr.bf16.mxu0 0
        %5711 = vmatpush1.bf16.msra.mxu0 0
        %5712 = vmatprep.mubr.bf16.mxu0 0
        %5713 = vmatmul.mubr.bf16.gmra.mrb[0].mxu0 %v5545
        %v5714 = vpop.f32.mrb[0].mxu0
        %v5715 = vadd.f32 %v5630, %v5714
        %v5716 = vpop.f32.mrb[0].mxu0
        %v5717 = vpop.f32.mrb[0].mxu0
        %v5718 = vadd.f32 %v5630, %v5717
        %v5719 = vpop.f32.mrb[0].mxu0
        %5720 = vmatprep.mubr.bf16.mxu0 0
        %5721 = vmatmul.mubr.bf16.gmra.mrb[0].mxu0 %v5546
        %v5722 = vpop.f32.mrb[0].mxu0
        %v5723 = vadd.f32 %v5630, %v5722
        %v5724 = vpop.f32.mrb[0].mxu0
        %v5725 = vpop.f32.mrb[0].mxu0
        %v5726 = vadd.f32 %v5630, %v5725
        %v5727 = vpop.f32.mrb[0].mxu0
        %5728 = vmatprep.mubr.bf16.mxu0 0
        %5729 = vmatmul.mubr.bf16.gmra.mrb[0].mxu0 %v5547
        %v5730 = vpop.f32.mrb[0].mxu0
        %v5731 = vadd.f32 %v5630, %v5730
        %v5732 = vpop.f32.mrb[0].mxu0
        %v5733 = vpop.f32.mrb[0].mxu0
        %v5734 = vadd.f32 %v5630, %v5733
        %v5735 = vpop.f32.mrb[0].mxu0
        %5736 = vmatprep.mubr.bf16.mxu0 0
        %5737 = vmatmul.mubr.bf16.gmra.mrb[0].mxu0 %v5548
        %v5738 = vpop.f32.mrb[0].mxu0
        %v5739 = vadd.f32 %v5630, %v5738
        %v5740 = vpop.f32.mrb[0].mxu0
        %v5741 = vpop.f32.mrb[0].mxu0
        %v5742 = vadd.f32 %v5630, %v5741
        %v5743 = vpop.f32.mrb[0].mxu0
        %5744 = vmatprep.mubr.bf16.mxu0 0
        %5745 = vmatmul.mubr.bf16.gmra.mrb[0].mxu0 %v5549
        %v5746 = vpop.f32.mrb[0].mxu0
        %v5747 = vadd.f32 %v5630, %v5746
        %v5748 = vpop.f32.mrb[0].mxu0
        %v5749 = vpop.f32.mrb[0].mxu0
        %v5750 = vadd.f32 %v5630, %v5749
        %v5751 = vpop.f32.mrb[0].mxu0
        %5752 = vmatprep.mubr.bf16.mxu0 0
        %5753 = vmatmul.mubr.bf16.gmra.mrb[0].mxu0 %v5550
        %v5754 = vpop.f32.mrb[0].mxu0
        %v5755 = vadd.f32 %v5630, %v5754
        %v5756 = vpop.f32.mrb[0].mxu0
        %v5757 = vpop.f32.mrb[0].mxu0
        %v5758 = vadd.f32 %v5630, %v5757
        %v5759 = vpop.f32.mrb[0].mxu0
        %5760 = vmatprep.mubr.bf16.mxu0 0
        %5761 = vmatmul.mubr.bf16.gmra.mrb[0].mxu0 %v5551
        %v5762 = vpop.f32.mrb[0].mxu0
        %v5763 = vadd.f32 %v5630, %v5762
        %v5764 = vpop.f32.mrb[0].mxu0
        %v5765 = vpop.f32.mrb[0].mxu0
        %v5766 = vadd.f32 %v5630, %v5765
        %v5767 = vpop.f32.mrb[0].mxu0
        %5768 = vmatprep.mubr.bf16.mxu0 0
        %5769 = vmatmul.mubr.bf16.gmra.mrb[0].mxu0 %v5552
        %v5770 = vpop.f32.mrb[0].mxu0
        %v5771 = vadd.f32 %v5630, %v5770
        %v5772 = vpop.f32.mrb[0].mxu0
        %v5773 = vpop.f32.mrb[0].mxu0
        %v5774 = vadd.f32 %v5630, %v5773
        %v5775 = vpop.f32.mrb[0].mxu0
        %5776 = vmatprep.mubr.bf16.mxu0 0
        %5777 = vmatmul.mubr.bf16.gmra.mrb[0].mxu0 %v5553
        %v5778 = vpop.f32.mrb[0].mxu0
        %v5779 = vadd.f32 %v5630, %v5778
        %v5780 = vpop.f32.mrb[0].mxu0
        %v5781 = vpop.f32.mrb[0].mxu0
        %v5782 = vadd.f32 %v5630, %v5781
        %v5783 = vpop.f32.mrb[0].mxu0
        %5784 = vmatprep.mubr.bf16.mxu0 0
        %5785 = vmatmul.mubr.bf16.gmra.mrb[0].mxu0 %v5554
        %v5786 = vpop.f32.mrb[0].mxu0
        %v5787 = vadd.f32 %v5630, %v5786
        %v5788 = vpop.f32.mrb[0].mxu0
        %v5789 = vpop.f32.mrb[0].mxu0
        %v5790 = vadd.f32 %v5630, %v5789
        %v5791 = vpop.f32.mrb[0].mxu0
        %5792 = vmatprep.mubr.bf16.mxu0 0
        %5793 = vmatmul.mubr.bf16.gmra.mrb[0].mxu0 %v5555
        %v5794 = vpop.f32.mrb[0].mxu0
        %v5795 = vadd.f32 %v5630, %v5794
        %v5796 = vpop.f32.mrb[0].mxu0
        %v5797 = vpop.f32.mrb[0].mxu0
        %v5798 = vadd.f32 %v5630, %v5797
        %v5799 = vpop.f32.mrb[0].mxu0
        %5800 = vmatprep.mubr.bf16.mxu0 0
        %5801 = vmatmul.mubr.bf16.gmra.mrb[0].mxu0 %v5556
        %v5802 = vpop.f32.mrb[0].mxu0
        %v5803 = vadd.f32 %v5630, %v5802
        %v5804 = vpop.f32.mrb[0].mxu0
        %v5805 = vpop.f32.mrb[0].mxu0
        %v5806 = vadd.f32 %v5630, %v5805
        %v5807 = vpop.f32.mrb[0].mxu0
        %5808 = vmatprep.mubr.bf16.mxu0 0
        %5809 = vmatmul.mubr.bf16.gmra.mrb[0].mxu0 %v5557
        %v5810 = vpop.f32.mrb[0].mxu0
        %v5811 = vadd.f32 %v5630, %v5810
        %v5812 = vpop.f32.mrb[0].mxu0
        %v5813 = vpop.f32.mrb[0].mxu0
        %v5814 = vadd.f32 %v5630, %v5813
        %v5815 = vpop.f32.mrb[0].mxu0
        %5816 = vmatprep.mubr.bf16.mxu0 0
        %5817 = vmatmul.mubr.bf16.gmra.mrb[0].mxu0 %v5558
        %v5818 = vpop.f32.mrb[0].mxu0
        %v5819 = vadd.f32 %v5630, %v5818
        %v5820 = vpop.f32.mrb[0].mxu0
        %v5821 = vpop.f32.mrb[0].mxu0
        %v5822 = vadd.f32 %v5630, %v5821
        %v5823 = vpop.f32.mrb[0].mxu0
        %5824 = vmatprep.mubr.bf16.mxu0 0
        %5825 = vmatmul.mubr.bf16.gmra.mrb[0].mxu0 %v5559
        %v5826 = vpop.f32.mrb[0].mxu0
        %v5827 = vadd.f32 %v5630, %v5826
        %v5828 = vpop.f32.mrb[0].mxu0
        %v5829 = vpop.f32.mrb[0].mxu0
        %v5830 = vadd.f32 %v5630, %v5829
        %v5831 = vpop.f32.mrb[0].mxu0
        %5832 = vmatprep.mubr.bf16.mxu0 0
        %5833 = vmatmul.mubr.bf16.gmra.mrb[0].mxu0 %v5560
        %v5834 = vpop.f32.mrb[0].mxu0
        %v5835 = vadd.f32 %v5630, %v5834
        %v5836 = vpop.f32.mrb[0].mxu0
        %v5837 = vpop.f32.mrb[0].mxu0
        %v5838 = vadd.f32 %v5630, %v5837
        %v5839 = vpop.f32.mrb[0].mxu0
        %5840 = vmatprep.mubr.bf16.mxu0 0
        %5841 = vmatmul.mubr.bf16.gmra.mrb[0].mxu0 %v5561
        %v5842 = vpop.f32.mrb[0].mxu0
        %v5843 = vadd.f32 %v5630, %v5842
        %v5844 = vpop.f32.mrb[0].mxu0
        %v5845 = vpop.f32.mrb[0].mxu0
        %v5846 = vadd.f32 %v5630, %v5845
        %v5847 = vpop.f32.mrb[0].mxu0
        %5848 = vmatprep.mubr.bf16.mxu0 0
        %5849 = vmatmul.mubr.bf16.gmra.mrb[0].mxu0 %v5562
        %v5850 = vpop.f32.mrb[0].mxu0
        %v5851 = vadd.f32 %v5630, %v5850
        %v5852 = vpop.f32.mrb[0].mxu0
        %v5853 = vpop.f32.mrb[0].mxu0
        %v5854 = vadd.f32 %v5630, %v5853
        %v5855 = vpop.f32.mrb[0].mxu0
        %5856 = vmatprep.mubr.bf16.mxu0 0
        %5857 = vmatmul.mubr.bf16.gmra.mrb[0].mxu0 %v5563
        %v5858 = vpop.f32.mrb[0].mxu0
        %v5859 = vadd.f32 %v5630, %v5858
        %v5860 = vpop.f32.mrb[0].mxu0
        %v5861 = vpop.f32.mrb[0].mxu0
        %v5862 = vadd.f32 %v5630, %v5861
        %v5863 = vpop.f32.mrb[0].mxu0
        %5864 = vmatprep.mubr.bf16.mxu0 0
        %5865 = vmatmul.mubr.bf16.gmra.mrb[0].mxu0 %v5564
        %v5866 = vpop.f32.mrb[0].mxu0
        %v5867 = vadd.f32 %v5630, %v5866
        %v5868 = vpop.f32.mrb[0].mxu0
        %v5869 = vpop.f32.mrb[0].mxu0
        %v5870 = vadd.f32 %v5630, %v5869
        %v5871 = vpop.f32.mrb[0].mxu0
        %5872 = vmatprep.mubr.bf16.mxu0 0
        %5873 = vmatmul.mubr.bf16.gmra.mrb[0].mxu0 %v5565
        %v5874 = vpop.f32.mrb[0].mxu0
        %v5875 = vadd.f32 %v5630, %v5874
        %v5876 = vpop.f32.mrb[0].mxu0
        %v5877 = vpop.f32.mrb[0].mxu0
        %v5878 = vadd.f32 %v5630, %v5877
        %v5879 = vpop.f32.mrb[0].mxu0
        %5880 = vmatprep.mubr.bf16.mxu0 0
        %5881 = vmatmul.mubr.bf16.gmra.mrb[0].mxu0 %v5566
        %v5882 = vpop.f32.mrb[0].mxu0
        %v5883 = vadd.f32 %v5630, %v5882
        %v5884 = vpop.f32.mrb[0].mxu0
        %v5885 = vpop.f32.mrb[0].mxu0
        %v5886 = vadd.f32 %v5630, %v5885
        %v5887 = vpop.f32.mrb[0].mxu0
        %5888 = vmatprep.mubr.bf16.mxu0 0
        %5889 = vmatmul.mubr.bf16.gmra.mrb[0].mxu0 %v5567
        %v5890 = vpop.f32.mrb[0].mxu0
        %v5891 = vadd.f32 %v5630, %v5890
        %v5892 = vpop.f32.mrb[0].mxu0
        %v5893 = vpop.f32.mrb[0].mxu0
        %v5894 = vadd.f32 %v5630, %v5893
        %v5895 = vpop.f32.mrb[0].mxu0
        %5896 = vmatprep.mubr.bf16.mxu0 0
        %5897 = vmatmul.mubr.bf16.gmra.mrb[0].mxu0 %v5568
        %v5898 = vpop.f32.mrb[0].mxu0
        %v5899 = vadd.f32 %v5630, %v5898
        %v5900 = vpop.f32.mrb[0].mxu0
        %v5901 = vpop.f32.mrb[0].mxu0
        %v5902 = vadd.f32 %v5630, %v5901
        %v5903 = vpop.f32.mrb[0].mxu0
        %5904 = vmatprep.mubr.bf16.mxu0 0
        %5905 = vmatmul.mubr.bf16.gmra.mrb[0].mxu0 %v5569
        %v5906 = vpop.f32.mrb[0].mxu0
        %v5907 = vadd.f32 %v5630, %v5906
        %v5908 = vpop.f32.mrb[0].mxu0
        %v5909 = vpop.f32.mrb[0].mxu0
        %v5910 = vadd.f32 %v5630, %v5909
        %v5911 = vpop.f32.mrb[0].mxu0
        %5912 = vmatprep.mubr.bf16.mxu0 0
        %5913 = vmatmul.mubr.bf16.gmra.mrb[0].mxu0 %v5570
        %v5914 = vpop.f32.mrb[0].mxu0
        %v5915 = vadd.f32 %v5630, %v5914
        %v5916 = vpop.f32.mrb[0].mxu0
        %v5917 = vpop.f32.mrb[0].mxu0
        %v5918 = vadd.f32 %v5630, %v5917
        %v5919 = vpop.f32.mrb[0].mxu0
        %5920 = vmatprep.mubr.bf16.mxu0 0
        %5921 = vmatmul.mubr.bf16.gmra.mrb[0].mxu0 %v5571
        %v5922 = vpop.f32.mrb[0].mxu0
        %v5923 = vadd.f32 %v5630, %v5922
        %v5924 = vpop.f32.mrb[0].mxu0
        %v5925 = vpop.f32.mrb[0].mxu0
        %v5926 = vadd.f32 %v5630, %v5925
        %v5927 = vpop.f32.mrb[0].mxu0
        %5928 = vmatprep.mubr.bf16.mxu0 0
        %5929 = vmatmul.mubr.bf16.gmra.mrb[0].mxu0 %v5572
        %v5930 = vpop.f32.mrb[0].mxu0
        %v5931 = vadd.f32 %v5630, %v5930
        %v5932 = vpop.f32.mrb[0].mxu0
        %v5933 = vpop.f32.mrb[0].mxu0
        %v5934 = vadd.f32 %v5630, %v5933
        %v5935 = vpop.f32.mrb[0].mxu0
        %5936 = vmatprep.mubr.bf16.mxu0 0
        %5937 = vmatmul.mubr.bf16.gmra.mrb[0].mxu0 %v5573
        %v5938 = vpop.f32.mrb[0].mxu0
        %v5939 = vadd.f32 %v5630, %v5938
        %v5940 = vpop.f32.mrb[0].mxu0
        %v5941 = vpop.f32.mrb[0].mxu0
        %v5942 = vadd.f32 %v5630, %v5941
        %v5943 = vpop.f32.mrb[0].mxu0
        %5944 = vmatprep.mubr.bf16.mxu0 0
        %5945 = vmatmul.mubr.bf16.gmra.mrb[0].mxu0 %v5574
        %v5946 = vpop.f32.mrb[0].mxu0
        %v5947 = vadd.f32 %v5630, %v5946
        %v5948 = vpop.f32.mrb[0].mxu0
        %v5949 = vpop.f32.mrb[0].mxu0
        %v5950 = vadd.f32 %v5630, %v5949
        %v5951 = vpop.f32.mrb[0].mxu0
        %5952 = vmatprep.mubr.bf16.mxu0 0
        %5953 = vmatmul.mubr.bf16.gmra.mrb[0].mxu0 %v5575
        %v5954 = vpop.f32.mrb[0].mxu0
        %v5955 = vadd.f32 %v5630, %v5954
        %v5956 = vpop.f32.mrb[0].mxu0
        %v5957 = vpop.f32.mrb[0].mxu0
        %v5958 = vadd.f32 %v5630, %v5957
        %v5959 = vpop.f32.mrb[0].mxu0
        %5960 = vmatprep.mubr.bf16.mxu0 0
        %5961 = vmatmul.mubr.bf16.gmra.mrb[0].mxu0 %v5576
        %v5962 = vpop.f32.mrb[0].mxu0
        %v5963 = vadd.f32 %v5630, %v5962
        %v5964 = vpop.f32.mrb[0].mxu0
        %v5965 = vpop.f32.mrb[0].mxu0
        %v5966 = vadd.f32 %v5630, %v5965
        %v5967 = vpop.f32.mrb[0].mxu0
        %5968 = vmatprep.mubr.bf16.mxu0 0
        %5969 = vmatmul.mubr.bf16.gmra.mrb[0].mxu0 %v5577
        %v5970 = vpop.f32.mrb[0].mxu0
        %v5971 = vadd.f32 %v5630, %v5970
        %v5972 = vpop.f32.mrb[0].mxu0
        %v5973 = vpop.f32.mrb[0].mxu0
        %v5974 = vadd.f32 %v5630, %v5973
        %v5975 = vpop.f32.mrb[0].mxu0
        %5976 = vmatprep.mubr.bf16.mxu0 0
        %5977 = vmatmul.mubr.bf16.gmra.mrb[0].mxu0 %v5578
        %v5978 = vpop.f32.mrb[0].mxu0
        %v5979 = vadd.f32 %v5630, %v5978
        %v5980 = vpop.f32.mrb[0].mxu0
        %v5981 = vpop.f32.mrb[0].mxu0
        %v5982 = vadd.f32 %v5630, %v5981
        %v5983 = vpop.f32.mrb[0].mxu0
        %5984 = vmatprep.mubr.bf16.mxu0 0
        %5985 = vmatmul.mubr.bf16.gmra.mrb[0].mxu0 %v5579
        %v5986 = vpop.f32.mrb[0].mxu0
        %v5987 = vadd.f32 %v5630, %v5986
        %v5988 = vpop.f32.mrb[0].mxu0
        %v5989 = vpop.f32.mrb[0].mxu0
        %v5990 = vadd.f32 %v5630, %v5989
        %v5991 = vpop.f32.mrb[0].mxu0
        %5992 = vmatprep.mubr.bf16.mxu0 0
        %5993 = vmatmul.mubr.bf16.gmra.mrb[0].mxu0 %v5580
        %v5994 = vpop.f32.mrb[0].mxu0
        %v5995 = vadd.f32 %v5630, %v5994
        %v5996 = vpop.f32.mrb[0].mxu0
        %v5997 = vpop.f32.mrb[0].mxu0
        %v5998 = vadd.f32 %v5630, %v5997
        %v5999 = vpop.f32.mrb[0].mxu0
        %6000 = vmatprep.mubr.bf16.mxu0 0
        %6001 = vmatmul.mubr.bf16.gmra.mrb[0].mxu0 %v5581
        %v6002 = vpop.f32.mrb[0].mxu0
        %v6003 = vadd.f32 %v5630, %v6002
        %v6004 = vpop.f32.mrb[0].mxu0
        %v6005 = vpop.f32.mrb[0].mxu0
        %v6006 = vadd.f32 %v5630, %v6005
        %v6007 = vpop.f32.mrb[0].mxu0
        %6008 = vmatprep.mubr.bf16.mxu0 0
        %6009 = vmatmul.mubr.bf16.gmra.mrb[0].mxu0 %v5582
        %v6010 = vpop.f32.mrb[0].mxu0
        %v6011 = vadd.f32 %v5630, %v6010
        %v6012 = vpop.f32.mrb[0].mxu0
        %v6013 = vpop.f32.mrb[0].mxu0
        %v6014 = vadd.f32 %v5630, %v6013
        %v6015 = vpop.f32.mrb[0].mxu0
        %6016 = vmatprep.mubr.bf16.mxu0 0
        %6017 = vmatmul.mubr.bf16.gmra.mrb[0].mxu0 %v5583
        %v6018 = vpop.f32.mrb[0].mxu0
        %v6019 = vadd.f32 %v5630, %v6018
        %v6020 = vpop.f32.mrb[0].mxu0
        %v6021 = vpop.f32.mrb[0].mxu0
        %v6022 = vadd.f32 %v5630, %v6021
        %v6023 = vpop.f32.mrb[0].mxu0
        %6024 = vmatprep.mubr.bf16.mxu0 0
        %6025 = vmatmul.mubr.bf16.gmra.mrb[0].mxu0 %v5584
        %v6026 = vpop.f32.mrb[0].mxu0
        %v6027 = vadd.f32 %v5630, %v6026
        %v6028 = vpop.f32.mrb[0].mxu0
        %v6029 = vpop.f32.mrb[0].mxu0
        %v6030 = vadd.f32 %v5630, %v6029
        %v6031 = vpop.f32.mrb[0].mxu0
        %6032 = vmatprep.mubr.bf16.mxu0 0
        %6033 = vmatmul.mubr.bf16.gmra.mrb[0].mxu0 %v5585
        %v6034 = vpop.f32.mrb[0].mxu0
        %v6035 = vadd.f32 %v5630, %v6034
        %v6036 = vpop.f32.mrb[0].mxu0
        %v6037 = vpop.f32.mrb[0].mxu0
        %v6038 = vadd.f32 %v5630, %v6037
        %v6039 = vpop.f32.mrb[0].mxu0
        %6040 = vmatprep.mubr.bf16.mxu0 0
        %6041 = vmatmul.mubr.bf16.gmra.mrb[0].mxu0 %v5586
        %v6042 = vpop.f32.mrb[0].mxu0
        %v6043 = vadd.f32 %v5630, %v6042
        %v6044 = vpop.f32.mrb[0].mxu0
        %v6045 = vpop.f32.mrb[0].mxu0
        %v6046 = vadd.f32 %v5630, %v6045
        %v6047 = vpop.f32.mrb[0].mxu0
        %6048 = vmatprep.mubr.bf16.mxu0 0
        %6049 = vmatmul.mubr.bf16.gmra.mrb[0].mxu0 %v5587
        %v6050 = vpop.f32.mrb[0].mxu0
        %v6051 = vadd.f32 %v5630, %v6050
        %v6052 = vpop.f32.mrb[0].mxu0
        %v6053 = vpop.f32.mrb[0].mxu0
        %v6054 = vadd.f32 %v5630, %v6053
        %v6055 = vpop.f32.mrb[0].mxu0
        %6056 = vmatprep.mubr.bf16.mxu0 0
        %6057 = vmatmul.mubr.bf16.gmra.mrb[0].mxu0 %v5588
        %v6058 = vpop.f32.mrb[0].mxu0
        %v6059 = vadd.f32 %v5630, %v6058
        %v6060 = vpop.f32.mrb[0].mxu0
        %v6061 = vpop.f32.mrb[0].mxu0
        %v6062 = vadd.f32 %v5630, %v6061
        %v6063 = vpop.f32.mrb[0].mxu0
        %6064 = vmatprep.mubr.bf16.mxu0 0
        %6065 = vmatmul.mubr.bf16.gmra.mrb[0].mxu0 %v5589
        %v6066 = vpop.f32.mrb[0].mxu0
        %v6067 = vadd.f32 %v5630, %v6066
        %v6068 = vpop.f32.mrb[0].mxu0
        %v6069 = vpop.f32.mrb[0].mxu0
        %v6070 = vadd.f32 %v5630, %v6069
        %v6071 = vpop.f32.mrb[0].mxu0
        %6072 = vmatprep.mubr.bf16.mxu0 0
        %6073 = vmatmul.mubr.bf16.gmra.mrb[0].mxu0 %v5590
        %v6074 = vpop.f32.mrb[0].mxu0
        %v6075 = vadd.f32 %v5630, %v6074
        %v6076 = vpop.f32.mrb[0].mxu0
        %v6077 = vpop.f32.mrb[0].mxu0
        %v6078 = vadd.f32 %v5630, %v6077
        %v6079 = vpop.f32.mrb[0].mxu0
        %6080 = vmatprep.mubr.bf16.mxu0 0
        %6081 = vmatmul.mubr.bf16.gmra.mrb[0].mxu0 %v5591
        %v6082 = vpop.f32.mrb[0].mxu0
        %v6083 = vadd.f32 %v5630, %v6082
        %v6084 = vpop.f32.mrb[0].mxu0
        %v6085 = vpop.f32.mrb[0].mxu0
        %v6086 = vadd.f32 %v5630, %v6085
        %v6087 = vpop.f32.mrb[0].mxu0
        %6088 = vmatprep.mubr.bf16.mxu0 0
        %6089 = vmatmul.mubr.bf16.gmra.mrb[0].mxu0 %v5592
        %v6090 = vpop.f32.mrb[0].mxu0
        %v6091 = vadd.f32 %v5630, %v6090
        %v6092 = vpop.f32.mrb[0].mxu0
        %v6093 = vpop.f32.mrb[0].mxu0
        %v6094 = vadd.f32 %v5630, %v6093
        %v6095 = vpop.f32.mrb[0].mxu0
        %6096 = vmatprep.mubr.bf16.mxu0 0
        %6097 = vmatmul.mubr.bf16.gmra.mrb[0].mxu0 %v5593
        %v6098 = vpop.f32.mrb[0].mxu0
        %v6099 = vadd.f32 %v5630, %v6098
        %v6100 = vpop.f32.mrb[0].mxu0
        %v6101 = vpop.f32.mrb[0].mxu0
        %v6102 = vadd.f32 %v5630, %v6101
        %v6103 = vpop.f32.mrb[0].mxu0
        %6104 = vmatprep.mubr.bf16.mxu0 0
        %6105 = vmatmul.mubr.bf16.gmra.mrb[0].mxu0 %v5594
        %v6106 = vpop.f32.mrb[0].mxu0
        %v6107 = vadd.f32 %v5630, %v6106
        %v6108 = vpop.f32.mrb[0].mxu0
        %v6109 = vpop.f32.mrb[0].mxu0
        %v6110 = vadd.f32 %v5630, %v6109
        %v6111 = vpop.f32.mrb[0].mxu0
        %6112 = vmatprep.mubr.bf16.mxu0 0
        %6113 = vmatmul.mubr.bf16.gmra.mrb[0].mxu0 %v5595
        %v6114 = vpop.f32.mrb[0].mxu0
        %v6115 = vadd.f32 %v5630, %v6114
        %v6116 = vpop.f32.mrb[0].mxu0
        %v6117 = vpop.f32.mrb[0].mxu0
        %v6118 = vadd.f32 %v5630, %v6117
        %v6119 = vpop.f32.mrb[0].mxu0
        %6120 = vmatprep.mubr.bf16.mxu0 0
        %6121 = vmatmul.mubr.bf16.gmra.mrb[0].mxu0 %v5596
        %v6122 = vpop.f32.mrb[0].mxu0
        %v6123 = vadd.f32 %v5630, %v6122
        %v6124 = vpop.f32.mrb[0].mxu0
        %v6125 = vpop.f32.mrb[0].mxu0
        %v6126 = vadd.f32 %v5630, %v6125
        %v6127 = vpop.f32.mrb[0].mxu0
        %6128 = vmatprep.mubr.bf16.mxu0 0
        %6129 = vmatmul.mubr.bf16.gmra.mrb[0].mxu0 %v5597
        %v6130 = vpop.f32.mrb[0].mxu0
        %v6131 = vadd.f32 %v5630, %v6130
        %v6132 = vpop.f32.mrb[0].mxu0
        %v6133 = vpop.f32.mrb[0].mxu0
        %v6134 = vadd.f32 %v5630, %v6133
        %v6135 = vpop.f32.mrb[0].mxu0
        %6136 = vmatprep.mubr.bf16.mxu0 0
        %6137 = vmatmul.mubr.bf16.gmra.mrb[0].mxu0 %v5598
        %v6138 = vpop.f32.mrb[0].mxu0
        %v6139 = vadd.f32 %v5630, %v6138
        %v6140 = vpop.f32.mrb[0].mxu0
        %v6141 = vpop.f32.mrb[0].mxu0
        %v6142 = vadd.f32 %v5630, %v6141
        %v6143 = vpop.f32.mrb[0].mxu0
        %6144 = vmatprep.mubr.bf16.mxu0 0
        %6145 = vmatmul.mubr.bf16.gmra.mrb[0].mxu0 %v5599
        %v6146 = vpop.f32.mrb[0].mxu0
        %v6147 = vadd.f32 %v5630, %v6146
        %v6148 = vpop.f32.mrb[0].mxu0
        %v6149 = vpop.f32.mrb[0].mxu0
        %v6150 = vadd.f32 %v5630, %v6149
        %v6151 = vpop.f32.mrb[0].mxu0
        %6152 = vmatprep.mubr.bf16.mxu0 0
        %6153 = vmatmul.mubr.bf16.gmra.mrb[0].mxu0 %v5600
        %v6154 = vpop.f32.mrb[0].mxu0
        %v6155 = vadd.f32 %v5630, %v6154
        %v6156 = vpop.f32.mrb[0].mxu0
        %v6157 = vpop.f32.mrb[0].mxu0
        %v6158 = vadd.f32 %v5630, %v6157
        %v6159 = vpop.f32.mrb[0].mxu0
        %6160 = vmatprep.mubr.bf16.mxu0 0
        %6161 = vmatmul.mubr.bf16.gmra.mrb[0].mxu0 %v5601
        %v6162 = vpop.f32.mrb[0].mxu0
        %v6163 = vadd.f32 %v5630, %v6162
        %v6164 = vpop.f32.mrb[0].mxu0
        %v6165 = vpop.f32.mrb[0].mxu0
        %v6166 = vadd.f32 %v5630, %v6165
        %v6167 = vpop.f32.mrb[0].mxu0
        %6168 = vmatprep.mubr.bf16.mxu0 0
        %6169 = vmatmul.mubr.bf16.gmra.mrb[0].mxu0 %v5602
        %v6170 = vpop.f32.mrb[0].mxu0
        %v6171 = vadd.f32 %v5630, %v6170
        %v6172 = vpop.f32.mrb[0].mxu0
        %v6173 = vpop.f32.mrb[0].mxu0
        %v6174 = vadd.f32 %v5630, %v6173
        %v6175 = vpop.f32.mrb[0].mxu0
        %6176 = vmatprep.mubr.bf16.mxu0 0
        %6177 = vmatmul.mubr.bf16.gmra.mrb[0].mxu0 %v5603
        %v6178 = vpop.f32.mrb[0].mxu0
        %v6179 = vadd.f32 %v5630, %v6178
        %v6180 = vpop.f32.mrb[0].mxu0
        %v6181 = vpop.f32.mrb[0].mxu0
        %v6182 = vadd.f32 %v5630, %v6181
        %v6183 = vpop.f32.mrb[0].mxu0
        %6184 = vmatprep.mubr.bf16.mxu0 0
        %6185 = vmatmul.mubr.bf16.gmra.mrb[0].mxu0 %v5604
        %v6186 = vpop.f32.mrb[0].mxu0
        %v6187 = vadd.f32 %v5630, %v6186
        %v6188 = vpop.f32.mrb[0].mxu0
        %v6189 = vpop.f32.mrb[0].mxu0
        %v6190 = vadd.f32 %v5630, %v6189
        %v6191 = vpop.f32.mrb[0].mxu0
        %6192 = vmatprep.mubr.bf16.mxu0 0
        %6193 = vmatmul.mubr.bf16.gmra.mrb[0].mxu0 %v5605
        %v6194 = vpop.f32.mrb[0].mxu0
        %v6195 = vadd.f32 %v5630, %v6194
        %v6196 = vpop.f32.mrb[0].mxu0
        %v6197 = vpop.f32.mrb[0].mxu0
        %v6198 = vadd.f32 %v5630, %v6197
        %v6199 = vpop.f32.mrb[0].mxu0
        %6200 = vmatprep.mubr.bf16.mxu0 0
        %6201 = vmatmul.mubr.bf16.gmra.mrb[0].mxu0 %v5606
        %v6202 = vpop.f32.mrb[0].mxu0
        %v6203 = vadd.f32 %v5630, %v6202
        %v6204 = vpop.f32.mrb[0].mxu0
        %v6205 = vpop.f32.mrb[0].mxu0
        %v6206 = vadd.f32 %v5630, %v6205
        %v6207 = vpop.f32.mrb[0].mxu0
        %6208 = vmatprep.mubr.bf16.mxu0 0
        %6209 = vmatmul.mubr.bf16.gmra.mrb[0].mxu0 %v5607
        %v6210 = vpop.f32.mrb[0].mxu0
        %v6211 = vadd.f32 %v5630, %v6210
        %v6212 = vpop.f32.mrb[0].mxu0
        %v6213 = vpop.f32.mrb[0].mxu0
        %v6214 = vadd.f32 %v5630, %v6213
        %v6215 = vpop.f32.mrb[0].mxu0
        %6216 = vmatprep.mubr.bf16.mxu0 0
        %6217 = vmatmul.mubr.bf16.gmra.mrb[0].mxu0 %v5608
        %v6218 = vpop.f32.mrb[0].mxu0
        %v6219 = vadd.f32 %v5630, %v6218
        %v6220 = vpop.f32.mrb[0].mxu0
        %v6221 = vpop.f32.mrb[0].mxu0
        %v6222 = vadd.f32 %v5630, %v6221
        %v6223 = vpop.f32.mrb[0].mxu0
        %6224 = vdwg.mxu0
        %v6225 = vmax.f32 %v5715, 0.0
        %v6226 = vmax.f32 %v5718, 0.0
        %v6227 = vmax.f32 %v5723, 0.0
        %v6228 = vmax.f32 %v5726, 0.0
        %v6229 = vmax.f32 %v5731, 0.0
        %v6230 = vmax.f32 %v5734, 0.0
        %v6231 = vmax.f32 %v5739, 0.0
        %v6232 = vmax.f32 %v5742, 0.0
        %v6233 = vmax.f32 %v5747, 0.0
        %v6234 = vmax.f32 %v5750, 0.0
        %v6235 = vmax.f32 %v5755, 0.0
        %v6236 = vmax.f32 %v5758, 0.0
        %v6237 = vmax.f32 %v5763, 0.0
        %v6238 = vmax.f32 %v5766, 0.0
        %v6239 = vmax.f32 %v5771, 0.0
        %v6240 = vmax.f32 %v5774, 0.0
        %v6241 = vmax.f32 %v5779, 0.0
        %v6242 = vmax.f32 %v5782, 0.0
        %v6243 = vmax.f32 %v5787, 0.0
        %v6244 = vmax.f32 %v5790, 0.0
        %v6245 = vmax.f32 %v5795, 0.0
        %v6246 = vmax.f32 %v5798, 0.0
        %v6247 = vmax.f32 %v5803, 0.0
        %v6248 = vmax.f32 %v5806, 0.0
        %v6249 = vmax.f32 %v5811, 0.0
        %v6250 = vmax.f32 %v5814, 0.0
        %v6251 = vmax.f32 %v5819, 0.0
        %v6252 = vmax.f32 %v5822, 0.0
        %v6253 = vmax.f32 %v5827, 0.0
        %v6254 = vmax.f32 %v5830, 0.0
        %v6255 = vmax.f32 %v5835, 0.0
        %v6256 = vmax.f32 %v5838, 0.0
        %v6257 = vmax.f32 %v5843, 0.0
        %v6258 = vmax.f32 %v5846, 0.0
        %v6259 = vmax.f32 %v5851, 0.0
        %v6260 = vmax.f32 %v5854, 0.0
        %v6261 = vmax.f32 %v5859, 0.0
        %v6262 = vmax.f32 %v5862, 0.0
        %v6263 = vmax.f32 %v5867, 0.0
        %v6264 = vmax.f32 %v5870, 0.0
        %v6265 = vmax.f32 %v5875, 0.0
        %v6266 = vmax.f32 %v5878, 0.0
        %v6267 = vmax.f32 %v5883, 0.0
        %v6268 = vmax.f32 %v5886, 0.0
        %v6269 = vmax.f32 %v5891, 0.0
        %v6270 = vmax.f32 %v5894, 0.0
        %v6271 = vmax.f32 %v5899, 0.0
        %v6272 = vmax.f32 %v5902, 0.0
        %v6273 = vmax.f32 %v5907, 0.0
        %v6274 = vmax.f32 %v5910, 0.0
        %v6275 = vmax.f32 %v5915, 0.0
        %v6276 = vmax.f32 %v5918, 0.0
        %v6277 = vmax.f32 %v5923, 0.0
        %v6278 = vmax.f32 %v5926, 0.0
        %v6279 = vmax.f32 %v5931, 0.0
        %v6280 = vmax.f32 %v5934, 0.0
        %v6281 = vmax.f32 %v5939, 0.0
        %v6282 = vmax.f32 %v5942, 0.0
        %v6283 = vmax.f32 %v5947, 0.0
        %v6284 = vmax.f32 %v5950, 0.0
        %v6285 = vmax.f32 %v5955, 0.0
        %v6286 = vmax.f32 %v5958, 0.0
        %v6287 = vmax.f32 %v5963, 0.0
        %v6288 = vmax.f32 %v5966, 0.0
        %v6289 = vmax.f32 %v5971, 0.0
        %v6290 = vmax.f32 %v5974, 0.0
        %v6291 = vmax.f32 %v5979, 0.0
        %v6292 = vmax.f32 %v5982, 0.0
        %v6293 = vmax.f32 %v5987, 0.0
        %v6294 = vmax.f32 %v5990, 0.0
        %v6295 = vmax.f32 %v5995, 0.0
        %v6296 = vmax.f32 %v5998, 0.0
        %v6297 = vmax.f32 %v6003, 0.0
        %v6298 = vmax.f32 %v6006, 0.0
        %v6299 = vmax.f32 %v6011, 0.0
        %v6300 = vmax.f32 %v6014, 0.0
        %v6301 = vmax.f32 %v6019, 0.0
        %v6302 = vmax.f32 %v6022, 0.0
        %v6303 = vmax.f32 %v6027, 0.0
        %v6304 = vmax.f32 %v6030, 0.0
        %v6305 = vmax.f32 %v6035, 0.0
        %v6306 = vmax.f32 %v6038, 0.0
        %v6307 = vmax.f32 %v6043, 0.0
        %v6308 = vmax.f32 %v6046, 0.0
        %v6309 = vmax.f32 %v6051, 0.0
        %v6310 = vmax.f32 %v6054, 0.0
        %v6311 = vmax.f32 %v6059, 0.0
        %v6312 = vmax.f32 %v6062, 0.0
        %v6313 = vmax.f32 %v6067, 0.0
        %v6314 = vmax.f32 %v6070, 0.0
        %v6315 = vmax.f32 %v6075, 0.0
        %v6316 = vmax.f32 %v6078, 0.0
        %v6317 = vmax.f32 %v6083, 0.0
        %v6318 = vmax.f32 %v6086, 0.0
        %v6319 = vmax.f32 %v6091, 0.0
        %v6320 = vmax.f32 %v6094, 0.0
        %v6321 = vmax.f32 %v6099, 0.0
        %v6322 = vmax.f32 %v6102, 0.0
        %v6323 = vmax.f32 %v6107, 0.0
        %v6324 = vmax.f32 %v6110, 0.0
        %v6325 = vmax.f32 %v6115, 0.0
        %v6326 = vmax.f32 %v6118, 0.0
        %v6327 = vmax.f32 %v6123, 0.0
        %v6328 = vmax.f32 %v6126, 0.0
        %v6329 = vmax.f32 %v6131, 0.0
        %v6330 = vmax.f32 %v6134, 0.0
        %v6331 = vmax.f32 %v6139, 0.0
        %v6332 = vmax.f32 %v6142, 0.0
        %v6333 = vmax.f32 %v6147, 0.0
        %v6334 = vmax.f32 %v6150, 0.0
        %v6335 = vmax.f32 %v6155, 0.0
        %v6336 = vmax.f32 %v6158, 0.0
        %v6337 = vmax.f32 %v6163, 0.0
        %v6338 = vmax.f32 %v6166, 0.0
        %v6339 = vmax.f32 %v6171, 0.0
        %v6340 = vmax.f32 %v6174, 0.0
        %v6341 = vmax.f32 %v6179, 0.0
        %v6342 = vmax.f32 %v6182, 0.0
        %v6343 = vmax.f32 %v6187, 0.0
        %v6344 = vmax.f32 %v6190, 0.0
        %v6345 = vmax.f32 %v6195, 0.0
        %v6346 = vmax.f32 %v6198, 0.0
        %v6347 = vmax.f32 %v6203, 0.0
        %v6348 = vmax.f32 %v6206, 0.0
        %v6349 = vmax.f32 %v6211, 0.0
        %v6350 = vmax.f32 %v6214, 0.0
        %v6351 = vmax.f32 %v6219, 0.0
        %v6352 = vmax.f32 %v6222, 0.0
        %v6353 = vpack.c.bf16 %v6226, %v6225
        %v6354 = vpack.c.bf16 %v6228, %v6227
        %v6355 = vpack.c.bf16 %v6230, %v6229
        %v6356 = vpack.c.bf16 %v6232, %v6231
        %v6357 = vpack.c.bf16 %v6234, %v6233
        %v6358 = vpack.c.bf16 %v6236, %v6235
        %v6359 = vpack.c.bf16 %v6238, %v6237
        %v6360 = vpack.c.bf16 %v6240, %v6239
        %v6361 = vpack.c.bf16 %v6242, %v6241
        %v6362 = vpack.c.bf16 %v6244, %v6243
        %v6363 = vpack.c.bf16 %v6246, %v6245
        %v6364 = vpack.c.bf16 %v6248, %v6247
        %v6365 = vpack.c.bf16 %v6250, %v6249
        %v6366 = vpack.c.bf16 %v6252, %v6251
        %v6367 = vpack.c.bf16 %v6254, %v6253
        %v6368 = vpack.c.bf16 %v6256, %v6255
        %v6369 = vpack.c.bf16 %v6258, %v6257
        %v6370 = vpack.c.bf16 %v6260, %v6259
        %v6371 = vpack.c.bf16 %v6262, %v6261
        %v6372 = vpack.c.bf16 %v6264, %v6263
        %v6373 = vpack.c.bf16 %v6266, %v6265
        %v6374 = vpack.c.bf16 %v6268, %v6267
        %v6375 = vpack.c.bf16 %v6270, %v6269
        %v6376 = vpack.c.bf16 %v6272, %v6271
        %v6377 = vpack.c.bf16 %v6274, %v6273
        %v6378 = vpack.c.bf16 %v6276, %v6275
        %v6379 = vpack.c.bf16 %v6278, %v6277
        %v6380 = vpack.c.bf16 %v6280, %v6279
        %v6381 = vpack.c.bf16 %v6282, %v6281
        %v6382 = vpack.c.bf16 %v6284, %v6283
        %v6383 = vpack.c.bf16 %v6286, %v6285
        %v6384 = vpack.c.bf16 %v6288, %v6287
        %v6385 = vpack.c.bf16 %v6290, %v6289
        %v6386 = vpack.c.bf16 %v6292, %v6291
        %v6387 = vpack.c.bf16 %v6294, %v6293
        %v6388 = vpack.c.bf16 %v6296, %v6295
        %v6389 = vpack.c.bf16 %v6298, %v6297
        %v6390 = vpack.c.bf16 %v6300, %v6299
        %v6391 = vpack.c.bf16 %v6302, %v6301
        %v6392 = vpack.c.bf16 %v6304, %v6303
        %v6393 = vpack.c.bf16 %v6306, %v6305
        %v6394 = vpack.c.bf16 %v6308, %v6307
        %v6395 = vpack.c.bf16 %v6310, %v6309
        %v6396 = vpack.c.bf16 %v6312, %v6311
        %v6397 = vpack.c.bf16 %v6314, %v6313
        %v6398 = vpack.c.bf16 %v6316, %v6315
        %v6399 = vpack.c.bf16 %v6318, %v6317
        %v6400 = vpack.c.bf16 %v6320, %v6319
        %v6401 = vpack.c.bf16 %v6322, %v6321
        %v6402 = vpack.c.bf16 %v6324, %v6323
        %v6403 = vpack.c.bf16 %v6326, %v6325
        %v6404 = vpack.c.bf16 %v6328, %v6327
        %v6405 = vpack.c.bf16 %v6330, %v6329
        %v6406 = vpack.c.bf16 %v6332, %v6331
        %v6407 = vpack.c.bf16 %v6334, %v6333
        %v6408 = vpack.c.bf16 %v6336, %v6335
        %v6409 = vpack.c.bf16 %v6338, %v6337
        %v6410 = vpack.c.bf16 %v6340, %v6339
        %v6411 = vpack.c.bf16 %v6342, %v6341
        %v6412 = vpack.c.bf16 %v6344, %v6343
        %v6413 = vpack.c.bf16 %v6346, %v6345
        %v6414 = vpack.c.bf16 %v6348, %v6347
        %v6415 = vpack.c.bf16 %v6350, %v6349
        %v6416 = vpack.c.bf16 %v6352, %v6351
        %v6417 = vld [vmem:[%s15] sm:$0xf]
        %v6418 = vld [vmem:[%s15 + $0x4] sm:$0xf]
        %v6419 = vld [vmem:[%s15 + $0x8] sm:$0xf]
        %v6420 = vld [vmem:[%s15 + $0xc] sm:$0xf]
        %v6425 = vunpack.c.l.b16 %v6417
        %v6426 = vunpack.c.l.b16 %v6418
        %v6427 = vunpack.c.l.b16 %v6419
        %v6428 = vunpack.c.l.b16 %v6420
        %v6429 = vpack.c.b16 %v6426, %v6425
        %v6430 = vpack.c.b16 %v6428, %v6427
        %v6434 = vsel %vm2663, %v6353, 0
        %v6437 = vsel %vm2663, %v6354, 0
        %v6440 = vsel %vm2663, %v6355, 0
        %v6443 = vsel %vm2663, %v6356, 0
        %v6446 = vsel %vm2663, %v6357, 0
        %v6449 = vsel %vm2663, %v6358, 0
        %v6452 = vsel %vm2663, %v6359, 0
        %v6455 = vsel %vm2663, %v6360, 0
        %v6458 = vsel %vm2663, %v6361, 0
        %v6461 = vsel %vm2663, %v6362, 0
        %v6464 = vsel %vm2663, %v6363, 0
        %v6467 = vsel %vm2663, %v6364, 0
        %v6470 = vsel %vm2663, %v6365, 0
        %v6473 = vsel %vm2663, %v6366, 0
        %v6476 = vsel %vm2663, %v6367, 0
        %v6479 = vsel %vm2663, %v6368, 0
        %v6482 = vsel %vm2663, %v6369, 0
        %v6485 = vsel %vm2663, %v6370, 0
        %v6488 = vsel %vm2663, %v6371, 0
        %v6491 = vsel %vm2663, %v6372, 0
        %v6494 = vsel %vm2663, %v6373, 0
        %v6497 = vsel %vm2663, %v6374, 0
        %v6500 = vsel %vm2663, %v6375, 0
        %v6503 = vsel %vm2663, %v6376, 0
        %v6506 = vsel %vm2663, %v6377, 0
        %v6509 = vsel %vm2663, %v6378, 0
        %v6512 = vsel %vm2663, %v6379, 0
        %v6515 = vsel %vm2663, %v6380, 0
        %v6518 = vsel %vm2663, %v6381, 0
        %v6521 = vsel %vm2663, %v6382, 0
        %v6524 = vsel %vm2663, %v6383, 0
        %v6527 = vsel %vm2663, %v6384, 0
        %v6530 = vsel %vm2663, %v6385, 0
        %v6533 = vsel %vm2663, %v6386, 0
        %v6536 = vsel %vm2663, %v6387, 0
        %v6539 = vsel %vm2663, %v6388, 0
        %v6542 = vsel %vm2663, %v6389, 0
        %v6545 = vsel %vm2663, %v6390, 0
        %v6548 = vsel %vm2663, %v6391, 0
        %v6551 = vsel %vm2663, %v6392, 0
        %v6554 = vsel %vm2663, %v6393, 0
        %v6557 = vsel %vm2663, %v6394, 0
        %v6560 = vsel %vm2663, %v6395, 0
        %v6563 = vsel %vm2663, %v6396, 0
        %v6566 = vsel %vm2663, %v6397, 0
        %v6569 = vsel %vm2663, %v6398, 0
        %v6572 = vsel %vm2663, %v6399, 0
        %v6575 = vsel %vm2663, %v6400, 0
        %v6578 = vsel %vm2663, %v6401, 0
        %v6581 = vsel %vm2663, %v6402, 0
        %v6584 = vsel %vm2663, %v6403, 0
        %v6587 = vsel %vm2663, %v6404, 0
        %v6590 = vsel %vm2663, %v6405, 0
        %v6593 = vsel %vm2663, %v6406, 0
        %v6596 = vsel %vm2663, %v6407, 0
        %v6599 = vsel %vm2663, %v6408, 0
        %v6602 = vsel %vm2663, %v6409, 0
        %v6605 = vsel %vm2663, %v6410, 0
        %v6608 = vsel %vm2663, %v6411, 0
        %v6611 = vsel %vm2663, %v6412, 0
        %v6614 = vsel %vm2663, %v6413, 0
        %v6617 = vsel %vm2663, %v6414, 0
        %v6620 = vsel %vm2663, %v6415, 0
        %v6623 = vsel %vm2663, %v6416, 0
        %6625 = vmatprep.subr.bf16.mxu0 0
        %6626 = vmatpush1.bf16.msra.mxu0 %v6429
        %6627 = vmatprep.subr.bf16.mxu0 0
        %6628 = vmatpush1.bf16.msra.mxu0 %v6430
        %6629 = vmatprep.subr.bf16.mxu0 0
        %6630 = vmatpush1.bf16.msra.mxu0 0
        %6631 = vmatprep.subr.bf16.mxu0 0
        %6632 = vmatpush1.bf16.msra.mxu0 0
        %6633 = vmatprep.subr.bf16.mxu0 0
        %6634 = vmatpush1.bf16.msra.mxu0 0
        %6635 = vmatprep.subr.bf16.mxu0 0
        %6636 = vmatpush1.bf16.msra.mxu0 0
        %6637 = vmatprep.subr.bf16.mxu0 0
        %6638 = vmatpush1.bf16.msra.mxu0 0
        %6639 = vmatprep.subr.bf16.mxu0 0
        %6640 = vmatpush1.bf16.msra.mxu0 0
        %6641 = vmatprep.subr.bf16.mxu0 0
        %6642 = vmatpush1.bf16.msra.mxu0 0
        %6643 = vmatprep.subr.bf16.mxu0 0
        %6644 = vmatpush1.bf16.msra.mxu0 0
        %6645 = vmatprep.subr.bf16.mxu0 0
        %6646 = vmatpush1.bf16.msra.mxu0 0
        %6647 = vmatprep.subr.bf16.mxu0 0
        %6648 = vmatpush1.bf16.msra.mxu0 0
        %6649 = vmatprep.subr.bf16.mxu0 0
        %6650 = vmatpush1.bf16.msra.mxu0 0
        %6651 = vmatprep.subr.bf16.mxu0 0
        %6652 = vmatpush1.bf16.msra.mxu0 0
        %6653 = vmatprep.subr.bf16.mxu0 0
        %6654 = vmatpush1.bf16.msra.mxu0 0
        %6655 = vmatprep.subr.bf16.mxu0 0
        %6656 = vmatpush1.bf16.msra.mxu0 0
        %6657 = vmatprep.mubr.bf16.mxu0 0
        %6658 = vmatmul.mubr.bf16.gmra.mrb[0].mxu0 %v6434
        %v6659 = vpop.f32.mrb[0].mxu0
        %v6660 = vadd.f32 0.0, %v6659
        %v6661 = vpop.f32.mrb[0].mxu0
        %v6662 = vpop.f32.mrb[0].mxu0
        %v6663 = vadd.f32 0.0, %v6662
        %v6664 = vpop.f32.mrb[0].mxu0
        %6665 = vmatprep.mubr.bf16.mxu0 0
        %6666 = vmatmul.mubr.bf16.gmra.mrb[0].mxu0 %v6437
        %v6667 = vpop.f32.mrb[0].mxu0
        %v6668 = vadd.f32 0.0, %v6667
        %v6669 = vpop.f32.mrb[0].mxu0
        %v6670 = vpop.f32.mrb[0].mxu0
        %v6671 = vadd.f32 0.0, %v6670
        %v6672 = vpop.f32.mrb[0].mxu0
        %6673 = vmatprep.mubr.bf16.mxu0 0
        %6674 = vmatmul.mubr.bf16.gmra.mrb[0].mxu0 %v6440
        %v6675 = vpop.f32.mrb[0].mxu0
        %v6676 = vadd.f32 0.0, %v6675
        %v6677 = vpop.f32.mrb[0].mxu0
        %v6678 = vpop.f32.mrb[0].mxu0
        %v6679 = vadd.f32 0.0, %v6678
        %v6680 = vpop.f32.mrb[0].mxu0
        %6681 = vmatprep.mubr.bf16.mxu0 0
        %6682 = vmatmul.mubr.bf16.gmra.mrb[0].mxu0 %v6443
        %v6683 = vpop.f32.mrb[0].mxu0
        %v6684 = vadd.f32 0.0, %v6683
        %v6685 = vpop.f32.mrb[0].mxu0
        %v6686 = vpop.f32.mrb[0].mxu0
        %v6687 = vadd.f32 0.0, %v6686
        %v6688 = vpop.f32.mrb[0].mxu0
        %6689 = vmatprep.mubr.bf16.mxu0 0
        %6690 = vmatmul.mubr.bf16.gmra.mrb[0].mxu0 %v6446
        %v6691 = vpop.f32.mrb[0].mxu0
        %v6692 = vadd.f32 0.0, %v6691
        %v6693 = vpop.f32.mrb[0].mxu0
        %v6694 = vpop.f32.mrb[0].mxu0
        %v6695 = vadd.f32 0.0, %v6694
        %v6696 = vpop.f32.mrb[0].mxu0
        %6697 = vmatprep.mubr.bf16.mxu0 0
        %6698 = vmatmul.mubr.bf16.gmra.mrb[0].mxu0 %v6449
        %v6699 = vpop.f32.mrb[0].mxu0
        %v6700 = vadd.f32 0.0, %v6699
        %v6701 = vpop.f32.mrb[0].mxu0
        %v6702 = vpop.f32.mrb[0].mxu0
        %v6703 = vadd.f32 0.0, %v6702
        %v6704 = vpop.f32.mrb[0].mxu0
        %6705 = vmatprep.mubr.bf16.mxu0 0
        %6706 = vmatmul.mubr.bf16.gmra.mrb[0].mxu0 %v6452
        %v6707 = vpop.f32.mrb[0].mxu0
        %v6708 = vadd.f32 0.0, %v6707
        %v6709 = vpop.f32.mrb[0].mxu0
        %v6710 = vpop.f32.mrb[0].mxu0
        %v6711 = vadd.f32 0.0, %v6710
        %v6712 = vpop.f32.mrb[0].mxu0
        %6713 = vmatprep.mubr.bf16.mxu0 0
        %6714 = vmatmul.mubr.bf16.gmra.mrb[0].mxu0 %v6455
        %v6715 = vpop.f32.mrb[0].mxu0
        %v6716 = vadd.f32 0.0, %v6715
        %v6717 = vpop.f32.mrb[0].mxu0
        %v6718 = vpop.f32.mrb[0].mxu0
        %v6719 = vadd.f32 0.0, %v6718
        %v6720 = vpop.f32.mrb[0].mxu0
        %6721 = vmatprep.mubr.bf16.mxu0 0
        %6722 = vmatmul.mubr.bf16.gmra.mrb[0].mxu0 %v6458
        %v6723 = vpop.f32.mrb[0].mxu0
        %v6724 = vadd.f32 0.0, %v6723
        %v6725 = vpop.f32.mrb[0].mxu0
        %v6726 = vpop.f32.mrb[0].mxu0
        %v6727 = vadd.f32 0.0, %v6726
        %v6728 = vpop.f32.mrb[0].mxu0
        %6729 = vmatprep.mubr.bf16.mxu0 0
        %6730 = vmatmul.mubr.bf16.gmra.mrb[0].mxu0 %v6461
        %v6731 = vpop.f32.mrb[0].mxu0
        %v6732 = vadd.f32 0.0, %v6731
        %v6733 = vpop.f32.mrb[0].mxu0
        %v6734 = vpop.f32.mrb[0].mxu0
        %v6735 = vadd.f32 0.0, %v6734
        %v6736 = vpop.f32.mrb[0].mxu0
        %6737 = vmatprep.mubr.bf16.mxu0 0
        %6738 = vmatmul.mubr.bf16.gmra.mrb[0].mxu0 %v6464
        %v6739 = vpop.f32.mrb[0].mxu0
        %v6740 = vadd.f32 0.0, %v6739
        %v6741 = vpop.f32.mrb[0].mxu0
        %v6742 = vpop.f32.mrb[0].mxu0
        %v6743 = vadd.f32 0.0, %v6742
        %v6744 = vpop.f32.mrb[0].mxu0
        %6745 = vmatprep.mubr.bf16.mxu0 0
        %6746 = vmatmul.mubr.bf16.gmra.mrb[0].mxu0 %v6467
        %v6747 = vpop.f32.mrb[0].mxu0
        %v6748 = vadd.f32 0.0, %v6747
        %v6749 = vpop.f32.mrb[0].mxu0
        %v6750 = vpop.f32.mrb[0].mxu0
        %v6751 = vadd.f32 0.0, %v6750
        %v6752 = vpop.f32.mrb[0].mxu0
        %6753 = vmatprep.mubr.bf16.mxu0 0
        %6754 = vmatmul.mubr.bf16.gmra.mrb[0].mxu0 %v6470
        %v6755 = vpop.f32.mrb[0].mxu0
        %v6756 = vadd.f32 0.0, %v6755
        %v6757 = vpop.f32.mrb[0].mxu0
        %v6758 = vpop.f32.mrb[0].mxu0
        %v6759 = vadd.f32 0.0, %v6758
        %v6760 = vpop.f32.mrb[0].mxu0
        %6761 = vmatprep.mubr.bf16.mxu0 0
        %6762 = vmatmul.mubr.bf16.gmra.mrb[0].mxu0 %v6473
        %v6763 = vpop.f32.mrb[0].mxu0
        %v6764 = vadd.f32 0.0, %v6763
        %v6765 = vpop.f32.mrb[0].mxu0
        %v6766 = vpop.f32.mrb[0].mxu0
        %v6767 = vadd.f32 0.0, %v6766
        %v6768 = vpop.f32.mrb[0].mxu0
        %6769 = vmatprep.mubr.bf16.mxu0 0
        %6770 = vmatmul.mubr.bf16.gmra.mrb[0].mxu0 %v6476
        %v6771 = vpop.f32.mrb[0].mxu0
        %v6772 = vadd.f32 0.0, %v6771
        %v6773 = vpop.f32.mrb[0].mxu0
        %v6774 = vpop.f32.mrb[0].mxu0
        %v6775 = vadd.f32 0.0, %v6774
        %v6776 = vpop.f32.mrb[0].mxu0
        %6777 = vmatprep.mubr.bf16.mxu0 0
        %6778 = vmatmul.mubr.bf16.gmra.mrb[0].mxu0 %v6479
        %v6779 = vpop.f32.mrb[0].mxu0
        %v6780 = vadd.f32 0.0, %v6779
        %v6781 = vpop.f32.mrb[0].mxu0
        %v6782 = vpop.f32.mrb[0].mxu0
        %v6783 = vadd.f32 0.0, %v6782
        %v6784 = vpop.f32.mrb[0].mxu0
        %6785 = vmatprep.mubr.bf16.mxu0 0
        %6786 = vmatmul.mubr.bf16.gmra.mrb[0].mxu0 %v6482
        %v6787 = vpop.f32.mrb[0].mxu0
        %v6788 = vadd.f32 0.0, %v6787
        %v6789 = vpop.f32.mrb[0].mxu0
        %v6790 = vpop.f32.mrb[0].mxu0
        %v6791 = vadd.f32 0.0, %v6790
        %v6792 = vpop.f32.mrb[0].mxu0
        %6793 = vmatprep.mubr.bf16.mxu0 0
        %6794 = vmatmul.mubr.bf16.gmra.mrb[0].mxu0 %v6485
        %v6795 = vpop.f32.mrb[0].mxu0
        %v6796 = vadd.f32 0.0, %v6795
        %v6797 = vpop.f32.mrb[0].mxu0
        %v6798 = vpop.f32.mrb[0].mxu0
        %v6799 = vadd.f32 0.0, %v6798
        %v6800 = vpop.f32.mrb[0].mxu0
        %6801 = vmatprep.mubr.bf16.mxu0 0
        %6802 = vmatmul.mubr.bf16.gmra.mrb[0].mxu0 %v6488
        %v6803 = vpop.f32.mrb[0].mxu0
        %v6804 = vadd.f32 0.0, %v6803
        %v6805 = vpop.f32.mrb[0].mxu0
        %v6806 = vpop.f32.mrb[0].mxu0
        %v6807 = vadd.f32 0.0, %v6806
        %v6808 = vpop.f32.mrb[0].mxu0
        %6809 = vmatprep.mubr.bf16.mxu0 0
        %6810 = vmatmul.mubr.bf16.gmra.mrb[0].mxu0 %v6491
        %v6811 = vpop.f32.mrb[0].mxu0
        %v6812 = vadd.f32 0.0, %v6811
        %v6813 = vpop.f32.mrb[0].mxu0
        %v6814 = vpop.f32.mrb[0].mxu0
        %v6815 = vadd.f32 0.0, %v6814
        %v6816 = vpop.f32.mrb[0].mxu0
        %6817 = vmatprep.mubr.bf16.mxu0 0
        %6818 = vmatmul.mubr.bf16.gmra.mrb[0].mxu0 %v6494
        %v6819 = vpop.f32.mrb[0].mxu0
        %v6820 = vadd.f32 0.0, %v6819
        %v6821 = vpop.f32.mrb[0].mxu0
        %v6822 = vpop.f32.mrb[0].mxu0
        %v6823 = vadd.f32 0.0, %v6822
        %v6824 = vpop.f32.mrb[0].mxu0
        %6825 = vmatprep.mubr.bf16.mxu0 0
        %6826 = vmatmul.mubr.bf16.gmra.mrb[0].mxu0 %v6497
        %v6827 = vpop.f32.mrb[0].mxu0
        %v6828 = vadd.f32 0.0, %v6827
        %v6829 = vpop.f32.mrb[0].mxu0
        %v6830 = vpop.f32.mrb[0].mxu0
        %v6831 = vadd.f32 0.0, %v6830
        %v6832 = vpop.f32.mrb[0].mxu0
        %6833 = vmatprep.mubr.bf16.mxu0 0
        %6834 = vmatmul.mubr.bf16.gmra.mrb[0].mxu0 %v6500
        %v6835 = vpop.f32.mrb[0].mxu0
        %v6836 = vadd.f32 0.0, %v6835
        %v6837 = vpop.f32.mrb[0].mxu0
        %v6838 = vpop.f32.mrb[0].mxu0
        %v6839 = vadd.f32 0.0, %v6838
        %v6840 = vpop.f32.mrb[0].mxu0
        %6841 = vmatprep.mubr.bf16.mxu0 0
        %6842 = vmatmul.mubr.bf16.gmra.mrb[0].mxu0 %v6503
        %v6843 = vpop.f32.mrb[0].mxu0
        %v6844 = vadd.f32 0.0, %v6843
        %v6845 = vpop.f32.mrb[0].mxu0
        %v6846 = vpop.f32.mrb[0].mxu0
        %v6847 = vadd.f32 0.0, %v6846
        %v6848 = vpop.f32.mrb[0].mxu0
        %6849 = vmatprep.mubr.bf16.mxu0 0
        %6850 = vmatmul.mubr.bf16.gmra.mrb[0].mxu0 %v6506
        %v6851 = vpop.f32.mrb[0].mxu0
        %v6852 = vadd.f32 0.0, %v6851
        %v6853 = vpop.f32.mrb[0].mxu0
        %v6854 = vpop.f32.mrb[0].mxu0
        %v6855 = vadd.f32 0.0, %v6854
        %v6856 = vpop.f32.mrb[0].mxu0
        %6857 = vmatprep.mubr.bf16.mxu0 0
        %6858 = vmatmul.mubr.bf16.gmra.mrb[0].mxu0 %v6509
        %v6859 = vpop.f32.mrb[0].mxu0
        %v6860 = vadd.f32 0.0, %v6859
        %v6861 = vpop.f32.mrb[0].mxu0
        %v6862 = vpop.f32.mrb[0].mxu0
        %v6863 = vadd.f32 0.0, %v6862
        %v6864 = vpop.f32.mrb[0].mxu0
        %6865 = vmatprep.mubr.bf16.mxu0 0
        %6866 = vmatmul.mubr.bf16.gmra.mrb[0].mxu0 %v6512
        %v6867 = vpop.f32.mrb[0].mxu0
        %v6868 = vadd.f32 0.0, %v6867
        %v6869 = vpop.f32.mrb[0].mxu0
        %v6870 = vpop.f32.mrb[0].mxu0
        %v6871 = vadd.f32 0.0, %v6870
        %v6872 = vpop.f32.mrb[0].mxu0
        %6873 = vmatprep.mubr.bf16.mxu0 0
        %6874 = vmatmul.mubr.bf16.gmra.mrb[0].mxu0 %v6515
        %v6875 = vpop.f32.mrb[0].mxu0
        %v6876 = vadd.f32 0.0, %v6875
        %v6877 = vpop.f32.mrb[0].mxu0
        %v6878 = vpop.f32.mrb[0].mxu0
        %v6879 = vadd.f32 0.0, %v6878
        %v6880 = vpop.f32.mrb[0].mxu0
        %6881 = vmatprep.mubr.bf16.mxu0 0
        %6882 = vmatmul.mubr.bf16.gmra.mrb[0].mxu0 %v6518
        %v6883 = vpop.f32.mrb[0].mxu0
        %v6884 = vadd.f32 0.0, %v6883
        %v6885 = vpop.f32.mrb[0].mxu0
        %v6886 = vpop.f32.mrb[0].mxu0
        %v6887 = vadd.f32 0.0, %v6886
        %v6888 = vpop.f32.mrb[0].mxu0
        %6889 = vmatprep.mubr.bf16.mxu0 0
        %6890 = vmatmul.mubr.bf16.gmra.mrb[0].mxu0 %v6521
        %v6891 = vpop.f32.mrb[0].mxu0
        %v6892 = vadd.f32 0.0, %v6891
        %v6893 = vpop.f32.mrb[0].mxu0
        %v6894 = vpop.f32.mrb[0].mxu0
        %v6895 = vadd.f32 0.0, %v6894
        %v6896 = vpop.f32.mrb[0].mxu0
        %6897 = vmatprep.mubr.bf16.mxu0 0
        %6898 = vmatmul.mubr.bf16.gmra.mrb[0].mxu0 %v6524
        %v6899 = vpop.f32.mrb[0].mxu0
        %v6900 = vadd.f32 0.0, %v6899
        %v6901 = vpop.f32.mrb[0].mxu0
        %v6902 = vpop.f32.mrb[0].mxu0
        %v6903 = vadd.f32 0.0, %v6902
        %v6904 = vpop.f32.mrb[0].mxu0
        %6905 = vmatprep.mubr.bf16.mxu0 0
        %6906 = vmatmul.mubr.bf16.gmra.mrb[0].mxu0 %v6527
        %v6907 = vpop.f32.mrb[0].mxu0
        %v6908 = vadd.f32 0.0, %v6907
        %v6909 = vpop.f32.mrb[0].mxu0
        %v6910 = vpop.f32.mrb[0].mxu0
        %v6911 = vadd.f32 0.0, %v6910
        %v6912 = vpop.f32.mrb[0].mxu0
        %6913 = vmatprep.mubr.bf16.mxu0 0
        %6914 = vmatmul.mubr.bf16.gmra.mrb[0].mxu0 %v6530
        %v6915 = vpop.f32.mrb[0].mxu0
        %v6916 = vadd.f32 0.0, %v6915
        %v6917 = vpop.f32.mrb[0].mxu0
        %v6918 = vpop.f32.mrb[0].mxu0
        %v6919 = vadd.f32 0.0, %v6918
        %v6920 = vpop.f32.mrb[0].mxu0
        %6921 = vmatprep.mubr.bf16.mxu0 0
        %6922 = vmatmul.mubr.bf16.gmra.mrb[0].mxu0 %v6533
        %v6923 = vpop.f32.mrb[0].mxu0
        %v6924 = vadd.f32 0.0, %v6923
        %v6925 = vpop.f32.mrb[0].mxu0
        %v6926 = vpop.f32.mrb[0].mxu0
        %v6927 = vadd.f32 0.0, %v6926
        %v6928 = vpop.f32.mrb[0].mxu0
        %6929 = vmatprep.mubr.bf16.mxu0 0
        %6930 = vmatmul.mubr.bf16.gmra.mrb[0].mxu0 %v6536
        %v6931 = vpop.f32.mrb[0].mxu0
        %v6932 = vadd.f32 0.0, %v6931
        %v6933 = vpop.f32.mrb[0].mxu0
        %v6934 = vpop.f32.mrb[0].mxu0
        %v6935 = vadd.f32 0.0, %v6934
        %v6936 = vpop.f32.mrb[0].mxu0
        %6937 = vmatprep.mubr.bf16.mxu0 0
        %6938 = vmatmul.mubr.bf16.gmra.mrb[0].mxu0 %v6539
        %v6939 = vpop.f32.mrb[0].mxu0
        %v6940 = vadd.f32 0.0, %v6939
        %v6941 = vpop.f32.mrb[0].mxu0
        %v6942 = vpop.f32.mrb[0].mxu0
        %v6943 = vadd.f32 0.0, %v6942
        %v6944 = vpop.f32.mrb[0].mxu0
        %6945 = vmatprep.mubr.bf16.mxu0 0
        %6946 = vmatmul.mubr.bf16.gmra.mrb[0].mxu0 %v6542
        %v6947 = vpop.f32.mrb[0].mxu0
        %v6948 = vadd.f32 0.0, %v6947
        %v6949 = vpop.f32.mrb[0].mxu0
        %v6950 = vpop.f32.mrb[0].mxu0
        %v6951 = vadd.f32 0.0, %v6950
        %v6952 = vpop.f32.mrb[0].mxu0
        %6953 = vmatprep.mubr.bf16.mxu0 0
        %6954 = vmatmul.mubr.bf16.gmra.mrb[0].mxu0 %v6545
        %v6955 = vpop.f32.mrb[0].mxu0
        %v6956 = vadd.f32 0.0, %v6955
        %v6957 = vpop.f32.mrb[0].mxu0
        %v6958 = vpop.f32.mrb[0].mxu0
        %v6959 = vadd.f32 0.0, %v6958
        %v6960 = vpop.f32.mrb[0].mxu0
        %6961 = vmatprep.mubr.bf16.mxu0 0
        %6962 = vmatmul.mubr.bf16.gmra.mrb[0].mxu0 %v6548
        %v6963 = vpop.f32.mrb[0].mxu0
        %v6964 = vadd.f32 0.0, %v6963
        %v6965 = vpop.f32.mrb[0].mxu0
        %v6966 = vpop.f32.mrb[0].mxu0
        %v6967 = vadd.f32 0.0, %v6966
        %v6968 = vpop.f32.mrb[0].mxu0
        %6969 = vmatprep.mubr.bf16.mxu0 0
        %6970 = vmatmul.mubr.bf16.gmra.mrb[0].mxu0 %v6551
        %v6971 = vpop.f32.mrb[0].mxu0
        %v6972 = vadd.f32 0.0, %v6971
        %v6973 = vpop.f32.mrb[0].mxu0
        %v6974 = vpop.f32.mrb[0].mxu0
        %v6975 = vadd.f32 0.0, %v6974
        %v6976 = vpop.f32.mrb[0].mxu0
        %6977 = vmatprep.mubr.bf16.mxu0 0
        %6978 = vmatmul.mubr.bf16.gmra.mrb[0].mxu0 %v6554
        %v6979 = vpop.f32.mrb[0].mxu0
        %v6980 = vadd.f32 0.0, %v6979
        %v6981 = vpop.f32.mrb[0].mxu0
        %v6982 = vpop.f32.mrb[0].mxu0
        %v6983 = vadd.f32 0.0, %v6982
        %v6984 = vpop.f32.mrb[0].mxu0
        %6985 = vmatprep.mubr.bf16.mxu0 0
        %6986 = vmatmul.mubr.bf16.gmra.mrb[0].mxu0 %v6557
        %v6987 = vpop.f32.mrb[0].mxu0
        %v6988 = vadd.f32 0.0, %v6987
        %v6989 = vpop.f32.mrb[0].mxu0
        %v6990 = vpop.f32.mrb[0].mxu0
        %v6991 = vadd.f32 0.0, %v6990
        %v6992 = vpop.f32.mrb[0].mxu0
        %6993 = vmatprep.mubr.bf16.mxu0 0
        %6994 = vmatmul.mubr.bf16.gmra.mrb[0].mxu0 %v6560
        %v6995 = vpop.f32.mrb[0].mxu0
        %v6996 = vadd.f32 0.0, %v6995
        %v6997 = vpop.f32.mrb[0].mxu0
        %v6998 = vpop.f32.mrb[0].mxu0
        %v6999 = vadd.f32 0.0, %v6998
        %v7000 = vpop.f32.mrb[0].mxu0
        %7001 = vmatprep.mubr.bf16.mxu0 0
        %7002 = vmatmul.mubr.bf16.gmra.mrb[0].mxu0 %v6563
        %v7003 = vpop.f32.mrb[0].mxu0
        %v7004 = vadd.f32 0.0, %v7003
        %v7005 = vpop.f32.mrb[0].mxu0
        %v7006 = vpop.f32.mrb[0].mxu0
        %v7007 = vadd.f32 0.0, %v7006
        %v7008 = vpop.f32.mrb[0].mxu0
        %7009 = vmatprep.mubr.bf16.mxu0 0
        %7010 = vmatmul.mubr.bf16.gmra.mrb[0].mxu0 %v6566
        %v7011 = vpop.f32.mrb[0].mxu0
        %v7012 = vadd.f32 0.0, %v7011
        %v7013 = vpop.f32.mrb[0].mxu0
        %v7014 = vpop.f32.mrb[0].mxu0
        %v7015 = vadd.f32 0.0, %v7014
        %v7016 = vpop.f32.mrb[0].mxu0
        %7017 = vmatprep.mubr.bf16.mxu0 0
        %7018 = vmatmul.mubr.bf16.gmra.mrb[0].mxu0 %v6569
        %v7019 = vpop.f32.mrb[0].mxu0
        %v7020 = vadd.f32 0.0, %v7019
        %v7021 = vpop.f32.mrb[0].mxu0
        %v7022 = vpop.f32.mrb[0].mxu0
        %v7023 = vadd.f32 0.0, %v7022
        %v7024 = vpop.f32.mrb[0].mxu0
        %7025 = vmatprep.mubr.bf16.mxu0 0
        %7026 = vmatmul.mubr.bf16.gmra.mrb[0].mxu0 %v6572
        %v7027 = vpop.f32.mrb[0].mxu0
        %v7028 = vadd.f32 0.0, %v7027
        %v7029 = vpop.f32.mrb[0].mxu0
        %v7030 = vpop.f32.mrb[0].mxu0
        %v7031 = vadd.f32 0.0, %v7030
        %v7032 = vpop.f32.mrb[0].mxu0
        %7033 = vmatprep.mubr.bf16.mxu0 0
        %7034 = vmatmul.mubr.bf16.gmra.mrb[0].mxu0 %v6575
        %v7035 = vpop.f32.mrb[0].mxu0
        %v7036 = vadd.f32 0.0, %v7035
        %v7037 = vpop.f32.mrb[0].mxu0
        %v7038 = vpop.f32.mrb[0].mxu0
        %v7039 = vadd.f32 0.0, %v7038
        %v7040 = vpop.f32.mrb[0].mxu0
        %7041 = vmatprep.mubr.bf16.mxu0 0
        %7042 = vmatmul.mubr.bf16.gmra.mrb[0].mxu0 %v6578
        %v7043 = vpop.f32.mrb[0].mxu0
        %v7044 = vadd.f32 0.0, %v7043
        %v7045 = vpop.f32.mrb[0].mxu0
        %v7046 = vpop.f32.mrb[0].mxu0
        %v7047 = vadd.f32 0.0, %v7046
        %v7048 = vpop.f32.mrb[0].mxu0
        %7049 = vmatprep.mubr.bf16.mxu0 0
        %7050 = vmatmul.mubr.bf16.gmra.mrb[0].mxu0 %v6581
        %v7051 = vpop.f32.mrb[0].mxu0
        %v7052 = vadd.f32 0.0, %v7051
        %v7053 = vpop.f32.mrb[0].mxu0
        %v7054 = vpop.f32.mrb[0].mxu0
        %v7055 = vadd.f32 0.0, %v7054
        %v7056 = vpop.f32.mrb[0].mxu0
        %7057 = vmatprep.mubr.bf16.mxu0 0
        %7058 = vmatmul.mubr.bf16.gmra.mrb[0].mxu0 %v6584
        %v7059 = vpop.f32.mrb[0].mxu0
        %v7060 = vadd.f32 0.0, %v7059
        %v7061 = vpop.f32.mrb[0].mxu0
        %v7062 = vpop.f32.mrb[0].mxu0
        %v7063 = vadd.f32 0.0, %v7062
        %v7064 = vpop.f32.mrb[0].mxu0
        %7065 = vmatprep.mubr.bf16.mxu0 0
        %7066 = vmatmul.mubr.bf16.gmra.mrb[0].mxu0 %v6587
        %v7067 = vpop.f32.mrb[0].mxu0
        %v7068 = vadd.f32 0.0, %v7067
        %v7069 = vpop.f32.mrb[0].mxu0
        %v7070 = vpop.f32.mrb[0].mxu0
        %v7071 = vadd.f32 0.0, %v7070
        %v7072 = vpop.f32.mrb[0].mxu0
        %7073 = vmatprep.mubr.bf16.mxu0 0
        %7074 = vmatmul.mubr.bf16.gmra.mrb[0].mxu0 %v6590
        %v7075 = vpop.f32.mrb[0].mxu0
        %v7076 = vadd.f32 0.0, %v7075
        %v7077 = vpop.f32.mrb[0].mxu0
        %v7078 = vpop.f32.mrb[0].mxu0
        %v7079 = vadd.f32 0.0, %v7078
        %v7080 = vpop.f32.mrb[0].mxu0
        %7081 = vmatprep.mubr.bf16.mxu0 0
        %7082 = vmatmul.mubr.bf16.gmra.mrb[0].mxu0 %v6593
        %v7083 = vpop.f32.mrb[0].mxu0
        %v7084 = vadd.f32 0.0, %v7083
        %v7085 = vpop.f32.mrb[0].mxu0
        %v7086 = vpop.f32.mrb[0].mxu0
        %v7087 = vadd.f32 0.0, %v7086
        %v7088 = vpop.f32.mrb[0].mxu0
        %7089 = vmatprep.mubr.bf16.mxu0 0
        %7090 = vmatmul.mubr.bf16.gmra.mrb[0].mxu0 %v6596
        %v7091 = vpop.f32.mrb[0].mxu0
        %v7092 = vadd.f32 0.0, %v7091
        %v7093 = vpop.f32.mrb[0].mxu0
        %v7094 = vpop.f32.mrb[0].mxu0
        %v7095 = vadd.f32 0.0, %v7094
        %v7096 = vpop.f32.mrb[0].mxu0
        %7097 = vmatprep.mubr.bf16.mxu0 0
        %7098 = vmatmul.mubr.bf16.gmra.mrb[0].mxu0 %v6599
        %v7099 = vpop.f32.mrb[0].mxu0
        %v7100 = vadd.f32 0.0, %v7099
        %v7101 = vpop.f32.mrb[0].mxu0
        %v7102 = vpop.f32.mrb[0].mxu0
        %v7103 = vadd.f32 0.0, %v7102
        %v7104 = vpop.f32.mrb[0].mxu0
        %7105 = vmatprep.mubr.bf16.mxu0 0
        %7106 = vmatmul.mubr.bf16.gmra.mrb[0].mxu0 %v6602
        %v7107 = vpop.f32.mrb[0].mxu0
        %v7108 = vadd.f32 0.0, %v7107
        %v7109 = vpop.f32.mrb[0].mxu0
        %v7110 = vpop.f32.mrb[0].mxu0
        %v7111 = vadd.f32 0.0, %v7110
        %v7112 = vpop.f32.mrb[0].mxu0
        %7113 = vmatprep.mubr.bf16.mxu0 0
        %7114 = vmatmul.mubr.bf16.gmra.mrb[0].mxu0 %v6605
        %v7115 = vpop.f32.mrb[0].mxu0
        %v7116 = vadd.f32 0.0, %v7115
        %v7117 = vpop.f32.mrb[0].mxu0
        %v7118 = vpop.f32.mrb[0].mxu0
        %v7119 = vadd.f32 0.0, %v7118
        %v7120 = vpop.f32.mrb[0].mxu0
        %7121 = vmatprep.mubr.bf16.mxu0 0
        %7122 = vmatmul.mubr.bf16.gmra.mrb[0].mxu0 %v6608
        %v7123 = vpop.f32.mrb[0].mxu0
        %v7124 = vadd.f32 0.0, %v7123
        %v7125 = vpop.f32.mrb[0].mxu0
        %v7126 = vpop.f32.mrb[0].mxu0
        %v7127 = vadd.f32 0.0, %v7126
        %v7128 = vpop.f32.mrb[0].mxu0
        %7129 = vmatprep.mubr.bf16.mxu0 0
        %7130 = vmatmul.mubr.bf16.gmra.mrb[0].mxu0 %v6611
        %v7131 = vpop.f32.mrb[0].mxu0
        %v7132 = vadd.f32 0.0, %v7131
        %v7133 = vpop.f32.mrb[0].mxu0
        %v7134 = vpop.f32.mrb[0].mxu0
        %v7135 = vadd.f32 0.0, %v7134
        %v7136 = vpop.f32.mrb[0].mxu0
        %7137 = vmatprep.mubr.bf16.mxu0 0
        %7138 = vmatmul.mubr.bf16.gmra.mrb[0].mxu0 %v6614
        %v7139 = vpop.f32.mrb[0].mxu0
        %v7140 = vadd.f32 0.0, %v7139
        %v7141 = vpop.f32.mrb[0].mxu0
        %v7142 = vpop.f32.mrb[0].mxu0
        %v7143 = vadd.f32 0.0, %v7142
        %v7144 = vpop.f32.mrb[0].mxu0
        %7145 = vmatprep.mubr.bf16.mxu0 0
        %7146 = vmatmul.mubr.bf16.gmra.mrb[0].mxu0 %v6617
        %v7147 = vpop.f32.mrb[0].mxu0
        %v7148 = vadd.f32 0.0, %v7147
        %v7149 = vpop.f32.mrb[0].mxu0
        %v7150 = vpop.f32.mrb[0].mxu0
        %v7151 = vadd.f32 0.0, %v7150
        %v7152 = vpop.f32.mrb[0].mxu0
        %7153 = vmatprep.mubr.bf16.mxu0 0
        %7154 = vmatmul.mubr.bf16.gmra.mrb[0].mxu0 %v6620
        %v7155 = vpop.f32.mrb[0].mxu0
        %v7156 = vadd.f32 0.0, %v7155
        %v7157 = vpop.f32.mrb[0].mxu0
        %v7158 = vpop.f32.mrb[0].mxu0
        %v7159 = vadd.f32 0.0, %v7158
        %v7160 = vpop.f32.mrb[0].mxu0
        %7161 = vmatprep.mubr.bf16.mxu0 0
        %7162 = vmatmul.mubr.bf16.gmra.mrb[0].mxu0 %v6623
        %v7163 = vpop.f32.mrb[0].mxu0
        %v7164 = vadd.f32 0.0, %v7163
        %v7165 = vpop.f32.mrb[0].mxu0
        %v7166 = vpop.f32.mrb[0].mxu0
        %v7167 = vadd.f32 0.0, %v7166
        %v7168 = vpop.f32.mrb[0].mxu0
        %7169 = vdwg.mxu0
        %v7170 = vld [vmem:[%s669] sm:$0x1]
        %v7171 = vld [vmem:[%s669 + $0x1] sm:$0x1]
        %v7172 = vld [vmem:[%s669 + $0x2] sm:$0x1]
        %v7173 = vld [vmem:[%s669 + $0x3] sm:$0x1]
        %v7174 = vld [vmem:[%s669 + $0x4] sm:$0x1]
        %v7175 = vld [vmem:[%s669 + $0x5] sm:$0x1]
        %v7176 = vld [vmem:[%s669 + $0x6] sm:$0x1]
        %v7177 = vld [vmem:[%s669 + $0x7] sm:$0x1]
        %v7178 = vld [vmem:[%s669 + $0x8] sm:$0x1]
        %v7179 = vld [vmem:[%s669 + $0x9] sm:$0x1]
        %v7180 = vld [vmem:[%s669 + $0xa] sm:$0x1]
        %v7181 = vld [vmem:[%s669 + $0xb] sm:$0x1]
        %v7182 = vld [vmem:[%s669 + $0xc] sm:$0x1]
        %v7183 = vld [vmem:[%s669 + $0xd] sm:$0x1]
        %v7184 = vld [vmem:[%s669 + $0xe] sm:$0x1]
        %v7185 = vld [vmem:[%s669 + $0xf] sm:$0x1]
        %v7202 = vlaneseq
        %v7203 = vshrl.u32 %v7202, 7
        %v7204 = vsub.s32 0, %v7203
        %v7205 = vrot.slane %v7170, %v7204
        %v7206 = vlaneseq
        %v7207 = vshrl.u32 %v7206, 7
        %v7208 = vsub.s32 0, %v7207
        %v7209 = vrot.slane %v7171, %v7208
        %v7210 = vlaneseq
        %v7211 = vshrl.u32 %v7210, 7
        %v7212 = vsub.s32 0, %v7211
        %v7213 = vrot.slane %v7172, %v7212
        %v7214 = vlaneseq
        %v7215 = vshrl.u32 %v7214, 7
        %v7216 = vsub.s32 0, %v7215
        %v7217 = vrot.slane %v7173, %v7216
        %v7218 = vlaneseq
        %v7219 = vshrl.u32 %v7218, 7
        %v7220 = vsub.s32 0, %v7219
        %v7221 = vrot.slane %v7174, %v7220
        %v7222 = vlaneseq
        %v7223 = vshrl.u32 %v7222, 7
        %v7224 = vsub.s32 0, %v7223
        %v7225 = vrot.slane %v7175, %v7224
        %v7226 = vlaneseq
        %v7227 = vshrl.u32 %v7226, 7
        %v7228 = vsub.s32 0, %v7227
        %v7229 = vrot.slane %v7176, %v7228
        %v7230 = vlaneseq
        %v7231 = vshrl.u32 %v7230, 7
        %v7232 = vsub.s32 0, %v7231
        %v7233 = vrot.slane %v7177, %v7232
        %v7234 = vlaneseq
        %v7235 = vshrl.u32 %v7234, 7
        %v7236 = vsub.s32 0, %v7235
        %v7237 = vrot.slane %v7178, %v7236
        %v7238 = vlaneseq
        %v7239 = vshrl.u32 %v7238, 7
        %v7240 = vsub.s32 0, %v7239
        %v7241 = vrot.slane %v7179, %v7240
        %v7242 = vlaneseq
        %v7243 = vshrl.u32 %v7242, 7
        %v7244 = vsub.s32 0, %v7243
        %v7245 = vrot.slane %v7180, %v7244
        %v7246 = vlaneseq
        %v7247 = vshrl.u32 %v7246, 7
        %v7248 = vsub.s32 0, %v7247
        %v7249 = vrot.slane %v7181, %v7248
        %v7250 = vlaneseq
        %v7251 = vshrl.u32 %v7250, 7
        %v7252 = vsub.s32 0, %v7251
        %v7253 = vrot.slane %v7182, %v7252
        %v7254 = vlaneseq
        %v7255 = vshrl.u32 %v7254, 7
        %v7256 = vsub.s32 0, %v7255
        %v7257 = vrot.slane %v7183, %v7256
        %v7258 = vlaneseq
        %v7259 = vshrl.u32 %v7258, 7
        %v7260 = vsub.s32 0, %v7259
        %v7261 = vrot.slane %v7184, %v7260
        %v7262 = vlaneseq
        %v7263 = vshrl.u32 %v7262, 7
        %v7264 = vsub.s32 0, %v7263
        %v7265 = vrot.slane %v7185, %v7264
        %v7282 = vadd.f32 %v6660, %v7205
        %v7283 = vadd.f32 %v6663, %v7205
        %v7284 = vadd.f32 %v6668, %v7205
        %v7285 = vadd.f32 %v6671, %v7205
        %v7286 = vadd.f32 %v6676, %v7205
        %v7287 = vadd.f32 %v6679, %v7205
        %v7288 = vadd.f32 %v6684, %v7205
        %v7289 = vadd.f32 %v6687, %v7205
        %v7290 = vadd.f32 %v6692, %v7209
        %v7291 = vadd.f32 %v6695, %v7209
        %v7292 = vadd.f32 %v6700, %v7209
        %v7293 = vadd.f32 %v6703, %v7209
        %v7294 = vadd.f32 %v6708, %v7209
        %v7295 = vadd.f32 %v6711, %v7209
        %v7296 = vadd.f32 %v6716, %v7209
        %v7297 = vadd.f32 %v6719, %v7209
        %v7298 = vadd.f32 %v6724, %v7213
        %v7299 = vadd.f32 %v6727, %v7213
        %v7300 = vadd.f32 %v6732, %v7213
        %v7301 = vadd.f32 %v6735, %v7213
        %v7302 = vadd.f32 %v6740, %v7213
        %v7303 = vadd.f32 %v6743, %v7213
        %v7304 = vadd.f32 %v6748, %v7213
        %v7305 = vadd.f32 %v6751, %v7213
        %v7306 = vadd.f32 %v6756, %v7217
        %v7307 = vadd.f32 %v6759, %v7217
        %v7308 = vadd.f32 %v6764, %v7217
        %v7309 = vadd.f32 %v6767, %v7217
        %v7310 = vadd.f32 %v6772, %v7217
        %v7311 = vadd.f32 %v6775, %v7217
        %v7312 = vadd.f32 %v6780, %v7217
        %v7313 = vadd.f32 %v6783, %v7217
        %v7314 = vadd.f32 %v6788, %v7221
        %v7315 = vadd.f32 %v6791, %v7221
        %v7316 = vadd.f32 %v6796, %v7221
        %v7317 = vadd.f32 %v6799, %v7221
        %v7318 = vadd.f32 %v6804, %v7221
        %v7319 = vadd.f32 %v6807, %v7221
        %v7320 = vadd.f32 %v6812, %v7221
        %v7321 = vadd.f32 %v6815, %v7221
        %v7322 = vadd.f32 %v6820, %v7225
        %v7323 = vadd.f32 %v6823, %v7225
        %v7324 = vadd.f32 %v6828, %v7225
        %v7325 = vadd.f32 %v6831, %v7225
        %v7326 = vadd.f32 %v6836, %v7225
        %v7327 = vadd.f32 %v6839, %v7225
        %v7328 = vadd.f32 %v6844, %v7225
        %v7329 = vadd.f32 %v6847, %v7225
        %v7330 = vadd.f32 %v6852, %v7229
        %v7331 = vadd.f32 %v6855, %v7229
        %v7332 = vadd.f32 %v6860, %v7229
        %v7333 = vadd.f32 %v6863, %v7229
        %v7334 = vadd.f32 %v6868, %v7229
        %v7335 = vadd.f32 %v6871, %v7229
        %v7336 = vadd.f32 %v6876, %v7229
        %v7337 = vadd.f32 %v6879, %v7229
        %v7338 = vadd.f32 %v6884, %v7233
        %v7339 = vadd.f32 %v6887, %v7233
        %v7340 = vadd.f32 %v6892, %v7233
        %v7341 = vadd.f32 %v6895, %v7233
        %v7342 = vadd.f32 %v6900, %v7233
        %v7343 = vadd.f32 %v6903, %v7233
        %v7344 = vadd.f32 %v6908, %v7233
        %v7345 = vadd.f32 %v6911, %v7233
        %v7346 = vadd.f32 %v6916, %v7237
        %v7347 = vadd.f32 %v6919, %v7237
        %v7348 = vadd.f32 %v6924, %v7237
        %v7349 = vadd.f32 %v6927, %v7237
        %v7350 = vadd.f32 %v6932, %v7237
        %v7351 = vadd.f32 %v6935, %v7237
        %v7352 = vadd.f32 %v6940, %v7237
        %v7353 = vadd.f32 %v6943, %v7237
        %v7354 = vadd.f32 %v6948, %v7241
        %v7355 = vadd.f32 %v6951, %v7241
        %v7356 = vadd.f32 %v6956, %v7241
        %v7357 = vadd.f32 %v6959, %v7241
        %v7358 = vadd.f32 %v6964, %v7241
        %v7359 = vadd.f32 %v6967, %v7241
        %v7360 = vadd.f32 %v6972, %v7241
        %v7361 = vadd.f32 %v6975, %v7241
        %v7362 = vadd.f32 %v6980, %v7245
        %v7363 = vadd.f32 %v6983, %v7245
        %v7364 = vadd.f32 %v6988, %v7245
        %v7365 = vadd.f32 %v6991, %v7245
        %v7366 = vadd.f32 %v6996, %v7245
        %v7367 = vadd.f32 %v6999, %v7245
        %v7368 = vadd.f32 %v7004, %v7245
        %v7369 = vadd.f32 %v7007, %v7245
        %v7370 = vadd.f32 %v7012, %v7249
        %v7371 = vadd.f32 %v7015, %v7249
        %v7372 = vadd.f32 %v7020, %v7249
        %v7373 = vadd.f32 %v7023, %v7249
        %v7374 = vadd.f32 %v7028, %v7249
        %v7375 = vadd.f32 %v7031, %v7249
        %v7376 = vadd.f32 %v7036, %v7249
        %v7377 = vadd.f32 %v7039, %v7249
        %v7378 = vadd.f32 %v7044, %v7253
        %v7379 = vadd.f32 %v7047, %v7253
        %v7380 = vadd.f32 %v7052, %v7253
        %v7381 = vadd.f32 %v7055, %v7253
        %v7382 = vadd.f32 %v7060, %v7253
        %v7383 = vadd.f32 %v7063, %v7253
        %v7384 = vadd.f32 %v7068, %v7253
        %v7385 = vadd.f32 %v7071, %v7253
        %v7386 = vadd.f32 %v7076, %v7257
        %v7387 = vadd.f32 %v7079, %v7257
        %v7388 = vadd.f32 %v7084, %v7257
        %v7389 = vadd.f32 %v7087, %v7257
        %v7390 = vadd.f32 %v7092, %v7257
        %v7391 = vadd.f32 %v7095, %v7257
        %v7392 = vadd.f32 %v7100, %v7257
        %v7393 = vadd.f32 %v7103, %v7257
        %v7394 = vadd.f32 %v7108, %v7261
        %v7395 = vadd.f32 %v7111, %v7261
        %v7396 = vadd.f32 %v7116, %v7261
        %v7397 = vadd.f32 %v7119, %v7261
        %v7398 = vadd.f32 %v7124, %v7261
        %v7399 = vadd.f32 %v7127, %v7261
        %v7400 = vadd.f32 %v7132, %v7261
        %v7401 = vadd.f32 %v7135, %v7261
        %v7402 = vadd.f32 %v7140, %v7265
        %v7403 = vadd.f32 %v7143, %v7265
        %v7404 = vadd.f32 %v7148, %v7265
        %v7405 = vadd.f32 %v7151, %v7265
        %v7406 = vadd.f32 %v7156, %v7265
        %v7407 = vadd.f32 %v7159, %v7265
        %v7408 = vadd.f32 %v7164, %v7265
        %v7409 = vadd.f32 %v7167, %v7265
        %v7410 = vmax.f32 %v7282, 0.0
        %v7411 = vmax.f32 %v7283, 0.0
        %v7412 = vmax.f32 %v7284, 0.0
        %v7413 = vmax.f32 %v7285, 0.0
        %v7414 = vmax.f32 %v7286, 0.0
        %v7415 = vmax.f32 %v7287, 0.0
        %v7416 = vmax.f32 %v7288, 0.0
        %v7417 = vmax.f32 %v7289, 0.0
        %v7418 = vmax.f32 %v7290, 0.0
        %v7419 = vmax.f32 %v7291, 0.0
        %v7420 = vmax.f32 %v7292, 0.0
        %v7421 = vmax.f32 %v7293, 0.0
        %v7422 = vmax.f32 %v7294, 0.0
        %v7423 = vmax.f32 %v7295, 0.0
        %v7424 = vmax.f32 %v7296, 0.0
        %v7425 = vmax.f32 %v7297, 0.0
        %v7426 = vmax.f32 %v7298, 0.0
        %v7427 = vmax.f32 %v7299, 0.0
        %v7428 = vmax.f32 %v7300, 0.0
        %v7429 = vmax.f32 %v7301, 0.0
        %v7430 = vmax.f32 %v7302, 0.0
        %v7431 = vmax.f32 %v7303, 0.0
        %v7432 = vmax.f32 %v7304, 0.0
        %v7433 = vmax.f32 %v7305, 0.0
        %v7434 = vmax.f32 %v7306, 0.0
        %v7435 = vmax.f32 %v7307, 0.0
        %v7436 = vmax.f32 %v7308, 0.0
        %v7437 = vmax.f32 %v7309, 0.0
        %v7438 = vmax.f32 %v7310, 0.0
        %v7439 = vmax.f32 %v7311, 0.0
        %v7440 = vmax.f32 %v7312, 0.0
        %v7441 = vmax.f32 %v7313, 0.0
        %v7442 = vmax.f32 %v7314, 0.0
        %v7443 = vmax.f32 %v7315, 0.0
        %v7444 = vmax.f32 %v7316, 0.0
        %v7445 = vmax.f32 %v7317, 0.0
        %v7446 = vmax.f32 %v7318, 0.0
        %v7447 = vmax.f32 %v7319, 0.0
        %v7448 = vmax.f32 %v7320, 0.0
        %v7449 = vmax.f32 %v7321, 0.0
        %v7450 = vmax.f32 %v7322, 0.0
        %v7451 = vmax.f32 %v7323, 0.0
        %v7452 = vmax.f32 %v7324, 0.0
        %v7453 = vmax.f32 %v7325, 0.0
        %v7454 = vmax.f32 %v7326, 0.0
        %v7455 = vmax.f32 %v7327, 0.0
        %v7456 = vmax.f32 %v7328, 0.0
        %v7457 = vmax.f32 %v7329, 0.0
        %v7458 = vmax.f32 %v7330, 0.0
        %v7459 = vmax.f32 %v7331, 0.0
        %v7460 = vmax.f32 %v7332, 0.0
        %v7461 = vmax.f32 %v7333, 0.0
        %v7462 = vmax.f32 %v7334, 0.0
        %v7463 = vmax.f32 %v7335, 0.0
        %v7464 = vmax.f32 %v7336, 0.0
        %v7465 = vmax.f32 %v7337, 0.0
        %v7466 = vmax.f32 %v7338, 0.0
        %v7467 = vmax.f32 %v7339, 0.0
        %v7468 = vmax.f32 %v7340, 0.0
        %v7469 = vmax.f32 %v7341, 0.0
        %v7470 = vmax.f32 %v7342, 0.0
        %v7471 = vmax.f32 %v7343, 0.0
        %v7472 = vmax.f32 %v7344, 0.0
        %v7473 = vmax.f32 %v7345, 0.0
        %v7474 = vmax.f32 %v7346, 0.0
        %v7475 = vmax.f32 %v7347, 0.0
        %v7476 = vmax.f32 %v7348, 0.0
        %v7477 = vmax.f32 %v7349, 0.0
        %v7478 = vmax.f32 %v7350, 0.0
        %v7479 = vmax.f32 %v7351, 0.0
        %v7480 = vmax.f32 %v7352, 0.0
        %v7481 = vmax.f32 %v7353, 0.0
        %v7482 = vmax.f32 %v7354, 0.0
        %v7483 = vmax.f32 %v7355, 0.0
        %v7484 = vmax.f32 %v7356, 0.0
        %v7485 = vmax.f32 %v7357, 0.0
        %v7486 = vmax.f32 %v7358, 0.0
        %v7487 = vmax.f32 %v7359, 0.0
        %v7488 = vmax.f32 %v7360, 0.0
        %v7489 = vmax.f32 %v7361, 0.0
        %v7490 = vmax.f32 %v7362, 0.0
        %v7491 = vmax.f32 %v7363, 0.0
        %v7492 = vmax.f32 %v7364, 0.0
        %v7493 = vmax.f32 %v7365, 0.0
        %v7494 = vmax.f32 %v7366, 0.0
        %v7495 = vmax.f32 %v7367, 0.0
        %v7496 = vmax.f32 %v7368, 0.0
        %v7497 = vmax.f32 %v7369, 0.0
        %v7498 = vmax.f32 %v7370, 0.0
        %v7499 = vmax.f32 %v7371, 0.0
        %v7500 = vmax.f32 %v7372, 0.0
        %v7501 = vmax.f32 %v7373, 0.0
        %v7502 = vmax.f32 %v7374, 0.0
        %v7503 = vmax.f32 %v7375, 0.0
        %v7504 = vmax.f32 %v7376, 0.0
        %v7505 = vmax.f32 %v7377, 0.0
        %v7506 = vmax.f32 %v7378, 0.0
        %v7507 = vmax.f32 %v7379, 0.0
        %v7508 = vmax.f32 %v7380, 0.0
        %v7509 = vmax.f32 %v7381, 0.0
        %v7510 = vmax.f32 %v7382, 0.0
        %v7511 = vmax.f32 %v7383, 0.0
        %v7512 = vmax.f32 %v7384, 0.0
        %v7513 = vmax.f32 %v7385, 0.0
        %v7514 = vmax.f32 %v7386, 0.0
        %v7515 = vmax.f32 %v7387, 0.0
        %v7516 = vmax.f32 %v7388, 0.0
        %v7517 = vmax.f32 %v7389, 0.0
        %v7518 = vmax.f32 %v7390, 0.0
        %v7519 = vmax.f32 %v7391, 0.0
        %v7520 = vmax.f32 %v7392, 0.0
        %v7521 = vmax.f32 %v7393, 0.0
        %v7522 = vmax.f32 %v7394, 0.0
        %v7523 = vmax.f32 %v7395, 0.0
        %v7524 = vmax.f32 %v7396, 0.0
        %v7525 = vmax.f32 %v7397, 0.0
        %v7526 = vmax.f32 %v7398, 0.0
        %v7527 = vmax.f32 %v7399, 0.0
        %v7528 = vmax.f32 %v7400, 0.0
        %v7529 = vmax.f32 %v7401, 0.0
        %v7530 = vmax.f32 %v7402, 0.0
        %v7531 = vmax.f32 %v7403, 0.0
        %v7532 = vmax.f32 %v7404, 0.0
        %v7533 = vmax.f32 %v7405, 0.0
        %v7534 = vmax.f32 %v7406, 0.0
        %v7535 = vmax.f32 %v7407, 0.0
        %v7536 = vmax.f32 %v7408, 0.0
        %v7537 = vmax.f32 %v7409, 0.0
        %v7538 = vpack.c.bf16 %v7411, %v7410
        %v7539 = vpack.c.bf16 %v7413, %v7412
        %v7540 = vpack.c.bf16 %v7415, %v7414
        %v7541 = vpack.c.bf16 %v7417, %v7416
        %v7542 = vpack.c.bf16 %v7419, %v7418
        %v7543 = vpack.c.bf16 %v7421, %v7420
        %v7544 = vpack.c.bf16 %v7423, %v7422
        %v7545 = vpack.c.bf16 %v7425, %v7424
        %v7546 = vpack.c.bf16 %v7427, %v7426
        %v7547 = vpack.c.bf16 %v7429, %v7428
        %v7548 = vpack.c.bf16 %v7431, %v7430
        %v7549 = vpack.c.bf16 %v7433, %v7432
        %v7550 = vpack.c.bf16 %v7435, %v7434
        %v7551 = vpack.c.bf16 %v7437, %v7436
        %v7552 = vpack.c.bf16 %v7439, %v7438
        %v7553 = vpack.c.bf16 %v7441, %v7440
        %v7554 = vpack.c.bf16 %v7443, %v7442
        %v7555 = vpack.c.bf16 %v7445, %v7444
        %v7556 = vpack.c.bf16 %v7447, %v7446
        %v7557 = vpack.c.bf16 %v7449, %v7448
        %v7558 = vpack.c.bf16 %v7451, %v7450
        %v7559 = vpack.c.bf16 %v7453, %v7452
        %v7560 = vpack.c.bf16 %v7455, %v7454
        %v7561 = vpack.c.bf16 %v7457, %v7456
        %v7562 = vpack.c.bf16 %v7459, %v7458
        %v7563 = vpack.c.bf16 %v7461, %v7460
        %v7564 = vpack.c.bf16 %v7463, %v7462
        %v7565 = vpack.c.bf16 %v7465, %v7464
        %v7566 = vpack.c.bf16 %v7467, %v7466
        %v7567 = vpack.c.bf16 %v7469, %v7468
        %v7568 = vpack.c.bf16 %v7471, %v7470
        %v7569 = vpack.c.bf16 %v7473, %v7472
        %v7570 = vpack.c.bf16 %v7475, %v7474
        %v7571 = vpack.c.bf16 %v7477, %v7476
        %v7572 = vpack.c.bf16 %v7479, %v7478
        %v7573 = vpack.c.bf16 %v7481, %v7480
        %v7574 = vpack.c.bf16 %v7483, %v7482
        %v7575 = vpack.c.bf16 %v7485, %v7484
        %v7576 = vpack.c.bf16 %v7487, %v7486
        %v7577 = vpack.c.bf16 %v7489, %v7488
        %v7578 = vpack.c.bf16 %v7491, %v7490
        %v7579 = vpack.c.bf16 %v7493, %v7492
        %v7580 = vpack.c.bf16 %v7495, %v7494
        %v7581 = vpack.c.bf16 %v7497, %v7496
        %v7582 = vpack.c.bf16 %v7499, %v7498
        %v7583 = vpack.c.bf16 %v7501, %v7500
        %v7584 = vpack.c.bf16 %v7503, %v7502
        %v7585 = vpack.c.bf16 %v7505, %v7504
        %v7586 = vpack.c.bf16 %v7507, %v7506
        %v7587 = vpack.c.bf16 %v7509, %v7508
        %v7588 = vpack.c.bf16 %v7511, %v7510
        %v7589 = vpack.c.bf16 %v7513, %v7512
        %v7590 = vpack.c.bf16 %v7515, %v7514
        %v7591 = vpack.c.bf16 %v7517, %v7516
        %v7592 = vpack.c.bf16 %v7519, %v7518
        %v7593 = vpack.c.bf16 %v7521, %v7520
        %v7594 = vpack.c.bf16 %v7523, %v7522
        %v7595 = vpack.c.bf16 %v7525, %v7524
        %v7596 = vpack.c.bf16 %v7527, %v7526
        %v7597 = vpack.c.bf16 %v7529, %v7528
        %v7598 = vpack.c.bf16 %v7531, %v7530
        %v7599 = vpack.c.bf16 %v7533, %v7532
        %v7600 = vpack.c.bf16 %v7535, %v7534
        %v7601 = vpack.c.bf16 %v7537, %v7536
        %v7602 = vld [vmem:[%s16] sm:$0xf]
        %v7603 = vld [vmem:[%s16 + $0x4] sm:$0xf]
        %v7604 = vld [vmem:[%s16 + $0x8] sm:$0xf]
        %v7605 = vld [vmem:[%s16 + $0xc] sm:$0xf]
        %v7606 = vld [vmem:[%s16 + $0x10] sm:$0xf]
        %v7607 = vld [vmem:[%s16 + $0x14] sm:$0xf]
        %v7608 = vld [vmem:[%s16 + $0x18] sm:$0xf]
        %v7609 = vld [vmem:[%s16 + $0x1c] sm:$0xf]
        %v7610 = vld [vmem:[%s16 + $0x20] sm:$0xf]
        %v7611 = vld [vmem:[%s16 + $0x24] sm:$0xf]
        %v7612 = vld [vmem:[%s16 + $0x28] sm:$0xf]
        %v7613 = vld [vmem:[%s16 + $0x2c] sm:$0xf]
        %v7614 = vld [vmem:[%s16 + $0x30] sm:$0xf]
        %v7615 = vld [vmem:[%s16 + $0x34] sm:$0xf]
        %v7616 = vld [vmem:[%s16 + $0x38] sm:$0xf]
        %v7617 = vld [vmem:[%s16 + $0x3c] sm:$0xf]
        %v7618 = vld [vmem:[%s17] sm:$0x1]
        %v7620 = vlaneseq
        %v7621 = vshrl.u32 %v7620, 7
        %v7622 = vsub.s32 0, %v7621
        %v7623 = vrot.slane %v7618, %v7622
        %v7641 = vunpack.c.l.b16 %v7602
        %v7642 = vunpack.c.l.b16 %v7603
        %v7643 = vunpack.c.l.b16 %v7604
        %v7644 = vunpack.c.l.b16 %v7605
        %v7645 = vunpack.c.l.b16 %v7606
        %v7646 = vunpack.c.l.b16 %v7607
        %v7647 = vunpack.c.l.b16 %v7608
        %v7648 = vunpack.c.l.b16 %v7609
        %v7649 = vunpack.c.l.b16 %v7610
        %v7650 = vunpack.c.l.b16 %v7611
        %v7651 = vunpack.c.l.b16 %v7612
        %v7652 = vunpack.c.l.b16 %v7613
        %v7653 = vunpack.c.l.b16 %v7614
        %v7654 = vunpack.c.l.b16 %v7615
        %v7655 = vunpack.c.l.b16 %v7616
        %v7656 = vunpack.c.l.b16 %v7617
        %v7657 = vpack.c.b16 %v7642, %v7641
        %v7658 = vpack.c.b16 %v7644, %v7643
        %v7659 = vpack.c.b16 %v7646, %v7645
        %v7660 = vpack.c.b16 %v7648, %v7647
        %v7661 = vpack.c.b16 %v7650, %v7649
        %v7662 = vpack.c.b16 %v7652, %v7651
        %v7663 = vpack.c.b16 %v7654, %v7653
        %v7664 = vpack.c.b16 %v7656, %v7655
        %7673 = vmatprep.subr.bf16.mxu0 0
        %7674 = vmatpush1.bf16.msra.mxu0 %v7657
        %7675 = vmatprep.subr.bf16.mxu0 0
        %7676 = vmatpush1.bf16.msra.mxu0 %v7658
        %7677 = vmatprep.subr.bf16.mxu0 0
        %7678 = vmatpush1.bf16.msra.mxu0 %v7659
        %7679 = vmatprep.subr.bf16.mxu0 0
        %7680 = vmatpush1.bf16.msra.mxu0 %v7660
        %7681 = vmatprep.subr.bf16.mxu0 0
        %7682 = vmatpush1.bf16.msra.mxu0 %v7661
        %7683 = vmatprep.subr.bf16.mxu0 0
        %7684 = vmatpush1.bf16.msra.mxu0 %v7662
        %7685 = vmatprep.subr.bf16.mxu0 0
        %7686 = vmatpush1.bf16.msra.mxu0 %v7663
        %7687 = vmatprep.subr.bf16.mxu0 0
        %7688 = vmatpush1.bf16.msra.mxu0 %v7664
        %7689 = vmatprep.subr.bf16.mxu0 0
        %7690 = vmatpush1.bf16.msra.mxu0 0
        %7691 = vmatprep.subr.bf16.mxu0 0
        %7692 = vmatpush1.bf16.msra.mxu0 0
        %7693 = vmatprep.subr.bf16.mxu0 0
        %7694 = vmatpush1.bf16.msra.mxu0 0
        %7695 = vmatprep.subr.bf16.mxu0 0
        %7696 = vmatpush1.bf16.msra.mxu0 0
        %7697 = vmatprep.subr.bf16.mxu0 0
        %7698 = vmatpush1.bf16.msra.mxu0 0
        %7699 = vmatprep.subr.bf16.mxu0 0
        %7700 = vmatpush1.bf16.msra.mxu0 0
        %7701 = vmatprep.subr.bf16.mxu0 0
        %7702 = vmatpush1.bf16.msra.mxu0 0
        %7703 = vmatprep.subr.bf16.mxu0 0
        %7704 = vmatpush1.bf16.msra.mxu0 0
        %7705 = vmatprep.mubr.bf16.mxu0 0
        %7706 = vmatmul.mubr.bf16.gmra.mrb[0].mxu0 %v7538
        %v7707 = vpop.f32.mrb[0].mxu0
        %v7708 = vadd.f32 %v7623, %v7707
        %v7709 = vpop.f32.mrb[0].mxu0
        %v7710 = vpop.f32.mrb[0].mxu0
        %v7711 = vadd.f32 %v7623, %v7710
        %v7712 = vpop.f32.mrb[0].mxu0
        %7713 = vmatprep.mubr.bf16.mxu0 0
        %7714 = vmatmul.mubr.bf16.gmra.mrb[0].mxu0 %v7539
        %v7715 = vpop.f32.mrb[0].mxu0
        %v7716 = vadd.f32 %v7623, %v7715
        %v7717 = vpop.f32.mrb[0].mxu0
        %v7718 = vpop.f32.mrb[0].mxu0
        %v7719 = vadd.f32 %v7623, %v7718
        %v7720 = vpop.f32.mrb[0].mxu0
        %7721 = vmatprep.mubr.bf16.mxu0 0
        %7722 = vmatmul.mubr.bf16.gmra.mrb[0].mxu0 %v7540
        %v7723 = vpop.f32.mrb[0].mxu0
        %v7724 = vadd.f32 %v7623, %v7723
        %v7725 = vpop.f32.mrb[0].mxu0
        %v7726 = vpop.f32.mrb[0].mxu0
        %v7727 = vadd.f32 %v7623, %v7726
        %v7728 = vpop.f32.mrb[0].mxu0
        %7729 = vmatprep.mubr.bf16.mxu0 0
        %7730 = vmatmul.mubr.bf16.gmra.mrb[0].mxu0 %v7541
        %v7731 = vpop.f32.mrb[0].mxu0
        %v7732 = vadd.f32 %v7623, %v7731
        %v7733 = vpop.f32.mrb[0].mxu0
        %v7734 = vpop.f32.mrb[0].mxu0
        %v7735 = vadd.f32 %v7623, %v7734
        %v7736 = vpop.f32.mrb[0].mxu0
        %7737 = vmatprep.mubr.bf16.mxu0 0
        %7738 = vmatmul.mubr.bf16.gmra.mrb[0].mxu0 %v7542
        %v7739 = vpop.f32.mrb[0].mxu0
        %v7740 = vadd.f32 %v7623, %v7739
        %v7741 = vpop.f32.mrb[0].mxu0
        %v7742 = vpop.f32.mrb[0].mxu0
        %v7743 = vadd.f32 %v7623, %v7742
        %v7744 = vpop.f32.mrb[0].mxu0
        %7745 = vmatprep.mubr.bf16.mxu0 0
        %7746 = vmatmul.mubr.bf16.gmra.mrb[0].mxu0 %v7543
        %v7747 = vpop.f32.mrb[0].mxu0
        %v7748 = vadd.f32 %v7623, %v7747
        %v7749 = vpop.f32.mrb[0].mxu0
        %v7750 = vpop.f32.mrb[0].mxu0
        %v7751 = vadd.f32 %v7623, %v7750
        %v7752 = vpop.f32.mrb[0].mxu0
        %7753 = vmatprep.mubr.bf16.mxu0 0
        %7754 = vmatmul.mubr.bf16.gmra.mrb[0].mxu0 %v7544
        %v7755 = vpop.f32.mrb[0].mxu0
        %v7756 = vadd.f32 %v7623, %v7755
        %v7757 = vpop.f32.mrb[0].mxu0
        %v7758 = vpop.f32.mrb[0].mxu0
        %v7759 = vadd.f32 %v7623, %v7758
        %v7760 = vpop.f32.mrb[0].mxu0
        %7761 = vmatprep.mubr.bf16.mxu0 0
        %7762 = vmatmul.mubr.bf16.gmra.mrb[0].mxu0 %v7545
        %v7763 = vpop.f32.mrb[0].mxu0
        %v7764 = vadd.f32 %v7623, %v7763
        %v7765 = vpop.f32.mrb[0].mxu0
        %v7766 = vpop.f32.mrb[0].mxu0
        %v7767 = vadd.f32 %v7623, %v7766
        %v7768 = vpop.f32.mrb[0].mxu0
        %7769 = vmatprep.mubr.bf16.mxu0 0
        %7770 = vmatmul.mubr.bf16.gmra.mrb[0].mxu0 %v7546
        %v7771 = vpop.f32.mrb[0].mxu0
        %v7772 = vadd.f32 %v7623, %v7771
        %v7773 = vpop.f32.mrb[0].mxu0
        %v7774 = vpop.f32.mrb[0].mxu0
        %v7775 = vadd.f32 %v7623, %v7774
        %v7776 = vpop.f32.mrb[0].mxu0
        %7777 = vmatprep.mubr.bf16.mxu0 0
        %7778 = vmatmul.mubr.bf16.gmra.mrb[0].mxu0 %v7547
        %v7779 = vpop.f32.mrb[0].mxu0
        %v7780 = vadd.f32 %v7623, %v7779
        %v7781 = vpop.f32.mrb[0].mxu0
        %v7782 = vpop.f32.mrb[0].mxu0
        %v7783 = vadd.f32 %v7623, %v7782
        %v7784 = vpop.f32.mrb[0].mxu0
        %7785 = vmatprep.mubr.bf16.mxu0 0
        %7786 = vmatmul.mubr.bf16.gmra.mrb[0].mxu0 %v7548
        %v7787 = vpop.f32.mrb[0].mxu0
        %v7788 = vadd.f32 %v7623, %v7787
        %v7789 = vpop.f32.mrb[0].mxu0
        %v7790 = vpop.f32.mrb[0].mxu0
        %v7791 = vadd.f32 %v7623, %v7790
        %v7792 = vpop.f32.mrb[0].mxu0
        %7793 = vmatprep.mubr.bf16.mxu0 0
        %7794 = vmatmul.mubr.bf16.gmra.mrb[0].mxu0 %v7549
        %v7795 = vpop.f32.mrb[0].mxu0
        %v7796 = vadd.f32 %v7623, %v7795
        %v7797 = vpop.f32.mrb[0].mxu0
        %v7798 = vpop.f32.mrb[0].mxu0
        %v7799 = vadd.f32 %v7623, %v7798
        %v7800 = vpop.f32.mrb[0].mxu0
        %7801 = vmatprep.mubr.bf16.mxu0 0
        %7802 = vmatmul.mubr.bf16.gmra.mrb[0].mxu0 %v7550
        %v7803 = vpop.f32.mrb[0].mxu0
        %v7804 = vadd.f32 %v7623, %v7803
        %v7805 = vpop.f32.mrb[0].mxu0
        %v7806 = vpop.f32.mrb[0].mxu0
        %v7807 = vadd.f32 %v7623, %v7806
        %v7808 = vpop.f32.mrb[0].mxu0
        %7809 = vmatprep.mubr.bf16.mxu0 0
        %7810 = vmatmul.mubr.bf16.gmra.mrb[0].mxu0 %v7551
        %v7811 = vpop.f32.mrb[0].mxu0
        %v7812 = vadd.f32 %v7623, %v7811
        %v7813 = vpop.f32.mrb[0].mxu0
        %v7814 = vpop.f32.mrb[0].mxu0
        %v7815 = vadd.f32 %v7623, %v7814
        %v7816 = vpop.f32.mrb[0].mxu0
        %7817 = vmatprep.mubr.bf16.mxu0 0
        %7818 = vmatmul.mubr.bf16.gmra.mrb[0].mxu0 %v7552
        %v7819 = vpop.f32.mrb[0].mxu0
        %v7820 = vadd.f32 %v7623, %v7819
        %v7821 = vpop.f32.mrb[0].mxu0
        %v7822 = vpop.f32.mrb[0].mxu0
        %v7823 = vadd.f32 %v7623, %v7822
        %v7824 = vpop.f32.mrb[0].mxu0
        %7825 = vmatprep.mubr.bf16.mxu0 0
        %7826 = vmatmul.mubr.bf16.gmra.mrb[0].mxu0 %v7553
        %v7827 = vpop.f32.mrb[0].mxu0
        %v7828 = vadd.f32 %v7623, %v7827
        %v7829 = vpop.f32.mrb[0].mxu0
        %v7830 = vpop.f32.mrb[0].mxu0
        %v7831 = vadd.f32 %v7623, %v7830
        %v7832 = vpop.f32.mrb[0].mxu0
        %7833 = vmatprep.mubr.bf16.mxu0 0
        %7834 = vmatmul.mubr.bf16.gmra.mrb[0].mxu0 %v7554
        %v7835 = vpop.f32.mrb[0].mxu0
        %v7836 = vadd.f32 %v7623, %v7835
        %v7837 = vpop.f32.mrb[0].mxu0
        %v7838 = vpop.f32.mrb[0].mxu0
        %v7839 = vadd.f32 %v7623, %v7838
        %v7840 = vpop.f32.mrb[0].mxu0
        %7841 = vmatprep.mubr.bf16.mxu0 0
        %7842 = vmatmul.mubr.bf16.gmra.mrb[0].mxu0 %v7555
        %v7843 = vpop.f32.mrb[0].mxu0
        %v7844 = vadd.f32 %v7623, %v7843
        %v7845 = vpop.f32.mrb[0].mxu0
        %v7846 = vpop.f32.mrb[0].mxu0
        %v7847 = vadd.f32 %v7623, %v7846
        %v7848 = vpop.f32.mrb[0].mxu0
        %7849 = vmatprep.mubr.bf16.mxu0 0
        %7850 = vmatmul.mubr.bf16.gmra.mrb[0].mxu0 %v7556
        %v7851 = vpop.f32.mrb[0].mxu0
        %v7852 = vadd.f32 %v7623, %v7851
        %v7853 = vpop.f32.mrb[0].mxu0
        %v7854 = vpop.f32.mrb[0].mxu0
        %v7855 = vadd.f32 %v7623, %v7854
        %v7856 = vpop.f32.mrb[0].mxu0
        %7857 = vmatprep.mubr.bf16.mxu0 0
        %7858 = vmatmul.mubr.bf16.gmra.mrb[0].mxu0 %v7557
        %v7859 = vpop.f32.mrb[0].mxu0
        %v7860 = vadd.f32 %v7623, %v7859
        %v7861 = vpop.f32.mrb[0].mxu0
        %v7862 = vpop.f32.mrb[0].mxu0
        %v7863 = vadd.f32 %v7623, %v7862
        %v7864 = vpop.f32.mrb[0].mxu0
        %7865 = vmatprep.mubr.bf16.mxu0 0
        %7866 = vmatmul.mubr.bf16.gmra.mrb[0].mxu0 %v7558
        %v7867 = vpop.f32.mrb[0].mxu0
        %v7868 = vadd.f32 %v7623, %v7867
        %v7869 = vpop.f32.mrb[0].mxu0
        %v7870 = vpop.f32.mrb[0].mxu0
        %v7871 = vadd.f32 %v7623, %v7870
        %v7872 = vpop.f32.mrb[0].mxu0
        %7873 = vmatprep.mubr.bf16.mxu0 0
        %7874 = vmatmul.mubr.bf16.gmra.mrb[0].mxu0 %v7559
        %v7875 = vpop.f32.mrb[0].mxu0
        %v7876 = vadd.f32 %v7623, %v7875
        %v7877 = vpop.f32.mrb[0].mxu0
        %v7878 = vpop.f32.mrb[0].mxu0
        %v7879 = vadd.f32 %v7623, %v7878
        %v7880 = vpop.f32.mrb[0].mxu0
        %7881 = vmatprep.mubr.bf16.mxu0 0
        %7882 = vmatmul.mubr.bf16.gmra.mrb[0].mxu0 %v7560
        %v7883 = vpop.f32.mrb[0].mxu0
        %v7884 = vadd.f32 %v7623, %v7883
        %v7885 = vpop.f32.mrb[0].mxu0
        %v7886 = vpop.f32.mrb[0].mxu0
        %v7887 = vadd.f32 %v7623, %v7886
        %v7888 = vpop.f32.mrb[0].mxu0
        %7889 = vmatprep.mubr.bf16.mxu0 0
        %7890 = vmatmul.mubr.bf16.gmra.mrb[0].mxu0 %v7561
        %v7891 = vpop.f32.mrb[0].mxu0
        %v7892 = vadd.f32 %v7623, %v7891
        %v7893 = vpop.f32.mrb[0].mxu0
        %v7894 = vpop.f32.mrb[0].mxu0
        %v7895 = vadd.f32 %v7623, %v7894
        %v7896 = vpop.f32.mrb[0].mxu0
        %7897 = vmatprep.mubr.bf16.mxu0 0
        %7898 = vmatmul.mubr.bf16.gmra.mrb[0].mxu0 %v7562
        %v7899 = vpop.f32.mrb[0].mxu0
        %v7900 = vadd.f32 %v7623, %v7899
        %v7901 = vpop.f32.mrb[0].mxu0
        %v7902 = vpop.f32.mrb[0].mxu0
        %v7903 = vadd.f32 %v7623, %v7902
        %v7904 = vpop.f32.mrb[0].mxu0
        %7905 = vmatprep.mubr.bf16.mxu0 0
        %7906 = vmatmul.mubr.bf16.gmra.mrb[0].mxu0 %v7563
        %v7907 = vpop.f32.mrb[0].mxu0
        %v7908 = vadd.f32 %v7623, %v7907
        %v7909 = vpop.f32.mrb[0].mxu0
        %v7910 = vpop.f32.mrb[0].mxu0
        %v7911 = vadd.f32 %v7623, %v7910
        %v7912 = vpop.f32.mrb[0].mxu0
        %7913 = vmatprep.mubr.bf16.mxu0 0
        %7914 = vmatmul.mubr.bf16.gmra.mrb[0].mxu0 %v7564
        %v7915 = vpop.f32.mrb[0].mxu0
        %v7916 = vadd.f32 %v7623, %v7915
        %v7917 = vpop.f32.mrb[0].mxu0
        %v7918 = vpop.f32.mrb[0].mxu0
        %v7919 = vadd.f32 %v7623, %v7918
        %v7920 = vpop.f32.mrb[0].mxu0
        %7921 = vmatprep.mubr.bf16.mxu0 0
        %7922 = vmatmul.mubr.bf16.gmra.mrb[0].mxu0 %v7565
        %v7923 = vpop.f32.mrb[0].mxu0
        %v7924 = vadd.f32 %v7623, %v7923
        %v7925 = vpop.f32.mrb[0].mxu0
        %v7926 = vpop.f32.mrb[0].mxu0
        %v7927 = vadd.f32 %v7623, %v7926
        %v7928 = vpop.f32.mrb[0].mxu0
        %7929 = vmatprep.mubr.bf16.mxu0 0
        %7930 = vmatmul.mubr.bf16.gmra.mrb[0].mxu0 %v7566
        %v7931 = vpop.f32.mrb[0].mxu0
        %v7932 = vadd.f32 %v7623, %v7931
        %v7933 = vpop.f32.mrb[0].mxu0
        %v7934 = vpop.f32.mrb[0].mxu0
        %v7935 = vadd.f32 %v7623, %v7934
        %v7936 = vpop.f32.mrb[0].mxu0
        %7937 = vmatprep.mubr.bf16.mxu0 0
        %7938 = vmatmul.mubr.bf16.gmra.mrb[0].mxu0 %v7567
        %v7939 = vpop.f32.mrb[0].mxu0
        %v7940 = vadd.f32 %v7623, %v7939
        %v7941 = vpop.f32.mrb[0].mxu0
        %v7942 = vpop.f32.mrb[0].mxu0
        %v7943 = vadd.f32 %v7623, %v7942
        %v7944 = vpop.f32.mrb[0].mxu0
        %7945 = vmatprep.mubr.bf16.mxu0 0
        %7946 = vmatmul.mubr.bf16.gmra.mrb[0].mxu0 %v7568
        %v7947 = vpop.f32.mrb[0].mxu0
        %v7948 = vadd.f32 %v7623, %v7947
        %v7949 = vpop.f32.mrb[0].mxu0
        %v7950 = vpop.f32.mrb[0].mxu0
        %v7951 = vadd.f32 %v7623, %v7950
        %v7952 = vpop.f32.mrb[0].mxu0
        %7953 = vmatprep.mubr.bf16.mxu0 0
        %7954 = vmatmul.mubr.bf16.gmra.mrb[0].mxu0 %v7569
        %v7955 = vpop.f32.mrb[0].mxu0
        %v7956 = vadd.f32 %v7623, %v7955
        %v7957 = vpop.f32.mrb[0].mxu0
        %v7958 = vpop.f32.mrb[0].mxu0
        %v7959 = vadd.f32 %v7623, %v7958
        %v7960 = vpop.f32.mrb[0].mxu0
        %7961 = vmatprep.mubr.bf16.mxu0 0
        %7962 = vmatmul.mubr.bf16.gmra.mrb[0].mxu0 %v7570
        %v7963 = vpop.f32.mrb[0].mxu0
        %v7964 = vadd.f32 %v7623, %v7963
        %v7965 = vpop.f32.mrb[0].mxu0
        %v7966 = vpop.f32.mrb[0].mxu0
        %v7967 = vadd.f32 %v7623, %v7966
        %v7968 = vpop.f32.mrb[0].mxu0
        %7969 = vmatprep.mubr.bf16.mxu0 0
        %7970 = vmatmul.mubr.bf16.gmra.mrb[0].mxu0 %v7571
        %v7971 = vpop.f32.mrb[0].mxu0
        %v7972 = vadd.f32 %v7623, %v7971
        %v7973 = vpop.f32.mrb[0].mxu0
        %v7974 = vpop.f32.mrb[0].mxu0
        %v7975 = vadd.f32 %v7623, %v7974
        %v7976 = vpop.f32.mrb[0].mxu0
        %7977 = vmatprep.mubr.bf16.mxu0 0
        %7978 = vmatmul.mubr.bf16.gmra.mrb[0].mxu0 %v7572
        %v7979 = vpop.f32.mrb[0].mxu0
        %v7980 = vadd.f32 %v7623, %v7979
        %v7981 = vpop.f32.mrb[0].mxu0
        %v7982 = vpop.f32.mrb[0].mxu0
        %v7983 = vadd.f32 %v7623, %v7982
        %v7984 = vpop.f32.mrb[0].mxu0
        %7985 = vmatprep.mubr.bf16.mxu0 0
        %7986 = vmatmul.mubr.bf16.gmra.mrb[0].mxu0 %v7573
        %v7987 = vpop.f32.mrb[0].mxu0
        %v7988 = vadd.f32 %v7623, %v7987
        %v7989 = vpop.f32.mrb[0].mxu0
        %v7990 = vpop.f32.mrb[0].mxu0
        %v7991 = vadd.f32 %v7623, %v7990
        %v7992 = vpop.f32.mrb[0].mxu0
        %7993 = vmatprep.mubr.bf16.mxu0 0
        %7994 = vmatmul.mubr.bf16.gmra.mrb[0].mxu0 %v7574
        %v7995 = vpop.f32.mrb[0].mxu0
        %v7996 = vadd.f32 %v7623, %v7995
        %v7997 = vpop.f32.mrb[0].mxu0
        %v7998 = vpop.f32.mrb[0].mxu0
        %v7999 = vadd.f32 %v7623, %v7998
        %v8000 = vpop.f32.mrb[0].mxu0
        %8001 = vmatprep.mubr.bf16.mxu0 0
        %8002 = vmatmul.mubr.bf16.gmra.mrb[0].mxu0 %v7575
        %v8003 = vpop.f32.mrb[0].mxu0
        %v8004 = vadd.f32 %v7623, %v8003
        %v8005 = vpop.f32.mrb[0].mxu0
        %v8006 = vpop.f32.mrb[0].mxu0
        %v8007 = vadd.f32 %v7623, %v8006
        %v8008 = vpop.f32.mrb[0].mxu0
        %8009 = vmatprep.mubr.bf16.mxu0 0
        %8010 = vmatmul.mubr.bf16.gmra.mrb[0].mxu0 %v7576
        %v8011 = vpop.f32.mrb[0].mxu0
        %v8012 = vadd.f32 %v7623, %v8011
        %v8013 = vpop.f32.mrb[0].mxu0
        %v8014 = vpop.f32.mrb[0].mxu0
        %v8015 = vadd.f32 %v7623, %v8014
        %v8016 = vpop.f32.mrb[0].mxu0
        %8017 = vmatprep.mubr.bf16.mxu0 0
        %8018 = vmatmul.mubr.bf16.gmra.mrb[0].mxu0 %v7577
        %v8019 = vpop.f32.mrb[0].mxu0
        %v8020 = vadd.f32 %v7623, %v8019
        %v8021 = vpop.f32.mrb[0].mxu0
        %v8022 = vpop.f32.mrb[0].mxu0
        %v8023 = vadd.f32 %v7623, %v8022
        %v8024 = vpop.f32.mrb[0].mxu0
        %8025 = vmatprep.mubr.bf16.mxu0 0
        %8026 = vmatmul.mubr.bf16.gmra.mrb[0].mxu0 %v7578
        %v8027 = vpop.f32.mrb[0].mxu0
        %v8028 = vadd.f32 %v7623, %v8027
        %v8029 = vpop.f32.mrb[0].mxu0
        %v8030 = vpop.f32.mrb[0].mxu0
        %v8031 = vadd.f32 %v7623, %v8030
        %v8032 = vpop.f32.mrb[0].mxu0
        %8033 = vmatprep.mubr.bf16.mxu0 0
        %8034 = vmatmul.mubr.bf16.gmra.mrb[0].mxu0 %v7579
        %v8035 = vpop.f32.mrb[0].mxu0
        %v8036 = vadd.f32 %v7623, %v8035
        %v8037 = vpop.f32.mrb[0].mxu0
        %v8038 = vpop.f32.mrb[0].mxu0
        %v8039 = vadd.f32 %v7623, %v8038
        %v8040 = vpop.f32.mrb[0].mxu0
        %8041 = vmatprep.mubr.bf16.mxu0 0
        %8042 = vmatmul.mubr.bf16.gmra.mrb[0].mxu0 %v7580
        %v8043 = vpop.f32.mrb[0].mxu0
        %v8044 = vadd.f32 %v7623, %v8043
        %v8045 = vpop.f32.mrb[0].mxu0
        %v8046 = vpop.f32.mrb[0].mxu0
        %v8047 = vadd.f32 %v7623, %v8046
        %v8048 = vpop.f32.mrb[0].mxu0
        %8049 = vmatprep.mubr.bf16.mxu0 0
        %8050 = vmatmul.mubr.bf16.gmra.mrb[0].mxu0 %v7581
        %v8051 = vpop.f32.mrb[0].mxu0
        %v8052 = vadd.f32 %v7623, %v8051
        %v8053 = vpop.f32.mrb[0].mxu0
        %v8054 = vpop.f32.mrb[0].mxu0
        %v8055 = vadd.f32 %v7623, %v8054
        %v8056 = vpop.f32.mrb[0].mxu0
        %8057 = vmatprep.mubr.bf16.mxu0 0
        %8058 = vmatmul.mubr.bf16.gmra.mrb[0].mxu0 %v7582
        %v8059 = vpop.f32.mrb[0].mxu0
        %v8060 = vadd.f32 %v7623, %v8059
        %v8061 = vpop.f32.mrb[0].mxu0
        %v8062 = vpop.f32.mrb[0].mxu0
        %v8063 = vadd.f32 %v7623, %v8062
        %v8064 = vpop.f32.mrb[0].mxu0
        %8065 = vmatprep.mubr.bf16.mxu0 0
        %8066 = vmatmul.mubr.bf16.gmra.mrb[0].mxu0 %v7583
        %v8067 = vpop.f32.mrb[0].mxu0
        %v8068 = vadd.f32 %v7623, %v8067
        %v8069 = vpop.f32.mrb[0].mxu0
        %v8070 = vpop.f32.mrb[0].mxu0
        %v8071 = vadd.f32 %v7623, %v8070
        %v8072 = vpop.f32.mrb[0].mxu0
        %8073 = vmatprep.mubr.bf16.mxu0 0
        %8074 = vmatmul.mubr.bf16.gmra.mrb[0].mxu0 %v7584
        %v8075 = vpop.f32.mrb[0].mxu0
        %v8076 = vadd.f32 %v7623, %v8075
        %v8077 = vpop.f32.mrb[0].mxu0
        %v8078 = vpop.f32.mrb[0].mxu0
        %v8079 = vadd.f32 %v7623, %v8078
        %v8080 = vpop.f32.mrb[0].mxu0
        %8081 = vmatprep.mubr.bf16.mxu0 0
        %8082 = vmatmul.mubr.bf16.gmra.mrb[0].mxu0 %v7585
        %v8083 = vpop.f32.mrb[0].mxu0
        %v8084 = vadd.f32 %v7623, %v8083
        %v8085 = vpop.f32.mrb[0].mxu0
        %v8086 = vpop.f32.mrb[0].mxu0
        %v8087 = vadd.f32 %v7623, %v8086
        %v8088 = vpop.f32.mrb[0].mxu0
        %8089 = vmatprep.mubr.bf16.mxu0 0
        %8090 = vmatmul.mubr.bf16.gmra.mrb[0].mxu0 %v7586
        %v8091 = vpop.f32.mrb[0].mxu0
        %v8092 = vadd.f32 %v7623, %v8091
        %v8093 = vpop.f32.mrb[0].mxu0
        %v8094 = vpop.f32.mrb[0].mxu0
        %v8095 = vadd.f32 %v7623, %v8094
        %v8096 = vpop.f32.mrb[0].mxu0
        %8097 = vmatprep.mubr.bf16.mxu0 0
        %8098 = vmatmul.mubr.bf16.gmra.mrb[0].mxu0 %v7587
        %v8099 = vpop.f32.mrb[0].mxu0
        %v8100 = vadd.f32 %v7623, %v8099
        %v8101 = vpop.f32.mrb[0].mxu0
        %v8102 = vpop.f32.mrb[0].mxu0
        %v8103 = vadd.f32 %v7623, %v8102
        %v8104 = vpop.f32.mrb[0].mxu0
        %8105 = vmatprep.mubr.bf16.mxu0 0
        %8106 = vmatmul.mubr.bf16.gmra.mrb[0].mxu0 %v7588
        %v8107 = vpop.f32.mrb[0].mxu0
        %v8108 = vadd.f32 %v7623, %v8107
        %v8109 = vpop.f32.mrb[0].mxu0
        %v8110 = vpop.f32.mrb[0].mxu0
        %v8111 = vadd.f32 %v7623, %v8110
        %v8112 = vpop.f32.mrb[0].mxu0
        %8113 = vmatprep.mubr.bf16.mxu0 0
        %8114 = vmatmul.mubr.bf16.gmra.mrb[0].mxu0 %v7589
        %v8115 = vpop.f32.mrb[0].mxu0
        %v8116 = vadd.f32 %v7623, %v8115
        %v8117 = vpop.f32.mrb[0].mxu0
        %v8118 = vpop.f32.mrb[0].mxu0
        %v8119 = vadd.f32 %v7623, %v8118
        %v8120 = vpop.f32.mrb[0].mxu0
        %8121 = vmatprep.mubr.bf16.mxu0 0
        %8122 = vmatmul.mubr.bf16.gmra.mrb[0].mxu0 %v7590
        %v8123 = vpop.f32.mrb[0].mxu0
        %v8124 = vadd.f32 %v7623, %v8123
        %v8125 = vpop.f32.mrb[0].mxu0
        %v8126 = vpop.f32.mrb[0].mxu0
        %v8127 = vadd.f32 %v7623, %v8126
        %v8128 = vpop.f32.mrb[0].mxu0
        %8129 = vmatprep.mubr.bf16.mxu0 0
        %8130 = vmatmul.mubr.bf16.gmra.mrb[0].mxu0 %v7591
        %v8131 = vpop.f32.mrb[0].mxu0
        %v8132 = vadd.f32 %v7623, %v8131
        %v8133 = vpop.f32.mrb[0].mxu0
        %v8134 = vpop.f32.mrb[0].mxu0
        %v8135 = vadd.f32 %v7623, %v8134
        %v8136 = vpop.f32.mrb[0].mxu0
        %8137 = vmatprep.mubr.bf16.mxu0 0
        %8138 = vmatmul.mubr.bf16.gmra.mrb[0].mxu0 %v7592
        %v8139 = vpop.f32.mrb[0].mxu0
        %v8140 = vadd.f32 %v7623, %v8139
        %v8141 = vpop.f32.mrb[0].mxu0
        %v8142 = vpop.f32.mrb[0].mxu0
        %v8143 = vadd.f32 %v7623, %v8142
        %v8144 = vpop.f32.mrb[0].mxu0
        %8145 = vmatprep.mubr.bf16.mxu0 0
        %8146 = vmatmul.mubr.bf16.gmra.mrb[0].mxu0 %v7593
        %v8147 = vpop.f32.mrb[0].mxu0
        %v8148 = vadd.f32 %v7623, %v8147
        %v8149 = vpop.f32.mrb[0].mxu0
        %v8150 = vpop.f32.mrb[0].mxu0
        %v8151 = vadd.f32 %v7623, %v8150
        %v8152 = vpop.f32.mrb[0].mxu0
        %8153 = vmatprep.mubr.bf16.mxu0 0
        %8154 = vmatmul.mubr.bf16.gmra.mrb[0].mxu0 %v7594
        %v8155 = vpop.f32.mrb[0].mxu0
        %v8156 = vadd.f32 %v7623, %v8155
        %v8157 = vpop.f32.mrb[0].mxu0
        %v8158 = vpop.f32.mrb[0].mxu0
        %v8159 = vadd.f32 %v7623, %v8158
        %v8160 = vpop.f32.mrb[0].mxu0
        %8161 = vmatprep.mubr.bf16.mxu0 0
        %8162 = vmatmul.mubr.bf16.gmra.mrb[0].mxu0 %v7595
        %v8163 = vpop.f32.mrb[0].mxu0
        %v8164 = vadd.f32 %v7623, %v8163
        %v8165 = vpop.f32.mrb[0].mxu0
        %v8166 = vpop.f32.mrb[0].mxu0
        %v8167 = vadd.f32 %v7623, %v8166
        %v8168 = vpop.f32.mrb[0].mxu0
        %8169 = vmatprep.mubr.bf16.mxu0 0
        %8170 = vmatmul.mubr.bf16.gmra.mrb[0].mxu0 %v7596
        %v8171 = vpop.f32.mrb[0].mxu0
        %v8172 = vadd.f32 %v7623, %v8171
        %v8173 = vpop.f32.mrb[0].mxu0
        %v8174 = vpop.f32.mrb[0].mxu0
        %v8175 = vadd.f32 %v7623, %v8174
        %v8176 = vpop.f32.mrb[0].mxu0
        %8177 = vmatprep.mubr.bf16.mxu0 0
        %8178 = vmatmul.mubr.bf16.gmra.mrb[0].mxu0 %v7597
        %v8179 = vpop.f32.mrb[0].mxu0
        %v8180 = vadd.f32 %v7623, %v8179
        %v8181 = vpop.f32.mrb[0].mxu0
        %v8182 = vpop.f32.mrb[0].mxu0
        %v8183 = vadd.f32 %v7623, %v8182
        %v8184 = vpop.f32.mrb[0].mxu0
        %8185 = vmatprep.mubr.bf16.mxu0 0
        %8186 = vmatmul.mubr.bf16.gmra.mrb[0].mxu0 %v7598
        %v8187 = vpop.f32.mrb[0].mxu0
        %v8188 = vadd.f32 %v7623, %v8187
        %v8189 = vpop.f32.mrb[0].mxu0
        %v8190 = vpop.f32.mrb[0].mxu0
        %v8191 = vadd.f32 %v7623, %v8190
        %v8192 = vpop.f32.mrb[0].mxu0
        %8193 = vmatprep.mubr.bf16.mxu0 0
        %8194 = vmatmul.mubr.bf16.gmra.mrb[0].mxu0 %v7599
        %v8195 = vpop.f32.mrb[0].mxu0
        %v8196 = vadd.f32 %v7623, %v8195
        %v8197 = vpop.f32.mrb[0].mxu0
        %v8198 = vpop.f32.mrb[0].mxu0
        %v8199 = vadd.f32 %v7623, %v8198
        %v8200 = vpop.f32.mrb[0].mxu0
        %8201 = vmatprep.mubr.bf16.mxu0 0
        %8202 = vmatmul.mubr.bf16.gmra.mrb[0].mxu0 %v7600
        %v8203 = vpop.f32.mrb[0].mxu0
        %v8204 = vadd.f32 %v7623, %v8203
        %v8205 = vpop.f32.mrb[0].mxu0
        %v8206 = vpop.f32.mrb[0].mxu0
        %v8207 = vadd.f32 %v7623, %v8206
        %v8208 = vpop.f32.mrb[0].mxu0
        %8209 = vmatprep.mubr.bf16.mxu0 0
        %8210 = vmatmul.mubr.bf16.gmra.mrb[0].mxu0 %v7601
        %v8211 = vpop.f32.mrb[0].mxu0
        %v8212 = vadd.f32 %v7623, %v8211
        %v8213 = vpop.f32.mrb[0].mxu0
        %v8214 = vpop.f32.mrb[0].mxu0
        %v8215 = vadd.f32 %v7623, %v8214
        %v8216 = vpop.f32.mrb[0].mxu0
        %8217 = vdwg.mxu0
        %8218 = vst.msk [vmem:[%s675] sm:$0xff] %vm2663, %v3939
        %8219 = vst.msk [vmem:[%s675 + $0x8] sm:$0xff] %vm2663, %v3942
        %8220 = vst.msk [vmem:[%s675 + $0x10] sm:$0xff] %vm2663, %v3947
        %8221 = vst.msk [vmem:[%s675 + $0x18] sm:$0xff] %vm2663, %v3950
        %8222 = vst.msk [vmem:[%s675 + $0x20] sm:$0xff] %vm2663, %v3955
        %8223 = vst.msk [vmem:[%s675 + $0x28] sm:$0xff] %vm2663, %v3958
        %8224 = vst.msk [vmem:[%s675 + $0x30] sm:$0xff] %vm2663, %v3963
        %8225 = vst.msk [vmem:[%s675 + $0x38] sm:$0xff] %vm2663, %v3966
        %8226 = vst.msk [vmem:[%s675 + $0x40] sm:$0xff] %vm2663, %v3971
        %8227 = vst.msk [vmem:[%s675 + $0x48] sm:$0xff] %vm2663, %v3974
        %8228 = vst.msk [vmem:[%s675 + $0x50] sm:$0xff] %vm2663, %v3979
        %8229 = vst.msk [vmem:[%s675 + $0x58] sm:$0xff] %vm2663, %v3982
        %8230 = vst.msk [vmem:[%s675 + $0x60] sm:$0xff] %vm2663, %v3987
        %8231 = vst.msk [vmem:[%s675 + $0x68] sm:$0xff] %vm2663, %v3990
        %8232 = vst.msk [vmem:[%s675 + $0x70] sm:$0xff] %vm2663, %v3995
        %8233 = vst.msk [vmem:[%s675 + $0x78] sm:$0xff] %vm2663, %v3998
        %8234 = vst.msk [vmem:[%s675 + $0x80] sm:$0xff] %vm2663, %v4003
        %8235 = vst.msk [vmem:[%s675 + $0x88] sm:$0xff] %vm2663, %v4006
        %8236 = vst.msk [vmem:[%s675 + $0x90] sm:$0xff] %vm2663, %v4011
        %8237 = vst.msk [vmem:[%s675 + $0x98] sm:$0xff] %vm2663, %v4014
        %8238 = vst.msk [vmem:[%s675 + $0xa0] sm:$0xff] %vm2663, %v4019
        %8239 = vst.msk [vmem:[%s675 + $0xa8] sm:$0xff] %vm2663, %v4022
        %8240 = vst.msk [vmem:[%s675 + $0xb0] sm:$0xff] %vm2663, %v4027
        %8241 = vst.msk [vmem:[%s675 + $0xb8] sm:$0xff] %vm2663, %v4030
        %8242 = vst.msk [vmem:[%s675 + $0xc0] sm:$0xff] %vm2663, %v4035
        %8243 = vst.msk [vmem:[%s675 + $0xc8] sm:$0xff] %vm2663, %v4038
        %8244 = vst.msk [vmem:[%s675 + $0xd0] sm:$0xff] %vm2663, %v4043
        %8245 = vst.msk [vmem:[%s675 + $0xd8] sm:$0xff] %vm2663, %v4046
        %8246 = vst.msk [vmem:[%s675 + $0xe0] sm:$0xff] %vm2663, %v4051
        %8247 = vst.msk [vmem:[%s675 + $0xe8] sm:$0xff] %vm2663, %v4054
        %8248 = vst.msk [vmem:[%s675 + $0xf0] sm:$0xff] %vm2663, %v4059
        %8249 = vst.msk [vmem:[%s675 + $0xf8] sm:$0xff] %vm2663, %v4062
        %8250 = vst.msk [vmem:[%s675 + $0x100] sm:$0xff] %vm2663, %v4067
        %8251 = vst.msk [vmem:[%s675 + $0x108] sm:$0xff] %vm2663, %v4070
        %8252 = vst.msk [vmem:[%s675 + $0x110] sm:$0xff] %vm2663, %v4075
        %8253 = vst.msk [vmem:[%s675 + $0x118] sm:$0xff] %vm2663, %v4078
        %8254 = vst.msk [vmem:[%s675 + $0x120] sm:$0xff] %vm2663, %v4083
        %8255 = vst.msk [vmem:[%s675 + $0x128] sm:$0xff] %vm2663, %v4086
        %8256 = vst.msk [vmem:[%s675 + $0x130] sm:$0xff] %vm2663, %v4091
        %8257 = vst.msk [vmem:[%s675 + $0x138] sm:$0xff] %vm2663, %v4094
        %8258 = vst.msk [vmem:[%s675 + $0x140] sm:$0xff] %vm2663, %v4099
        %8259 = vst.msk [vmem:[%s675 + $0x148] sm:$0xff] %vm2663, %v4102
        %8260 = vst.msk [vmem:[%s675 + $0x150] sm:$0xff] %vm2663, %v4107
        %8261 = vst.msk [vmem:[%s675 + $0x158] sm:$0xff] %vm2663, %v4110
        %8262 = vst.msk [vmem:[%s675 + $0x160] sm:$0xff] %vm2663, %v4115
        %8263 = vst.msk [vmem:[%s675 + $0x168] sm:$0xff] %vm2663, %v4118
        %8264 = vst.msk [vmem:[%s675 + $0x170] sm:$0xff] %vm2663, %v4123
        %8265 = vst.msk [vmem:[%s675 + $0x178] sm:$0xff] %vm2663, %v4126
        %8266 = vst.msk [vmem:[%s675 + $0x180] sm:$0xff] %vm2663, %v4131
        %8267 = vst.msk [vmem:[%s675 + $0x188] sm:$0xff] %vm2663, %v4134
        %8268 = vst.msk [vmem:[%s675 + $0x190] sm:$0xff] %vm2663, %v4139
        %8269 = vst.msk [vmem:[%s675 + $0x198] sm:$0xff] %vm2663, %v4142
        %8270 = vst.msk [vmem:[%s675 + $0x1a0] sm:$0xff] %vm2663, %v4147
        %8271 = vst.msk [vmem:[%s675 + $0x1a8] sm:$0xff] %vm2663, %v4150
        %8272 = vst.msk [vmem:[%s675 + $0x1b0] sm:$0xff] %vm2663, %v4155
        %8273 = vst.msk [vmem:[%s675 + $0x1b8] sm:$0xff] %vm2663, %v4158
        %8274 = vst.msk [vmem:[%s675 + $0x1c0] sm:$0xff] %vm2663, %v4163
        %8275 = vst.msk [vmem:[%s675 + $0x1c8] sm:$0xff] %vm2663, %v4166
        %8276 = vst.msk [vmem:[%s675 + $0x1d0] sm:$0xff] %vm2663, %v4171
        %8277 = vst.msk [vmem:[%s675 + $0x1d8] sm:$0xff] %vm2663, %v4174
        %8278 = vst.msk [vmem:[%s675 + $0x1e0] sm:$0xff] %vm2663, %v4179
        %8279 = vst.msk [vmem:[%s675 + $0x1e8] sm:$0xff] %vm2663, %v4182
        %8280 = vst.msk [vmem:[%s675 + $0x1f0] sm:$0xff] %vm2663, %v4187
        %8281 = vst.msk [vmem:[%s675 + $0x1f8] sm:$0xff] %vm2663, %v4190
        %8282 = vst.msk [vmem:[%s675 + $0x200] sm:$0xff] %vm2663, %v4195
        %8283 = vst.msk [vmem:[%s675 + $0x208] sm:$0xff] %vm2663, %v4198
        %8284 = vst.msk [vmem:[%s675 + $0x210] sm:$0xff] %vm2663, %v4203
        %8285 = vst.msk [vmem:[%s675 + $0x218] sm:$0xff] %vm2663, %v4206
        %8286 = vst.msk [vmem:[%s675 + $0x220] sm:$0xff] %vm2663, %v4211
        %8287 = vst.msk [vmem:[%s675 + $0x228] sm:$0xff] %vm2663, %v4214
        %8288 = vst.msk [vmem:[%s675 + $0x230] sm:$0xff] %vm2663, %v4219
        %8289 = vst.msk [vmem:[%s675 + $0x238] sm:$0xff] %vm2663, %v4222
        %8290 = vst.msk [vmem:[%s675 + $0x240] sm:$0xff] %vm2663, %v4227
        %8291 = vst.msk [vmem:[%s675 + $0x248] sm:$0xff] %vm2663, %v4230
        %8292 = vst.msk [vmem:[%s675 + $0x250] sm:$0xff] %vm2663, %v4235
        %8293 = vst.msk [vmem:[%s675 + $0x258] sm:$0xff] %vm2663, %v4238
        %8294 = vst.msk [vmem:[%s675 + $0x260] sm:$0xff] %vm2663, %v4243
        %8295 = vst.msk [vmem:[%s675 + $0x268] sm:$0xff] %vm2663, %v4246
        %8296 = vst.msk [vmem:[%s675 + $0x270] sm:$0xff] %vm2663, %v4251
        %8297 = vst.msk [vmem:[%s675 + $0x278] sm:$0xff] %vm2663, %v4254
        %8298 = vst.msk [vmem:[%s675 + $0x280] sm:$0xff] %vm2663, %v4259
        %8299 = vst.msk [vmem:[%s675 + $0x288] sm:$0xff] %vm2663, %v4262
        %8300 = vst.msk [vmem:[%s675 + $0x290] sm:$0xff] %vm2663, %v4267
        %8301 = vst.msk [vmem:[%s675 + $0x298] sm:$0xff] %vm2663, %v4270
        %8302 = vst.msk [vmem:[%s675 + $0x2a0] sm:$0xff] %vm2663, %v4275
        %8303 = vst.msk [vmem:[%s675 + $0x2a8] sm:$0xff] %vm2663, %v4278
        %8304 = vst.msk [vmem:[%s675 + $0x2b0] sm:$0xff] %vm2663, %v4283
        %8305 = vst.msk [vmem:[%s675 + $0x2b8] sm:$0xff] %vm2663, %v4286
        %8306 = vst.msk [vmem:[%s675 + $0x2c0] sm:$0xff] %vm2663, %v4291
        %8307 = vst.msk [vmem:[%s675 + $0x2c8] sm:$0xff] %vm2663, %v4294
        %8308 = vst.msk [vmem:[%s675 + $0x2d0] sm:$0xff] %vm2663, %v4299
        %8309 = vst.msk [vmem:[%s675 + $0x2d8] sm:$0xff] %vm2663, %v4302
        %8310 = vst.msk [vmem:[%s675 + $0x2e0] sm:$0xff] %vm2663, %v4307
        %8311 = vst.msk [vmem:[%s675 + $0x2e8] sm:$0xff] %vm2663, %v4310
        %8312 = vst.msk [vmem:[%s675 + $0x2f0] sm:$0xff] %vm2663, %v4315
        %8313 = vst.msk [vmem:[%s675 + $0x2f8] sm:$0xff] %vm2663, %v4318
        %8314 = vst.msk [vmem:[%s675 + $0x300] sm:$0xff] %vm2663, %v4323
        %8315 = vst.msk [vmem:[%s675 + $0x308] sm:$0xff] %vm2663, %v4326
        %8316 = vst.msk [vmem:[%s675 + $0x310] sm:$0xff] %vm2663, %v4331
        %8317 = vst.msk [vmem:[%s675 + $0x318] sm:$0xff] %vm2663, %v4334
        %8318 = vst.msk [vmem:[%s675 + $0x320] sm:$0xff] %vm2663, %v4339
        %8319 = vst.msk [vmem:[%s675 + $0x328] sm:$0xff] %vm2663, %v4342
        %8320 = vst.msk [vmem:[%s675 + $0x330] sm:$0xff] %vm2663, %v4347
        %8321 = vst.msk [vmem:[%s675 + $0x338] sm:$0xff] %vm2663, %v4350
        %8322 = vst.msk [vmem:[%s675 + $0x340] sm:$0xff] %vm2663, %v4355
        %8323 = vst.msk [vmem:[%s675 + $0x348] sm:$0xff] %vm2663, %v4358
        %8324 = vst.msk [vmem:[%s675 + $0x350] sm:$0xff] %vm2663, %v4363
        %8325 = vst.msk [vmem:[%s675 + $0x358] sm:$0xff] %vm2663, %v4366
        %8326 = vst.msk [vmem:[%s675 + $0x360] sm:$0xff] %vm2663, %v4371
        %8327 = vst.msk [vmem:[%s675 + $0x368] sm:$0xff] %vm2663, %v4374
        %8328 = vst.msk [vmem:[%s675 + $0x370] sm:$0xff] %vm2663, %v4379
        %8329 = vst.msk [vmem:[%s675 + $0x378] sm:$0xff] %vm2663, %v4382
        %8330 = vst.msk [vmem:[%s675 + $0x380] sm:$0xff] %vm2663, %v4387
        %8331 = vst.msk [vmem:[%s675 + $0x388] sm:$0xff] %vm2663, %v4390
        %8332 = vst.msk [vmem:[%s675 + $0x390] sm:$0xff] %vm2663, %v4395
        %8333 = vst.msk [vmem:[%s675 + $0x398] sm:$0xff] %vm2663, %v4398
        %8334 = vst.msk [vmem:[%s675 + $0x3a0] sm:$0xff] %vm2663, %v4403
        %8335 = vst.msk [vmem:[%s675 + $0x3a8] sm:$0xff] %vm2663, %v4406
        %8336 = vst.msk [vmem:[%s675 + $0x3b0] sm:$0xff] %vm2663, %v4411
        %8337 = vst.msk [vmem:[%s675 + $0x3b8] sm:$0xff] %vm2663, %v4414
        %8338 = vst.msk [vmem:[%s675 + $0x3c0] sm:$0xff] %vm2663, %v4419
        %8339 = vst.msk [vmem:[%s675 + $0x3c8] sm:$0xff] %vm2663, %v4422
        %8340 = vst.msk [vmem:[%s675 + $0x3d0] sm:$0xff] %vm2663, %v4427
        %8341 = vst.msk [vmem:[%s675 + $0x3d8] sm:$0xff] %vm2663, %v4430
        %8342 = vst.msk [vmem:[%s675 + $0x3e0] sm:$0xff] %vm2663, %v4435
        %8343 = vst.msk [vmem:[%s675 + $0x3e8] sm:$0xff] %vm2663, %v4438
        %8344 = vst.msk [vmem:[%s675 + $0x3f0] sm:$0xff] %vm2663, %v4443
        %8345 = vst.msk [vmem:[%s675 + $0x3f8] sm:$0xff] %vm2663, %v4446
        %8474 = vrot.lane.b32.xlu0 %v7708, 32
        %v8475 = vpop.permute.xlu0 %8474
        %8476 = vrot.lane.b32.xlu0 %v7711, 32
        %v8477 = vpop.permute.xlu0 %8476
        %8478 = vrot.lane.b32.xlu0 %v7716, 32
        %v8479 = vpop.permute.xlu0 %8478
        %8480 = vrot.lane.b32.xlu0 %v7719, 32
        %v8481 = vpop.permute.xlu0 %8480
        %8482 = vrot.lane.b32.xlu0 %v7724, 32
        %v8483 = vpop.permute.xlu0 %8482
        %8484 = vrot.lane.b32.xlu0 %v7727, 32
        %v8485 = vpop.permute.xlu0 %8484
        %8486 = vrot.lane.b32.xlu0 %v7732, 32
        %v8487 = vpop.permute.xlu0 %8486
        %8488 = vrot.lane.b32.xlu0 %v7735, 32
        %v8489 = vpop.permute.xlu0 %8488
        %8490 = vrot.lane.b32.xlu0 %v7740, 32
        %v8491 = vpop.permute.xlu0 %8490
        %8492 = vrot.lane.b32.xlu0 %v7743, 32
        %v8493 = vpop.permute.xlu0 %8492
        %8494 = vrot.lane.b32.xlu0 %v7748, 32
        %v8495 = vpop.permute.xlu0 %8494
        %8496 = vrot.lane.b32.xlu0 %v7751, 32
        %v8497 = vpop.permute.xlu0 %8496
        %8498 = vrot.lane.b32.xlu0 %v7756, 32
        %v8499 = vpop.permute.xlu0 %8498
        %8500 = vrot.lane.b32.xlu0 %v7759, 32
        %v8501 = vpop.permute.xlu0 %8500
        %8502 = vrot.lane.b32.xlu0 %v7764, 32
        %v8503 = vpop.permute.xlu0 %8502
        %8504 = vrot.lane.b32.xlu0 %v7767, 32
        %v8505 = vpop.permute.xlu0 %8504
        %8506 = vrot.lane.b32.xlu0 %v7772, 32
        %v8507 = vpop.permute.xlu0 %8506
        %8508 = vrot.lane.b32.xlu0 %v7775, 32
        %v8509 = vpop.permute.xlu0 %8508
        %8510 = vrot.lane.b32.xlu0 %v7780, 32
        %v8511 = vpop.permute.xlu0 %8510
        %8512 = vrot.lane.b32.xlu0 %v7783, 32
        %v8513 = vpop.permute.xlu0 %8512
        %8514 = vrot.lane.b32.xlu0 %v7788, 32
        %v8515 = vpop.permute.xlu0 %8514
        %8516 = vrot.lane.b32.xlu0 %v7791, 32
        %v8517 = vpop.permute.xlu0 %8516
        %8518 = vrot.lane.b32.xlu0 %v7796, 32
        %v8519 = vpop.permute.xlu0 %8518
        %8520 = vrot.lane.b32.xlu0 %v7799, 32
        %v8521 = vpop.permute.xlu0 %8520
        %8522 = vrot.lane.b32.xlu0 %v7804, 32
        %v8523 = vpop.permute.xlu0 %8522
        %8524 = vrot.lane.b32.xlu0 %v7807, 32
        %v8525 = vpop.permute.xlu0 %8524
        %8526 = vrot.lane.b32.xlu0 %v7812, 32
        %v8527 = vpop.permute.xlu0 %8526
        %8528 = vrot.lane.b32.xlu0 %v7815, 32
        %v8529 = vpop.permute.xlu0 %8528
        %8530 = vrot.lane.b32.xlu0 %v7820, 32
        %v8531 = vpop.permute.xlu0 %8530
        %8532 = vrot.lane.b32.xlu0 %v7823, 32
        %v8533 = vpop.permute.xlu0 %8532
        %8534 = vrot.lane.b32.xlu0 %v7828, 32
        %v8535 = vpop.permute.xlu0 %8534
        %8536 = vrot.lane.b32.xlu0 %v7831, 32
        %v8537 = vpop.permute.xlu0 %8536
        %8538 = vrot.lane.b32.xlu0 %v7836, 32
        %v8539 = vpop.permute.xlu0 %8538
        %8540 = vrot.lane.b32.xlu0 %v7839, 32
        %v8541 = vpop.permute.xlu0 %8540
        %8542 = vrot.lane.b32.xlu0 %v7844, 32
        %v8543 = vpop.permute.xlu0 %8542
        %8544 = vrot.lane.b32.xlu0 %v7847, 32
        %v8545 = vpop.permute.xlu0 %8544
        %8546 = vrot.lane.b32.xlu0 %v7852, 32
        %v8547 = vpop.permute.xlu0 %8546
        %8548 = vrot.lane.b32.xlu0 %v7855, 32
        %v8549 = vpop.permute.xlu0 %8548
        %8550 = vrot.lane.b32.xlu0 %v7860, 32
        %v8551 = vpop.permute.xlu0 %8550
        %8552 = vrot.lane.b32.xlu0 %v7863, 32
        %v8553 = vpop.permute.xlu0 %8552
        %8554 = vrot.lane.b32.xlu0 %v7868, 32
        %v8555 = vpop.permute.xlu0 %8554
        %8556 = vrot.lane.b32.xlu0 %v7871, 32
        %v8557 = vpop.permute.xlu0 %8556
        %8558 = vrot.lane.b32.xlu0 %v7876, 32
        %v8559 = vpop.permute.xlu0 %8558
        %8560 = vrot.lane.b32.xlu0 %v7879, 32
        %v8561 = vpop.permute.xlu0 %8560
        %8562 = vrot.lane.b32.xlu0 %v7884, 32
        %v8563 = vpop.permute.xlu0 %8562
        %8564 = vrot.lane.b32.xlu0 %v7887, 32
        %v8565 = vpop.permute.xlu0 %8564
        %8566 = vrot.lane.b32.xlu0 %v7892, 32
        %v8567 = vpop.permute.xlu0 %8566
        %8568 = vrot.lane.b32.xlu0 %v7895, 32
        %v8569 = vpop.permute.xlu0 %8568
        %8570 = vrot.lane.b32.xlu0 %v7900, 32
        %v8571 = vpop.permute.xlu0 %8570
        %8572 = vrot.lane.b32.xlu0 %v7903, 32
        %v8573 = vpop.permute.xlu0 %8572
        %8574 = vrot.lane.b32.xlu0 %v7908, 32
        %v8575 = vpop.permute.xlu0 %8574
        %8576 = vrot.lane.b32.xlu0 %v7911, 32
        %v8577 = vpop.permute.xlu0 %8576
        %8578 = vrot.lane.b32.xlu0 %v7916, 32
        %v8579 = vpop.permute.xlu0 %8578
        %8580 = vrot.lane.b32.xlu0 %v7919, 32
        %v8581 = vpop.permute.xlu0 %8580
        %8582 = vrot.lane.b32.xlu0 %v7924, 32
        %v8583 = vpop.permute.xlu0 %8582
        %8584 = vrot.lane.b32.xlu0 %v7927, 32
        %v8585 = vpop.permute.xlu0 %8584
        %8586 = vrot.lane.b32.xlu0 %v7932, 32
        %v8587 = vpop.permute.xlu0 %8586
        %8588 = vrot.lane.b32.xlu0 %v7935, 32
        %v8589 = vpop.permute.xlu0 %8588
        %8590 = vrot.lane.b32.xlu0 %v7940, 32
        %v8591 = vpop.permute.xlu0 %8590
        %8592 = vrot.lane.b32.xlu0 %v7943, 32
        %v8593 = vpop.permute.xlu0 %8592
        %8594 = vrot.lane.b32.xlu0 %v7948, 32
        %v8595 = vpop.permute.xlu0 %8594
        %8596 = vrot.lane.b32.xlu0 %v7951, 32
        %v8597 = vpop.permute.xlu0 %8596
        %8598 = vrot.lane.b32.xlu0 %v7956, 32
        %v8599 = vpop.permute.xlu0 %8598
        %8600 = vrot.lane.b32.xlu0 %v7959, 32
        %v8601 = vpop.permute.xlu0 %8600
        %8602 = vrot.lane.b32.xlu0 %v7964, 32
        %v8603 = vpop.permute.xlu0 %8602
        %8604 = vrot.lane.b32.xlu0 %v7967, 32
        %v8605 = vpop.permute.xlu0 %8604
        %8606 = vrot.lane.b32.xlu0 %v7972, 32
        %v8607 = vpop.permute.xlu0 %8606
        %8608 = vrot.lane.b32.xlu0 %v7975, 32
        %v8609 = vpop.permute.xlu0 %8608
        %8610 = vrot.lane.b32.xlu0 %v7980, 32
        %v8611 = vpop.permute.xlu0 %8610
        %8612 = vrot.lane.b32.xlu0 %v7983, 32
        %v8613 = vpop.permute.xlu0 %8612
        %8614 = vrot.lane.b32.xlu0 %v7988, 32
        %v8615 = vpop.permute.xlu0 %8614
        %8616 = vrot.lane.b32.xlu0 %v7991, 32
        %v8617 = vpop.permute.xlu0 %8616
        %8618 = vrot.lane.b32.xlu0 %v7996, 32
        %v8619 = vpop.permute.xlu0 %8618
        %8620 = vrot.lane.b32.xlu0 %v7999, 32
        %v8621 = vpop.permute.xlu0 %8620
        %8622 = vrot.lane.b32.xlu0 %v8004, 32
        %v8623 = vpop.permute.xlu0 %8622
        %8624 = vrot.lane.b32.xlu0 %v8007, 32
        %v8625 = vpop.permute.xlu0 %8624
        %8626 = vrot.lane.b32.xlu0 %v8012, 32
        %v8627 = vpop.permute.xlu0 %8626
        %8628 = vrot.lane.b32.xlu0 %v8015, 32
        %v8629 = vpop.permute.xlu0 %8628
        %8630 = vrot.lane.b32.xlu0 %v8020, 32
        %v8631 = vpop.permute.xlu0 %8630
        %8632 = vrot.lane.b32.xlu0 %v8023, 32
        %v8633 = vpop.permute.xlu0 %8632
        %8634 = vrot.lane.b32.xlu0 %v8028, 32
        %v8635 = vpop.permute.xlu0 %8634
        %8636 = vrot.lane.b32.xlu0 %v8031, 32
        %v8637 = vpop.permute.xlu0 %8636
        %8638 = vrot.lane.b32.xlu0 %v8036, 32
        %v8639 = vpop.permute.xlu0 %8638
        %8640 = vrot.lane.b32.xlu0 %v8039, 32
        %v8641 = vpop.permute.xlu0 %8640
        %8642 = vrot.lane.b32.xlu0 %v8044, 32
        %v8643 = vpop.permute.xlu0 %8642
        %8644 = vrot.lane.b32.xlu0 %v8047, 32
        %v8645 = vpop.permute.xlu0 %8644
        %8646 = vrot.lane.b32.xlu0 %v8052, 32
        %v8647 = vpop.permute.xlu0 %8646
        %8648 = vrot.lane.b32.xlu0 %v8055, 32
        %v8649 = vpop.permute.xlu0 %8648
        %8650 = vrot.lane.b32.xlu0 %v8060, 32
        %v8651 = vpop.permute.xlu0 %8650
        %8652 = vrot.lane.b32.xlu0 %v8063, 32
        %v8653 = vpop.permute.xlu0 %8652
        %8654 = vrot.lane.b32.xlu0 %v8068, 32
        %v8655 = vpop.permute.xlu0 %8654
        %8656 = vrot.lane.b32.xlu0 %v8071, 32
        %v8657 = vpop.permute.xlu0 %8656
        %8658 = vrot.lane.b32.xlu0 %v8076, 32
        %v8659 = vpop.permute.xlu0 %8658
        %8660 = vrot.lane.b32.xlu0 %v8079, 32
        %v8661 = vpop.permute.xlu0 %8660
        %8662 = vrot.lane.b32.xlu0 %v8084, 32
        %v8663 = vpop.permute.xlu0 %8662
        %8664 = vrot.lane.b32.xlu0 %v8087, 32
        %v8665 = vpop.permute.xlu0 %8664
        %8666 = vrot.lane.b32.xlu0 %v8092, 32
        %v8667 = vpop.permute.xlu0 %8666
        %8668 = vrot.lane.b32.xlu0 %v8095, 32
        %v8669 = vpop.permute.xlu0 %8668
        %8670 = vrot.lane.b32.xlu0 %v8100, 32
        %v8671 = vpop.permute.xlu0 %8670
        %8672 = vrot.lane.b32.xlu0 %v8103, 32
        %v8673 = vpop.permute.xlu0 %8672
        %8674 = vrot.lane.b32.xlu0 %v8108, 32
        %v8675 = vpop.permute.xlu0 %8674
        %8676 = vrot.lane.b32.xlu0 %v8111, 32
        %v8677 = vpop.permute.xlu0 %8676
        %8678 = vrot.lane.b32.xlu0 %v8116, 32
        %v8679 = vpop.permute.xlu0 %8678
        %8680 = vrot.lane.b32.xlu0 %v8119, 32
        %v8681 = vpop.permute.xlu0 %8680
        %8682 = vrot.lane.b32.xlu0 %v8124, 32
        %v8683 = vpop.permute.xlu0 %8682
        %8684 = vrot.lane.b32.xlu0 %v8127, 32
        %v8685 = vpop.permute.xlu0 %8684
        %8686 = vrot.lane.b32.xlu0 %v8132, 32
        %v8687 = vpop.permute.xlu0 %8686
        %8688 = vrot.lane.b32.xlu0 %v8135, 32
        %v8689 = vpop.permute.xlu0 %8688
        %8690 = vrot.lane.b32.xlu0 %v8140, 32
        %v8691 = vpop.permute.xlu0 %8690
        %8692 = vrot.lane.b32.xlu0 %v8143, 32
        %v8693 = vpop.permute.xlu0 %8692
        %8694 = vrot.lane.b32.xlu0 %v8148, 32
        %v8695 = vpop.permute.xlu0 %8694
        %8696 = vrot.lane.b32.xlu0 %v8151, 32
        %v8697 = vpop.permute.xlu0 %8696
        %8698 = vrot.lane.b32.xlu0 %v8156, 32
        %v8699 = vpop.permute.xlu0 %8698
        %8700 = vrot.lane.b32.xlu0 %v8159, 32
        %v8701 = vpop.permute.xlu0 %8700
        %8702 = vrot.lane.b32.xlu0 %v8164, 32
        %v8703 = vpop.permute.xlu0 %8702
        %8704 = vrot.lane.b32.xlu0 %v8167, 32
        %v8705 = vpop.permute.xlu0 %8704
        %8706 = vrot.lane.b32.xlu0 %v8172, 32
        %v8707 = vpop.permute.xlu0 %8706
        %8708 = vrot.lane.b32.xlu0 %v8175, 32
        %v8709 = vpop.permute.xlu0 %8708
        %8710 = vrot.lane.b32.xlu0 %v8180, 32
        %v8711 = vpop.permute.xlu0 %8710
        %8712 = vrot.lane.b32.xlu0 %v8183, 32
        %v8713 = vpop.permute.xlu0 %8712
        %8714 = vrot.lane.b32.xlu0 %v8188, 32
        %v8715 = vpop.permute.xlu0 %8714
        %8716 = vrot.lane.b32.xlu0 %v8191, 32
        %v8717 = vpop.permute.xlu0 %8716
        %8718 = vrot.lane.b32.xlu0 %v8196, 32
        %v8719 = vpop.permute.xlu0 %8718
        %8720 = vrot.lane.b32.xlu0 %v8199, 32
        %v8721 = vpop.permute.xlu0 %8720
        %8722 = vrot.lane.b32.xlu0 %v8204, 32
        %v8723 = vpop.permute.xlu0 %8722
        %8724 = vrot.lane.b32.xlu0 %v8207, 32
        %v8725 = vpop.permute.xlu0 %8724
        %8726 = vrot.lane.b32.xlu0 %v8212, 32
        %v8727 = vpop.permute.xlu0 %8726
        %8728 = vrot.lane.b32.xlu0 %v8215, 32
        %v8729 = vpop.permute.xlu0 %8728
        %vm8858 = vcmask 523520
        %8859 = vst.msk [vmem:[%s675] sm:$0xff] %vm8858, %v8475
        %8860 = vst.msk [vmem:[%s675 + $0x8] sm:$0xff] %vm8858, %v8477
        %8861 = vst.msk [vmem:[%s675 + $0x10] sm:$0xff] %vm8858, %v8479
        %8862 = vst.msk [vmem:[%s675 + $0x18] sm:$0xff] %vm8858, %v8481
        %8863 = vst.msk [vmem:[%s675 + $0x20] sm:$0xff] %vm8858, %v8483
        %8864 = vst.msk [vmem:[%s675 + $0x28] sm:$0xff] %vm8858, %v8485
        %8865 = vst.msk [vmem:[%s675 + $0x30] sm:$0xff] %vm8858, %v8487
        %8866 = vst.msk [vmem:[%s675 + $0x38] sm:$0xff] %vm8858, %v8489
        %8867 = vst.msk [vmem:[%s675 + $0x40] sm:$0xff] %vm8858, %v8491
        %8868 = vst.msk [vmem:[%s675 + $0x48] sm:$0xff] %vm8858, %v8493
        %8869 = vst.msk [vmem:[%s675 + $0x50] sm:$0xff] %vm8858, %v8495
        %8870 = vst.msk [vmem:[%s675 + $0x58] sm:$0xff] %vm8858, %v8497
        %8871 = vst.msk [vmem:[%s675 + $0x60] sm:$0xff] %vm8858, %v8499
        %8872 = vst.msk [vmem:[%s675 + $0x68] sm:$0xff] %vm8858, %v8501
        %8873 = vst.msk [vmem:[%s675 + $0x70] sm:$0xff] %vm8858, %v8503
        %8874 = vst.msk [vmem:[%s675 + $0x78] sm:$0xff] %vm8858, %v8505
        %8875 = vst.msk [vmem:[%s675 + $0x80] sm:$0xff] %vm8858, %v8507
        %8876 = vst.msk [vmem:[%s675 + $0x88] sm:$0xff] %vm8858, %v8509
        %8877 = vst.msk [vmem:[%s675 + $0x90] sm:$0xff] %vm8858, %v8511
        %8878 = vst.msk [vmem:[%s675 + $0x98] sm:$0xff] %vm8858, %v8513
        %8879 = vst.msk [vmem:[%s675 + $0xa0] sm:$0xff] %vm8858, %v8515
        %8880 = vst.msk [vmem:[%s675 + $0xa8] sm:$0xff] %vm8858, %v8517
        %8881 = vst.msk [vmem:[%s675 + $0xb0] sm:$0xff] %vm8858, %v8519
        %8882 = vst.msk [vmem:[%s675 + $0xb8] sm:$0xff] %vm8858, %v8521
        %8883 = vst.msk [vmem:[%s675 + $0xc0] sm:$0xff] %vm8858, %v8523
        %8884 = vst.msk [vmem:[%s675 + $0xc8] sm:$0xff] %vm8858, %v8525
        %8885 = vst.msk [vmem:[%s675 + $0xd0] sm:$0xff] %vm8858, %v8527
        %8886 = vst.msk [vmem:[%s675 + $0xd8] sm:$0xff] %vm8858, %v8529
        %8887 = vst.msk [vmem:[%s675 + $0xe0] sm:$0xff] %vm8858, %v8531
        %8888 = vst.msk [vmem:[%s675 + $0xe8] sm:$0xff] %vm8858, %v8533
        %8889 = vst.msk [vmem:[%s675 + $0xf0] sm:$0xff] %vm8858, %v8535
        %8890 = vst.msk [vmem:[%s675 + $0xf8] sm:$0xff] %vm8858, %v8537
        %8891 = vst.msk [vmem:[%s675 + $0x100] sm:$0xff] %vm8858, %v8539
        %8892 = vst.msk [vmem:[%s675 + $0x108] sm:$0xff] %vm8858, %v8541
        %8893 = vst.msk [vmem:[%s675 + $0x110] sm:$0xff] %vm8858, %v8543
        %8894 = vst.msk [vmem:[%s675 + $0x118] sm:$0xff] %vm8858, %v8545
        %8895 = vst.msk [vmem:[%s675 + $0x120] sm:$0xff] %vm8858, %v8547
        %8896 = vst.msk [vmem:[%s675 + $0x128] sm:$0xff] %vm8858, %v8549
        %8897 = vst.msk [vmem:[%s675 + $0x130] sm:$0xff] %vm8858, %v8551
        %8898 = vst.msk [vmem:[%s675 + $0x138] sm:$0xff] %vm8858, %v8553
        %8899 = vst.msk [vmem:[%s675 + $0x140] sm:$0xff] %vm8858, %v8555
        %8900 = vst.msk [vmem:[%s675 + $0x148] sm:$0xff] %vm8858, %v8557
        %8901 = vst.msk [vmem:[%s675 + $0x150] sm:$0xff] %vm8858, %v8559
        %8902 = vst.msk [vmem:[%s675 + $0x158] sm:$0xff] %vm8858, %v8561
        %8903 = vst.msk [vmem:[%s675 + $0x160] sm:$0xff] %vm8858, %v8563
        %8904 = vst.msk [vmem:[%s675 + $0x168] sm:$0xff] %vm8858, %v8565
        %8905 = vst.msk [vmem:[%s675 + $0x170] sm:$0xff] %vm8858, %v8567
        %8906 = vst.msk [vmem:[%s675 + $0x178] sm:$0xff] %vm8858, %v8569
        %8907 = vst.msk [vmem:[%s675 + $0x180] sm:$0xff] %vm8858, %v8571
        %8908 = vst.msk [vmem:[%s675 + $0x188] sm:$0xff] %vm8858, %v8573
        %8909 = vst.msk [vmem:[%s675 + $0x190] sm:$0xff] %vm8858, %v8575
        %8910 = vst.msk [vmem:[%s675 + $0x198] sm:$0xff] %vm8858, %v8577
        %8911 = vst.msk [vmem:[%s675 + $0x1a0] sm:$0xff] %vm8858, %v8579
        %8912 = vst.msk [vmem:[%s675 + $0x1a8] sm:$0xff] %vm8858, %v8581
        %8913 = vst.msk [vmem:[%s675 + $0x1b0] sm:$0xff] %vm8858, %v8583
        %8914 = vst.msk [vmem:[%s675 + $0x1b8] sm:$0xff] %vm8858, %v8585
        %8915 = vst.msk [vmem:[%s675 + $0x1c0] sm:$0xff] %vm8858, %v8587
        %8916 = vst.msk [vmem:[%s675 + $0x1c8] sm:$0xff] %vm8858, %v8589
        %8917 = vst.msk [vmem:[%s675 + $0x1d0] sm:$0xff] %vm8858, %v8591
        %8918 = vst.msk [vmem:[%s675 + $0x1d8] sm:$0xff] %vm8858, %v8593
        %8919 = vst.msk [vmem:[%s675 + $0x1e0] sm:$0xff] %vm8858, %v8595
        %8920 = vst.msk [vmem:[%s675 + $0x1e8] sm:$0xff] %vm8858, %v8597
        %8921 = vst.msk [vmem:[%s675 + $0x1f0] sm:$0xff] %vm8858, %v8599
        %8922 = vst.msk [vmem:[%s675 + $0x1f8] sm:$0xff] %vm8858, %v8601
        %8923 = vst.msk [vmem:[%s675 + $0x200] sm:$0xff] %vm8858, %v8603
        %8924 = vst.msk [vmem:[%s675 + $0x208] sm:$0xff] %vm8858, %v8605
        %8925 = vst.msk [vmem:[%s675 + $0x210] sm:$0xff] %vm8858, %v8607
        %8926 = vst.msk [vmem:[%s675 + $0x218] sm:$0xff] %vm8858, %v8609
        %8927 = vst.msk [vmem:[%s675 + $0x220] sm:$0xff] %vm8858, %v8611
        %8928 = vst.msk [vmem:[%s675 + $0x228] sm:$0xff] %vm8858, %v8613
        %8929 = vst.msk [vmem:[%s675 + $0x230] sm:$0xff] %vm8858, %v8615
        %8930 = vst.msk [vmem:[%s675 + $0x238] sm:$0xff] %vm8858, %v8617
        %8931 = vst.msk [vmem:[%s675 + $0x240] sm:$0xff] %vm8858, %v8619
        %8932 = vst.msk [vmem:[%s675 + $0x248] sm:$0xff] %vm8858, %v8621
        %8933 = vst.msk [vmem:[%s675 + $0x250] sm:$0xff] %vm8858, %v8623
        %8934 = vst.msk [vmem:[%s675 + $0x258] sm:$0xff] %vm8858, %v8625
        %8935 = vst.msk [vmem:[%s675 + $0x260] sm:$0xff] %vm8858, %v8627
        %8936 = vst.msk [vmem:[%s675 + $0x268] sm:$0xff] %vm8858, %v8629
        %8937 = vst.msk [vmem:[%s675 + $0x270] sm:$0xff] %vm8858, %v8631
        %8938 = vst.msk [vmem:[%s675 + $0x278] sm:$0xff] %vm8858, %v8633
        %8939 = vst.msk [vmem:[%s675 + $0x280] sm:$0xff] %vm8858, %v8635
        %8940 = vst.msk [vmem:[%s675 + $0x288] sm:$0xff] %vm8858, %v8637
        %8941 = vst.msk [vmem:[%s675 + $0x290] sm:$0xff] %vm8858, %v8639
        %8942 = vst.msk [vmem:[%s675 + $0x298] sm:$0xff] %vm8858, %v8641
        %8943 = vst.msk [vmem:[%s675 + $0x2a0] sm:$0xff] %vm8858, %v8643
        %8944 = vst.msk [vmem:[%s675 + $0x2a8] sm:$0xff] %vm8858, %v8645
        %8945 = vst.msk [vmem:[%s675 + $0x2b0] sm:$0xff] %vm8858, %v8647
        %8946 = vst.msk [vmem:[%s675 + $0x2b8] sm:$0xff] %vm8858, %v8649
        %8947 = vst.msk [vmem:[%s675 + $0x2c0] sm:$0xff] %vm8858, %v8651
        %8948 = vst.msk [vmem:[%s675 + $0x2c8] sm:$0xff] %vm8858, %v8653
        %8949 = vst.msk [vmem:[%s675 + $0x2d0] sm:$0xff] %vm8858, %v8655
        %8950 = vst.msk [vmem:[%s675 + $0x2d8] sm:$0xff] %vm8858, %v8657
        %8951 = vst.msk [vmem:[%s675 + $0x2e0] sm:$0xff] %vm8858, %v8659
        %8952 = vst.msk [vmem:[%s675 + $0x2e8] sm:$0xff] %vm8858, %v8661
        %8953 = vst.msk [vmem:[%s675 + $0x2f0] sm:$0xff] %vm8858, %v8663
        %8954 = vst.msk [vmem:[%s675 + $0x2f8] sm:$0xff] %vm8858, %v8665
        %8955 = vst.msk [vmem:[%s675 + $0x300] sm:$0xff] %vm8858, %v8667
        %8956 = vst.msk [vmem:[%s675 + $0x308] sm:$0xff] %vm8858, %v8669
        %8957 = vst.msk [vmem:[%s675 + $0x310] sm:$0xff] %vm8858, %v8671
        %8958 = vst.msk [vmem:[%s675 + $0x318] sm:$0xff] %vm8858, %v8673
        %8959 = vst.msk [vmem:[%s675 + $0x320] sm:$0xff] %vm8858, %v8675
        %8960 = vst.msk [vmem:[%s675 + $0x328] sm:$0xff] %vm8858, %v8677
        %8961 = vst.msk [vmem:[%s675 + $0x330] sm:$0xff] %vm8858, %v8679
        %8962 = vst.msk [vmem:[%s675 + $0x338] sm:$0xff] %vm8858, %v8681
        %8963 = vst.msk [vmem:[%s675 + $0x340] sm:$0xff] %vm8858, %v8683
        %8964 = vst.msk [vmem:[%s675 + $0x348] sm:$0xff] %vm8858, %v8685
        %8965 = vst.msk [vmem:[%s675 + $0x350] sm:$0xff] %vm8858, %v8687
        %8966 = vst.msk [vmem:[%s675 + $0x358] sm:$0xff] %vm8858, %v8689
        %8967 = vst.msk [vmem:[%s675 + $0x360] sm:$0xff] %vm8858, %v8691
        %8968 = vst.msk [vmem:[%s675 + $0x368] sm:$0xff] %vm8858, %v8693
        %8969 = vst.msk [vmem:[%s675 + $0x370] sm:$0xff] %vm8858, %v8695
        %8970 = vst.msk [vmem:[%s675 + $0x378] sm:$0xff] %vm8858, %v8697
        %8971 = vst.msk [vmem:[%s675 + $0x380] sm:$0xff] %vm8858, %v8699
        %8972 = vst.msk [vmem:[%s675 + $0x388] sm:$0xff] %vm8858, %v8701
        %8973 = vst.msk [vmem:[%s675 + $0x390] sm:$0xff] %vm8858, %v8703
        %8974 = vst.msk [vmem:[%s675 + $0x398] sm:$0xff] %vm8858, %v8705
        %8975 = vst.msk [vmem:[%s675 + $0x3a0] sm:$0xff] %vm8858, %v8707
        %8976 = vst.msk [vmem:[%s675 + $0x3a8] sm:$0xff] %vm8858, %v8709
        %8977 = vst.msk [vmem:[%s675 + $0x3b0] sm:$0xff] %vm8858, %v8711
        %8978 = vst.msk [vmem:[%s675 + $0x3b8] sm:$0xff] %vm8858, %v8713
        %8979 = vst.msk [vmem:[%s675 + $0x3c0] sm:$0xff] %vm8858, %v8715
        %8980 = vst.msk [vmem:[%s675 + $0x3c8] sm:$0xff] %vm8858, %v8717
        %8981 = vst.msk [vmem:[%s675 + $0x3d0] sm:$0xff] %vm8858, %v8719
        %8982 = vst.msk [vmem:[%s675 + $0x3d8] sm:$0xff] %vm8858, %v8721
        %8983 = vst.msk [vmem:[%s675 + $0x3e0] sm:$0xff] %vm8858, %v8723
        %8984 = vst.msk [vmem:[%s675 + $0x3e8] sm:$0xff] %vm8858, %v8725
        %8985 = vst.msk [vmem:[%s675 + $0x3f0] sm:$0xff] %vm8858, %v8727
        %8986 = vst.msk [vmem:[%s675 + $0x3f8] sm:$0xff] %vm8858, %v8729
        %s8987 = smul.u32 128, %s35
        %p8988 = scmp.lt.s32.totalorder %s8987, 255
        %s8989 = scalar_select %p8988, %s8987, 255
        %s8990 = smul.addr %s8989, 8
        %s8991 = scalar_lea.vmem %s18, %s8990
        // Predicated region
        $region101: #{resnet_dual_tensor_goal_encoder.1} parent=91 // pred_check
          %p8992 = pneg %p451
        $region102: #{resnet_dual_tensor_goal_encoder.1} parent=91 // pred_check_branch
          %8994 = sbr.rel (%p8992) target = $region104
        $region103: #{resnet_dual_tensor_goal_encoder.1} parent=91 // pred_region
          %s8995 = smul.u32 128, %s35
        $region104: #{resnet_dual_tensor_goal_encoder.1} parent=91 // pred_fallthru
          _
      $region92: #{resnet_dual_tensor_goal_encoder.1} parent=5 // pred_fallthru
        _
      %p8996 = scmp.le.s32.totalorder 2, %s30
      // Predicated region
      $region105: #{resnet_dual_tensor_goal_encoder.1} parent=5 // pred_check
        %p8997 = pneg %p8996
      $region106: #{resnet_dual_tensor_goal_encoder.1} parent=5 // pred_check_branch
        %8999 = sbr.rel (%p8997) target = $region108
      $region107: #{resnet_dual_tensor_goal_encoder.1} parent=5 // pred_region
        %s9000 = ssub.s32 %s30, 2
        // Predicated region
        $region109: #{resnet_dual_tensor_goal_encoder.1} parent=107 // pred_check
          %p9001 = pneg %p457
        $region110: #{resnet_dual_tensor_goal_encoder.1} parent=107 // pred_check_branch
          %9003 = sbr.rel (%p9001) target = $region112
        $region111: #{resnet_dual_tensor_goal_encoder.1} parent=107 // pred_region
          %s9004 = smul.u32 128, %s36
          %p9005 = scmp.lt.s32.totalorder %s9004, 255
          %s9006 = scalar_select %p9005, %s9004, 255
          %s9007 = smul.addr %s9006, 8
          %s9008 = scalar_lea.vmem %s18, %s9007
        $region112: #{resnet_dual_tensor_goal_encoder.1} parent=107 // pred_fallthru
          _
      $region108: #{resnet_dual_tensor_goal_encoder.1} parent=5 // pred_fallthru
        _
    $region6: #{resnet_dual_tensor_goal_encoder.1} parent=1 // loop_footer
      %s34 = sadd.s32 1, %s30
    $region7: #{resnet_dual_tensor_goal_encoder.1} parent=1 // loop_footer_branch
      %29 = sbr.rel target = $region3
    $region8: #{resnet_dual_tensor_goal_encoder.1} parent=1 // loop_exit
      _
    %9009 = vsyncpa [#allocation3], 1
    %s9010 = scalar_lea.sflag [#allocation3], 1
    %9011 = vsyncpa %s9010, 1
    %9012 = vsyncpa [#allocation5], 1
    %s9013 = scalar_lea.sflag [#allocation5], 1
    %9014 = vsyncpa %s9013, 1

</llo_original>
